<compile_context>
chip_gen: v7x
topology: tpu7x:2x2x1
jax: 0.10.0
libtpu: 0.0.40
codegen_flags: <defaults>
</compile_context>

<pallas_src>
import functools

import numpy as np
import jax
import jax.numpy as jnp
from jax.experimental import pallas as pl
from jax.experimental.pallas import tpu as pltpu


# ----------------------------------------------------------------------------
# Fused kernel: one batch image per grid step (all fold regions at once)
# ----------------------------------------------------------------------------
def _cluster_kernel(x_ref, wf_ref, bf_ref, wv_ref, bv_ref, wp_ref, bp_ref,
                    p_ref, rmask_ref, ab_ref, o_ref, *, heads, inv_pool, n_pix):
    _, A1, A2, C = x_ref.shape
    RM = p_ref.shape[0]                       # fold_w*fold_h*proposal_w*proposal_h
    out_dim = bp_ref.shape[-1]

    alpha = ab_ref[0]                         # SMEM scalars
    beta = ab_ref[1]

    # --- pixel rows (raster order) + pooled center rows, all bf16 -----------
    x2d = x_ref[0].reshape(n_pix, C)                                   # [N, C] bf16
    pooled = jnp.dot(p_ref[...], x2d,
                     preferred_element_type=jnp.float32)               # [RM, C] bin sums
    rows = jnp.concatenate([x2d, pooled.astype(jnp.bfloat16)], axis=0)  # [N+RM, C]
    rows_b = jnp.broadcast_to(rows[None], (heads, n_pix + RM, C))

    # --- fused f / v 1x1 convs, head-batched on the MXU (bf16 in, f32 acc) --
    f_all = jnp.einsum('hrc,hcd->hrd', rows_b, wf_ref[...],
                       preferred_element_type=jnp.float32)             # [h, N+RM, hd]
    v_all = jnp.einsum('hrc,hcd->hrd', rows_b, wv_ref[...],
                       preferred_element_type=jnp.float32)
    feat = f_all[:, :n_pix, :] + bf_ref[...]                           # [h, N, hd]
    val = v_all[:, :n_pix, :] + bv_ref[...]
    feat_c = f_all[:, n_pix:, :] * inv_pool + bf_ref[...]              # [h, RM, hd]
    val_c = v_all[:, n_pix:, :] * inv_pool + bv_ref[...]

    # --- cosine similarity + sigmoid gate, masked to each pixel's region ----
    # F.normalize(eps=1e-12)  ->  x * rsqrt(max(||x||^2, 1e-24))   (EUP rsqrt)
    fn = feat * jax.lax.rsqrt(
        jnp.maximum(jnp.sum(feat * feat, axis=-1, keepdims=True), 1e-24))
    cn = feat_c * jax.lax.rsqrt(
        jnp.maximum(jnp.sum(feat_c * feat_c, axis=-1, keepdims=True), 1e-24))
    raw = jnp.einsum('hmd,hnd->hmn', cn, fn,
                     preferred_element_type=jnp.float32)               # [h, RM, N]
    sim = jax.nn.sigmoid(beta + alpha * raw) * rmask_ref[...][None]    # 0 off-region

    # --- hard (first-)argmax assignment of every pixel to one of its region's
    #     centers (global masked argmax is exactly equivalent) ---------------
    m_iota = jax.lax.broadcasted_iota(jnp.int32, sim.shape, 1)
    smax = jnp.max(sim, axis=1, keepdims=True)                         # [h, 1, N]
    first = jnp.min(jnp.where(sim >= smax, m_iota, RM), axis=1, keepdims=True)
    simm = jnp.where(m_iota == first, sim, 0.0)                        # [h, RM, N]

    # --- aggregate values onto centers, normalize, dispatch back ------------
    agg = jnp.einsum('hmn,hnd->hmd', simm, val,
                     preferred_element_type=jnp.float32) + val_c       # [h, RM, hd]
    agg = agg / (jnp.sum(simm, axis=-1, keepdims=True) + 1.0)
    disp = jnp.einsum('hmn,hmd->hnd', simm, agg,
                      preferred_element_type=jnp.float32)              # [h, N, hd]

    # --- proj 1x1 conv (head-batched, summed over heads) --------------------
    proj = jnp.einsum('hnd,hdo->hno', disp.astype(jnp.bfloat16), wp_ref[...],
                      preferred_element_type=jnp.float32)              # [h, N, out]
    out = jnp.sum(proj, axis=0) + bp_ref[...]                          # [N, out]

    o_ref[0] = out.reshape(A1, A2, out_dim).astype(o_ref.dtype)


# ----------------------------------------------------------------------------
# Forward wrapper: channels-last in, channels-last out, no HBM intermediates
# ----------------------------------------------------------------------------
def cluster_forward(x, params, *, heads, head_dim,
                    proposal_w, proposal_h, fold_w, fold_h):
    """x: [B, A1, A2, C].  Returns [B, A1, A2, out_dim] (float32)."""
    B, A1, A2, C = x.shape
    out_dim = params["proj_w"].shape[1]

    # PyTorch only folds when BOTH fold factors exceed 1.
    if not (fold_w > 1 and fold_h > 1):
        fold_w = fold_h = 1
    assert A2 % fold_w == 0 and A1 % fold_h == 0
    wl, hl = A2 // fold_w, A1 // fold_h          # per-region conv-spatial sizes
    assert wl % proposal_w == 0 and hl % proposal_h == 0
    kw, kh = wl // proposal_w, hl // proposal_h
    M = proposal_w * proposal_h
    R = fold_w * fold_h
    RM = R * M
    n_pix = A1 * A2

    # Constant membership matrices over raster-ordered pixels (row = a1*A2+a2).
    a1 = np.arange(A1)
    a2 = np.arange(A2)
    f2 = a1 // hl                                # region index along A1 (h)
    ph = (a1 % hl) // kh                         # pooling bin along h
    f1 = a2 // wl                                # region index along A2 (w)
    pw = (a2 % wl) // kw                         # pooling bin along w
    r_map = f1[None, :] * fold_h + f2[:, None]                    # [A1, A2]
    m_map = pw[None, :] * proposal_h + ph[:, None]                # torch flatten order
    rm_flat = (r_map * M + m_map).reshape(-1)
    reg_flat = r_map.reshape(-1)
    P01 = np.zeros((RM, n_pix), np.float32)                       # 0/1 bin sums
    P01[rm_flat, np.arange(n_pix)] = 1.0
    region_mask = (reg_flat[None, :] ==
                   (np.arange(RM) // M)[:, None]).astype(np.float32)

    # Head-major weights (bf16 for the MXU); f32 biases for the accumulate.
    w_f = params["f_w"].reshape(C, heads, head_dim).transpose(1, 0, 2).astype(jnp.bfloat16)
    w_v = params["v_w"].reshape(C, heads, head_dim).transpose(1, 0, 2).astype(jnp.bfloat16)
    b_f = params["f_b"].reshape(heads, 1, head_dim).astype(jnp.float32)
    b_v = params["v_b"].reshape(heads, 1, head_dim).astype(jnp.float32)
    w_p = params["proj_w"].reshape(heads, head_dim, out_dim).astype(jnp.bfloat16)
    b_p = params["proj_b"].reshape(1, out_dim).astype(jnp.float32)
    ab = jnp.concatenate([params["sim_alpha"].reshape(1),
                          params["sim_beta"].reshape(1)]).astype(jnp.float32)

    kernel = functools.partial(_cluster_kernel, heads=heads,
                               inv_pool=1.0 / float(kw * kh), n_pix=n_pix)

    return pl.pallas_call(
        kernel,
        out_shape=jax.ShapeDtypeStruct((B, A1, A2, out_dim), jnp.float32),
        grid=(B,),
        in_specs=[
            pl.BlockSpec((1, A1, A2, C), lambda b: (b, 0, 0, 0)),
            pl.BlockSpec((heads, C, head_dim), lambda b: (0, 0, 0)),
            pl.BlockSpec((heads, 1, head_dim), lambda b: (0, 0, 0)),
            pl.BlockSpec((heads, C, head_dim), lambda b: (0, 0, 0)),
            pl.BlockSpec((heads, 1, head_dim), lambda b: (0, 0, 0)),
            pl.BlockSpec((heads, head_dim, out_dim), lambda b: (0, 0, 0)),
            pl.BlockSpec((1, out_dim), lambda b: (0, 0)),
            pl.BlockSpec((RM, n_pix), lambda b: (0, 0)),
            pl.BlockSpec((RM, n_pix), lambda b: (0, 0)),
            pl.BlockSpec(memory_space=pltpu.MemorySpace.SMEM),
        ],
        out_specs=pl.BlockSpec((1, A1, A2, out_dim), lambda b: (b, 0, 0, 0)),
        compiler_params=pltpu.CompilerParams(
            dimension_semantics=("parallel",),
            vmem_limit_bytes=48 * 1024 * 1024),   # headroom, v7x-safe (<64 MiB)
    )(x.astype(jnp.bfloat16), w_f, b_f, w_v, b_v, w_p, b_p,
      jnp.asarray(P01, jnp.bfloat16), jnp.asarray(region_mask), ab)


# ----------------------------------------------------------------------------
# Deterministic parameter init + driver
# ----------------------------------------------------------------------------
def init_params(key, dim, out_dim, heads, head_dim):
    D = heads * head_dim
    k = jax.random.split(key, 6)
    return {
        "f_w": jax.random.normal(k[0], (dim, D), jnp.float32) * 0.1,
        "f_b": jax.random.normal(k[1], (D,), jnp.float32) * 0.1,
        "v_w": jax.random.normal(k[2], (dim, D), jnp.float32) * 0.1,
        "v_b": jax.random.normal(k[3], (D,), jnp.float32) * 0.1,
        "proj_w": jax.random.normal(k[4], (D, out_dim), jnp.float32) * 0.1,
        "proj_b": jax.random.normal(k[5], (out_dim,), jnp.float32) * 0.1,
        "sim_alpha": jnp.ones((1,), jnp.float32),    # torch.ones(1)
        "sim_beta": jnp.zeros((1,), jnp.float32),    # torch.zeros(1)
    }


if __name__ == "__main__":
    # Small config consistent with the module (default heads=4, head_dim=24).
    B, A1, A2, dim = 2, 16, 16, 32
    out_dim = 32
    heads, head_dim = 4, 24
    proposal_w = proposal_h = 2
    fold_w = fold_h = 2

    key = jax.random.PRNGKey(0)
    kx, kp = jax.random.split(key)
    x = jax.random.normal(kx, (B, A1, A2, dim), jnp.float32)
    params = init_params(kp, dim, out_dim, heads, head_dim)

    fwd = jax.jit(functools.partial(
        cluster_forward,
        heads=heads, head_dim=head_dim,
        proposal_w=proposal_w, proposal_h=proposal_h,
        fold_w=fold_w, fold_h=fold_h))

    y = fwd(x, params)
    jax.block_until_ready(y)
    assert y.shape == (B, A1, A2, out_dim), y.shape
    assert bool(jnp.all(jnp.isfinite(y)))
    print("KERNEL_OK")
</pallas_src>

<mosaic_0001>
module attributes {stable_mosaic.version = 11 : i64} {
  func.func @_cluster_kernel(%arg0: i32, %arg1: memref<1x16x16x32xbf16, #tpu.memory_space<vmem>>, %arg2: memref<4x32x24xbf16, #tpu.memory_space<vmem>>, %arg3: memref<4x1x24xf32, #tpu.memory_space<vmem>>, %arg4: memref<4x32x24xbf16, #tpu.memory_space<vmem>>, %arg5: memref<4x1x24xf32, #tpu.memory_space<vmem>>, %arg6: memref<4x24x32xbf16, #tpu.memory_space<vmem>>, %arg7: memref<1x32xf32, #tpu.memory_space<vmem>>, %arg8: memref<16x256xbf16, #tpu.memory_space<vmem>>, %arg9: memref<16x256xf32, #tpu.memory_space<vmem>>, %arg10: memref<2xf32, #tpu.memory_space<smem>>, %arg11: memref<1x16x16x32xf32, #tpu.memory_space<vmem>>) attributes {dimension_semantics = [#tpu.dimension_semantics<parallel>], iteration_bounds = array<i64: 2>, scalar_prefetch = 0 : i64, scratch_operands = 0 : i64, tpu.core_type = #tpu.core_type<tc>, window_params = [{transform_indices = @transform_0, window_bounds = array<i64: 1, 16, 16, 32>}, {pipeline_mode = #tpu.pipeline_mode<synchronous>, transform_indices = @transform_1, window_bounds = array<i64: 4, 32, 24>}, {pipeline_mode = #tpu.pipeline_mode<synchronous>, transform_indices = @transform_2, window_bounds = array<i64: 4, 1, 24>}, {pipeline_mode = #tpu.pipeline_mode<synchronous>, transform_indices = @transform_3, window_bounds = array<i64: 4, 32, 24>}, {pipeline_mode = #tpu.pipeline_mode<synchronous>, transform_indices = @transform_4, window_bounds = array<i64: 4, 1, 24>}, {pipeline_mode = #tpu.pipeline_mode<synchronous>, transform_indices = @transform_5, window_bounds = array<i64: 4, 24, 32>}, {pipeline_mode = #tpu.pipeline_mode<synchronous>, transform_indices = @transform_6, window_bounds = array<i64: 1, 32>}, {pipeline_mode = #tpu.pipeline_mode<synchronous>, transform_indices = @transform_7, window_bounds = array<i64: 16, 256>}, {pipeline_mode = #tpu.pipeline_mode<synchronous>, transform_indices = @transform_8, window_bounds = array<i64: 16, 256>}, {transform_indices = @transform_9, window_bounds = array<i64: 2>}, {transform_indices = @transform_10, window_bounds = array<i64: 1, 16, 16, 32>}]} {
    %c0 = arith.constant 0 : index
    %0 = memref.load %arg10[%c0] : memref<2xf32, #tpu.memory_space<smem>>
    %c1 = arith.constant 1 : index
    %1 = memref.load %arg10[%c1] : memref<2xf32, #tpu.memory_space<smem>>
    %c0_0 = arith.constant 0 : index
    %c0_1 = arith.constant 0 : index
    %c0_2 = arith.constant 0 : index
    %c0_3 = arith.constant 0 : index
    %2 = vector.load %arg1[%c0_0, %c0_1, %c0_2, %c0_3] : memref<1x16x16x32xbf16, #tpu.memory_space<vmem>>, vector<1x16x16x32xbf16>
    %3 = vector.shape_cast %2 : vector<1x16x16x32xbf16> to vector<16x16x32xbf16>
    %4 = vector.shape_cast %3 : vector<16x16x32xbf16> to vector<256x32xbf16>
    %c0_4 = arith.constant 0 : index
    %c0_5 = arith.constant 0 : index
    %5 = vector.load %arg8[%c0_4, %c0_5] : memref<16x256xbf16, #tpu.memory_space<vmem>>, vector<16x256xbf16>
    %cst = arith.constant dense<0.000000e+00> : vector<16x32xf32>
    %6 = tpu.matmul %5, %4, %cst {dimension_numbers = #tpu.dot_dimension_numbers<[1], [0], [0], [1], [0, 0, 1, 1], [], []>} : vector<16x256xbf16>, vector<256x32xbf16>, vector<16x32xf32> -> vector<16x32xf32>
    %7 = arith.truncf %6 : vector<16x32xf32> to vector<16x32xbf16>
    %8 = tpu.concatenate %4, %7 in 0 : vector<256x32xbf16>, vector<16x32xbf16> -> vector<272x32xbf16>
    %9 = vector.shape_cast %8 : vector<272x32xbf16> to vector<1x272x32xbf16>
    %10 = vector.shape_cast %9 : vector<1x272x32xbf16> to vector<1x272x32xbf16>
    %11 = vector.broadcast %10 : vector<1x272x32xbf16> to vector<4x272x32xbf16>
    %c0_6 = arith.constant 0 : index
    %c0_7 = arith.constant 0 : index
    %c0_8 = arith.constant 0 : index
    %12 = vector.load %arg2[%c0_6, %c0_7, %c0_8] : memref<4x32x24xbf16, #tpu.memory_space<vmem>>, vector<4x32x24xbf16>
    "tpu.trace_start"() <{level = 10 : i32, message = "hrc,hcd->hrd"}> : () -> ()
    %cst_9 = arith.constant dense<0.000000e+00> : vector<4x272x24xf32>
    %13 = tpu.matmul %11, %12, %cst_9 {dimension_numbers = #tpu.dot_dimension_numbers<[2], [1], [1], [2], [0, 0, 0, 1, 1, 2], [0], [0]>} : vector<4x272x32xbf16>, vector<4x32x24xbf16>, vector<4x272x24xf32> -> vector<4x272x24xf32>
    "tpu.trace_stop"() : () -> ()
    %c0_10 = arith.constant 0 : index
    %c0_11 = arith.constant 0 : index
    %c0_12 = arith.constant 0 : index
    %14 = vector.load %arg4[%c0_10, %c0_11, %c0_12] : memref<4x32x24xbf16, #tpu.memory_space<vmem>>, vector<4x32x24xbf16>
    "tpu.trace_start"() <{level = 10 : i32, message = "hrc,hcd->hrd"}> : () -> ()
    %cst_13 = arith.constant dense<0.000000e+00> : vector<4x272x24xf32>
    %15 = tpu.matmul %11, %14, %cst_13 {dimension_numbers = #tpu.dot_dimension_numbers<[2], [1], [1], [2], [0, 0, 0, 1, 1, 2], [0], [0]>} : vector<4x272x32xbf16>, vector<4x32x24xbf16>, vector<4x272x24xf32> -> vector<4x272x24xf32>
    "tpu.trace_stop"() : () -> ()
    %16 = vector.extract_strided_slice %13 {offsets = [0, 0, 0], sizes = [4, 256, 24], strides = [1, 1, 1]} : vector<4x272x24xf32> to vector<4x256x24xf32>
    %c0_14 = arith.constant 0 : index
    %c0_15 = arith.constant 0 : index
    %c0_16 = arith.constant 0 : index
    %17 = vector.load %arg3[%c0_14, %c0_15, %c0_16] : memref<4x1x24xf32, #tpu.memory_space<vmem>>, vector<4x1x24xf32>
    %18 = vector.broadcast %17 : vector<4x1x24xf32> to vector<4x256x24xf32>
    %19 = arith.addf %16, %18 : vector<4x256x24xf32>
    %20 = vector.extract_strided_slice %15 {offsets = [0, 0, 0], sizes = [4, 256, 24], strides = [1, 1, 1]} : vector<4x272x24xf32> to vector<4x256x24xf32>
    %c0_17 = arith.constant 0 : index
    %c0_18 = arith.constant 0 : index
    %c0_19 = arith.constant 0 : index
    %21 = vector.load %arg5[%c0_17, %c0_18, %c0_19] : memref<4x1x24xf32, #tpu.memory_space<vmem>>, vector<4x1x24xf32>
    %22 = vector.broadcast %21 : vector<4x1x24xf32> to vector<4x256x24xf32>
    %23 = arith.addf %20, %22 : vector<4x256x24xf32>
    %24 = vector.extract_strided_slice %13 {offsets = [0, 256, 0], sizes = [4, 16, 24], strides = [1, 1, 1]} : vector<4x272x24xf32> to vector<4x16x24xf32>
    %cst_20 = arith.constant 6.250000e-02 : f32
    %25 = vector.broadcast %cst_20 : f32 to vector<4x16x24xf32>
    %26 = arith.mulf %24, %25 : vector<4x16x24xf32>
    %c0_21 = arith.constant 0 : index
    %c0_22 = arith.constant 0 : index
    %c0_23 = arith.constant 0 : index
    %27 = vector.load %arg3[%c0_21, %c0_22, %c0_23] : memref<4x1x24xf32, #tpu.memory_space<vmem>>, vector<4x1x24xf32>
    %28 = vector.broadcast %27 : vector<4x1x24xf32> to vector<4x16x24xf32>
    %29 = arith.addf %26, %28 : vector<4x16x24xf32>
    %30 = vector.extract_strided_slice %15 {offsets = [0, 256, 0], sizes = [4, 16, 24], strides = [1, 1, 1]} : vector<4x272x24xf32> to vector<4x16x24xf32>
    %cst_24 = arith.constant 6.250000e-02 : f32
    %31 = vector.broadcast %cst_24 : f32 to vector<4x16x24xf32>
    %32 = arith.mulf %30, %31 : vector<4x16x24xf32>
    %c0_25 = arith.constant 0 : index
    %c0_26 = arith.constant 0 : index
    %c0_27 = arith.constant 0 : index
    %33 = vector.load %arg5[%c0_25, %c0_26, %c0_27] : memref<4x1x24xf32, #tpu.memory_space<vmem>>, vector<4x1x24xf32>
    %34 = vector.broadcast %33 : vector<4x1x24xf32> to vector<4x16x24xf32>
    %35 = arith.addf %32, %34 : vector<4x16x24xf32>
    %36 = arith.mulf %19, %19 : vector<4x256x24xf32>
    %cst_28 = arith.constant dense<0.000000e+00> : vector<4x256xf32>
    %37 = vector.multi_reduction <add>, %36, %cst_28 [2] : vector<4x256x24xf32> to vector<4x256xf32>
    %38 = vector.shape_cast %37 : vector<4x256xf32> to vector<4x256x1xf32>
    %cst_29 = arith.constant 1.000000e-24 : f32
    %39 = vector.broadcast %cst_29 : f32 to vector<4x256x1xf32>
    %40 = arith.maximumf %38, %39 : vector<4x256x1xf32>
    %41 = math.rsqrt %40 : vector<4x256x1xf32>
    %42 = vector.broadcast %41 : vector<4x256x1xf32> to vector<4x256x24xf32>
    %43 = arith.mulf %19, %42 : vector<4x256x24xf32>
    %44 = arith.mulf %29, %29 : vector<4x16x24xf32>
    %cst_30 = arith.constant dense<0.000000e+00> : vector<4x16xf32>
    %45 = vector.multi_reduction <add>, %44, %cst_30 [2] : vector<4x16x24xf32> to vector<4x16xf32>
    %46 = vector.shape_cast %45 : vector<4x16xf32> to vector<4x16x1xf32>
    %cst_31 = arith.constant 1.000000e-24 : f32
    %47 = vector.broadcast %cst_31 : f32 to vector<4x16x1xf32>
    %48 = arith.maximumf %46, %47 : vector<4x16x1xf32>
    %49 = math.rsqrt %48 : vector<4x16x1xf32>
    %50 = vector.broadcast %49 : vector<4x16x1xf32> to vector<4x16x24xf32>
    %51 = arith.mulf %29, %50 : vector<4x16x24xf32>
    "tpu.trace_start"() <{level = 10 : i32, message = "hmd,hnd->hmn"}> : () -> ()
    %cst_32 = arith.constant dense<0.000000e+00> : vector<4x16x256xf32>
    %52 = tpu.matmul %51, %43, %cst_32 {dimension_numbers = #tpu.dot_dimension_numbers<[2], [2], [1], [1], [0, 0, 0, 1, 1, 1], [0], [0]>} : vector<4x16x24xf32>, vector<4x256x24xf32>, vector<4x16x256xf32> -> vector<4x16x256xf32>
    "tpu.trace_stop"() : () -> ()
    %53 = vector.broadcast %0 : f32 to vector<4x16x256xf32>
    %54 = arith.mulf %53, %52 : vector<4x16x256xf32>
    %55 = vector.broadcast %1 : f32 to vector<4x16x256xf32>
    %56 = arith.addf %55, %54 : vector<4x16x256xf32>
    %57 = arith.negf %56 : vector<4x16x256xf32>
    %58 = math.exp %57 : vector<4x16x256xf32>
    %cst_33 = arith.constant 1.000000e+00 : f32
    %59 = vector.broadcast %cst_33 : f32 to vector<4x16x256xf32>
    %60 = arith.addf %59, %58 : vector<4x16x256xf32>
    %61 = arith.divf %59, %60 : vector<4x16x256xf32>
    %c0_34 = arith.constant 0 : index
    %c0_35 = arith.constant 0 : index
    %62 = vector.load %arg9[%c0_34, %c0_35] : memref<16x256xf32, #tpu.memory_space<vmem>>, vector<16x256xf32>
    %63 = vector.shape_cast %62 : vector<16x256xf32> to vector<1x16x256xf32>
    %64 = vector.broadcast %63 : vector<1x16x256xf32> to vector<4x16x256xf32>
    %65 = arith.mulf %61, %64 : vector<4x16x256xf32>
    %66 = tpu.iota {dimensions = array<i32: 1>} : vector<4x16x256xi32>
    %cst_36 = arith.constant dense<0xFF800000> : vector<4x256xf32>
    %67 = vector.multi_reduction <maximumf>, %65, %cst_36 [1] : vector<4x16x256xf32> to vector<4x256xf32>
    %68 = vector.shape_cast %67 : vector<4x256xf32> to vector<4x1x256xf32>
    %69 = vector.broadcast %68 : vector<4x1x256xf32> to vector<4x16x256xf32>
    %70 = arith.cmpf oge, %65, %69 : vector<4x16x256xf32>
    %c16_i32 = arith.constant 16 : i32
    %71 = vector.broadcast %c16_i32 : i32 to vector<4x16x256xi32>
    %72 = arith.select %70, %66, %71 : vector<4x16x256xi1>, vector<4x16x256xi32>
    %cst_37 = arith.constant dense<2147483647> : vector<4x256xi32>
    %73 = vector.multi_reduction <minsi>, %72, %cst_37 [1] : vector<4x16x256xi32> to vector<4x256xi32>
    %74 = vector.shape_cast %73 : vector<4x256xi32> to vector<4x1x256xi32>
    %75 = vector.broadcast %74 : vector<4x1x256xi32> to vector<4x16x256xi32>
    %76 = arith.cmpi eq, %66, %75 : vector<4x16x256xi32>
    %cst_38 = arith.constant 0.000000e+00 : f32
    %77 = vector.broadcast %cst_38 : f32 to vector<4x16x256xf32>
    %78 = arith.select %76, %65, %77 : vector<4x16x256xi1>, vector<4x16x256xf32>
    "tpu.trace_start"() <{level = 10 : i32, message = "hmn,hnd->hmd"}> : () -> ()
    %cst_39 = arith.constant dense<0.000000e+00> : vector<4x16x24xf32>
    %79 = tpu.matmul %78, %23, %cst_39 {dimension_numbers = #tpu.dot_dimension_numbers<[2], [1], [1], [2], [0, 0, 0, 1, 1, 2], [0], [0]>} : vector<4x16x256xf32>, vector<4x256x24xf32>, vector<4x16x24xf32> -> vector<4x16x24xf32>
    "tpu.trace_stop"() : () -> ()
    %80 = arith.addf %79, %35 : vector<4x16x24xf32>
    %cst_40 = arith.constant dense<0.000000e+00> : vector<4x16xf32>
    %81 = vector.multi_reduction <add>, %78, %cst_40 [2] : vector<4x16x256xf32> to vector<4x16xf32>
    %82 = vector.shape_cast %81 : vector<4x16xf32> to vector<4x16x1xf32>
    %cst_41 = arith.constant 1.000000e+00 : f32
    %83 = vector.broadcast %cst_41 : f32 to vector<4x16x1xf32>
    %84 = arith.addf %82, %83 : vector<4x16x1xf32>
    %85 = vector.broadcast %84 : vector<4x16x1xf32> to vector<4x16x24xf32>
    %86 = arith.divf %80, %85 : vector<4x16x24xf32>
    "tpu.trace_start"() <{level = 10 : i32, message = "hmn,hmd->hnd"}> : () -> ()
    %cst_42 = arith.constant dense<0.000000e+00> : vector<4x256x24xf32>
    %87 = tpu.matmul %78, %86, %cst_42 {dimension_numbers = #tpu.dot_dimension_numbers<[1], [1], [2], [2], [0, 0, 0, 2, 1, 2], [0], [0]>} : vector<4x16x256xf32>, vector<4x16x24xf32>, vector<4x256x24xf32> -> vector<4x256x24xf32>
    "tpu.trace_stop"() : () -> ()
    %88 = arith.truncf %87 : vector<4x256x24xf32> to vector<4x256x24xbf16>
    %c0_43 = arith.constant 0 : index
    %c0_44 = arith.constant 0 : index
    %c0_45 = arith.constant 0 : index
    %89 = vector.load %arg6[%c0_43, %c0_44, %c0_45] : memref<4x24x32xbf16, #tpu.memory_space<vmem>>, vector<4x24x32xbf16>
    "tpu.trace_start"() <{level = 10 : i32, message = "hnd,hdo->hno"}> : () -> ()
    %cst_46 = arith.constant dense<0.000000e+00> : vector<4x256x32xf32>
    %90 = tpu.matmul %88, %89, %cst_46 {dimension_numbers = #tpu.dot_dimension_numbers<[2], [1], [1], [2], [0, 0, 0, 1, 1, 2], [0], [0]>} : vector<4x256x24xbf16>, vector<4x24x32xbf16>, vector<4x256x32xf32> -> vector<4x256x32xf32>
    "tpu.trace_stop"() : () -> ()
    %cst_47 = arith.constant dense<0.000000e+00> : vector<256x32xf32>
    %91 = vector.multi_reduction <add>, %90, %cst_47 [0] : vector<4x256x32xf32> to vector<256x32xf32>
    %c0_48 = arith.constant 0 : index
    %c0_49 = arith.constant 0 : index
    %92 = vector.load %arg7[%c0_48, %c0_49] : memref<1x32xf32, #tpu.memory_space<vmem>>, vector<1x32xf32>
    %93 = vector.broadcast %92 : vector<1x32xf32> to vector<256x32xf32>
    %94 = arith.addf %91, %93 : vector<256x32xf32>
    %95 = vector.shape_cast %94 : vector<256x32xf32> to vector<16x16x32xf32>
    %c0_50 = arith.constant 0 : index
    %c0_51 = arith.constant 0 : index
    %c0_52 = arith.constant 0 : index
    %c0_53 = arith.constant 0 : index
    %96 = vector.load %arg11[%c0_50, %c0_51, %c0_52, %c0_53] : memref<1x16x16x32xf32, #tpu.memory_space<vmem>>, vector<1x16x16x32xf32>
    %97 = vector.shape_cast %96 : vector<1x16x16x32xf32> to vector<16x16x32xf32>
    %98 = vector.shape_cast %95 : vector<16x16x32xf32> to vector<1x16x16x32xf32>
    tpu.vector_store %arg11[%c0_50, %c0_51, %c0_52, %c0_53], %98 {strides = array<i32>} : memref<1x16x16x32xf32, #tpu.memory_space<vmem>>, vector<1x16x16x32xf32>,
    return
  }
  func.func @transform_0(%arg0: i32) -> (i32, i32, i32, i32) {
    %c0_i32 = arith.constant 0 : i32
    %c0_i32_0 = arith.constant 0 : i32
    %c0_i32_1 = arith.constant 0 : i32
    %c0_i32_2 = arith.constant 0 : i32
    return %arg0, %c0_i32, %c0_i32_0, %c0_i32_1 : i32, i32, i32, i32
  }
  func.func @transform_1(%arg0: i32) -> (i32, i32, i32) {
    %c0_i32 = arith.constant 0 : i32
    %c0_i32_0 = arith.constant 0 : i32
    %c0_i32_1 = arith.constant 0 : i32
    %c0_i32_2 = arith.constant 0 : i32
    return %c0_i32, %c0_i32_0, %c0_i32_1 : i32, i32, i32
  }
  func.func @transform_2(%arg0: i32) -> (i32, i32, i32) {
    %c0_i32 = arith.constant 0 : i32
    %c0_i32_0 = arith.constant 0 : i32
    %c0_i32_1 = arith.constant 0 : i32
    %c0_i32_2 = arith.constant 0 : i32
    return %c0_i32, %c0_i32_0, %c0_i32_1 : i32, i32, i32
  }
  func.func @transform_3(%arg0: i32) -> (i32, i32, i32) {
    %c0_i32 = arith.constant 0 : i32
    %c0_i32_0 = arith.constant 0 : i32
    %c0_i32_1 = arith.constant 0 : i32
    %c0_i32_2 = arith.constant 0 : i32
    return %c0_i32, %c0_i32_0, %c0_i32_1 : i32, i32, i32
  }
  func.func @transform_4(%arg0: i32) -> (i32, i32, i32) {
    %c0_i32 = arith.constant 0 : i32
    %c0_i32_0 = arith.constant 0 : i32
    %c0_i32_1 = arith.constant 0 : i32
    %c0_i32_2 = arith.constant 0 : i32
    return %c0_i32, %c0_i32_0, %c0_i32_1 : i32, i32, i32
  }
  func.func @transform_5(%arg0: i32) -> (i32, i32, i32) {
    %c0_i32 = arith.constant 0 : i32
    %c0_i32_0 = arith.constant 0 : i32
    %c0_i32_1 = arith.constant 0 : i32
    %c0_i32_2 = arith.constant 0 : i32
    return %c0_i32, %c0_i32_0, %c0_i32_1 : i32, i32, i32
  }
  func.func @transform_6(%arg0: i32) -> (i32, i32) {
    %c0_i32 = arith.constant 0 : i32
    %c0_i32_0 = arith.constant 0 : i32
    %c0_i32_1 = arith.constant 0 : i32
    return %c0_i32, %c0_i32_0 : i32, i32
  }
  func.func @transform_7(%arg0: i32) -> (i32, i32) {
    %c0_i32 = arith.constant 0 : i32
    %c0_i32_0 = arith.constant 0 : i32
    %c0_i32_1 = arith.constant 0 : i32
    return %c0_i32, %c0_i32_0 : i32, i32
  }
  func.func @transform_8(%arg0: i32) -> (i32, i32) {
    %c0_i32 = arith.constant 0 : i32
    %c0_i32_0 = arith.constant 0 : i32
    %c0_i32_1 = arith.constant 0 : i32
    return %c0_i32, %c0_i32_0 : i32, i32
  }
  func.func @transform_9(%arg0: i32) -> i32 {
    %c0_i32 = arith.constant 0 : i32
    %c0_i32_0 = arith.constant 0 : i32
    return %c0_i32 : i32
  }
  func.func @transform_10(%arg0: i32) -> (i32, i32, i32, i32) {
    %c0_i32 = arith.constant 0 : i32
    %c0_i32_0 = arith.constant 0 : i32
    %c0_i32_1 = arith.constant 0 : i32
    %c0_i32_2 = arith.constant 0 : i32
    return %arg0, %c0_i32, %c0_i32_0, %c0_i32_1 : i32, i32, i32, i32
  }
}

</mosaic_0001>

<llo_original>
// kernel: cluster_forward.1
$region0: #{cluster_forward.1}
  #allocation0 [shape = 'u32[]', space=smem, size = 0x4, offset = 0x4, fixed_abs, tag = 'smem constant byte address 0x4 - core index']
  #allocation1 [shape = 'u32[144,128]{1,0:T(1,128)}', space=vmem, size = 0x12000, scoped, tag = 'internal scratch']
  %s0 = inlined_call_operand.vmem [shape: bf16[2,16,16,32], index: 0, kind: input, shape index: {}]
  %s1 = inlined_call_operand.vmem [shape: bf16[4,32,24], index: 1, kind: input, shape index: {}]
  %s2 = inlined_call_operand.vmem [shape: f32[4,1,24], index: 2, kind: input, shape index: {}]
  %s3 = inlined_call_operand.vmem [shape: bf16[4,32,24], index: 3, kind: input, shape index: {}]
  %s4 = inlined_call_operand.vmem [shape: f32[4,1,24], index: 4, kind: input, shape index: {}]
  %s5 = inlined_call_operand.vmem [shape: bf16[4,24,32], index: 5, kind: input, shape index: {}]
  %s6 = inlined_call_operand.vmem [shape: f32[1,32], index: 6, kind: input, shape index: {}]
  %s7 = inlined_call_operand.vmem [shape: bf16[16,256], index: 7, kind: input, shape index: {}]
  %s8 = inlined_call_operand.vmem [shape: f32[16,256], index: 8, kind: input, shape index: {}]
  %s9 = inlined_call_operand.vmem [shape: f32[2], index: 9, kind: input, shape index: {}]
  %s10 = inlined_call_operand.hbm [shape: f32[2,16,16,32], index: 10, kind: output, shape index: {}]
  %s11 = sld [smem:[#allocation0]]
  $region77: #{cluster_forward.1} parent=0
    _
  %s13 = ssub.s32 1, %s11
  %s14 = scalar_select 0, %s13, %s11
  $region1: #{cluster_forward.1} parent=0
    #allocation2 [shape = 'u8[512]{0}', space=smem, size = 0x200, scoped, tag = 'input window, operand 9, single buffered']
    #allocation3 [shape = 's32[2]{0}', space=sflag, size = 0x8, scoped, tag = 'scoped memory for cluster_forward.1']
    #allocation4 [shape = 's32[2]{0}', space=sflag, size = 0x8, scoped, tag = 'scoped memory for cluster_forward.1']
    #allocation5 [shape = 'u8[262144]{0}', space=vmem, size = 0x40000, scoped, tag = 'output window, operand 0']
    %15 = vsyncpa [#allocation4], 0
    %16 = vsyncpa [#allocation3], 0
    %s17 = scalar_lea.sflag [#allocation3], 1
    %18 = vsyncpa %s17, 0
    loop: start=0, step=1, limit=4
    $region2: #{cluster_forward.1} parent=1 // loop_pre_header
      _
    $region3: #{cluster_forward.1} parent=1 // loop_header
      %s20 = sphi 0, %s24
      %p21 = scmp.ge.s32.totalorder %s20, 4
      %s30 = sphi 0, %s32
      %s33 = sphi 0, %s30
      %s34 = sphi 0, %s33
      %s50 = sphi 0, %s34
      %s54 = sphi 0, %s54
      %s56 = sphi 0, %s54
      %s57 = sphi 0, %s56
      %s71 = sphi 0, %s57
      %s75 = sphi 0, %s75
      %s77 = sphi 0, %s75
      %s78 = sphi 0, %s77
      %s92 = sphi 0, %s78
      %s96 = sphi 0, %s96
      %s98 = sphi 0, %s96
      %s99 = sphi 0, %s98
      %s113 = sphi 0, %s99
      %s117 = sphi 0, %s117
      %s119 = sphi 0, %s117
      %s120 = sphi 0, %s119
      %s134 = sphi 0, %s120
      %s138 = sphi 0, %s138
      %s140 = sphi 0, %s138
      %s141 = sphi 0, %s140
      %s155 = sphi 0, %s141
      %s159 = sphi 0, %s159
      %s161 = sphi 0, %s159
      %s162 = sphi 0, %s161
      %s176 = sphi 0, %s162
      %s180 = sphi 0, %s180
      %s182 = sphi 0, %s180
      %s183 = sphi 0, %s182
      %s197 = sphi 0, %s183
      %s201 = sphi 0, %s201
      %s203 = sphi 0, %s201
      %s204 = sphi 0, %s203
      %s218 = sphi 0, %s204
      %s222 = sphi 0, %s222
      %s224 = sphi 0, %s222
      %s225 = sphi 0, %s224
      %s239 = sphi 0, %s225
      %s245 = sphi 0, %s247
      %s248 = sphi 0, %s245
      %s249 = sphi 0, %s248
      %s265 = sphi 0, %s249
    $region4: #{cluster_forward.1} parent=1 // loop_header_branch
      %23 = sbr.rel (%p21) target = $region8
    $region5: #{cluster_forward.1} parent=1 // loop_body
      %s25 = ssub.s32 %s20, 1
      %s26 = ssub.s32 %s20, 2
      %s27 = sadd.s32 %s20, 1
      %s28 = ssub.s32 %s20, %s27
      %p29 = scmp.eq.s32.totalorder %s28, 0
      %s31 = sadd.s32 %s30, 1
      %s32 = scalar_select %p29, %s30, %s31
      %p35 = pneg %p29
      %p36 = scmp.eq.s32.totalorder %s20, 1
      %p37 = por %p35, %p36
      %p38 = scmp.ne.s32.totalorder %s30, %s33
      %p39 = scmp.eq.s32.totalorder %s20, 0
      %p40 = por %p38, %p39
      %p41 = scmp.ne.s32.totalorder %s30, %s33
      %p42 = scmp.eq.s32.totalorder %s25, 1
      %p43 = por %p41, %p42
      %p44 = scmp.ne.s32.totalorder %s33, %s34
      %p45 = scmp.eq.s32.totalorder %s25, 0
      %p46 = por %p44, %p45
      %p47 = scmp.ne.s32.totalorder %s33, %s34
      %p48 = scmp.eq.s32.totalorder %s26, 1
      %p49 = por %p47, %p48
      %p51 = scmp.ne.s32.totalorder %s34, %s50
      %p52 = scmp.eq.s32.totalorder %s26, 0
      %p53 = por %p51, %p52
      %s55 = sadd.s32 %s54, 1
      %p58 = scmp.eq.s32.totalorder %s20, 1
      %p59 = scmp.ne.s32.totalorder %s54, %s56
      %p60 = scmp.eq.s32.totalorder %s20, 0
      %p61 = por %p59, %p60
      %p62 = scmp.ne.s32.totalorder %s54, %s56
      %p63 = scmp.eq.s32.totalorder %s25, 1
      %p64 = por %p62, %p63
      %p65 = scmp.ne.s32.totalorder %s56, %s57
      %p66 = scmp.eq.s32.totalorder %s25, 0
      %p67 = por %p65, %p66
      %p68 = scmp.ne.s32.totalorder %s56, %s57
      %p69 = scmp.eq.s32.totalorder %s26, 1
      %p70 = por %p68, %p69
      %p72 = scmp.ne.s32.totalorder %s57, %s71
      %p73 = scmp.eq.s32.totalorder %s26, 0
      %p74 = por %p72, %p73
      %s76 = sadd.s32 %s75, 1
      %p79 = scmp.eq.s32.totalorder %s20, 1
      %p80 = scmp.ne.s32.totalorder %s75, %s77
      %p81 = scmp.eq.s32.totalorder %s20, 0
      %p82 = por %p80, %p81
      %p83 = scmp.ne.s32.totalorder %s75, %s77
      %p84 = scmp.eq.s32.totalorder %s25, 1
      %p85 = por %p83, %p84
      %p86 = scmp.ne.s32.totalorder %s77, %s78
      %p87 = scmp.eq.s32.totalorder %s25, 0
      %p88 = por %p86, %p87
      %p89 = scmp.ne.s32.totalorder %s77, %s78
      %p90 = scmp.eq.s32.totalorder %s26, 1
      %p91 = por %p89, %p90
      %p93 = scmp.ne.s32.totalorder %s78, %s92
      %p94 = scmp.eq.s32.totalorder %s26, 0
      %p95 = por %p93, %p94
      %s97 = sadd.s32 %s96, 1
      %p100 = scmp.eq.s32.totalorder %s20, 1
      %p101 = scmp.ne.s32.totalorder %s96, %s98
      %p102 = scmp.eq.s32.totalorder %s20, 0
      %p103 = por %p101, %p102
      %p104 = scmp.ne.s32.totalorder %s96, %s98
      %p105 = scmp.eq.s32.totalorder %s25, 1
      %p106 = por %p104, %p105
      %p107 = scmp.ne.s32.totalorder %s98, %s99
      %p108 = scmp.eq.s32.totalorder %s25, 0
      %p109 = por %p107, %p108
      %p110 = scmp.ne.s32.totalorder %s98, %s99
      %p111 = scmp.eq.s32.totalorder %s26, 1
      %p112 = por %p110, %p111
      %p114 = scmp.ne.s32.totalorder %s99, %s113
      %p115 = scmp.eq.s32.totalorder %s26, 0
      %p116 = por %p114, %p115
      %s118 = sadd.s32 %s117, 1
      %p121 = scmp.eq.s32.totalorder %s20, 1
      %p122 = scmp.ne.s32.totalorder %s117, %s119
      %p123 = scmp.eq.s32.totalorder %s20, 0
      %p124 = por %p122, %p123
      %p125 = scmp.ne.s32.totalorder %s117, %s119
      %p126 = scmp.eq.s32.totalorder %s25, 1
      %p127 = por %p125, %p126
      %p128 = scmp.ne.s32.totalorder %s119, %s120
      %p129 = scmp.eq.s32.totalorder %s25, 0
      %p130 = por %p128, %p129
      %p131 = scmp.ne.s32.totalorder %s119, %s120
      %p132 = scmp.eq.s32.totalorder %s26, 1
      %p133 = por %p131, %p132
      %p135 = scmp.ne.s32.totalorder %s120, %s134
      %p136 = scmp.eq.s32.totalorder %s26, 0
      %p137 = por %p135, %p136
      %s139 = sadd.s32 %s138, 1
      %p142 = scmp.eq.s32.totalorder %s20, 1
      %p143 = scmp.ne.s32.totalorder %s138, %s140
      %p144 = scmp.eq.s32.totalorder %s20, 0
      %p145 = por %p143, %p144
      %p146 = scmp.ne.s32.totalorder %s138, %s140
      %p147 = scmp.eq.s32.totalorder %s25, 1
      %p148 = por %p146, %p147
      %p149 = scmp.ne.s32.totalorder %s140, %s141
      %p150 = scmp.eq.s32.totalorder %s25, 0
      %p151 = por %p149, %p150
      %p152 = scmp.ne.s32.totalorder %s140, %s141
      %p153 = scmp.eq.s32.totalorder %s26, 1
      %p154 = por %p152, %p153
      %p156 = scmp.ne.s32.totalorder %s141, %s155
      %p157 = scmp.eq.s32.totalorder %s26, 0
      %p158 = por %p156, %p157
      %s160 = sadd.s32 %s159, 1
      %p163 = scmp.eq.s32.totalorder %s20, 1
      %p164 = scmp.ne.s32.totalorder %s159, %s161
      %p165 = scmp.eq.s32.totalorder %s20, 0
      %p166 = por %p164, %p165
      %p167 = scmp.ne.s32.totalorder %s159, %s161
      %p168 = scmp.eq.s32.totalorder %s25, 1
      %p169 = por %p167, %p168
      %p170 = scmp.ne.s32.totalorder %s161, %s162
      %p171 = scmp.eq.s32.totalorder %s25, 0
      %p172 = por %p170, %p171
      %p173 = scmp.ne.s32.totalorder %s161, %s162
      %p174 = scmp.eq.s32.totalorder %s26, 1
      %p175 = por %p173, %p174
      %p177 = scmp.ne.s32.totalorder %s162, %s176
      %p178 = scmp.eq.s32.totalorder %s26, 0
      %p179 = por %p177, %p178
      %s181 = sadd.s32 %s180, 1
      %p184 = scmp.eq.s32.totalorder %s20, 1
      %p185 = scmp.ne.s32.totalorder %s180, %s182
      %p186 = scmp.eq.s32.totalorder %s20, 0
      %p187 = por %p185, %p186
      %p188 = scmp.ne.s32.totalorder %s180, %s182
      %p189 = scmp.eq.s32.totalorder %s25, 1
      %p190 = por %p188, %p189
      %p191 = scmp.ne.s32.totalorder %s182, %s183
      %p192 = scmp.eq.s32.totalorder %s25, 0
      %p193 = por %p191, %p192
      %p194 = scmp.ne.s32.totalorder %s182, %s183
      %p195 = scmp.eq.s32.totalorder %s26, 1
      %p196 = por %p194, %p195
      %p198 = scmp.ne.s32.totalorder %s183, %s197
      %p199 = scmp.eq.s32.totalorder %s26, 0
      %p200 = por %p198, %p199
      %s202 = sadd.s32 %s201, 1
      %p205 = scmp.eq.s32.totalorder %s20, 1
      %p206 = scmp.ne.s32.totalorder %s201, %s203
      %p207 = scmp.eq.s32.totalorder %s20, 0
      %p208 = por %p206, %p207
      %p209 = scmp.ne.s32.totalorder %s201, %s203
      %p210 = scmp.eq.s32.totalorder %s25, 1
      %p211 = por %p209, %p210
      %p212 = scmp.ne.s32.totalorder %s203, %s204
      %p213 = scmp.eq.s32.totalorder %s25, 0
      %p214 = por %p212, %p213
      %p215 = scmp.ne.s32.totalorder %s203, %s204
      %p216 = scmp.eq.s32.totalorder %s26, 1
      %p217 = por %p215, %p216
      %p219 = scmp.ne.s32.totalorder %s204, %s218
      %p220 = scmp.eq.s32.totalorder %s26, 0
      %p221 = por %p219, %p220
      %s223 = sadd.s32 %s222, 1
      %p226 = scmp.eq.s32.totalorder %s20, 1
      %p227 = scmp.ne.s32.totalorder %s222, %s224
      %p228 = scmp.eq.s32.totalorder %s20, 0
      %p229 = por %p227, %p228
      %p230 = scmp.ne.s32.totalorder %s222, %s224
      %p231 = scmp.eq.s32.totalorder %s25, 1
      %p232 = por %p230, %p231
      %p233 = scmp.ne.s32.totalorder %s224, %s225
      %p234 = scmp.eq.s32.totalorder %s25, 0
      %p235 = por %p233, %p234
      %p236 = scmp.ne.s32.totalorder %s224, %s225
      %p237 = scmp.eq.s32.totalorder %s26, 1
      %p238 = por %p236, %p237
      %p240 = scmp.ne.s32.totalorder %s225, %s239
      %p241 = scmp.eq.s32.totalorder %s26, 0
      %p242 = por %p240, %p241
      %s243 = ssub.s32 %s20, %s27
      %p244 = scmp.eq.s32.totalorder %s243, 0
      %s246 = sadd.s32 %s245, 1
      %s247 = scalar_select %p244, %s245, %s246
      %p250 = pneg %p244
      %p251 = scmp.eq.s32.totalorder %s20, 1
      %p252 = por %p250, %p251
      %p253 = scmp.ne.s32.totalorder %s245, %s248
      %p254 = scmp.eq.s32.totalorder %s20, 0
      %p255 = por %p253, %p254
      %p256 = scmp.ne.s32.totalorder %s245, %s248
      %p257 = scmp.eq.s32.totalorder %s25, 1
      %p258 = por %p256, %p257
      %p259 = scmp.ne.s32.totalorder %s248, %s249
      %p260 = scmp.eq.s32.totalorder %s25, 0
      %p261 = por %p259, %p260
      %p262 = scmp.ne.s32.totalorder %s248, %s249
      %p263 = scmp.eq.s32.totalorder %s26, 1
      %p264 = por %p262, %p263
      %p266 = scmp.ne.s32.totalorder %s249, %s265
      %p267 = scmp.eq.s32.totalorder %s26, 0
      %p268 = por %p266, %p267
      %p269 = scmp.le.s32.totalorder 1, %s20
      %p270 = scmp.lt.s32.totalorder %s20, 3
      %p271 = pnand %p269, %p270
      %p272 = pneg %p271
      // Predicated region
      $region9: #{cluster_forward.1} parent=5 // pred_check
        _
      $region10: #{cluster_forward.1} parent=5 // pred_check_branch
        %274 = sbr.rel (%p271) target = $region12
      $region11: #{cluster_forward.1} parent=5 // pred_region
        %s275 = ssub.s32 %s20, 1
        // Predicated region
        $region13: #{cluster_forward.1} parent=11 // pred_check
          %p276 = pneg %p67
        $region14: #{cluster_forward.1} parent=11 // pred_check_branch
          %278 = sbr.rel (%p276) target = $region16
        $region15: #{cluster_forward.1} parent=11 // pred_region
          _
        $region16: #{cluster_forward.1} parent=11 // pred_fallthru
          _
        // Predicated region
        $region17: #{cluster_forward.1} parent=11 // pred_check
          %p279 = pneg %p88
        $region18: #{cluster_forward.1} parent=11 // pred_check_branch
          %281 = sbr.rel (%p279) target = $region20
        $region19: #{cluster_forward.1} parent=11 // pred_region
          _
        $region20: #{cluster_forward.1} parent=11 // pred_fallthru
          _
        // Predicated region
        $region21: #{cluster_forward.1} parent=11 // pred_check
          %p282 = pneg %p109
        $region22: #{cluster_forward.1} parent=11 // pred_check_branch
          %284 = sbr.rel (%p282) target = $region24
        $region23: #{cluster_forward.1} parent=11 // pred_region
          _
        $region24: #{cluster_forward.1} parent=11 // pred_fallthru
          _
        // Predicated region
        $region25: #{cluster_forward.1} parent=11 // pred_check
          %p285 = pneg %p130
        $region26: #{cluster_forward.1} parent=11 // pred_check_branch
          %287 = sbr.rel (%p285) target = $region28
        $region27: #{cluster_forward.1} parent=11 // pred_region
          _
        $region28: #{cluster_forward.1} parent=11 // pred_fallthru
          _
        // Predicated region
        $region29: #{cluster_forward.1} parent=11 // pred_check
          %p288 = pneg %p151
        $region30: #{cluster_forward.1} parent=11 // pred_check_branch
          %290 = sbr.rel (%p288) target = $region32
        $region31: #{cluster_forward.1} parent=11 // pred_region
          _
        $region32: #{cluster_forward.1} parent=11 // pred_fallthru
          _
        // Predicated region
        $region33: #{cluster_forward.1} parent=11 // pred_check
          %p291 = pneg %p172
        $region34: #{cluster_forward.1} parent=11 // pred_check_branch
          %293 = sbr.rel (%p291) target = $region36
        $region35: #{cluster_forward.1} parent=11 // pred_region
          _
        $region36: #{cluster_forward.1} parent=11 // pred_fallthru
          _
        // Predicated region
        $region37: #{cluster_forward.1} parent=11 // pred_check
          %p294 = pneg %p193
        $region38: #{cluster_forward.1} parent=11 // pred_check_branch
          %296 = sbr.rel (%p294) target = $region40
        $region39: #{cluster_forward.1} parent=11 // pred_region
          _
        $region40: #{cluster_forward.1} parent=11 // pred_fallthru
          _
        // Predicated region
        $region41: #{cluster_forward.1} parent=11 // pred_check
          %p297 = pneg %p214
        $region42: #{cluster_forward.1} parent=11 // pred_check_branch
          %299 = sbr.rel (%p297) target = $region44
        $region43: #{cluster_forward.1} parent=11 // pred_region
          _
        $region44: #{cluster_forward.1} parent=11 // pred_fallthru
          _
        // Predicated region
        $region45: #{cluster_forward.1} parent=11 // pred_check
          %p300 = pneg %p235
        $region46: #{cluster_forward.1} parent=11 // pred_check_branch
          %302 = sbr.rel (%p300) target = $region48
        $region47: #{cluster_forward.1} parent=11 // pred_region
          %s304 = ssub.s32 16, 16
          %305 = vsyncadd [#allocation4], %s304
          %s307 = sshll.u32 %s9, 4
          %s308 = int_to_ptr.vmem [resolvable:$true] %s307
          %310 = dma.vmem_to_smem %s308, 16, [#allocation2], [#allocation4]
        $region48: #{cluster_forward.1} parent=11 // pred_fallthru
          _
      $region12: #{cluster_forward.1} parent=5 // pred_fallthru
        _
      %p311 = scmp.lt.s32.totalorder %s20, 2
      // Predicated region
      $region49: #{cluster_forward.1} parent=5 // pred_check
        %p312 = pneg %p311
      $region50: #{cluster_forward.1} parent=5 // pred_check_branch
        %314 = sbr.rel (%p312) target = $region52
      $region51: #{cluster_forward.1} parent=5 // pred_region
        // Predicated region
        $region53: #{cluster_forward.1} parent=51 // pred_check
          %p315 = pneg %p40
        $region54: #{cluster_forward.1} parent=51 // pred_check_branch
          %317 = sbr.rel (%p315) target = $region56
        $region55: #{cluster_forward.1} parent=51 // pred_region
          %p318 = scmp.lt.s32.totalorder %s20, 1
          %s319 = scalar_select %p318, %s20, 1
          %s320 = smul.addr %s319, 32
          %s321 = smul.addr %s320, 4
          %s322 = scalar_lea.vmem %s0, %s321
        $region56: #{cluster_forward.1} parent=51 // pred_fallthru
          _
      $region52: #{cluster_forward.1} parent=5 // pred_fallthru
        _
      %p323 = scmp.le.s32.totalorder 1, %s20
      %p324 = scmp.lt.s32.totalorder %s20, 3
      %p325 = pnand %p323, %p324
      %p326 = pneg %p325
      // Predicated region
      $region57: #{cluster_forward.1} parent=5 // pred_check
        _
      $region58: #{cluster_forward.1} parent=5 // pred_check_branch
        %328 = sbr.rel (%p325) target = $region60
      $region59: #{cluster_forward.1} parent=5 // pred_region
        %s329 = ssub.s32 %s20, 1
        // Predicated region
        $region61: #{cluster_forward.1} parent=59 // pred_check
          %p330 = pneg %p235
        $region62: #{cluster_forward.1} parent=59 // pred_check_branch
          %332 = sbr.rel (%p330) target = $region64
        $region63: #{cluster_forward.1} parent=59 // pred_region
          %333 = dma.done [#allocation4], 16
        $region64: #{cluster_forward.1} parent=59 // pred_fallthru
          _
        %334 = sfence
        %p335 = scmp.lt.s32.totalorder %s25, 1
        %s336 = scalar_select %p335, %s25, 1
        %s337 = smul.addr %s336, 32
        %s338 = smul.addr %s337, 4
        %s339 = scalar_lea.vmem %s0, %s338
        %p340 = pneg %p46
        %p341 = pneg %p43
        %p342 = pneg %p67
        %p343 = pneg %p64
        %p344 = pneg %p88
        %p345 = pneg %p85
        %p346 = pneg %p109
        %p347 = pneg %p106
        %p348 = pneg %p130
        %p349 = pneg %p127
        %p350 = pneg %p151
        %p351 = pneg %p148
        %p352 = pneg %p172
        %p353 = pneg %p169
        %p354 = pneg %p193
        %p355 = pneg %p190
        %p356 = pneg %p214
        %p357 = pneg %p211
        %p358 = pneg %p235
        %p359 = pneg %p232
        %p360 = pneg %p261
        %p361 = pneg %p258
        %s362 = sand.u32 %s248, 1
        %s363 = scalar_lea.sflag [#allocation3], %s362
        %s364 = sand.u32 %s248, 1
        %s365 = smul.addr %s364, 256
        %s366 = scalar_lea.vmem [#allocation5], %s365
        %p367 = scmp.lt.s32.totalorder %s25, 1
        %s368 = scalar_select %p367, %s25, 1
        %s369 = smul.addr %s368, 32
        %s370 = smul.addr %s369, 4
        %s371 = scalar_lea.vmem %s0, %s370
        %s373 = sld [smem:[#allocation2]]
        %s374 = sld [smem:[#allocation2 + $0x1]]
        %v375 = vld [vmem:[%s371] sm:$0xf]
        %v376 = vld [vmem:[%s371 + $0x4] sm:$0xf]
        %v377 = vld [vmem:[%s371 + $0x8] sm:$0xf]
        %v378 = vld [vmem:[%s371 + $0xc] sm:$0xf]
        %v379 = vld [vmem:[%s371 + $0x10] sm:$0xf]
        %v380 = vld [vmem:[%s371 + $0x14] sm:$0xf]
        %v381 = vld [vmem:[%s371 + $0x18] sm:$0xf]
        %v382 = vld [vmem:[%s371 + $0x1c] sm:$0xf]
        %v383 = vld [vmem:[%s371 + $0x20] sm:$0xf]
        %v384 = vld [vmem:[%s371 + $0x24] sm:$0xf]
        %v385 = vld [vmem:[%s371 + $0x28] sm:$0xf]
        %v386 = vld [vmem:[%s371 + $0x2c] sm:$0xf]
        %v387 = vld [vmem:[%s371 + $0x30] sm:$0xf]
        %v388 = vld [vmem:[%s371 + $0x34] sm:$0xf]
        %v389 = vld [vmem:[%s371 + $0x38] sm:$0xf]
        %v390 = vld [vmem:[%s371 + $0x3c] sm:$0xf]
        %v391 = vld [vmem:[%s371 + $0x40] sm:$0xf]
        %v392 = vld [vmem:[%s371 + $0x44] sm:$0xf]
        %v393 = vld [vmem:[%s371 + $0x48] sm:$0xf]
        %v394 = vld [vmem:[%s371 + $0x4c] sm:$0xf]
        %v395 = vld [vmem:[%s371 + $0x50] sm:$0xf]
        %v396 = vld [vmem:[%s371 + $0x54] sm:$0xf]
        %v397 = vld [vmem:[%s371 + $0x58] sm:$0xf]
        %v398 = vld [vmem:[%s371 + $0x5c] sm:$0xf]
        %v399 = vld [vmem:[%s371 + $0x60] sm:$0xf]
        %v400 = vld [vmem:[%s371 + $0x64] sm:$0xf]
        %v401 = vld [vmem:[%s371 + $0x68] sm:$0xf]
        %v402 = vld [vmem:[%s371 + $0x6c] sm:$0xf]
        %v403 = vld [vmem:[%s371 + $0x70] sm:$0xf]
        %v404 = vld [vmem:[%s371 + $0x74] sm:$0xf]
        %v405 = vld [vmem:[%s371 + $0x78] sm:$0xf]
        %v406 = vld [vmem:[%s371 + $0x7c] sm:$0xf]
        %v407 = vld [vmem:[%s7] sm:$0xff]
        %v408 = vld [vmem:[%s7 + $0x8] sm:$0xff]
        %v411 = vunpack.c.l.b16 %v407
        %v412 = vunpack.c.h.b16 %v407
        %v413 = vunpack.c.l.b16 %v408
        %v414 = vunpack.c.h.b16 %v408
        %v415 = vpack.c.b16 %v413, %v411
        %v416 = vpack.c.b16 %v414, %v412
        %v451 = vunpack.c.l.b16 %v375
        %v452 = vunpack.c.l.b16 %v376
        %v453 = vunpack.c.l.b16 %v377
        %v454 = vunpack.c.l.b16 %v378
        %v455 = vunpack.c.l.b16 %v379
        %v456 = vunpack.c.l.b16 %v380
        %v457 = vunpack.c.l.b16 %v381
        %v458 = vunpack.c.l.b16 %v382
        %v459 = vunpack.c.l.b16 %v383
        %v460 = vunpack.c.l.b16 %v384
        %v461 = vunpack.c.l.b16 %v385
        %v462 = vunpack.c.l.b16 %v386
        %v463 = vunpack.c.l.b16 %v387
        %v464 = vunpack.c.l.b16 %v388
        %v465 = vunpack.c.l.b16 %v389
        %v466 = vunpack.c.l.b16 %v390
        %v467 = vunpack.c.l.b16 %v391
        %v468 = vunpack.c.l.b16 %v392
        %v469 = vunpack.c.l.b16 %v393
        %v470 = vunpack.c.l.b16 %v394
        %v471 = vunpack.c.l.b16 %v395
        %v472 = vunpack.c.l.b16 %v396
        %v473 = vunpack.c.l.b16 %v397
        %v474 = vunpack.c.l.b16 %v398
        %v475 = vunpack.c.l.b16 %v399
        %v476 = vunpack.c.l.b16 %v400
        %v477 = vunpack.c.l.b16 %v401
        %v478 = vunpack.c.l.b16 %v402
        %v479 = vunpack.c.l.b16 %v403
        %v480 = vunpack.c.l.b16 %v404
        %v481 = vunpack.c.l.b16 %v405
        %v482 = vunpack.c.l.b16 %v406
        %v483 = vpack.c.b16 %v452, %v451
        %v484 = vpack.c.b16 %v454, %v453
        %v485 = vpack.c.b16 %v456, %v455
        %v486 = vpack.c.b16 %v458, %v457
        %v487 = vpack.c.b16 %v460, %v459
        %v488 = vpack.c.b16 %v462, %v461
        %v489 = vpack.c.b16 %v464, %v463
        %v490 = vpack.c.b16 %v466, %v465
        %v491 = vpack.c.b16 %v468, %v467
        %v492 = vpack.c.b16 %v470, %v469
        %v493 = vpack.c.b16 %v472, %v471
        %v494 = vpack.c.b16 %v474, %v473
        %v495 = vpack.c.b16 %v476, %v475
        %v496 = vpack.c.b16 %v478, %v477
        %v497 = vpack.c.b16 %v480, %v479
        %v498 = vpack.c.b16 %v482, %v481
        %515 = vmatprep.subr.bf16.mxu0 0
        %516 = vmatpush1.bf16.msra.mxu0 %v483
        %517 = vmatprep.subr.bf16.mxu0 0
        %518 = vmatpush1.bf16.msra.mxu0 %v484
        %519 = vmatprep.subr.bf16.mxu0 0
        %520 = vmatpush1.bf16.msra.mxu0 %v485
        %521 = vmatprep.subr.bf16.mxu0 0
        %522 = vmatpush1.bf16.msra.mxu0 %v486
        %523 = vmatprep.subr.bf16.mxu0 0
        %524 = vmatpush1.bf16.msra.mxu0 %v487
        %525 = vmatprep.subr.bf16.mxu0 0
        %526 = vmatpush1.bf16.msra.mxu0 %v488
        %527 = vmatprep.subr.bf16.mxu0 0
        %528 = vmatpush1.bf16.msra.mxu0 %v489
        %529 = vmatprep.subr.bf16.mxu0 0
        %530 = vmatpush1.bf16.msra.mxu0 %v490
        %531 = vmatprep.subr.bf16.mxu0 0
        %532 = vmatpush1.bf16.msra.mxu0 %v491
        %533 = vmatprep.subr.bf16.mxu0 0
        %534 = vmatpush1.bf16.msra.mxu0 %v492
        %535 = vmatprep.subr.bf16.mxu0 0
        %536 = vmatpush1.bf16.msra.mxu0 %v493
        %537 = vmatprep.subr.bf16.mxu0 0
        %538 = vmatpush1.bf16.msra.mxu0 %v494
        %539 = vmatprep.subr.bf16.mxu0 0
        %540 = vmatpush1.bf16.msra.mxu0 %v495
        %541 = vmatprep.subr.bf16.mxu0 0
        %542 = vmatpush1.bf16.msra.mxu0 %v496
        %543 = vmatprep.subr.bf16.mxu0 0
        %544 = vmatpush1.bf16.msra.mxu0 %v497
        %545 = vmatprep.subr.bf16.mxu0 0
        %546 = vmatpush1.bf16.msra.mxu0 %v498
        %547 = vmatprep.mubr.bf16.mxu0 %v416
        %548 = vmatmul.mubr.bf16.gmra.mrb[0].mxu0 %v415
        %v549 = vpop.f32.mrb[0].mxu0
        %v550 = vadd.f32 0.0, %v549
        %v551 = vpop.f32.mrb[0].mxu0
        %v552 = vpop.f32.mrb[0].mxu0
        %v553 = vadd.f32 0.0, %v552
        %v554 = vpop.f32.mrb[0].mxu0
        %555 = vdwg.mxu0
        %v556 = vpack.c.bf16 %v553, %v550
        %v557 = vld [vmem:[%s1] sm:$0xf]
        %v558 = vld [vmem:[%s1 + $0x4] sm:$0xf]
        %v559 = vld [vmem:[%s1 + $0x8] sm:$0xf]
        %v560 = vld [vmem:[%s1 + $0xc] sm:$0xf]
        %v561 = vld [vmem:[%s1 + $0x10] sm:$0xf]
        %v562 = vld [vmem:[%s1 + $0x14] sm:$0xf]
        %v563 = vld [vmem:[%s1 + $0x18] sm:$0xf]
        %v564 = vld [vmem:[%s1 + $0x1c] sm:$0xf]
        %v565 = vld [vmem:[%s1 + $0x20] sm:$0xf]
        %v566 = vld [vmem:[%s1 + $0x24] sm:$0xf]
        %v567 = vld [vmem:[%s1 + $0x28] sm:$0xf]
        %v568 = vld [vmem:[%s1 + $0x2c] sm:$0xf]
        %v569 = vld [vmem:[%s1 + $0x30] sm:$0xf]
        %v570 = vld [vmem:[%s1 + $0x34] sm:$0xf]
        %v571 = vld [vmem:[%s1 + $0x38] sm:$0xf]
        %v572 = vld [vmem:[%s1 + $0x3c] sm:$0xf]
        %v577 = vunpack.c.l.b16 %v557
        %v578 = vunpack.c.l.b16 %v558
        %v579 = vunpack.c.l.b16 %v559
        %v580 = vunpack.c.l.b16 %v560
        %v581 = vpack.c.b16 %v578, %v577
        %v582 = vpack.c.b16 %v580, %v579
        %vm585 = vcmask 261120
        %v587 = vsel %vm585, %v483, 0
        %v590 = vsel %vm585, %v484, 0
        %v593 = vsel %vm585, %v485, 0
        %v596 = vsel %vm585, %v486, 0
        %v599 = vsel %vm585, %v487, 0
        %v602 = vsel %vm585, %v488, 0
        %v605 = vsel %vm585, %v489, 0
        %v608 = vsel %vm585, %v490, 0
        %v611 = vsel %vm585, %v491, 0
        %v614 = vsel %vm585, %v492, 0
        %v617 = vsel %vm585, %v493, 0
        %v620 = vsel %vm585, %v494, 0
        %v623 = vsel %vm585, %v495, 0
        %v626 = vsel %vm585, %v496, 0
        %v629 = vsel %vm585, %v497, 0
        %v632 = vsel %vm585, %v498, 0
        %v635 = vsel %vm585, %v556, 0
        %637 = vmatprep.subr.bf16.mxu0 0
        %638 = vmatpush1.bf16.msra.mxu0 %v581
        %639 = vmatprep.subr.bf16.mxu0 0
        %640 = vmatpush1.bf16.msra.mxu0 %v582
        %641 = vmatprep.subr.bf16.mxu0 0
        %642 = vmatpush1.bf16.msra.mxu0 0
        %643 = vmatprep.subr.bf16.mxu0 0
        %644 = vmatpush1.bf16.msra.mxu0 0
        %645 = vmatprep.subr.bf16.mxu0 0
        %646 = vmatpush1.bf16.msra.mxu0 0
        %647 = vmatprep.subr.bf16.mxu0 0
        %648 = vmatpush1.bf16.msra.mxu0 0
        %649 = vmatprep.subr.bf16.mxu0 0
        %650 = vmatpush1.bf16.msra.mxu0 0
        %651 = vmatprep.subr.bf16.mxu0 0
        %652 = vmatpush1.bf16.msra.mxu0 0
        %653 = vmatprep.subr.bf16.mxu0 0
        %654 = vmatpush1.bf16.msra.mxu0 0
        %655 = vmatprep.subr.bf16.mxu0 0
        %656 = vmatpush1.bf16.msra.mxu0 0
        %657 = vmatprep.subr.bf16.mxu0 0
        %658 = vmatpush1.bf16.msra.mxu0 0
        %659 = vmatprep.subr.bf16.mxu0 0
        %660 = vmatpush1.bf16.msra.mxu0 0
        %661 = vmatprep.subr.bf16.mxu0 0
        %662 = vmatpush1.bf16.msra.mxu0 0
        %663 = vmatprep.subr.bf16.mxu0 0
        %664 = vmatpush1.bf16.msra.mxu0 0
        %665 = vmatprep.subr.bf16.mxu0 0
        %666 = vmatpush1.bf16.msra.mxu0 0
        %667 = vmatprep.subr.bf16.mxu0 0
        %668 = vmatpush1.bf16.msra.mxu0 0
        %669 = vmatprep.mubr.bf16.mxu0 0
        %670 = vmatmul.mubr.bf16.gmra.mrb[0].mxu0 %v587
        %v671 = vpop.f32.mrb[0].mxu0
        %v672 = vadd.f32 0.0, %v671
        %v673 = vpop.f32.mrb[0].mxu0
        %v674 = vpop.f32.mrb[0].mxu0
        %v675 = vadd.f32 0.0, %v674
        %v676 = vpop.f32.mrb[0].mxu0
        %677 = vmatprep.mubr.bf16.mxu0 0
        %678 = vmatmul.mubr.bf16.gmra.mrb[0].mxu0 %v590
        %v679 = vpop.f32.mrb[0].mxu0
        %v680 = vadd.f32 0.0, %v679
        %v681 = vpop.f32.mrb[0].mxu0
        %v682 = vpop.f32.mrb[0].mxu0
        %v683 = vadd.f32 0.0, %v682
        %v684 = vpop.f32.mrb[0].mxu0
        %685 = vmatprep.mubr.bf16.mxu0 0
        %686 = vmatmul.mubr.bf16.gmra.mrb[0].mxu0 %v593
        %v687 = vpop.f32.mrb[0].mxu0
        %v688 = vadd.f32 0.0, %v687
        %v689 = vpop.f32.mrb[0].mxu0
        %v690 = vpop.f32.mrb[0].mxu0
        %v691 = vadd.f32 0.0, %v690
        %v692 = vpop.f32.mrb[0].mxu0
        %693 = vmatprep.mubr.bf16.mxu0 0
        %694 = vmatmul.mubr.bf16.gmra.mrb[0].mxu0 %v596
        %v695 = vpop.f32.mrb[0].mxu0
        %v696 = vadd.f32 0.0, %v695
        %v697 = vpop.f32.mrb[0].mxu0
        %v698 = vpop.f32.mrb[0].mxu0
        %v699 = vadd.f32 0.0, %v698
        %v700 = vpop.f32.mrb[0].mxu0
        %701 = vmatprep.mubr.bf16.mxu0 0
        %702 = vmatmul.mubr.bf16.gmra.mrb[0].mxu0 %v599
        %v703 = vpop.f32.mrb[0].mxu0
        %v704 = vadd.f32 0.0, %v703
        %v705 = vpop.f32.mrb[0].mxu0
        %v706 = vpop.f32.mrb[0].mxu0
        %v707 = vadd.f32 0.0, %v706
        %v708 = vpop.f32.mrb[0].mxu0
        %709 = vmatprep.mubr.bf16.mxu0 0
        %710 = vmatmul.mubr.bf16.gmra.mrb[0].mxu0 %v602
        %v711 = vpop.f32.mrb[0].mxu0
        %v712 = vadd.f32 0.0, %v711
        %v713 = vpop.f32.mrb[0].mxu0
        %v714 = vpop.f32.mrb[0].mxu0
        %v715 = vadd.f32 0.0, %v714
        %v716 = vpop.f32.mrb[0].mxu0
        %717 = vmatprep.mubr.bf16.mxu0 0
        %718 = vmatmul.mubr.bf16.gmra.mrb[0].mxu0 %v605
        %v719 = vpop.f32.mrb[0].mxu0
        %v720 = vadd.f32 0.0, %v719
        %v721 = vpop.f32.mrb[0].mxu0
        %v722 = vpop.f32.mrb[0].mxu0
        %v723 = vadd.f32 0.0, %v722
        %v724 = vpop.f32.mrb[0].mxu0
        %725 = vmatprep.mubr.bf16.mxu0 0
        %726 = vmatmul.mubr.bf16.gmra.mrb[0].mxu0 %v608
        %v727 = vpop.f32.mrb[0].mxu0
        %v728 = vadd.f32 0.0, %v727
        %v729 = vpop.f32.mrb[0].mxu0
        %v730 = vpop.f32.mrb[0].mxu0
        %v731 = vadd.f32 0.0, %v730
        %v732 = vpop.f32.mrb[0].mxu0
        %733 = vmatprep.mubr.bf16.mxu0 0
        %734 = vmatmul.mubr.bf16.gmra.mrb[0].mxu0 %v611
        %v735 = vpop.f32.mrb[0].mxu0
        %v736 = vadd.f32 0.0, %v735
        %v737 = vpop.f32.mrb[0].mxu0
        %v738 = vpop.f32.mrb[0].mxu0
        %v739 = vadd.f32 0.0, %v738
        %v740 = vpop.f32.mrb[0].mxu0
        %741 = vmatprep.mubr.bf16.mxu0 0
        %742 = vmatmul.mubr.bf16.gmra.mrb[0].mxu0 %v614
        %v743 = vpop.f32.mrb[0].mxu0
        %v744 = vadd.f32 0.0, %v743
        %v745 = vpop.f32.mrb[0].mxu0
        %v746 = vpop.f32.mrb[0].mxu0
        %v747 = vadd.f32 0.0, %v746
        %v748 = vpop.f32.mrb[0].mxu0
        %749 = vmatprep.mubr.bf16.mxu0 0
        %750 = vmatmul.mubr.bf16.gmra.mrb[0].mxu0 %v617
        %v751 = vpop.f32.mrb[0].mxu0
        %v752 = vadd.f32 0.0, %v751
        %v753 = vpop.f32.mrb[0].mxu0
        %v754 = vpop.f32.mrb[0].mxu0
        %v755 = vadd.f32 0.0, %v754
        %v756 = vpop.f32.mrb[0].mxu0
        %757 = vmatprep.mubr.bf16.mxu0 0
        %758 = vmatmul.mubr.bf16.gmra.mrb[0].mxu0 %v620
        %v759 = vpop.f32.mrb[0].mxu0
        %v760 = vadd.f32 0.0, %v759
        %v761 = vpop.f32.mrb[0].mxu0
        %v762 = vpop.f32.mrb[0].mxu0
        %v763 = vadd.f32 0.0, %v762
        %v764 = vpop.f32.mrb[0].mxu0
        %765 = vmatprep.mubr.bf16.mxu0 0
        %766 = vmatmul.mubr.bf16.gmra.mrb[0].mxu0 %v623
        %v767 = vpop.f32.mrb[0].mxu0
        %v768 = vadd.f32 0.0, %v767
        %v769 = vpop.f32.mrb[0].mxu0
        %v770 = vpop.f32.mrb[0].mxu0
        %v771 = vadd.f32 0.0, %v770
        %v772 = vpop.f32.mrb[0].mxu0
        %773 = vmatprep.mubr.bf16.mxu0 0
        %774 = vmatmul.mubr.bf16.gmra.mrb[0].mxu0 %v626
        %v775 = vpop.f32.mrb[0].mxu0
        %v776 = vadd.f32 0.0, %v775
        %v777 = vpop.f32.mrb[0].mxu0
        %v778 = vpop.f32.mrb[0].mxu0
        %v779 = vadd.f32 0.0, %v778
        %v780 = vpop.f32.mrb[0].mxu0
        %781 = vmatprep.mubr.bf16.mxu0 0
        %782 = vmatmul.mubr.bf16.gmra.mrb[0].mxu0 %v629
        %v783 = vpop.f32.mrb[0].mxu0
        %v784 = vadd.f32 0.0, %v783
        %v785 = vpop.f32.mrb[0].mxu0
        %v786 = vpop.f32.mrb[0].mxu0
        %v787 = vadd.f32 0.0, %v786
        %v788 = vpop.f32.mrb[0].mxu0
        %789 = vmatprep.mubr.bf16.mxu0 0
        %790 = vmatmul.mubr.bf16.gmra.mrb[0].mxu0 %v632
        %v791 = vpop.f32.mrb[0].mxu0
        %v792 = vadd.f32 0.0, %v791
        %v793 = vpop.f32.mrb[0].mxu0
        %v794 = vpop.f32.mrb[0].mxu0
        %v795 = vadd.f32 0.0, %v794
        %v796 = vpop.f32.mrb[0].mxu0
        %797 = vmatprep.mubr.bf16.mxu0 0
        %798 = vmatmul.mubr.bf16.gmra.mrb[0].mxu0 %v635
        %v799 = vpop.f32.mrb[0].mxu0
        %v800 = vadd.f32 0.0, %v799
        %v801 = vpop.f32.mrb[0].mxu0
        %v802 = vpop.f32.mrb[0].mxu0
        %v803 = vadd.f32 0.0, %v802
        %v804 = vpop.f32.mrb[0].mxu0
        %805 = vdwg.mxu0
        %v810 = vunpack.c.l.b16 %v561
        %v811 = vunpack.c.l.b16 %v562
        %v812 = vunpack.c.l.b16 %v563
        %v813 = vunpack.c.l.b16 %v564
        %v814 = vpack.c.b16 %v811, %v810
        %v815 = vpack.c.b16 %v813, %v812
        %818 = vmatprep.subr.bf16.mxu0 0
        %819 = vmatpush1.bf16.msra.mxu0 %v814
        %820 = vmatprep.subr.bf16.mxu0 0
        %821 = vmatpush1.bf16.msra.mxu0 %v815
        %822 = vmatprep.subr.bf16.mxu0 0
        %823 = vmatpush1.bf16.msra.mxu0 0
        %824 = vmatprep.subr.bf16.mxu0 0
        %825 = vmatpush1.bf16.msra.mxu0 0
        %826 = vmatprep.subr.bf16.mxu0 0
        %827 = vmatpush1.bf16.msra.mxu0 0
        %828 = vmatprep.subr.bf16.mxu0 0
        %829 = vmatpush1.bf16.msra.mxu0 0
        %830 = vmatprep.subr.bf16.mxu0 0
        %831 = vmatpush1.bf16.msra.mxu0 0
        %832 = vmatprep.subr.bf16.mxu0 0
        %833 = vmatpush1.bf16.msra.mxu0 0
        %834 = vmatprep.subr.bf16.mxu0 0
        %835 = vmatpush1.bf16.msra.mxu0 0
        %836 = vmatprep.subr.bf16.mxu0 0
        %837 = vmatpush1.bf16.msra.mxu0 0
        %838 = vmatprep.subr.bf16.mxu0 0
        %839 = vmatpush1.bf16.msra.mxu0 0
        %840 = vmatprep.subr.bf16.mxu0 0
        %841 = vmatpush1.bf16.msra.mxu0 0
        %842 = vmatprep.subr.bf16.mxu0 0
        %843 = vmatpush1.bf16.msra.mxu0 0
        %844 = vmatprep.subr.bf16.mxu0 0
        %845 = vmatpush1.bf16.msra.mxu0 0
        %846 = vmatprep.subr.bf16.mxu0 0
        %847 = vmatpush1.bf16.msra.mxu0 0
        %848 = vmatprep.subr.bf16.mxu0 0
        %849 = vmatpush1.bf16.msra.mxu0 0
        %850 = vmatprep.mubr.bf16.mxu0 0
        %851 = vmatmul.mubr.bf16.gmra.mrb[0].mxu0 %v587
        %v852 = vpop.f32.mrb[0].mxu0
        %v853 = vadd.f32 0.0, %v852
        %v854 = vpop.f32.mrb[0].mxu0
        %v855 = vpop.f32.mrb[0].mxu0
        %v856 = vadd.f32 0.0, %v855
        %v857 = vpop.f32.mrb[0].mxu0
        %858 = vmatprep.mubr.bf16.mxu0 0
        %859 = vmatmul.mubr.bf16.gmra.mrb[0].mxu0 %v590
        %v860 = vpop.f32.mrb[0].mxu0
        %v861 = vadd.f32 0.0, %v860
        %v862 = vpop.f32.mrb[0].mxu0
        %v863 = vpop.f32.mrb[0].mxu0
        %v864 = vadd.f32 0.0, %v863
        %v865 = vpop.f32.mrb[0].mxu0
        %866 = vmatprep.mubr.bf16.mxu0 0
        %867 = vmatmul.mubr.bf16.gmra.mrb[0].mxu0 %v593
        %v868 = vpop.f32.mrb[0].mxu0
        %v869 = vadd.f32 0.0, %v868
        %v870 = vpop.f32.mrb[0].mxu0
        %v871 = vpop.f32.mrb[0].mxu0
        %v872 = vadd.f32 0.0, %v871
        %v873 = vpop.f32.mrb[0].mxu0
        %874 = vmatprep.mubr.bf16.mxu0 0
        %875 = vmatmul.mubr.bf16.gmra.mrb[0].mxu0 %v596
        %v876 = vpop.f32.mrb[0].mxu0
        %v877 = vadd.f32 0.0, %v876
        %v878 = vpop.f32.mrb[0].mxu0
        %v879 = vpop.f32.mrb[0].mxu0
        %v880 = vadd.f32 0.0, %v879
        %v881 = vpop.f32.mrb[0].mxu0
        %882 = vmatprep.mubr.bf16.mxu0 0
        %883 = vmatmul.mubr.bf16.gmra.mrb[0].mxu0 %v599
        %v884 = vpop.f32.mrb[0].mxu0
        %v885 = vadd.f32 0.0, %v884
        %v886 = vpop.f32.mrb[0].mxu0
        %v887 = vpop.f32.mrb[0].mxu0
        %v888 = vadd.f32 0.0, %v887
        %v889 = vpop.f32.mrb[0].mxu0
        %890 = vmatprep.mubr.bf16.mxu0 0
        %891 = vmatmul.mubr.bf16.gmra.mrb[0].mxu0 %v602
        %v892 = vpop.f32.mrb[0].mxu0
        %v893 = vadd.f32 0.0, %v892
        %v894 = vpop.f32.mrb[0].mxu0
        %v895 = vpop.f32.mrb[0].mxu0
        %v896 = vadd.f32 0.0, %v895
        %v897 = vpop.f32.mrb[0].mxu0
        %898 = vmatprep.mubr.bf16.mxu0 0
        %899 = vmatmul.mubr.bf16.gmra.mrb[0].mxu0 %v605
        %v900 = vpop.f32.mrb[0].mxu0
        %v901 = vadd.f32 0.0, %v900
        %v902 = vpop.f32.mrb[0].mxu0
        %v903 = vpop.f32.mrb[0].mxu0
        %v904 = vadd.f32 0.0, %v903
        %v905 = vpop.f32.mrb[0].mxu0
        %906 = vmatprep.mubr.bf16.mxu0 0
        %907 = vmatmul.mubr.bf16.gmra.mrb[0].mxu0 %v608
        %v908 = vpop.f32.mrb[0].mxu0
        %v909 = vadd.f32 0.0, %v908
        %v910 = vpop.f32.mrb[0].mxu0
        %v911 = vpop.f32.mrb[0].mxu0
        %v912 = vadd.f32 0.0, %v911
        %v913 = vpop.f32.mrb[0].mxu0
        %914 = vmatprep.mubr.bf16.mxu0 0
        %915 = vmatmul.mubr.bf16.gmra.mrb[0].mxu0 %v611
        %v916 = vpop.f32.mrb[0].mxu0
        %v917 = vadd.f32 0.0, %v916
        %v918 = vpop.f32.mrb[0].mxu0
        %v919 = vpop.f32.mrb[0].mxu0
        %v920 = vadd.f32 0.0, %v919
        %v921 = vpop.f32.mrb[0].mxu0
        %922 = vmatprep.mubr.bf16.mxu0 0
        %923 = vmatmul.mubr.bf16.gmra.mrb[0].mxu0 %v614
        %v924 = vpop.f32.mrb[0].mxu0
        %v925 = vadd.f32 0.0, %v924
        %v926 = vpop.f32.mrb[0].mxu0
        %v927 = vpop.f32.mrb[0].mxu0
        %v928 = vadd.f32 0.0, %v927
        %v929 = vpop.f32.mrb[0].mxu0
        %930 = vmatprep.mubr.bf16.mxu0 0
        %931 = vmatmul.mubr.bf16.gmra.mrb[0].mxu0 %v617
        %v932 = vpop.f32.mrb[0].mxu0
        %v933 = vadd.f32 0.0, %v932
        %v934 = vpop.f32.mrb[0].mxu0
        %v935 = vpop.f32.mrb[0].mxu0
        %v936 = vadd.f32 0.0, %v935
        %v937 = vpop.f32.mrb[0].mxu0
        %938 = vmatprep.mubr.bf16.mxu0 0
        %939 = vmatmul.mubr.bf16.gmra.mrb[0].mxu0 %v620
        %v940 = vpop.f32.mrb[0].mxu0
        %v941 = vadd.f32 0.0, %v940
        %v942 = vpop.f32.mrb[0].mxu0
        %v943 = vpop.f32.mrb[0].mxu0
        %v944 = vadd.f32 0.0, %v943
        %v945 = vpop.f32.mrb[0].mxu0
        %946 = vmatprep.mubr.bf16.mxu0 0
        %947 = vmatmul.mubr.bf16.gmra.mrb[0].mxu0 %v623
        %v948 = vpop.f32.mrb[0].mxu0
        %v949 = vadd.f32 0.0, %v948
        %v950 = vpop.f32.mrb[0].mxu0
        %v951 = vpop.f32.mrb[0].mxu0
        %v952 = vadd.f32 0.0, %v951
        %v953 = vpop.f32.mrb[0].mxu0
        %954 = vmatprep.mubr.bf16.mxu0 0
        %955 = vmatmul.mubr.bf16.gmra.mrb[0].mxu0 %v626
        %v956 = vpop.f32.mrb[0].mxu0
        %v957 = vadd.f32 0.0, %v956
        %v958 = vpop.f32.mrb[0].mxu0
        %v959 = vpop.f32.mrb[0].mxu0
        %v960 = vadd.f32 0.0, %v959
        %v961 = vpop.f32.mrb[0].mxu0
        %962 = vmatprep.mubr.bf16.mxu0 0
        %963 = vmatmul.mubr.bf16.gmra.mrb[0].mxu0 %v629
        %v964 = vpop.f32.mrb[0].mxu0
        %v965 = vadd.f32 0.0, %v964
        %v966 = vpop.f32.mrb[0].mxu0
        %v967 = vpop.f32.mrb[0].mxu0
        %v968 = vadd.f32 0.0, %v967
        %v969 = vpop.f32.mrb[0].mxu0
        %970 = vmatprep.mubr.bf16.mxu0 0
        %971 = vmatmul.mubr.bf16.gmra.mrb[0].mxu0 %v632
        %v972 = vpop.f32.mrb[0].mxu0
        %v973 = vadd.f32 0.0, %v972
        %v974 = vpop.f32.mrb[0].mxu0
        %v975 = vpop.f32.mrb[0].mxu0
        %v976 = vadd.f32 0.0, %v975
        %v977 = vpop.f32.mrb[0].mxu0
        %978 = vmatprep.mubr.bf16.mxu0 0
        %979 = vmatmul.mubr.bf16.gmra.mrb[0].mxu0 %v635
        %v980 = vpop.f32.mrb[0].mxu0
        %v981 = vadd.f32 0.0, %v980
        %v982 = vpop.f32.mrb[0].mxu0
        %v983 = vpop.f32.mrb[0].mxu0
        %v984 = vadd.f32 0.0, %v983
        %v985 = vpop.f32.mrb[0].mxu0
        %986 = vdwg.mxu0
        %v991 = vunpack.c.l.b16 %v565
        %v992 = vunpack.c.l.b16 %v566
        %v993 = vunpack.c.l.b16 %v567
        %v994 = vunpack.c.l.b16 %v568
        %v995 = vpack.c.b16 %v992, %v991
        %v996 = vpack.c.b16 %v994, %v993
        %999 = vmatprep.subr.bf16.mxu0 0
        %1000 = vmatpush1.bf16.msra.mxu0 %v995
        %1001 = vmatprep.subr.bf16.mxu0 0
        %1002 = vmatpush1.bf16.msra.mxu0 %v996
        %1003 = vmatprep.subr.bf16.mxu0 0
        %1004 = vmatpush1.bf16.msra.mxu0 0
        %1005 = vmatprep.subr.bf16.mxu0 0
        %1006 = vmatpush1.bf16.msra.mxu0 0
        %1007 = vmatprep.subr.bf16.mxu0 0
        %1008 = vmatpush1.bf16.msra.mxu0 0
        %1009 = vmatprep.subr.bf16.mxu0 0
        %1010 = vmatpush1.bf16.msra.mxu0 0
        %1011 = vmatprep.subr.bf16.mxu0 0
        %1012 = vmatpush1.bf16.msra.mxu0 0
        %1013 = vmatprep.subr.bf16.mxu0 0
        %1014 = vmatpush1.bf16.msra.mxu0 0
        %1015 = vmatprep.subr.bf16.mxu0 0
        %1016 = vmatpush1.bf16.msra.mxu0 0
        %1017 = vmatprep.subr.bf16.mxu0 0
        %1018 = vmatpush1.bf16.msra.mxu0 0
        %1019 = vmatprep.subr.bf16.mxu0 0
        %1020 = vmatpush1.bf16.msra.mxu0 0
        %1021 = vmatprep.subr.bf16.mxu0 0
        %1022 = vmatpush1.bf16.msra.mxu0 0
        %1023 = vmatprep.subr.bf16.mxu0 0
        %1024 = vmatpush1.bf16.msra.mxu0 0
        %1025 = vmatprep.subr.bf16.mxu0 0
        %1026 = vmatpush1.bf16.msra.mxu0 0
        %1027 = vmatprep.subr.bf16.mxu0 0
        %1028 = vmatpush1.bf16.msra.mxu0 0
        %1029 = vmatprep.subr.bf16.mxu0 0
        %1030 = vmatpush1.bf16.msra.mxu0 0
        %1031 = vmatprep.mubr.bf16.mxu0 0
        %1032 = vmatmul.mubr.bf16.gmra.mrb[0].mxu0 %v587
        %v1033 = vpop.f32.mrb[0].mxu0
        %v1034 = vadd.f32 0.0, %v1033
        %v1035 = vpop.f32.mrb[0].mxu0
        %v1036 = vpop.f32.mrb[0].mxu0
        %v1037 = vadd.f32 0.0, %v1036
        %v1038 = vpop.f32.mrb[0].mxu0
        %1039 = vmatprep.mubr.bf16.mxu0 0
        %1040 = vmatmul.mubr.bf16.gmra.mrb[0].mxu0 %v590
        %v1041 = vpop.f32.mrb[0].mxu0
        %v1042 = vadd.f32 0.0, %v1041
        %v1043 = vpop.f32.mrb[0].mxu0
        %v1044 = vpop.f32.mrb[0].mxu0
        %v1045 = vadd.f32 0.0, %v1044
        %v1046 = vpop.f32.mrb[0].mxu0
        %1047 = vmatprep.mubr.bf16.mxu0 0
        %1048 = vmatmul.mubr.bf16.gmra.mrb[0].mxu0 %v593
        %v1049 = vpop.f32.mrb[0].mxu0
        %v1050 = vadd.f32 0.0, %v1049
        %v1051 = vpop.f32.mrb[0].mxu0
        %v1052 = vpop.f32.mrb[0].mxu0
        %v1053 = vadd.f32 0.0, %v1052
        %v1054 = vpop.f32.mrb[0].mxu0
        %1055 = vmatprep.mubr.bf16.mxu0 0
        %1056 = vmatmul.mubr.bf16.gmra.mrb[0].mxu0 %v596
        %v1057 = vpop.f32.mrb[0].mxu0
        %v1058 = vadd.f32 0.0, %v1057
        %v1059 = vpop.f32.mrb[0].mxu0
        %v1060 = vpop.f32.mrb[0].mxu0
        %v1061 = vadd.f32 0.0, %v1060
        %v1062 = vpop.f32.mrb[0].mxu0
        %1063 = vmatprep.mubr.bf16.mxu0 0
        %1064 = vmatmul.mubr.bf16.gmra.mrb[0].mxu0 %v599
        %v1065 = vpop.f32.mrb[0].mxu0
        %v1066 = vadd.f32 0.0, %v1065
        %v1067 = vpop.f32.mrb[0].mxu0
        %v1068 = vpop.f32.mrb[0].mxu0
        %v1069 = vadd.f32 0.0, %v1068
        %v1070 = vpop.f32.mrb[0].mxu0
        %1071 = vmatprep.mubr.bf16.mxu0 0
        %1072 = vmatmul.mubr.bf16.gmra.mrb[0].mxu0 %v602
        %v1073 = vpop.f32.mrb[0].mxu0
        %v1074 = vadd.f32 0.0, %v1073
        %v1075 = vpop.f32.mrb[0].mxu0
        %v1076 = vpop.f32.mrb[0].mxu0
        %v1077 = vadd.f32 0.0, %v1076
        %v1078 = vpop.f32.mrb[0].mxu0
        %1079 = vmatprep.mubr.bf16.mxu0 0
        %1080 = vmatmul.mubr.bf16.gmra.mrb[0].mxu0 %v605
        %v1081 = vpop.f32.mrb[0].mxu0
        %v1082 = vadd.f32 0.0, %v1081
        %v1083 = vpop.f32.mrb[0].mxu0
        %v1084 = vpop.f32.mrb[0].mxu0
        %v1085 = vadd.f32 0.0, %v1084
        %v1086 = vpop.f32.mrb[0].mxu0
        %1087 = vmatprep.mubr.bf16.mxu0 0
        %1088 = vmatmul.mubr.bf16.gmra.mrb[0].mxu0 %v608
        %v1089 = vpop.f32.mrb[0].mxu0
        %v1090 = vadd.f32 0.0, %v1089
        %v1091 = vpop.f32.mrb[0].mxu0
        %v1092 = vpop.f32.mrb[0].mxu0
        %v1093 = vadd.f32 0.0, %v1092
        %v1094 = vpop.f32.mrb[0].mxu0
        %1095 = vmatprep.mubr.bf16.mxu0 0
        %1096 = vmatmul.mubr.bf16.gmra.mrb[0].mxu0 %v611
        %v1097 = vpop.f32.mrb[0].mxu0
        %v1098 = vadd.f32 0.0, %v1097
        %v1099 = vpop.f32.mrb[0].mxu0
        %v1100 = vpop.f32.mrb[0].mxu0
        %v1101 = vadd.f32 0.0, %v1100
        %v1102 = vpop.f32.mrb[0].mxu0
        %1103 = vmatprep.mubr.bf16.mxu0 0
        %1104 = vmatmul.mubr.bf16.gmra.mrb[0].mxu0 %v614
        %v1105 = vpop.f32.mrb[0].mxu0
        %v1106 = vadd.f32 0.0, %v1105
        %v1107 = vpop.f32.mrb[0].mxu0
        %v1108 = vpop.f32.mrb[0].mxu0
        %v1109 = vadd.f32 0.0, %v1108
        %v1110 = vpop.f32.mrb[0].mxu0
        %1111 = vmatprep.mubr.bf16.mxu0 0
        %1112 = vmatmul.mubr.bf16.gmra.mrb[0].mxu0 %v617
        %v1113 = vpop.f32.mrb[0].mxu0
        %v1114 = vadd.f32 0.0, %v1113
        %v1115 = vpop.f32.mrb[0].mxu0
        %v1116 = vpop.f32.mrb[0].mxu0
        %v1117 = vadd.f32 0.0, %v1116
        %v1118 = vpop.f32.mrb[0].mxu0
        %1119 = vmatprep.mubr.bf16.mxu0 0
        %1120 = vmatmul.mubr.bf16.gmra.mrb[0].mxu0 %v620
        %v1121 = vpop.f32.mrb[0].mxu0
        %v1122 = vadd.f32 0.0, %v1121
        %v1123 = vpop.f32.mrb[0].mxu0
        %v1124 = vpop.f32.mrb[0].mxu0
        %v1125 = vadd.f32 0.0, %v1124
        %v1126 = vpop.f32.mrb[0].mxu0
        %1127 = vmatprep.mubr.bf16.mxu0 0
        %1128 = vmatmul.mubr.bf16.gmra.mrb[0].mxu0 %v623
        %v1129 = vpop.f32.mrb[0].mxu0
        %v1130 = vadd.f32 0.0, %v1129
        %v1131 = vpop.f32.mrb[0].mxu0
        %v1132 = vpop.f32.mrb[0].mxu0
        %v1133 = vadd.f32 0.0, %v1132
        %v1134 = vpop.f32.mrb[0].mxu0
        %1135 = vmatprep.mubr.bf16.mxu0 0
        %1136 = vmatmul.mubr.bf16.gmra.mrb[0].mxu0 %v626
        %v1137 = vpop.f32.mrb[0].mxu0
        %v1138 = vadd.f32 0.0, %v1137
        %v1139 = vpop.f32.mrb[0].mxu0
        %v1140 = vpop.f32.mrb[0].mxu0
        %v1141 = vadd.f32 0.0, %v1140
        %v1142 = vpop.f32.mrb[0].mxu0
        %1143 = vmatprep.mubr.bf16.mxu0 0
        %1144 = vmatmul.mubr.bf16.gmra.mrb[0].mxu0 %v629
        %v1145 = vpop.f32.mrb[0].mxu0
        %v1146 = vadd.f32 0.0, %v1145
        %v1147 = vpop.f32.mrb[0].mxu0
        %v1148 = vpop.f32.mrb[0].mxu0
        %v1149 = vadd.f32 0.0, %v1148
        %v1150 = vpop.f32.mrb[0].mxu0
        %1151 = vmatprep.mubr.bf16.mxu0 0
        %1152 = vmatmul.mubr.bf16.gmra.mrb[0].mxu0 %v632
        %v1153 = vpop.f32.mrb[0].mxu0
        %v1154 = vadd.f32 0.0, %v1153
        %v1155 = vpop.f32.mrb[0].mxu0
        %v1156 = vpop.f32.mrb[0].mxu0
        %v1157 = vadd.f32 0.0, %v1156
        %v1158 = vpop.f32.mrb[0].mxu0
        %1159 = vmatprep.mubr.bf16.mxu0 0
        %1160 = vmatmul.mubr.bf16.gmra.mrb[0].mxu0 %v635
        %v1161 = vpop.f32.mrb[0].mxu0
        %v1162 = vadd.f32 0.0, %v1161
        %v1163 = vpop.f32.mrb[0].mxu0
        %v1164 = vpop.f32.mrb[0].mxu0
        %v1165 = vadd.f32 0.0, %v1164
        %v1166 = vpop.f32.mrb[0].mxu0
        %1167 = vdwg.mxu0
        %v1172 = vunpack.c.l.b16 %v569
        %v1173 = vunpack.c.l.b16 %v570
        %v1174 = vunpack.c.l.b16 %v571
        %v1175 = vunpack.c.l.b16 %v572
        %v1176 = vpack.c.b16 %v1173, %v1172
        %v1177 = vpack.c.b16 %v1175, %v1174
        %1180 = vmatprep.subr.bf16.mxu0 0
        %1181 = vmatpush1.bf16.msra.mxu0 %v1176
        %1182 = vmatprep.subr.bf16.mxu0 0
        %1183 = vmatpush1.bf16.msra.mxu0 %v1177
        %1184 = vmatprep.subr.bf16.mxu0 0
        %1185 = vmatpush1.bf16.msra.mxu0 0
        %1186 = vmatprep.subr.bf16.mxu0 0
        %1187 = vmatpush1.bf16.msra.mxu0 0
        %1188 = vmatprep.subr.bf16.mxu0 0
        %1189 = vmatpush1.bf16.msra.mxu0 0
        %1190 = vmatprep.subr.bf16.mxu0 0
        %1191 = vmatpush1.bf16.msra.mxu0 0
        %1192 = vmatprep.subr.bf16.mxu0 0
        %1193 = vmatpush1.bf16.msra.mxu0 0
        %1194 = vmatprep.subr.bf16.mxu0 0
        %1195 = vmatpush1.bf16.msra.mxu0 0
        %1196 = vmatprep.subr.bf16.mxu0 0
        %1197 = vmatpush1.bf16.msra.mxu0 0
        %1198 = vmatprep.subr.bf16.mxu0 0
        %1199 = vmatpush1.bf16.msra.mxu0 0
        %1200 = vmatprep.subr.bf16.mxu0 0
        %1201 = vmatpush1.bf16.msra.mxu0 0
        %1202 = vmatprep.subr.bf16.mxu0 0
        %1203 = vmatpush1.bf16.msra.mxu0 0
        %1204 = vmatprep.subr.bf16.mxu0 0
        %1205 = vmatpush1.bf16.msra.mxu0 0
        %1206 = vmatprep.subr.bf16.mxu0 0
        %1207 = vmatpush1.bf16.msra.mxu0 0
        %1208 = vmatprep.subr.bf16.mxu0 0
        %1209 = vmatpush1.bf16.msra.mxu0 0
        %1210 = vmatprep.subr.bf16.mxu0 0
        %1211 = vmatpush1.bf16.msra.mxu0 0
        %1212 = vmatprep.mubr.bf16.mxu0 0
        %1213 = vmatmul.mubr.bf16.gmra.mrb[0].mxu0 %v587
        %v1214 = vpop.f32.mrb[0].mxu0
        %v1215 = vadd.f32 0.0, %v1214
        %v1216 = vpop.f32.mrb[0].mxu0
        %v1217 = vpop.f32.mrb[0].mxu0
        %v1218 = vadd.f32 0.0, %v1217
        %v1219 = vpop.f32.mrb[0].mxu0
        %1220 = vmatprep.mubr.bf16.mxu0 0
        %1221 = vmatmul.mubr.bf16.gmra.mrb[0].mxu0 %v590
        %v1222 = vpop.f32.mrb[0].mxu0
        %v1223 = vadd.f32 0.0, %v1222
        %v1224 = vpop.f32.mrb[0].mxu0
        %v1225 = vpop.f32.mrb[0].mxu0
        %v1226 = vadd.f32 0.0, %v1225
        %v1227 = vpop.f32.mrb[0].mxu0
        %1228 = vmatprep.mubr.bf16.mxu0 0
        %1229 = vmatmul.mubr.bf16.gmra.mrb[0].mxu0 %v593
        %v1230 = vpop.f32.mrb[0].mxu0
        %v1231 = vadd.f32 0.0, %v1230
        %v1232 = vpop.f32.mrb[0].mxu0
        %v1233 = vpop.f32.mrb[0].mxu0
        %v1234 = vadd.f32 0.0, %v1233
        %v1235 = vpop.f32.mrb[0].mxu0
        %1236 = vmatprep.mubr.bf16.mxu0 0
        %1237 = vmatmul.mubr.bf16.gmra.mrb[0].mxu0 %v596
        %v1238 = vpop.f32.mrb[0].mxu0
        %v1239 = vadd.f32 0.0, %v1238
        %v1240 = vpop.f32.mrb[0].mxu0
        %v1241 = vpop.f32.mrb[0].mxu0
        %v1242 = vadd.f32 0.0, %v1241
        %v1243 = vpop.f32.mrb[0].mxu0
        %1244 = vmatprep.mubr.bf16.mxu0 0
        %1245 = vmatmul.mubr.bf16.gmra.mrb[0].mxu0 %v599
        %v1246 = vpop.f32.mrb[0].mxu0
        %v1247 = vadd.f32 0.0, %v1246
        %v1248 = vpop.f32.mrb[0].mxu0
        %v1249 = vpop.f32.mrb[0].mxu0
        %v1250 = vadd.f32 0.0, %v1249
        %v1251 = vpop.f32.mrb[0].mxu0
        %1252 = vmatprep.mubr.bf16.mxu0 0
        %1253 = vmatmul.mubr.bf16.gmra.mrb[0].mxu0 %v602
        %v1254 = vpop.f32.mrb[0].mxu0
        %v1255 = vadd.f32 0.0, %v1254
        %v1256 = vpop.f32.mrb[0].mxu0
        %v1257 = vpop.f32.mrb[0].mxu0
        %v1258 = vadd.f32 0.0, %v1257
        %v1259 = vpop.f32.mrb[0].mxu0
        %1260 = vmatprep.mubr.bf16.mxu0 0
        %1261 = vmatmul.mubr.bf16.gmra.mrb[0].mxu0 %v605
        %v1262 = vpop.f32.mrb[0].mxu0
        %v1263 = vadd.f32 0.0, %v1262
        %v1264 = vpop.f32.mrb[0].mxu0
        %v1265 = vpop.f32.mrb[0].mxu0
        %v1266 = vadd.f32 0.0, %v1265
        %v1267 = vpop.f32.mrb[0].mxu0
        %1268 = vmatprep.mubr.bf16.mxu0 0
        %1269 = vmatmul.mubr.bf16.gmra.mrb[0].mxu0 %v608
        %v1270 = vpop.f32.mrb[0].mxu0
        %v1271 = vadd.f32 0.0, %v1270
        %v1272 = vpop.f32.mrb[0].mxu0
        %v1273 = vpop.f32.mrb[0].mxu0
        %v1274 = vadd.f32 0.0, %v1273
        %v1275 = vpop.f32.mrb[0].mxu0
        %1276 = vmatprep.mubr.bf16.mxu0 0
        %1277 = vmatmul.mubr.bf16.gmra.mrb[0].mxu0 %v611
        %v1278 = vpop.f32.mrb[0].mxu0
        %v1279 = vadd.f32 0.0, %v1278
        %v1280 = vpop.f32.mrb[0].mxu0
        %v1281 = vpop.f32.mrb[0].mxu0
        %v1282 = vadd.f32 0.0, %v1281
        %v1283 = vpop.f32.mrb[0].mxu0
        %1284 = vmatprep.mubr.bf16.mxu0 0
        %1285 = vmatmul.mubr.bf16.gmra.mrb[0].mxu0 %v614
        %v1286 = vpop.f32.mrb[0].mxu0
        %v1287 = vadd.f32 0.0, %v1286
        %v1288 = vpop.f32.mrb[0].mxu0
        %v1289 = vpop.f32.mrb[0].mxu0
        %v1290 = vadd.f32 0.0, %v1289
        %v1291 = vpop.f32.mrb[0].mxu0
        %1292 = vmatprep.mubr.bf16.mxu0 0
        %1293 = vmatmul.mubr.bf16.gmra.mrb[0].mxu0 %v617
        %v1294 = vpop.f32.mrb[0].mxu0
        %v1295 = vadd.f32 0.0, %v1294
        %v1296 = vpop.f32.mrb[0].mxu0
        %v1297 = vpop.f32.mrb[0].mxu0
        %v1298 = vadd.f32 0.0, %v1297
        %v1299 = vpop.f32.mrb[0].mxu0
        %1300 = vmatprep.mubr.bf16.mxu0 0
        %1301 = vmatmul.mubr.bf16.gmra.mrb[0].mxu0 %v620
        %v1302 = vpop.f32.mrb[0].mxu0
        %v1303 = vadd.f32 0.0, %v1302
        %v1304 = vpop.f32.mrb[0].mxu0
        %v1305 = vpop.f32.mrb[0].mxu0
        %v1306 = vadd.f32 0.0, %v1305
        %v1307 = vpop.f32.mrb[0].mxu0
        %1308 = vmatprep.mubr.bf16.mxu0 0
        %1309 = vmatmul.mubr.bf16.gmra.mrb[0].mxu0 %v623
        %v1310 = vpop.f32.mrb[0].mxu0
        %v1311 = vadd.f32 0.0, %v1310
        %v1312 = vpop.f32.mrb[0].mxu0
        %v1313 = vpop.f32.mrb[0].mxu0
        %v1314 = vadd.f32 0.0, %v1313
        %v1315 = vpop.f32.mrb[0].mxu0
        %1316 = vmatprep.mubr.bf16.mxu0 0
        %1317 = vmatmul.mubr.bf16.gmra.mrb[0].mxu0 %v626
        %v1318 = vpop.f32.mrb[0].mxu0
        %v1319 = vadd.f32 0.0, %v1318
        %v1320 = vpop.f32.mrb[0].mxu0
        %v1321 = vpop.f32.mrb[0].mxu0
        %v1322 = vadd.f32 0.0, %v1321
        %v1323 = vpop.f32.mrb[0].mxu0
        %1324 = vmatprep.mubr.bf16.mxu0 0
        %1325 = vmatmul.mubr.bf16.gmra.mrb[0].mxu0 %v629
        %v1326 = vpop.f32.mrb[0].mxu0
        %v1327 = vadd.f32 0.0, %v1326
        %v1328 = vpop.f32.mrb[0].mxu0
        %v1329 = vpop.f32.mrb[0].mxu0
        %v1330 = vadd.f32 0.0, %v1329
        %v1331 = vpop.f32.mrb[0].mxu0
        %1332 = vmatprep.mubr.bf16.mxu0 0
        %1333 = vmatmul.mubr.bf16.gmra.mrb[0].mxu0 %v632
        %v1334 = vpop.f32.mrb[0].mxu0
        %v1335 = vadd.f32 0.0, %v1334
        %v1336 = vpop.f32.mrb[0].mxu0
        %v1337 = vpop.f32.mrb[0].mxu0
        %v1338 = vadd.f32 0.0, %v1337
        %v1339 = vpop.f32.mrb[0].mxu0
        %1340 = vmatprep.mubr.bf16.mxu0 0
        %1341 = vmatmul.mubr.bf16.gmra.mrb[0].mxu0 %v635
        %v1342 = vpop.f32.mrb[0].mxu0
        %v1343 = vadd.f32 0.0, %v1342
        %v1344 = vpop.f32.mrb[0].mxu0
        %v1345 = vpop.f32.mrb[0].mxu0
        %v1346 = vadd.f32 0.0, %v1345
        %v1347 = vpop.f32.mrb[0].mxu0
        %1348 = vdwg.mxu0
        %v1349 = vld [vmem:[%s3] sm:$0xf]
        %v1350 = vld [vmem:[%s3 + $0x4] sm:$0xf]
        %v1351 = vld [vmem:[%s3 + $0x8] sm:$0xf]
        %v1352 = vld [vmem:[%s3 + $0xc] sm:$0xf]
        %v1353 = vld [vmem:[%s3 + $0x10] sm:$0xf]
        %v1354 = vld [vmem:[%s3 + $0x14] sm:$0xf]
        %v1355 = vld [vmem:[%s3 + $0x18] sm:$0xf]
        %v1356 = vld [vmem:[%s3 + $0x1c] sm:$0xf]
        %v1357 = vld [vmem:[%s3 + $0x20] sm:$0xf]
        %v1358 = vld [vmem:[%s3 + $0x24] sm:$0xf]
        %v1359 = vld [vmem:[%s3 + $0x28] sm:$0xf]
        %v1360 = vld [vmem:[%s3 + $0x2c] sm:$0xf]
        %v1361 = vld [vmem:[%s3 + $0x30] sm:$0xf]
        %v1362 = vld [vmem:[%s3 + $0x34] sm:$0xf]
        %v1363 = vld [vmem:[%s3 + $0x38] sm:$0xf]
        %v1364 = vld [vmem:[%s3 + $0x3c] sm:$0xf]
        %v1369 = vunpack.c.l.b16 %v1349
        %v1370 = vunpack.c.l.b16 %v1350
        %v1371 = vunpack.c.l.b16 %v1351
        %v1372 = vunpack.c.l.b16 %v1352
        %v1373 = vpack.c.b16 %v1370, %v1369
        %v1374 = vpack.c.b16 %v1372, %v1371
        %1377 = vmatprep.subr.bf16.mxu0 0
        %1378 = vmatpush1.bf16.msra.mxu0 %v1373
        %1379 = vmatprep.subr.bf16.mxu0 0
        %1380 = vmatpush1.bf16.msra.mxu0 %v1374
        %1381 = vmatprep.subr.bf16.mxu0 0
        %1382 = vmatpush1.bf16.msra.mxu0 0
        %1383 = vmatprep.subr.bf16.mxu0 0
        %1384 = vmatpush1.bf16.msra.mxu0 0
        %1385 = vmatprep.subr.bf16.mxu0 0
        %1386 = vmatpush1.bf16.msra.mxu0 0
        %1387 = vmatprep.subr.bf16.mxu0 0
        %1388 = vmatpush1.bf16.msra.mxu0 0
        %1389 = vmatprep.subr.bf16.mxu0 0
        %1390 = vmatpush1.bf16.msra.mxu0 0
        %1391 = vmatprep.subr.bf16.mxu0 0
        %1392 = vmatpush1.bf16.msra.mxu0 0
        %1393 = vmatprep.subr.bf16.mxu0 0
        %1394 = vmatpush1.bf16.msra.mxu0 0
        %1395 = vmatprep.subr.bf16.mxu0 0
        %1396 = vmatpush1.bf16.msra.mxu0 0
        %1397 = vmatprep.subr.bf16.mxu0 0
        %1398 = vmatpush1.bf16.msra.mxu0 0
        %1399 = vmatprep.subr.bf16.mxu0 0
        %1400 = vmatpush1.bf16.msra.mxu0 0
        %1401 = vmatprep.subr.bf16.mxu0 0
        %1402 = vmatpush1.bf16.msra.mxu0 0
        %1403 = vmatprep.subr.bf16.mxu0 0
        %1404 = vmatpush1.bf16.msra.mxu0 0
        %1405 = vmatprep.subr.bf16.mxu0 0
        %1406 = vmatpush1.bf16.msra.mxu0 0
        %1407 = vmatprep.subr.bf16.mxu0 0
        %1408 = vmatpush1.bf16.msra.mxu0 0
        %1409 = vmatprep.mubr.bf16.mxu0 0
        %1410 = vmatmul.mubr.bf16.gmra.mrb[0].mxu0 %v587
        %v1411 = vpop.f32.mrb[0].mxu0
        %v1412 = vadd.f32 0.0, %v1411
        %v1413 = vpop.f32.mrb[0].mxu0
        %v1414 = vpop.f32.mrb[0].mxu0
        %v1415 = vadd.f32 0.0, %v1414
        %v1416 = vpop.f32.mrb[0].mxu0
        %1417 = vmatprep.mubr.bf16.mxu0 0
        %1418 = vmatmul.mubr.bf16.gmra.mrb[0].mxu0 %v590
        %v1419 = vpop.f32.mrb[0].mxu0
        %v1420 = vadd.f32 0.0, %v1419
        %v1421 = vpop.f32.mrb[0].mxu0
        %v1422 = vpop.f32.mrb[0].mxu0
        %v1423 = vadd.f32 0.0, %v1422
        %v1424 = vpop.f32.mrb[0].mxu0
        %1425 = vmatprep.mubr.bf16.mxu0 0
        %1426 = vmatmul.mubr.bf16.gmra.mrb[0].mxu0 %v593
        %v1427 = vpop.f32.mrb[0].mxu0
        %v1428 = vadd.f32 0.0, %v1427
        %v1429 = vpop.f32.mrb[0].mxu0
        %v1430 = vpop.f32.mrb[0].mxu0
        %v1431 = vadd.f32 0.0, %v1430
        %v1432 = vpop.f32.mrb[0].mxu0
        %1433 = vmatprep.mubr.bf16.mxu0 0
        %1434 = vmatmul.mubr.bf16.gmra.mrb[0].mxu0 %v596
        %v1435 = vpop.f32.mrb[0].mxu0
        %v1436 = vadd.f32 0.0, %v1435
        %v1437 = vpop.f32.mrb[0].mxu0
        %v1438 = vpop.f32.mrb[0].mxu0
        %v1439 = vadd.f32 0.0, %v1438
        %v1440 = vpop.f32.mrb[0].mxu0
        %1441 = vmatprep.mubr.bf16.mxu0 0
        %1442 = vmatmul.mubr.bf16.gmra.mrb[0].mxu0 %v599
        %v1443 = vpop.f32.mrb[0].mxu0
        %v1444 = vadd.f32 0.0, %v1443
        %v1445 = vpop.f32.mrb[0].mxu0
        %v1446 = vpop.f32.mrb[0].mxu0
        %v1447 = vadd.f32 0.0, %v1446
        %v1448 = vpop.f32.mrb[0].mxu0
        %1449 = vmatprep.mubr.bf16.mxu0 0
        %1450 = vmatmul.mubr.bf16.gmra.mrb[0].mxu0 %v602
        %v1451 = vpop.f32.mrb[0].mxu0
        %v1452 = vadd.f32 0.0, %v1451
        %v1453 = vpop.f32.mrb[0].mxu0
        %v1454 = vpop.f32.mrb[0].mxu0
        %v1455 = vadd.f32 0.0, %v1454
        %v1456 = vpop.f32.mrb[0].mxu0
        %1457 = vmatprep.mubr.bf16.mxu0 0
        %1458 = vmatmul.mubr.bf16.gmra.mrb[0].mxu0 %v605
        %v1459 = vpop.f32.mrb[0].mxu0
        %v1460 = vadd.f32 0.0, %v1459
        %v1461 = vpop.f32.mrb[0].mxu0
        %v1462 = vpop.f32.mrb[0].mxu0
        %v1463 = vadd.f32 0.0, %v1462
        %v1464 = vpop.f32.mrb[0].mxu0
        %1465 = vmatprep.mubr.bf16.mxu0 0
        %1466 = vmatmul.mubr.bf16.gmra.mrb[0].mxu0 %v608
        %v1467 = vpop.f32.mrb[0].mxu0
        %v1468 = vadd.f32 0.0, %v1467
        %v1469 = vpop.f32.mrb[0].mxu0
        %v1470 = vpop.f32.mrb[0].mxu0
        %v1471 = vadd.f32 0.0, %v1470
        %v1472 = vpop.f32.mrb[0].mxu0
        %1473 = vmatprep.mubr.bf16.mxu0 0
        %1474 = vmatmul.mubr.bf16.gmra.mrb[0].mxu0 %v611
        %v1475 = vpop.f32.mrb[0].mxu0
        %v1476 = vadd.f32 0.0, %v1475
        %v1477 = vpop.f32.mrb[0].mxu0
        %v1478 = vpop.f32.mrb[0].mxu0
        %v1479 = vadd.f32 0.0, %v1478
        %v1480 = vpop.f32.mrb[0].mxu0
        %1481 = vmatprep.mubr.bf16.mxu0 0
        %1482 = vmatmul.mubr.bf16.gmra.mrb[0].mxu0 %v614
        %v1483 = vpop.f32.mrb[0].mxu0
        %v1484 = vadd.f32 0.0, %v1483
        %v1485 = vpop.f32.mrb[0].mxu0
        %v1486 = vpop.f32.mrb[0].mxu0
        %v1487 = vadd.f32 0.0, %v1486
        %v1488 = vpop.f32.mrb[0].mxu0
        %1489 = vmatprep.mubr.bf16.mxu0 0
        %1490 = vmatmul.mubr.bf16.gmra.mrb[0].mxu0 %v617
        %v1491 = vpop.f32.mrb[0].mxu0
        %v1492 = vadd.f32 0.0, %v1491
        %v1493 = vpop.f32.mrb[0].mxu0
        %v1494 = vpop.f32.mrb[0].mxu0
        %v1495 = vadd.f32 0.0, %v1494
        %v1496 = vpop.f32.mrb[0].mxu0
        %1497 = vmatprep.mubr.bf16.mxu0 0
        %1498 = vmatmul.mubr.bf16.gmra.mrb[0].mxu0 %v620
        %v1499 = vpop.f32.mrb[0].mxu0
        %v1500 = vadd.f32 0.0, %v1499
        %v1501 = vpop.f32.mrb[0].mxu0
        %v1502 = vpop.f32.mrb[0].mxu0
        %v1503 = vadd.f32 0.0, %v1502
        %v1504 = vpop.f32.mrb[0].mxu0
        %1505 = vmatprep.mubr.bf16.mxu0 0
        %1506 = vmatmul.mubr.bf16.gmra.mrb[0].mxu0 %v623
        %v1507 = vpop.f32.mrb[0].mxu0
        %v1508 = vadd.f32 0.0, %v1507
        %v1509 = vpop.f32.mrb[0].mxu0
        %v1510 = vpop.f32.mrb[0].mxu0
        %v1511 = vadd.f32 0.0, %v1510
        %v1512 = vpop.f32.mrb[0].mxu0
        %1513 = vmatprep.mubr.bf16.mxu0 0
        %1514 = vmatmul.mubr.bf16.gmra.mrb[0].mxu0 %v626
        %v1515 = vpop.f32.mrb[0].mxu0
        %v1516 = vadd.f32 0.0, %v1515
        %v1517 = vpop.f32.mrb[0].mxu0
        %v1518 = vpop.f32.mrb[0].mxu0
        %v1519 = vadd.f32 0.0, %v1518
        %v1520 = vpop.f32.mrb[0].mxu0
        %1521 = vmatprep.mubr.bf16.mxu0 0
        %1522 = vmatmul.mubr.bf16.gmra.mrb[0].mxu0 %v629
        %v1523 = vpop.f32.mrb[0].mxu0
        %v1524 = vadd.f32 0.0, %v1523
        %v1525 = vpop.f32.mrb[0].mxu0
        %v1526 = vpop.f32.mrb[0].mxu0
        %v1527 = vadd.f32 0.0, %v1526
        %v1528 = vpop.f32.mrb[0].mxu0
        %1529 = vmatprep.mubr.bf16.mxu0 0
        %1530 = vmatmul.mubr.bf16.gmra.mrb[0].mxu0 %v632
        %v1531 = vpop.f32.mrb[0].mxu0
        %v1532 = vadd.f32 0.0, %v1531
        %v1533 = vpop.f32.mrb[0].mxu0
        %v1534 = vpop.f32.mrb[0].mxu0
        %v1535 = vadd.f32 0.0, %v1534
        %v1536 = vpop.f32.mrb[0].mxu0
        %1537 = vmatprep.mubr.bf16.mxu0 0
        %1538 = vmatmul.mubr.bf16.gmra.mrb[0].mxu0 %v635
        %v1539 = vpop.f32.mrb[0].mxu0
        %v1540 = vadd.f32 0.0, %v1539
        %v1541 = vpop.f32.mrb[0].mxu0
        %v1542 = vpop.f32.mrb[0].mxu0
        %v1543 = vadd.f32 0.0, %v1542
        %v1544 = vpop.f32.mrb[0].mxu0
        %1545 = vdwg.mxu0
        %v1550 = vunpack.c.l.b16 %v1353
        %v1551 = vunpack.c.l.b16 %v1354
        %v1552 = vunpack.c.l.b16 %v1355
        %v1553 = vunpack.c.l.b16 %v1356
        %v1554 = vpack.c.b16 %v1551, %v1550
        %v1555 = vpack.c.b16 %v1553, %v1552
        %1558 = vmatprep.subr.bf16.mxu0 0
        %1559 = vmatpush1.bf16.msra.mxu0 %v1554
        %1560 = vmatprep.subr.bf16.mxu0 0
        %1561 = vmatpush1.bf16.msra.mxu0 %v1555
        %1562 = vmatprep.subr.bf16.mxu0 0
        %1563 = vmatpush1.bf16.msra.mxu0 0
        %1564 = vmatprep.subr.bf16.mxu0 0
        %1565 = vmatpush1.bf16.msra.mxu0 0
        %1566 = vmatprep.subr.bf16.mxu0 0
        %1567 = vmatpush1.bf16.msra.mxu0 0
        %1568 = vmatprep.subr.bf16.mxu0 0
        %1569 = vmatpush1.bf16.msra.mxu0 0
        %1570 = vmatprep.subr.bf16.mxu0 0
        %1571 = vmatpush1.bf16.msra.mxu0 0
        %1572 = vmatprep.subr.bf16.mxu0 0
        %1573 = vmatpush1.bf16.msra.mxu0 0
        %1574 = vmatprep.subr.bf16.mxu0 0
        %1575 = vmatpush1.bf16.msra.mxu0 0
        %1576 = vmatprep.subr.bf16.mxu0 0
        %1577 = vmatpush1.bf16.msra.mxu0 0
        %1578 = vmatprep.subr.bf16.mxu0 0
        %1579 = vmatpush1.bf16.msra.mxu0 0
        %1580 = vmatprep.subr.bf16.mxu0 0
        %1581 = vmatpush1.bf16.msra.mxu0 0
        %1582 = vmatprep.subr.bf16.mxu0 0
        %1583 = vmatpush1.bf16.msra.mxu0 0
        %1584 = vmatprep.subr.bf16.mxu0 0
        %1585 = vmatpush1.bf16.msra.mxu0 0
        %1586 = vmatprep.subr.bf16.mxu0 0
        %1587 = vmatpush1.bf16.msra.mxu0 0
        %1588 = vmatprep.subr.bf16.mxu0 0
        %1589 = vmatpush1.bf16.msra.mxu0 0
        %1590 = vmatprep.mubr.bf16.mxu0 0
        %1591 = vmatmul.mubr.bf16.gmra.mrb[0].mxu0 %v587
        %v1592 = vpop.f32.mrb[0].mxu0
        %v1593 = vadd.f32 0.0, %v1592
        %v1594 = vpop.f32.mrb[0].mxu0
        %v1595 = vpop.f32.mrb[0].mxu0
        %v1596 = vadd.f32 0.0, %v1595
        %v1597 = vpop.f32.mrb[0].mxu0
        %1598 = vmatprep.mubr.bf16.mxu0 0
        %1599 = vmatmul.mubr.bf16.gmra.mrb[0].mxu0 %v590
        %v1600 = vpop.f32.mrb[0].mxu0
        %v1601 = vadd.f32 0.0, %v1600
        %v1602 = vpop.f32.mrb[0].mxu0
        %v1603 = vpop.f32.mrb[0].mxu0
        %v1604 = vadd.f32 0.0, %v1603
        %v1605 = vpop.f32.mrb[0].mxu0
        %1606 = vmatprep.mubr.bf16.mxu0 0
        %1607 = vmatmul.mubr.bf16.gmra.mrb[0].mxu0 %v593
        %v1608 = vpop.f32.mrb[0].mxu0
        %v1609 = vadd.f32 0.0, %v1608
        %v1610 = vpop.f32.mrb[0].mxu0
        %v1611 = vpop.f32.mrb[0].mxu0
        %v1612 = vadd.f32 0.0, %v1611
        %v1613 = vpop.f32.mrb[0].mxu0
        %1614 = vmatprep.mubr.bf16.mxu0 0
        %1615 = vmatmul.mubr.bf16.gmra.mrb[0].mxu0 %v596
        %v1616 = vpop.f32.mrb[0].mxu0
        %v1617 = vadd.f32 0.0, %v1616
        %v1618 = vpop.f32.mrb[0].mxu0
        %v1619 = vpop.f32.mrb[0].mxu0
        %v1620 = vadd.f32 0.0, %v1619
        %v1621 = vpop.f32.mrb[0].mxu0
        %1622 = vmatprep.mubr.bf16.mxu0 0
        %1623 = vmatmul.mubr.bf16.gmra.mrb[0].mxu0 %v599
        %v1624 = vpop.f32.mrb[0].mxu0
        %v1625 = vadd.f32 0.0, %v1624
        %v1626 = vpop.f32.mrb[0].mxu0
        %v1627 = vpop.f32.mrb[0].mxu0
        %v1628 = vadd.f32 0.0, %v1627
        %v1629 = vpop.f32.mrb[0].mxu0
        %1630 = vmatprep.mubr.bf16.mxu0 0
        %1631 = vmatmul.mubr.bf16.gmra.mrb[0].mxu0 %v602
        %v1632 = vpop.f32.mrb[0].mxu0
        %v1633 = vadd.f32 0.0, %v1632
        %v1634 = vpop.f32.mrb[0].mxu0
        %v1635 = vpop.f32.mrb[0].mxu0
        %v1636 = vadd.f32 0.0, %v1635
        %v1637 = vpop.f32.mrb[0].mxu0
        %1638 = vmatprep.mubr.bf16.mxu0 0
        %1639 = vmatmul.mubr.bf16.gmra.mrb[0].mxu0 %v605
        %v1640 = vpop.f32.mrb[0].mxu0
        %v1641 = vadd.f32 0.0, %v1640
        %v1642 = vpop.f32.mrb[0].mxu0
        %v1643 = vpop.f32.mrb[0].mxu0
        %v1644 = vadd.f32 0.0, %v1643
        %v1645 = vpop.f32.mrb[0].mxu0
        %1646 = vmatprep.mubr.bf16.mxu0 0
        %1647 = vmatmul.mubr.bf16.gmra.mrb[0].mxu0 %v608
        %v1648 = vpop.f32.mrb[0].mxu0
        %v1649 = vadd.f32 0.0, %v1648
        %v1650 = vpop.f32.mrb[0].mxu0
        %v1651 = vpop.f32.mrb[0].mxu0
        %v1652 = vadd.f32 0.0, %v1651
        %v1653 = vpop.f32.mrb[0].mxu0
        %1654 = vmatprep.mubr.bf16.mxu0 0
        %1655 = vmatmul.mubr.bf16.gmra.mrb[0].mxu0 %v611
        %v1656 = vpop.f32.mrb[0].mxu0
        %v1657 = vadd.f32 0.0, %v1656
        %v1658 = vpop.f32.mrb[0].mxu0
        %v1659 = vpop.f32.mrb[0].mxu0
        %v1660 = vadd.f32 0.0, %v1659
        %v1661 = vpop.f32.mrb[0].mxu0
        %1662 = vmatprep.mubr.bf16.mxu0 0
        %1663 = vmatmul.mubr.bf16.gmra.mrb[0].mxu0 %v614
        %v1664 = vpop.f32.mrb[0].mxu0
        %v1665 = vadd.f32 0.0, %v1664
        %v1666 = vpop.f32.mrb[0].mxu0
        %v1667 = vpop.f32.mrb[0].mxu0
        %v1668 = vadd.f32 0.0, %v1667
        %v1669 = vpop.f32.mrb[0].mxu0
        %1670 = vmatprep.mubr.bf16.mxu0 0
        %1671 = vmatmul.mubr.bf16.gmra.mrb[0].mxu0 %v617
        %v1672 = vpop.f32.mrb[0].mxu0
        %v1673 = vadd.f32 0.0, %v1672
        %v1674 = vpop.f32.mrb[0].mxu0
        %v1675 = vpop.f32.mrb[0].mxu0
        %v1676 = vadd.f32 0.0, %v1675
        %v1677 = vpop.f32.mrb[0].mxu0
        %1678 = vmatprep.mubr.bf16.mxu0 0
        %1679 = vmatmul.mubr.bf16.gmra.mrb[0].mxu0 %v620
        %v1680 = vpop.f32.mrb[0].mxu0
        %v1681 = vadd.f32 0.0, %v1680
        %v1682 = vpop.f32.mrb[0].mxu0
        %v1683 = vpop.f32.mrb[0].mxu0
        %v1684 = vadd.f32 0.0, %v1683
        %v1685 = vpop.f32.mrb[0].mxu0
        %1686 = vmatprep.mubr.bf16.mxu0 0
        %1687 = vmatmul.mubr.bf16.gmra.mrb[0].mxu0 %v623
        %v1688 = vpop.f32.mrb[0].mxu0
        %v1689 = vadd.f32 0.0, %v1688
        %v1690 = vpop.f32.mrb[0].mxu0
        %v1691 = vpop.f32.mrb[0].mxu0
        %v1692 = vadd.f32 0.0, %v1691
        %v1693 = vpop.f32.mrb[0].mxu0
        %1694 = vmatprep.mubr.bf16.mxu0 0
        %1695 = vmatmul.mubr.bf16.gmra.mrb[0].mxu0 %v626
        %v1696 = vpop.f32.mrb[0].mxu0
        %v1697 = vadd.f32 0.0, %v1696
        %v1698 = vpop.f32.mrb[0].mxu0
        %v1699 = vpop.f32.mrb[0].mxu0
        %v1700 = vadd.f32 0.0, %v1699
        %v1701 = vpop.f32.mrb[0].mxu0
        %1702 = vmatprep.mubr.bf16.mxu0 0
        %1703 = vmatmul.mubr.bf16.gmra.mrb[0].mxu0 %v629
        %v1704 = vpop.f32.mrb[0].mxu0
        %v1705 = vadd.f32 0.0, %v1704
        %v1706 = vpop.f32.mrb[0].mxu0
        %v1707 = vpop.f32.mrb[0].mxu0
        %v1708 = vadd.f32 0.0, %v1707
        %v1709 = vpop.f32.mrb[0].mxu0
        %1710 = vmatprep.mubr.bf16.mxu0 0
        %1711 = vmatmul.mubr.bf16.gmra.mrb[0].mxu0 %v632
        %v1712 = vpop.f32.mrb[0].mxu0
        %v1713 = vadd.f32 0.0, %v1712
        %v1714 = vpop.f32.mrb[0].mxu0
        %v1715 = vpop.f32.mrb[0].mxu0
        %v1716 = vadd.f32 0.0, %v1715
        %v1717 = vpop.f32.mrb[0].mxu0
        %1718 = vmatprep.mubr.bf16.mxu0 0
        %1719 = vmatmul.mubr.bf16.gmra.mrb[0].mxu0 %v635
        %v1720 = vpop.f32.mrb[0].mxu0
        %v1721 = vadd.f32 0.0, %v1720
        %v1722 = vpop.f32.mrb[0].mxu0
        %v1723 = vpop.f32.mrb[0].mxu0
        %v1724 = vadd.f32 0.0, %v1723
        %v1725 = vpop.f32.mrb[0].mxu0
        %1726 = vdwg.mxu0
        %v1731 = vunpack.c.l.b16 %v1357
        %v1732 = vunpack.c.l.b16 %v1358
        %v1733 = vunpack.c.l.b16 %v1359
        %v1734 = vunpack.c.l.b16 %v1360
        %v1735 = vpack.c.b16 %v1732, %v1731
        %v1736 = vpack.c.b16 %v1734, %v1733
        %1739 = vmatprep.subr.bf16.mxu0 0
        %1740 = vmatpush1.bf16.msra.mxu0 %v1735
        %1741 = vmatprep.subr.bf16.mxu0 0
        %1742 = vmatpush1.bf16.msra.mxu0 %v1736
        %1743 = vmatprep.subr.bf16.mxu0 0
        %1744 = vmatpush1.bf16.msra.mxu0 0
        %1745 = vmatprep.subr.bf16.mxu0 0
        %1746 = vmatpush1.bf16.msra.mxu0 0
        %1747 = vmatprep.subr.bf16.mxu0 0
        %1748 = vmatpush1.bf16.msra.mxu0 0
        %1749 = vmatprep.subr.bf16.mxu0 0
        %1750 = vmatpush1.bf16.msra.mxu0 0
        %1751 = vmatprep.subr.bf16.mxu0 0
        %1752 = vmatpush1.bf16.msra.mxu0 0
        %1753 = vmatprep.subr.bf16.mxu0 0
        %1754 = vmatpush1.bf16.msra.mxu0 0
        %1755 = vmatprep.subr.bf16.mxu0 0
        %1756 = vmatpush1.bf16.msra.mxu0 0
        %1757 = vmatprep.subr.bf16.mxu0 0
        %1758 = vmatpush1.bf16.msra.mxu0 0
        %1759 = vmatprep.subr.bf16.mxu0 0
        %1760 = vmatpush1.bf16.msra.mxu0 0
        %1761 = vmatprep.subr.bf16.mxu0 0
        %1762 = vmatpush1.bf16.msra.mxu0 0
        %1763 = vmatprep.subr.bf16.mxu0 0
        %1764 = vmatpush1.bf16.msra.mxu0 0
        %1765 = vmatprep.subr.bf16.mxu0 0
        %1766 = vmatpush1.bf16.msra.mxu0 0
        %1767 = vmatprep.subr.bf16.mxu0 0
        %1768 = vmatpush1.bf16.msra.mxu0 0
        %1769 = vmatprep.subr.bf16.mxu0 0
        %1770 = vmatpush1.bf16.msra.mxu0 0
        %1771 = vmatprep.mubr.bf16.mxu0 0
        %1772 = vmatmul.mubr.bf16.gmra.mrb[0].mxu0 %v587
        %v1773 = vpop.f32.mrb[0].mxu0
        %v1774 = vadd.f32 0.0, %v1773
        %v1775 = vpop.f32.mrb[0].mxu0
        %v1776 = vpop.f32.mrb[0].mxu0
        %v1777 = vadd.f32 0.0, %v1776
        %v1778 = vpop.f32.mrb[0].mxu0
        %1779 = vmatprep.mubr.bf16.mxu0 0
        %1780 = vmatmul.mubr.bf16.gmra.mrb[0].mxu0 %v590
        %v1781 = vpop.f32.mrb[0].mxu0
        %v1782 = vadd.f32 0.0, %v1781
        %v1783 = vpop.f32.mrb[0].mxu0
        %v1784 = vpop.f32.mrb[0].mxu0
        %v1785 = vadd.f32 0.0, %v1784
        %v1786 = vpop.f32.mrb[0].mxu0
        %1787 = vmatprep.mubr.bf16.mxu0 0
        %1788 = vmatmul.mubr.bf16.gmra.mrb[0].mxu0 %v593
        %v1789 = vpop.f32.mrb[0].mxu0
        %v1790 = vadd.f32 0.0, %v1789
        %v1791 = vpop.f32.mrb[0].mxu0
        %v1792 = vpop.f32.mrb[0].mxu0
        %v1793 = vadd.f32 0.0, %v1792
        %v1794 = vpop.f32.mrb[0].mxu0
        %1795 = vmatprep.mubr.bf16.mxu0 0
        %1796 = vmatmul.mubr.bf16.gmra.mrb[0].mxu0 %v596
        %v1797 = vpop.f32.mrb[0].mxu0
        %v1798 = vadd.f32 0.0, %v1797
        %v1799 = vpop.f32.mrb[0].mxu0
        %v1800 = vpop.f32.mrb[0].mxu0
        %v1801 = vadd.f32 0.0, %v1800
        %v1802 = vpop.f32.mrb[0].mxu0
        %1803 = vmatprep.mubr.bf16.mxu0 0
        %1804 = vmatmul.mubr.bf16.gmra.mrb[0].mxu0 %v599
        %v1805 = vpop.f32.mrb[0].mxu0
        %v1806 = vadd.f32 0.0, %v1805
        %v1807 = vpop.f32.mrb[0].mxu0
        %v1808 = vpop.f32.mrb[0].mxu0
        %v1809 = vadd.f32 0.0, %v1808
        %v1810 = vpop.f32.mrb[0].mxu0
        %1811 = vmatprep.mubr.bf16.mxu0 0
        %1812 = vmatmul.mubr.bf16.gmra.mrb[0].mxu0 %v602
        %v1813 = vpop.f32.mrb[0].mxu0
        %v1814 = vadd.f32 0.0, %v1813
        %v1815 = vpop.f32.mrb[0].mxu0
        %v1816 = vpop.f32.mrb[0].mxu0
        %v1817 = vadd.f32 0.0, %v1816
        %v1818 = vpop.f32.mrb[0].mxu0
        %1819 = vmatprep.mubr.bf16.mxu0 0
        %1820 = vmatmul.mubr.bf16.gmra.mrb[0].mxu0 %v605
        %v1821 = vpop.f32.mrb[0].mxu0
        %v1822 = vadd.f32 0.0, %v1821
        %v1823 = vpop.f32.mrb[0].mxu0
        %v1824 = vpop.f32.mrb[0].mxu0
        %v1825 = vadd.f32 0.0, %v1824
        %v1826 = vpop.f32.mrb[0].mxu0
        %1827 = vmatprep.mubr.bf16.mxu0 0
        %1828 = vmatmul.mubr.bf16.gmra.mrb[0].mxu0 %v608
        %v1829 = vpop.f32.mrb[0].mxu0
        %v1830 = vadd.f32 0.0, %v1829
        %v1831 = vpop.f32.mrb[0].mxu0
        %v1832 = vpop.f32.mrb[0].mxu0
        %v1833 = vadd.f32 0.0, %v1832
        %v1834 = vpop.f32.mrb[0].mxu0
        %1835 = vmatprep.mubr.bf16.mxu0 0
        %1836 = vmatmul.mubr.bf16.gmra.mrb[0].mxu0 %v611
        %v1837 = vpop.f32.mrb[0].mxu0
        %v1838 = vadd.f32 0.0, %v1837
        %v1839 = vpop.f32.mrb[0].mxu0
        %v1840 = vpop.f32.mrb[0].mxu0
        %v1841 = vadd.f32 0.0, %v1840
        %v1842 = vpop.f32.mrb[0].mxu0
        %1843 = vmatprep.mubr.bf16.mxu0 0
        %1844 = vmatmul.mubr.bf16.gmra.mrb[0].mxu0 %v614
        %v1845 = vpop.f32.mrb[0].mxu0
        %v1846 = vadd.f32 0.0, %v1845
        %v1847 = vpop.f32.mrb[0].mxu0
        %v1848 = vpop.f32.mrb[0].mxu0
        %v1849 = vadd.f32 0.0, %v1848
        %v1850 = vpop.f32.mrb[0].mxu0
        %1851 = vmatprep.mubr.bf16.mxu0 0
        %1852 = vmatmul.mubr.bf16.gmra.mrb[0].mxu0 %v617
        %v1853 = vpop.f32.mrb[0].mxu0
        %v1854 = vadd.f32 0.0, %v1853
        %v1855 = vpop.f32.mrb[0].mxu0
        %v1856 = vpop.f32.mrb[0].mxu0
        %v1857 = vadd.f32 0.0, %v1856
        %v1858 = vpop.f32.mrb[0].mxu0
        %1859 = vmatprep.mubr.bf16.mxu0 0
        %1860 = vmatmul.mubr.bf16.gmra.mrb[0].mxu0 %v620
        %v1861 = vpop.f32.mrb[0].mxu0
        %v1862 = vadd.f32 0.0, %v1861
        %v1863 = vpop.f32.mrb[0].mxu0
        %v1864 = vpop.f32.mrb[0].mxu0
        %v1865 = vadd.f32 0.0, %v1864
        %v1866 = vpop.f32.mrb[0].mxu0
        %1867 = vmatprep.mubr.bf16.mxu0 0
        %1868 = vmatmul.mubr.bf16.gmra.mrb[0].mxu0 %v623
        %v1869 = vpop.f32.mrb[0].mxu0
        %v1870 = vadd.f32 0.0, %v1869
        %v1871 = vpop.f32.mrb[0].mxu0
        %v1872 = vpop.f32.mrb[0].mxu0
        %v1873 = vadd.f32 0.0, %v1872
        %v1874 = vpop.f32.mrb[0].mxu0
        %1875 = vmatprep.mubr.bf16.mxu0 0
        %1876 = vmatmul.mubr.bf16.gmra.mrb[0].mxu0 %v626
        %v1877 = vpop.f32.mrb[0].mxu0
        %v1878 = vadd.f32 0.0, %v1877
        %v1879 = vpop.f32.mrb[0].mxu0
        %v1880 = vpop.f32.mrb[0].mxu0
        %v1881 = vadd.f32 0.0, %v1880
        %v1882 = vpop.f32.mrb[0].mxu0
        %1883 = vmatprep.mubr.bf16.mxu0 0
        %1884 = vmatmul.mubr.bf16.gmra.mrb[0].mxu0 %v629
        %v1885 = vpop.f32.mrb[0].mxu0
        %v1886 = vadd.f32 0.0, %v1885
        %v1887 = vpop.f32.mrb[0].mxu0
        %v1888 = vpop.f32.mrb[0].mxu0
        %v1889 = vadd.f32 0.0, %v1888
        %v1890 = vpop.f32.mrb[0].mxu0
        %1891 = vmatprep.mubr.bf16.mxu0 0
        %1892 = vmatmul.mubr.bf16.gmra.mrb[0].mxu0 %v632
        %v1893 = vpop.f32.mrb[0].mxu0
        %v1894 = vadd.f32 0.0, %v1893
        %v1895 = vpop.f32.mrb[0].mxu0
        %v1896 = vpop.f32.mrb[0].mxu0
        %v1897 = vadd.f32 0.0, %v1896
        %v1898 = vpop.f32.mrb[0].mxu0
        %1899 = vmatprep.mubr.bf16.mxu0 0
        %1900 = vmatmul.mubr.bf16.gmra.mrb[0].mxu0 %v635
        %v1901 = vpop.f32.mrb[0].mxu0
        %v1902 = vadd.f32 0.0, %v1901
        %v1903 = vpop.f32.mrb[0].mxu0
        %v1904 = vpop.f32.mrb[0].mxu0
        %v1905 = vadd.f32 0.0, %v1904
        %v1906 = vpop.f32.mrb[0].mxu0
        %1907 = vdwg.mxu0
        %v1912 = vunpack.c.l.b16 %v1361
        %v1913 = vunpack.c.l.b16 %v1362
        %v1914 = vunpack.c.l.b16 %v1363
        %v1915 = vunpack.c.l.b16 %v1364
        %v1916 = vpack.c.b16 %v1913, %v1912
        %v1917 = vpack.c.b16 %v1915, %v1914
        %1920 = vmatprep.subr.bf16.mxu0 0
        %1921 = vmatpush1.bf16.msra.mxu0 %v1916
        %1922 = vmatprep.subr.bf16.mxu0 0
        %1923 = vmatpush1.bf16.msra.mxu0 %v1917
        %1924 = vmatprep.subr.bf16.mxu0 0
        %1925 = vmatpush1.bf16.msra.mxu0 0
        %1926 = vmatprep.subr.bf16.mxu0 0
        %1927 = vmatpush1.bf16.msra.mxu0 0
        %1928 = vmatprep.subr.bf16.mxu0 0
        %1929 = vmatpush1.bf16.msra.mxu0 0
        %1930 = vmatprep.subr.bf16.mxu0 0
        %1931 = vmatpush1.bf16.msra.mxu0 0
        %1932 = vmatprep.subr.bf16.mxu0 0
        %1933 = vmatpush1.bf16.msra.mxu0 0
        %1934 = vmatprep.subr.bf16.mxu0 0
        %1935 = vmatpush1.bf16.msra.mxu0 0
        %1936 = vmatprep.subr.bf16.mxu0 0
        %1937 = vmatpush1.bf16.msra.mxu0 0
        %1938 = vmatprep.subr.bf16.mxu0 0
        %1939 = vmatpush1.bf16.msra.mxu0 0
        %1940 = vmatprep.subr.bf16.mxu0 0
        %1941 = vmatpush1.bf16.msra.mxu0 0
        %1942 = vmatprep.subr.bf16.mxu0 0
        %1943 = vmatpush1.bf16.msra.mxu0 0
        %1944 = vmatprep.subr.bf16.mxu0 0
        %1945 = vmatpush1.bf16.msra.mxu0 0
        %1946 = vmatprep.subr.bf16.mxu0 0
        %1947 = vmatpush1.bf16.msra.mxu0 0
        %1948 = vmatprep.subr.bf16.mxu0 0
        %1949 = vmatpush1.bf16.msra.mxu0 0
        %1950 = vmatprep.subr.bf16.mxu0 0
        %1951 = vmatpush1.bf16.msra.mxu0 0
        %1952 = vmatprep.mubr.bf16.mxu0 0
        %1953 = vmatmul.mubr.bf16.gmra.mrb[0].mxu0 %v587
        %v1954 = vpop.f32.mrb[0].mxu0
        %v1955 = vadd.f32 0.0, %v1954
        %v1956 = vpop.f32.mrb[0].mxu0
        %v1957 = vpop.f32.mrb[0].mxu0
        %v1958 = vadd.f32 0.0, %v1957
        %v1959 = vpop.f32.mrb[0].mxu0
        %1960 = vmatprep.mubr.bf16.mxu0 0
        %1961 = vmatmul.mubr.bf16.gmra.mrb[0].mxu0 %v590
        %v1962 = vpop.f32.mrb[0].mxu0
        %v1963 = vadd.f32 0.0, %v1962
        %v1964 = vpop.f32.mrb[0].mxu0
        %v1965 = vpop.f32.mrb[0].mxu0
        %v1966 = vadd.f32 0.0, %v1965
        %v1967 = vpop.f32.mrb[0].mxu0
        %1968 = vmatprep.mubr.bf16.mxu0 0
        %1969 = vmatmul.mubr.bf16.gmra.mrb[0].mxu0 %v593
        %v1970 = vpop.f32.mrb[0].mxu0
        %v1971 = vadd.f32 0.0, %v1970
        %v1972 = vpop.f32.mrb[0].mxu0
        %v1973 = vpop.f32.mrb[0].mxu0
        %v1974 = vadd.f32 0.0, %v1973
        %v1975 = vpop.f32.mrb[0].mxu0
        %1976 = vmatprep.mubr.bf16.mxu0 0
        %1977 = vmatmul.mubr.bf16.gmra.mrb[0].mxu0 %v596
        %v1978 = vpop.f32.mrb[0].mxu0
        %v1979 = vadd.f32 0.0, %v1978
        %v1980 = vpop.f32.mrb[0].mxu0
        %v1981 = vpop.f32.mrb[0].mxu0
        %v1982 = vadd.f32 0.0, %v1981
        %v1983 = vpop.f32.mrb[0].mxu0
        %1984 = vmatprep.mubr.bf16.mxu0 0
        %1985 = vmatmul.mubr.bf16.gmra.mrb[0].mxu0 %v599
        %v1986 = vpop.f32.mrb[0].mxu0
        %v1987 = vadd.f32 0.0, %v1986
        %v1988 = vpop.f32.mrb[0].mxu0
        %v1989 = vpop.f32.mrb[0].mxu0
        %v1990 = vadd.f32 0.0, %v1989
        %v1991 = vpop.f32.mrb[0].mxu0
        %1992 = vmatprep.mubr.bf16.mxu0 0
        %1993 = vmatmul.mubr.bf16.gmra.mrb[0].mxu0 %v602
        %v1994 = vpop.f32.mrb[0].mxu0
        %v1995 = vadd.f32 0.0, %v1994
        %v1996 = vpop.f32.mrb[0].mxu0
        %v1997 = vpop.f32.mrb[0].mxu0
        %v1998 = vadd.f32 0.0, %v1997
        %v1999 = vpop.f32.mrb[0].mxu0
        %2000 = vmatprep.mubr.bf16.mxu0 0
        %2001 = vmatmul.mubr.bf16.gmra.mrb[0].mxu0 %v605
        %v2002 = vpop.f32.mrb[0].mxu0
        %v2003 = vadd.f32 0.0, %v2002
        %v2004 = vpop.f32.mrb[0].mxu0
        %v2005 = vpop.f32.mrb[0].mxu0
        %v2006 = vadd.f32 0.0, %v2005
        %v2007 = vpop.f32.mrb[0].mxu0
        %2008 = vmatprep.mubr.bf16.mxu0 0
        %2009 = vmatmul.mubr.bf16.gmra.mrb[0].mxu0 %v608
        %v2010 = vpop.f32.mrb[0].mxu0
        %v2011 = vadd.f32 0.0, %v2010
        %v2012 = vpop.f32.mrb[0].mxu0
        %v2013 = vpop.f32.mrb[0].mxu0
        %v2014 = vadd.f32 0.0, %v2013
        %v2015 = vpop.f32.mrb[0].mxu0
        %2016 = vmatprep.mubr.bf16.mxu0 0
        %2017 = vmatmul.mubr.bf16.gmra.mrb[0].mxu0 %v611
        %v2018 = vpop.f32.mrb[0].mxu0
        %v2019 = vadd.f32 0.0, %v2018
        %v2020 = vpop.f32.mrb[0].mxu0
        %v2021 = vpop.f32.mrb[0].mxu0
        %v2022 = vadd.f32 0.0, %v2021
        %v2023 = vpop.f32.mrb[0].mxu0
        %2024 = vmatprep.mubr.bf16.mxu0 0
        %2025 = vmatmul.mubr.bf16.gmra.mrb[0].mxu0 %v614
        %v2026 = vpop.f32.mrb[0].mxu0
        %v2027 = vadd.f32 0.0, %v2026
        %v2028 = vpop.f32.mrb[0].mxu0
        %v2029 = vpop.f32.mrb[0].mxu0
        %v2030 = vadd.f32 0.0, %v2029
        %v2031 = vpop.f32.mrb[0].mxu0
        %2032 = vmatprep.mubr.bf16.mxu0 0
        %2033 = vmatmul.mubr.bf16.gmra.mrb[0].mxu0 %v617
        %v2034 = vpop.f32.mrb[0].mxu0
        %v2035 = vadd.f32 0.0, %v2034
        %v2036 = vpop.f32.mrb[0].mxu0
        %v2037 = vpop.f32.mrb[0].mxu0
        %v2038 = vadd.f32 0.0, %v2037
        %v2039 = vpop.f32.mrb[0].mxu0
        %2040 = vmatprep.mubr.bf16.mxu0 0
        %2041 = vmatmul.mubr.bf16.gmra.mrb[0].mxu0 %v620
        %v2042 = vpop.f32.mrb[0].mxu0
        %v2043 = vadd.f32 0.0, %v2042
        %v2044 = vpop.f32.mrb[0].mxu0
        %v2045 = vpop.f32.mrb[0].mxu0
        %v2046 = vadd.f32 0.0, %v2045
        %v2047 = vpop.f32.mrb[0].mxu0
        %2048 = vmatprep.mubr.bf16.mxu0 0
        %2049 = vmatmul.mubr.bf16.gmra.mrb[0].mxu0 %v623
        %v2050 = vpop.f32.mrb[0].mxu0
        %v2051 = vadd.f32 0.0, %v2050
        %v2052 = vpop.f32.mrb[0].mxu0
        %v2053 = vpop.f32.mrb[0].mxu0
        %v2054 = vadd.f32 0.0, %v2053
        %v2055 = vpop.f32.mrb[0].mxu0
        %2056 = vmatprep.mubr.bf16.mxu0 0
        %2057 = vmatmul.mubr.bf16.gmra.mrb[0].mxu0 %v626
        %v2058 = vpop.f32.mrb[0].mxu0
        %v2059 = vadd.f32 0.0, %v2058
        %v2060 = vpop.f32.mrb[0].mxu0
        %v2061 = vpop.f32.mrb[0].mxu0
        %v2062 = vadd.f32 0.0, %v2061
        %v2063 = vpop.f32.mrb[0].mxu0
        %2064 = vmatprep.mubr.bf16.mxu0 0
        %2065 = vmatmul.mubr.bf16.gmra.mrb[0].mxu0 %v629
        %v2066 = vpop.f32.mrb[0].mxu0
        %v2067 = vadd.f32 0.0, %v2066
        %v2068 = vpop.f32.mrb[0].mxu0
        %v2069 = vpop.f32.mrb[0].mxu0
        %v2070 = vadd.f32 0.0, %v2069
        %v2071 = vpop.f32.mrb[0].mxu0
        %2072 = vmatprep.mubr.bf16.mxu0 0
        %2073 = vmatmul.mubr.bf16.gmra.mrb[0].mxu0 %v632
        %v2074 = vpop.f32.mrb[0].mxu0
        %v2075 = vadd.f32 0.0, %v2074
        %v2076 = vpop.f32.mrb[0].mxu0
        %v2077 = vpop.f32.mrb[0].mxu0
        %v2078 = vadd.f32 0.0, %v2077
        %v2079 = vpop.f32.mrb[0].mxu0
        %2080 = vmatprep.mubr.bf16.mxu0 0
        %2081 = vmatmul.mubr.bf16.gmra.mrb[0].mxu0 %v635
        %v2082 = vpop.f32.mrb[0].mxu0
        %v2083 = vadd.f32 0.0, %v2082
        %v2084 = vpop.f32.mrb[0].mxu0
        %v2085 = vpop.f32.mrb[0].mxu0
        %v2086 = vadd.f32 0.0, %v2085
        %v2087 = vpop.f32.mrb[0].mxu0
        %2088 = vdwg.mxu0
        %v2089 = vld [vmem:[%s2] sm:$0x1]
        %v2090 = vld [vmem:[%s2 + $0x1] sm:$0x1]
        %v2091 = vld [vmem:[%s2 + $0x2] sm:$0x1]
        %v2092 = vld [vmem:[%s2 + $0x3] sm:$0x1]
        %v2097 = vlaneseq
        %v2098 = vshrl.u32 %v2097, 7
        %v2099 = vsub.s32 0, %v2098
        %v2100 = vrot.slane %v2089, %v2099
        %v2101 = vlaneseq
        %v2102 = vshrl.u32 %v2101, 7
        %v2103 = vsub.s32 0, %v2102
        %v2104 = vrot.slane %v2090, %v2103
        %v2105 = vlaneseq
        %v2106 = vshrl.u32 %v2105, 7
        %v2107 = vsub.s32 0, %v2106
        %v2108 = vrot.slane %v2091, %v2107
        %v2109 = vlaneseq
        %v2110 = vshrl.u32 %v2109, 7
        %v2111 = vsub.s32 0, %v2110
        %v2112 = vrot.slane %v2092, %v2111
        %v2117 = vadd.f32 %v672, %v2100
        %v2118 = vadd.f32 %v675, %v2100
        %v2119 = vadd.f32 %v680, %v2100
        %v2120 = vadd.f32 %v683, %v2100
        %v2121 = vadd.f32 %v688, %v2100
        %v2122 = vadd.f32 %v691, %v2100
        %v2123 = vadd.f32 %v696, %v2100
        %v2124 = vadd.f32 %v699, %v2100
        %v2125 = vadd.f32 %v704, %v2100
        %v2126 = vadd.f32 %v707, %v2100
        %v2127 = vadd.f32 %v712, %v2100
        %v2128 = vadd.f32 %v715, %v2100
        %v2129 = vadd.f32 %v720, %v2100
        %v2130 = vadd.f32 %v723, %v2100
        %v2131 = vadd.f32 %v728, %v2100
        %v2132 = vadd.f32 %v731, %v2100
        %v2133 = vadd.f32 %v736, %v2100
        %v2134 = vadd.f32 %v739, %v2100
        %v2135 = vadd.f32 %v744, %v2100
        %v2136 = vadd.f32 %v747, %v2100
        %v2137 = vadd.f32 %v752, %v2100
        %v2138 = vadd.f32 %v755, %v2100
        %v2139 = vadd.f32 %v760, %v2100
        %v2140 = vadd.f32 %v763, %v2100
        %v2141 = vadd.f32 %v768, %v2100
        %v2142 = vadd.f32 %v771, %v2100
        %v2143 = vadd.f32 %v776, %v2100
        %v2144 = vadd.f32 %v779, %v2100
        %v2145 = vadd.f32 %v784, %v2100
        %v2146 = vadd.f32 %v787, %v2100
        %v2147 = vadd.f32 %v792, %v2100
        %v2148 = vadd.f32 %v795, %v2100
        %v2149 = vadd.f32 %v853, %v2104
        %v2150 = vadd.f32 %v856, %v2104
        %v2151 = vadd.f32 %v861, %v2104
        %v2152 = vadd.f32 %v864, %v2104
        %v2153 = vadd.f32 %v869, %v2104
        %v2154 = vadd.f32 %v872, %v2104
        %v2155 = vadd.f32 %v877, %v2104
        %v2156 = vadd.f32 %v880, %v2104
        %v2157 = vadd.f32 %v885, %v2104
        %v2158 = vadd.f32 %v888, %v2104
        %v2159 = vadd.f32 %v893, %v2104
        %v2160 = vadd.f32 %v896, %v2104
        %v2161 = vadd.f32 %v901, %v2104
        %v2162 = vadd.f32 %v904, %v2104
        %v2163 = vadd.f32 %v909, %v2104
        %v2164 = vadd.f32 %v912, %v2104
        %v2165 = vadd.f32 %v917, %v2104
        %v2166 = vadd.f32 %v920, %v2104
        %v2167 = vadd.f32 %v925, %v2104
        %v2168 = vadd.f32 %v928, %v2104
        %v2169 = vadd.f32 %v933, %v2104
        %v2170 = vadd.f32 %v936, %v2104
        %v2171 = vadd.f32 %v941, %v2104
        %v2172 = vadd.f32 %v944, %v2104
        %v2173 = vadd.f32 %v949, %v2104
        %v2174 = vadd.f32 %v952, %v2104
        %v2175 = vadd.f32 %v957, %v2104
        %v2176 = vadd.f32 %v960, %v2104
        %v2177 = vadd.f32 %v965, %v2104
        %v2178 = vadd.f32 %v968, %v2104
        %v2179 = vadd.f32 %v973, %v2104
        %v2180 = vadd.f32 %v976, %v2104
        %v2181 = vadd.f32 %v1034, %v2108
        %v2182 = vadd.f32 %v1037, %v2108
        %v2183 = vadd.f32 %v1042, %v2108
        %v2184 = vadd.f32 %v1045, %v2108
        %v2185 = vadd.f32 %v1050, %v2108
        %v2186 = vadd.f32 %v1053, %v2108
        %v2187 = vadd.f32 %v1058, %v2108
        %v2188 = vadd.f32 %v1061, %v2108
        %v2189 = vadd.f32 %v1066, %v2108
        %v2190 = vadd.f32 %v1069, %v2108
        %v2191 = vadd.f32 %v1074, %v2108
        %v2192 = vadd.f32 %v1077, %v2108
        %v2193 = vadd.f32 %v1082, %v2108
        %v2194 = vadd.f32 %v1085, %v2108
        %v2195 = vadd.f32 %v1090, %v2108
        %v2196 = vadd.f32 %v1093, %v2108
        %v2197 = vadd.f32 %v1098, %v2108
        %v2198 = vadd.f32 %v1101, %v2108
        %v2199 = vadd.f32 %v1106, %v2108
        %v2200 = vadd.f32 %v1109, %v2108
        %v2201 = vadd.f32 %v1114, %v2108
        %v2202 = vadd.f32 %v1117, %v2108
        %v2203 = vadd.f32 %v1122, %v2108
        %v2204 = vadd.f32 %v1125, %v2108
        %v2205 = vadd.f32 %v1130, %v2108
        %v2206 = vadd.f32 %v1133, %v2108
        %v2207 = vadd.f32 %v1138, %v2108
        %v2208 = vadd.f32 %v1141, %v2108
        %v2209 = vadd.f32 %v1146, %v2108
        %v2210 = vadd.f32 %v1149, %v2108
        %v2211 = vadd.f32 %v1154, %v2108
        %v2212 = vadd.f32 %v1157, %v2108
        %v2213 = vadd.f32 %v1215, %v2112
        %v2214 = vadd.f32 %v1218, %v2112
        %v2215 = vadd.f32 %v1223, %v2112
        %v2216 = vadd.f32 %v1226, %v2112
        %v2217 = vadd.f32 %v1231, %v2112
        %v2218 = vadd.f32 %v1234, %v2112
        %v2219 = vadd.f32 %v1239, %v2112
        %v2220 = vadd.f32 %v1242, %v2112
        %v2221 = vadd.f32 %v1247, %v2112
        %v2222 = vadd.f32 %v1250, %v2112
        %v2223 = vadd.f32 %v1255, %v2112
        %v2224 = vadd.f32 %v1258, %v2112
        %v2225 = vadd.f32 %v1263, %v2112
        %v2226 = vadd.f32 %v1266, %v2112
        %v2227 = vadd.f32 %v1271, %v2112
        %v2228 = vadd.f32 %v1274, %v2112
        %v2229 = vadd.f32 %v1279, %v2112
        %v2230 = vadd.f32 %v1282, %v2112
        %v2231 = vadd.f32 %v1287, %v2112
        %v2232 = vadd.f32 %v1290, %v2112
        %v2233 = vadd.f32 %v1295, %v2112
        %v2234 = vadd.f32 %v1298, %v2112
        %v2235 = vadd.f32 %v1303, %v2112
        %v2236 = vadd.f32 %v1306, %v2112
        %v2237 = vadd.f32 %v1311, %v2112
        %v2238 = vadd.f32 %v1314, %v2112
        %v2239 = vadd.f32 %v1319, %v2112
        %v2240 = vadd.f32 %v1322, %v2112
        %v2241 = vadd.f32 %v1327, %v2112
        %v2242 = vadd.f32 %v1330, %v2112
        %v2243 = vadd.f32 %v1335, %v2112
        %v2244 = vadd.f32 %v1338, %v2112
        %v2245 = vld [vmem:[%s4] sm:$0x1]
        %v2246 = vld [vmem:[%s4 + $0x1] sm:$0x1]
        %v2247 = vld [vmem:[%s4 + $0x2] sm:$0x1]
        %v2248 = vld [vmem:[%s4 + $0x3] sm:$0x1]
        %v2253 = vlaneseq
        %v2254 = vshrl.u32 %v2253, 7
        %v2255 = vsub.s32 0, %v2254
        %v2256 = vrot.slane %v2245, %v2255
        %v2257 = vlaneseq
        %v2258 = vshrl.u32 %v2257, 7
        %v2259 = vsub.s32 0, %v2258
        %v2260 = vrot.slane %v2246, %v2259
        %v2261 = vlaneseq
        %v2262 = vshrl.u32 %v2261, 7
        %v2263 = vsub.s32 0, %v2262
        %v2264 = vrot.slane %v2247, %v2263
        %v2265 = vlaneseq
        %v2266 = vshrl.u32 %v2265, 7
        %v2267 = vsub.s32 0, %v2266
        %v2268 = vrot.slane %v2248, %v2267
        %v2273 = vadd.f32 %v1412, %v2256
        %v2274 = vadd.f32 %v1415, %v2256
        %v2275 = vadd.f32 %v1420, %v2256
        %v2276 = vadd.f32 %v1423, %v2256
        %v2277 = vadd.f32 %v1428, %v2256
        %v2278 = vadd.f32 %v1431, %v2256
        %v2279 = vadd.f32 %v1436, %v2256
        %v2280 = vadd.f32 %v1439, %v2256
        %v2281 = vadd.f32 %v1444, %v2256
        %v2282 = vadd.f32 %v1447, %v2256
        %v2283 = vadd.f32 %v1452, %v2256
        %v2284 = vadd.f32 %v1455, %v2256
        %v2285 = vadd.f32 %v1460, %v2256
        %v2286 = vadd.f32 %v1463, %v2256
        %v2287 = vadd.f32 %v1468, %v2256
        %v2288 = vadd.f32 %v1471, %v2256
        %v2289 = vadd.f32 %v1476, %v2256
        %v2290 = vadd.f32 %v1479, %v2256
        %v2291 = vadd.f32 %v1484, %v2256
        %v2292 = vadd.f32 %v1487, %v2256
        %v2293 = vadd.f32 %v1492, %v2256
        %v2294 = vadd.f32 %v1495, %v2256
        %v2295 = vadd.f32 %v1500, %v2256
        %v2296 = vadd.f32 %v1503, %v2256
        %v2297 = vadd.f32 %v1508, %v2256
        %v2298 = vadd.f32 %v1511, %v2256
        %v2299 = vadd.f32 %v1516, %v2256
        %v2300 = vadd.f32 %v1519, %v2256
        %v2301 = vadd.f32 %v1524, %v2256
        %v2302 = vadd.f32 %v1527, %v2256
        %v2303 = vadd.f32 %v1532, %v2256
        %v2304 = vadd.f32 %v1535, %v2256
        %v2305 = vadd.f32 %v1593, %v2260
        %v2306 = vadd.f32 %v1596, %v2260
        %v2307 = vadd.f32 %v1601, %v2260
        %v2308 = vadd.f32 %v1604, %v2260
        %v2309 = vadd.f32 %v1609, %v2260
        %v2310 = vadd.f32 %v1612, %v2260
        %v2311 = vadd.f32 %v1617, %v2260
        %v2312 = vadd.f32 %v1620, %v2260
        %v2313 = vadd.f32 %v1625, %v2260
        %v2314 = vadd.f32 %v1628, %v2260
        %v2315 = vadd.f32 %v1633, %v2260
        %v2316 = vadd.f32 %v1636, %v2260
        %v2317 = vadd.f32 %v1641, %v2260
        %v2318 = vadd.f32 %v1644, %v2260
        %v2319 = vadd.f32 %v1649, %v2260
        %v2320 = vadd.f32 %v1652, %v2260
        %v2321 = vadd.f32 %v1657, %v2260
        %v2322 = vadd.f32 %v1660, %v2260
        %v2323 = vadd.f32 %v1665, %v2260
        %v2324 = vadd.f32 %v1668, %v2260
        %v2325 = vadd.f32 %v1673, %v2260
        %v2326 = vadd.f32 %v1676, %v2260
        %v2327 = vadd.f32 %v1681, %v2260
        %v2328 = vadd.f32 %v1684, %v2260
        %v2329 = vadd.f32 %v1689, %v2260
        %v2330 = vadd.f32 %v1692, %v2260
        %v2331 = vadd.f32 %v1697, %v2260
        %v2332 = vadd.f32 %v1700, %v2260
        %v2333 = vadd.f32 %v1705, %v2260
        %v2334 = vadd.f32 %v1708, %v2260
        %v2335 = vadd.f32 %v1713, %v2260
        %v2336 = vadd.f32 %v1716, %v2260
        %v2337 = vadd.f32 %v1774, %v2264
        %v2338 = vadd.f32 %v1777, %v2264
        %v2339 = vadd.f32 %v1782, %v2264
        %v2340 = vadd.f32 %v1785, %v2264
        %v2341 = vadd.f32 %v1790, %v2264
        %v2342 = vadd.f32 %v1793, %v2264
        %v2343 = vadd.f32 %v1798, %v2264
        %v2344 = vadd.f32 %v1801, %v2264
        %v2345 = vadd.f32 %v1806, %v2264
        %v2346 = vadd.f32 %v1809, %v2264
        %v2347 = vadd.f32 %v1814, %v2264
        %v2348 = vadd.f32 %v1817, %v2264
        %v2349 = vadd.f32 %v1822, %v2264
        %v2350 = vadd.f32 %v1825, %v2264
        %v2351 = vadd.f32 %v1830, %v2264
        %v2352 = vadd.f32 %v1833, %v2264
        %v2353 = vadd.f32 %v1838, %v2264
        %v2354 = vadd.f32 %v1841, %v2264
        %v2355 = vadd.f32 %v1846, %v2264
        %v2356 = vadd.f32 %v1849, %v2264
        %v2357 = vadd.f32 %v1854, %v2264
        %v2358 = vadd.f32 %v1857, %v2264
        %v2359 = vadd.f32 %v1862, %v2264
        %v2360 = vadd.f32 %v1865, %v2264
        %v2361 = vadd.f32 %v1870, %v2264
        %v2362 = vadd.f32 %v1873, %v2264
        %v2363 = vadd.f32 %v1878, %v2264
        %v2364 = vadd.f32 %v1881, %v2264
        %v2365 = vadd.f32 %v1886, %v2264
        %v2366 = vadd.f32 %v1889, %v2264
        %v2367 = vadd.f32 %v1894, %v2264
        %v2368 = vadd.f32 %v1897, %v2264
        %v2369 = vadd.f32 %v1955, %v2268
        %v2370 = vadd.f32 %v1958, %v2268
        %v2371 = vadd.f32 %v1963, %v2268
        %v2372 = vadd.f32 %v1966, %v2268
        %v2373 = vadd.f32 %v1971, %v2268
        %v2374 = vadd.f32 %v1974, %v2268
        %v2375 = vadd.f32 %v1979, %v2268
        %v2376 = vadd.f32 %v1982, %v2268
        %v2377 = vadd.f32 %v1987, %v2268
        %v2378 = vadd.f32 %v1990, %v2268
        %v2379 = vadd.f32 %v1995, %v2268
        %v2380 = vadd.f32 %v1998, %v2268
        %v2381 = vadd.f32 %v2003, %v2268
        %v2382 = vadd.f32 %v2006, %v2268
        %v2383 = vadd.f32 %v2011, %v2268
        %v2384 = vadd.f32 %v2014, %v2268
        %v2385 = vadd.f32 %v2019, %v2268
        %v2386 = vadd.f32 %v2022, %v2268
        %v2387 = vadd.f32 %v2027, %v2268
        %v2388 = vadd.f32 %v2030, %v2268
        %v2389 = vadd.f32 %v2035, %v2268
        %v2390 = vadd.f32 %v2038, %v2268
        %v2391 = vadd.f32 %v2043, %v2268
        %v2392 = vadd.f32 %v2046, %v2268
        %v2393 = vadd.f32 %v2051, %v2268
        %v2394 = vadd.f32 %v2054, %v2268
        %v2395 = vadd.f32 %v2059, %v2268
        %v2396 = vadd.f32 %v2062, %v2268
        %v2397 = vadd.f32 %v2067, %v2268
        %v2398 = vadd.f32 %v2070, %v2268
        %v2399 = vadd.f32 %v2075, %v2268
        %v2400 = vadd.f32 %v2078, %v2268
        %v2401 = vmul.f32 %v800, 0.0625
        %v2402 = vmul.f32 %v803, 0.0625
        %v2403 = vmul.f32 %v981, 0.0625
        %v2404 = vmul.f32 %v984, 0.0625
        %v2405 = vmul.f32 %v1162, 0.0625
        %v2406 = vmul.f32 %v1165, 0.0625
        %v2407 = vmul.f32 %v1343, 0.0625
        %v2408 = vmul.f32 %v1346, 0.0625
        %v2409 = vadd.f32 %v2401, %v2100
        %v2410 = vadd.f32 %v2402, %v2100
        %v2411 = vadd.f32 %v2403, %v2104
        %v2412 = vadd.f32 %v2404, %v2104
        %v2413 = vadd.f32 %v2405, %v2108
        %v2414 = vadd.f32 %v2406, %v2108
        %v2415 = vadd.f32 %v2407, %v2112
        %v2416 = vadd.f32 %v2408, %v2112
        %v2417 = vmul.f32 %v1540, 0.0625
        %v2418 = vmul.f32 %v1543, 0.0625
        %v2419 = vmul.f32 %v1721, 0.0625
        %v2420 = vmul.f32 %v1724, 0.0625
        %v2421 = vmul.f32 %v1902, 0.0625
        %v2422 = vmul.f32 %v1905, 0.0625
        %v2423 = vmul.f32 %v2083, 0.0625
        %v2424 = vmul.f32 %v2086, 0.0625
        %v2425 = vadd.f32 %v2417, %v2256
        %v2426 = vadd.f32 %v2418, %v2256
        %v2427 = vadd.f32 %v2419, %v2260
        %v2428 = vadd.f32 %v2420, %v2260
        %v2429 = vadd.f32 %v2421, %v2264
        %v2430 = vadd.f32 %v2422, %v2264
        %v2431 = vadd.f32 %v2423, %v2268
        %v2432 = vadd.f32 %v2424, %v2268
        %v2433 = vmul.f32 %v2117, %v2117
        %v2434 = vmul.f32 %v2118, %v2118
        %v2435 = vmul.f32 %v2119, %v2119
        %v2436 = vmul.f32 %v2120, %v2120
        %v2437 = vmul.f32 %v2121, %v2121
        %v2438 = vmul.f32 %v2122, %v2122
        %v2439 = vmul.f32 %v2123, %v2123
        %v2440 = vmul.f32 %v2124, %v2124
        %v2441 = vmul.f32 %v2125, %v2125
        %v2442 = vmul.f32 %v2126, %v2126
        %v2443 = vmul.f32 %v2127, %v2127
        %v2444 = vmul.f32 %v2128, %v2128
        %v2445 = vmul.f32 %v2129, %v2129
        %v2446 = vmul.f32 %v2130, %v2130
        %v2447 = vmul.f32 %v2131, %v2131
        %v2448 = vmul.f32 %v2132, %v2132
        %v2449 = vmul.f32 %v2133, %v2133
        %v2450 = vmul.f32 %v2134, %v2134
        %v2451 = vmul.f32 %v2135, %v2135
        %v2452 = vmul.f32 %v2136, %v2136
        %v2453 = vmul.f32 %v2137, %v2137
        %v2454 = vmul.f32 %v2138, %v2138
        %v2455 = vmul.f32 %v2139, %v2139
        %v2456 = vmul.f32 %v2140, %v2140
        %v2457 = vmul.f32 %v2141, %v2141
        %v2458 = vmul.f32 %v2142, %v2142
        %v2459 = vmul.f32 %v2143, %v2143
        %v2460 = vmul.f32 %v2144, %v2144
        %v2461 = vmul.f32 %v2145, %v2145
        %v2462 = vmul.f32 %v2146, %v2146
        %v2463 = vmul.f32 %v2147, %v2147
        %v2464 = vmul.f32 %v2148, %v2148
        %v2465 = vmul.f32 %v2149, %v2149
        %v2466 = vmul.f32 %v2150, %v2150
        %v2467 = vmul.f32 %v2151, %v2151
        %v2468 = vmul.f32 %v2152, %v2152
        %v2469 = vmul.f32 %v2153, %v2153
        %v2470 = vmul.f32 %v2154, %v2154
        %v2471 = vmul.f32 %v2155, %v2155
        %v2472 = vmul.f32 %v2156, %v2156
        %v2473 = vmul.f32 %v2157, %v2157
        %v2474 = vmul.f32 %v2158, %v2158
        %v2475 = vmul.f32 %v2159, %v2159
        %v2476 = vmul.f32 %v2160, %v2160
        %v2477 = vmul.f32 %v2161, %v2161
        %v2478 = vmul.f32 %v2162, %v2162
        %v2479 = vmul.f32 %v2163, %v2163
        %v2480 = vmul.f32 %v2164, %v2164
        %v2481 = vmul.f32 %v2165, %v2165
        %v2482 = vmul.f32 %v2166, %v2166
        %v2483 = vmul.f32 %v2167, %v2167
        %v2484 = vmul.f32 %v2168, %v2168
        %v2485 = vmul.f32 %v2169, %v2169
        %v2486 = vmul.f32 %v2170, %v2170
        %v2487 = vmul.f32 %v2171, %v2171
        %v2488 = vmul.f32 %v2172, %v2172
        %v2489 = vmul.f32 %v2173, %v2173
        %v2490 = vmul.f32 %v2174, %v2174
        %v2491 = vmul.f32 %v2175, %v2175
        %v2492 = vmul.f32 %v2176, %v2176
        %v2493 = vmul.f32 %v2177, %v2177
        %v2494 = vmul.f32 %v2178, %v2178
        %v2495 = vmul.f32 %v2179, %v2179
        %v2496 = vmul.f32 %v2180, %v2180
        %v2497 = vmul.f32 %v2181, %v2181
        %v2498 = vmul.f32 %v2182, %v2182
        %v2499 = vmul.f32 %v2183, %v2183
        %v2500 = vmul.f32 %v2184, %v2184
        %v2501 = vmul.f32 %v2185, %v2185
        %v2502 = vmul.f32 %v2186, %v2186
        %v2503 = vmul.f32 %v2187, %v2187
        %v2504 = vmul.f32 %v2188, %v2188
        %v2505 = vmul.f32 %v2189, %v2189
        %v2506 = vmul.f32 %v2190, %v2190
        %v2507 = vmul.f32 %v2191, %v2191
        %v2508 = vmul.f32 %v2192, %v2192
        %v2509 = vmul.f32 %v2193, %v2193
        %v2510 = vmul.f32 %v2194, %v2194
        %v2511 = vmul.f32 %v2195, %v2195
        %v2512 = vmul.f32 %v2196, %v2196
        %v2513 = vmul.f32 %v2197, %v2197
        %v2514 = vmul.f32 %v2198, %v2198
        %v2515 = vmul.f32 %v2199, %v2199
        %v2516 = vmul.f32 %v2200, %v2200
        %v2517 = vmul.f32 %v2201, %v2201
        %v2518 = vmul.f32 %v2202, %v2202
        %v2519 = vmul.f32 %v2203, %v2203
        %v2520 = vmul.f32 %v2204, %v2204
        %v2521 = vmul.f32 %v2205, %v2205
        %v2522 = vmul.f32 %v2206, %v2206
        %v2523 = vmul.f32 %v2207, %v2207
        %v2524 = vmul.f32 %v2208, %v2208
        %v2525 = vmul.f32 %v2209, %v2209
        %v2526 = vmul.f32 %v2210, %v2210
        %v2527 = vmul.f32 %v2211, %v2211
        %v2528 = vmul.f32 %v2212, %v2212
        %v2529 = vmul.f32 %v2213, %v2213
        %v2530 = vmul.f32 %v2214, %v2214
        %v2531 = vmul.f32 %v2215, %v2215
        %v2532 = vmul.f32 %v2216, %v2216
        %v2533 = vmul.f32 %v2217, %v2217
        %v2534 = vmul.f32 %v2218, %v2218
        %v2535 = vmul.f32 %v2219, %v2219
        %v2536 = vmul.f32 %v2220, %v2220
        %v2537 = vmul.f32 %v2221, %v2221
        %v2538 = vmul.f32 %v2222, %v2222
        %v2539 = vmul.f32 %v2223, %v2223
        %v2540 = vmul.f32 %v2224, %v2224
        %v2541 = vmul.f32 %v2225, %v2225
        %v2542 = vmul.f32 %v2226, %v2226
        %v2543 = vmul.f32 %v2227, %v2227
        %v2544 = vmul.f32 %v2228, %v2228
        %v2545 = vmul.f32 %v2229, %v2229
        %v2546 = vmul.f32 %v2230, %v2230
        %v2547 = vmul.f32 %v2231, %v2231
        %v2548 = vmul.f32 %v2232, %v2232
        %v2549 = vmul.f32 %v2233, %v2233
        %v2550 = vmul.f32 %v2234, %v2234
        %v2551 = vmul.f32 %v2235, %v2235
        %v2552 = vmul.f32 %v2236, %v2236
        %v2553 = vmul.f32 %v2237, %v2237
        %v2554 = vmul.f32 %v2238, %v2238
        %v2555 = vmul.f32 %v2239, %v2239
        %v2556 = vmul.f32 %v2240, %v2240
        %v2557 = vmul.f32 %v2241, %v2241
        %v2558 = vmul.f32 %v2242, %v2242
        %v2559 = vmul.f32 %v2243, %v2243
        %v2560 = vmul.f32 %v2244, %v2244
        %vm2561 = vcmask 195584
        %v2562 = vsel %vm2561, %v2433, 0.0
        %2563 = vadd.xlane.f32.xlu0 %v2562
        %v2564 = vpop.xlane.xlu0 %2563
        %v2565 = vsel %vm2561, %v2434, 0.0
        %2566 = vadd.xlane.f32.xlu0 %v2565
        %v2567 = vpop.xlane.xlu0 %2566
        %v2568 = vsel %vm2561, %v2435, 0.0
        %2569 = vadd.xlane.f32.xlu0 %v2568
        %v2570 = vpop.xlane.xlu0 %2569
        %v2571 = vsel %vm2561, %v2436, 0.0
        %2572 = vadd.xlane.f32.xlu0 %v2571
        %v2573 = vpop.xlane.xlu0 %2572
        %v2574 = vsel %vm2561, %v2437, 0.0
        %2575 = vadd.xlane.f32.xlu0 %v2574
        %v2576 = vpop.xlane.xlu0 %2575
        %v2577 = vsel %vm2561, %v2438, 0.0
        %2578 = vadd.xlane.f32.xlu0 %v2577
        %v2579 = vpop.xlane.xlu0 %2578
        %v2580 = vsel %vm2561, %v2439, 0.0
        %2581 = vadd.xlane.f32.xlu0 %v2580
        %v2582 = vpop.xlane.xlu0 %2581
        %v2583 = vsel %vm2561, %v2440, 0.0
        %2584 = vadd.xlane.f32.xlu0 %v2583
        %v2585 = vpop.xlane.xlu0 %2584
        %v2586 = vsel %vm2561, %v2441, 0.0
        %2587 = vadd.xlane.f32.xlu0 %v2586
        %v2588 = vpop.xlane.xlu0 %2587
        %v2589 = vsel %vm2561, %v2442, 0.0
        %2590 = vadd.xlane.f32.xlu0 %v2589
        %v2591 = vpop.xlane.xlu0 %2590
        %v2592 = vsel %vm2561, %v2443, 0.0
        %2593 = vadd.xlane.f32.xlu0 %v2592
        %v2594 = vpop.xlane.xlu0 %2593
        %v2595 = vsel %vm2561, %v2444, 0.0
        %2596 = vadd.xlane.f32.xlu0 %v2595
        %v2597 = vpop.xlane.xlu0 %2596
        %v2598 = vsel %vm2561, %v2445, 0.0
        %2599 = vadd.xlane.f32.xlu0 %v2598
        %v2600 = vpop.xlane.xlu0 %2599
        %v2601 = vsel %vm2561, %v2446, 0.0
        %2602 = vadd.xlane.f32.xlu0 %v2601
        %v2603 = vpop.xlane.xlu0 %2602
        %v2604 = vsel %vm2561, %v2447, 0.0
        %2605 = vadd.xlane.f32.xlu0 %v2604
        %v2606 = vpop.xlane.xlu0 %2605
        %v2607 = vsel %vm2561, %v2448, 0.0
        %2608 = vadd.xlane.f32.xlu0 %v2607
        %v2609 = vpop.xlane.xlu0 %2608
        %v2610 = vsel %vm2561, %v2449, 0.0
        %2611 = vadd.xlane.f32.xlu0 %v2610
        %v2612 = vpop.xlane.xlu0 %2611
        %v2613 = vsel %vm2561, %v2450, 0.0
        %2614 = vadd.xlane.f32.xlu0 %v2613
        %v2615 = vpop.xlane.xlu0 %2614
        %v2616 = vsel %vm2561, %v2451, 0.0
        %2617 = vadd.xlane.f32.xlu0 %v2616
        %v2618 = vpop.xlane.xlu0 %2617
        %v2619 = vsel %vm2561, %v2452, 0.0
        %2620 = vadd.xlane.f32.xlu0 %v2619
        %v2621 = vpop.xlane.xlu0 %2620
        %v2622 = vsel %vm2561, %v2453, 0.0
        %2623 = vadd.xlane.f32.xlu0 %v2622
        %v2624 = vpop.xlane.xlu0 %2623
        %v2625 = vsel %vm2561, %v2454, 0.0
        %2626 = vadd.xlane.f32.xlu0 %v2625
        %v2627 = vpop.xlane.xlu0 %2626
        %v2628 = vsel %vm2561, %v2455, 0.0
        %2629 = vadd.xlane.f32.xlu0 %v2628
        %v2630 = vpop.xlane.xlu0 %2629
        %v2631 = vsel %vm2561, %v2456, 0.0
        %2632 = vadd.xlane.f32.xlu0 %v2631
        %v2633 = vpop.xlane.xlu0 %2632
        %v2634 = vsel %vm2561, %v2457, 0.0
        %2635 = vadd.xlane.f32.xlu0 %v2634
        %v2636 = vpop.xlane.xlu0 %2635
        %v2637 = vsel %vm2561, %v2458, 0.0
        %2638 = vadd.xlane.f32.xlu0 %v2637
        %v2639 = vpop.xlane.xlu0 %2638
        %v2640 = vsel %vm2561, %v2459, 0.0
        %2641 = vadd.xlane.f32.xlu0 %v2640
        %v2642 = vpop.xlane.xlu0 %2641
        %v2643 = vsel %vm2561, %v2460, 0.0
        %2644 = vadd.xlane.f32.xlu0 %v2643
        %v2645 = vpop.xlane.xlu0 %2644
        %v2646 = vsel %vm2561, %v2461, 0.0
        %2647 = vadd.xlane.f32.xlu0 %v2646
        %v2648 = vpop.xlane.xlu0 %2647
        %v2649 = vsel %vm2561, %v2462, 0.0
        %2650 = vadd.xlane.f32.xlu0 %v2649
        %v2651 = vpop.xlane.xlu0 %2650
        %v2652 = vsel %vm2561, %v2463, 0.0
        %2653 = vadd.xlane.f32.xlu0 %v2652
        %v2654 = vpop.xlane.xlu0 %2653
        %v2655 = vsel %vm2561, %v2464, 0.0
        %2656 = vadd.xlane.f32.xlu0 %v2655
        %v2657 = vpop.xlane.xlu0 %2656
        %v2658 = vsel %vm2561, %v2465, 0.0
        %2659 = vadd.xlane.f32.xlu0 %v2658
        %v2660 = vpop.xlane.xlu0 %2659
        %v2661 = vsel %vm2561, %v2466, 0.0
        %2662 = vadd.xlane.f32.xlu0 %v2661
        %v2663 = vpop.xlane.xlu0 %2662
        %v2664 = vsel %vm2561, %v2467, 0.0
        %2665 = vadd.xlane.f32.xlu0 %v2664
        %v2666 = vpop.xlane.xlu0 %2665
        %v2667 = vsel %vm2561, %v2468, 0.0
        %2668 = vadd.xlane.f32.xlu0 %v2667
        %v2669 = vpop.xlane.xlu0 %2668
        %v2670 = vsel %vm2561, %v2469, 0.0
        %2671 = vadd.xlane.f32.xlu0 %v2670
        %v2672 = vpop.xlane.xlu0 %2671
        %v2673 = vsel %vm2561, %v2470, 0.0
        %2674 = vadd.xlane.f32.xlu0 %v2673
        %v2675 = vpop.xlane.xlu0 %2674
        %v2676 = vsel %vm2561, %v2471, 0.0
        %2677 = vadd.xlane.f32.xlu0 %v2676
        %v2678 = vpop.xlane.xlu0 %2677
        %v2679 = vsel %vm2561, %v2472, 0.0
        %2680 = vadd.xlane.f32.xlu0 %v2679
        %v2681 = vpop.xlane.xlu0 %2680
        %v2682 = vsel %vm2561, %v2473, 0.0
        %2683 = vadd.xlane.f32.xlu0 %v2682
        %v2684 = vpop.xlane.xlu0 %2683
        %v2685 = vsel %vm2561, %v2474, 0.0
        %2686 = vadd.xlane.f32.xlu0 %v2685
        %v2687 = vpop.xlane.xlu0 %2686
        %v2688 = vsel %vm2561, %v2475, 0.0
        %2689 = vadd.xlane.f32.xlu0 %v2688
        %v2690 = vpop.xlane.xlu0 %2689
        %v2691 = vsel %vm2561, %v2476, 0.0
        %2692 = vadd.xlane.f32.xlu0 %v2691
        %v2693 = vpop.xlane.xlu0 %2692
        %v2694 = vsel %vm2561, %v2477, 0.0
        %2695 = vadd.xlane.f32.xlu0 %v2694
        %v2696 = vpop.xlane.xlu0 %2695
        %v2697 = vsel %vm2561, %v2478, 0.0
        %2698 = vadd.xlane.f32.xlu0 %v2697
        %v2699 = vpop.xlane.xlu0 %2698
        %v2700 = vsel %vm2561, %v2479, 0.0
        %2701 = vadd.xlane.f32.xlu0 %v2700
        %v2702 = vpop.xlane.xlu0 %2701
        %v2703 = vsel %vm2561, %v2480, 0.0
        %2704 = vadd.xlane.f32.xlu0 %v2703
        %v2705 = vpop.xlane.xlu0 %2704
        %v2706 = vsel %vm2561, %v2481, 0.0
        %2707 = vadd.xlane.f32.xlu0 %v2706
        %v2708 = vpop.xlane.xlu0 %2707
        %v2709 = vsel %vm2561, %v2482, 0.0
        %2710 = vadd.xlane.f32.xlu0 %v2709
        %v2711 = vpop.xlane.xlu0 %2710
        %v2712 = vsel %vm2561, %v2483, 0.0
        %2713 = vadd.xlane.f32.xlu0 %v2712
        %v2714 = vpop.xlane.xlu0 %2713
        %v2715 = vsel %vm2561, %v2484, 0.0
        %2716 = vadd.xlane.f32.xlu0 %v2715
        %v2717 = vpop.xlane.xlu0 %2716
        %v2718 = vsel %vm2561, %v2485, 0.0
        %2719 = vadd.xlane.f32.xlu0 %v2718
        %v2720 = vpop.xlane.xlu0 %2719
        %v2721 = vsel %vm2561, %v2486, 0.0
        %2722 = vadd.xlane.f32.xlu0 %v2721
        %v2723 = vpop.xlane.xlu0 %2722
        %v2724 = vsel %vm2561, %v2487, 0.0
        %2725 = vadd.xlane.f32.xlu0 %v2724
        %v2726 = vpop.xlane.xlu0 %2725
        %v2727 = vsel %vm2561, %v2488, 0.0
        %2728 = vadd.xlane.f32.xlu0 %v2727
        %v2729 = vpop.xlane.xlu0 %2728
        %v2730 = vsel %vm2561, %v2489, 0.0
        %2731 = vadd.xlane.f32.xlu0 %v2730
        %v2732 = vpop.xlane.xlu0 %2731
        %v2733 = vsel %vm2561, %v2490, 0.0
        %2734 = vadd.xlane.f32.xlu0 %v2733
        %v2735 = vpop.xlane.xlu0 %2734
        %v2736 = vsel %vm2561, %v2491, 0.0
        %2737 = vadd.xlane.f32.xlu0 %v2736
        %v2738 = vpop.xlane.xlu0 %2737
        %v2739 = vsel %vm2561, %v2492, 0.0
        %2740 = vadd.xlane.f32.xlu0 %v2739
        %v2741 = vpop.xlane.xlu0 %2740
        %v2742 = vsel %vm2561, %v2493, 0.0
        %2743 = vadd.xlane.f32.xlu0 %v2742
        %v2744 = vpop.xlane.xlu0 %2743
        %v2745 = vsel %vm2561, %v2494, 0.0
        %2746 = vadd.xlane.f32.xlu0 %v2745
        %v2747 = vpop.xlane.xlu0 %2746
        %v2748 = vsel %vm2561, %v2495, 0.0
        %2749 = vadd.xlane.f32.xlu0 %v2748
        %v2750 = vpop.xlane.xlu0 %2749
        %v2751 = vsel %vm2561, %v2496, 0.0
        %2752 = vadd.xlane.f32.xlu0 %v2751
        %v2753 = vpop.xlane.xlu0 %2752
        %v2754 = vsel %vm2561, %v2497, 0.0
        %2755 = vadd.xlane.f32.xlu0 %v2754
        %v2756 = vpop.xlane.xlu0 %2755
        %v2757 = vsel %vm2561, %v2498, 0.0
        %2758 = vadd.xlane.f32.xlu0 %v2757
        %v2759 = vpop.xlane.xlu0 %2758
        %v2760 = vsel %vm2561, %v2499, 0.0
        %2761 = vadd.xlane.f32.xlu0 %v2760
        %v2762 = vpop.xlane.xlu0 %2761
        %v2763 = vsel %vm2561, %v2500, 0.0
        %2764 = vadd.xlane.f32.xlu0 %v2763
        %v2765 = vpop.xlane.xlu0 %2764
        %v2766 = vsel %vm2561, %v2501, 0.0
        %2767 = vadd.xlane.f32.xlu0 %v2766
        %v2768 = vpop.xlane.xlu0 %2767
        %v2769 = vsel %vm2561, %v2502, 0.0
        %2770 = vadd.xlane.f32.xlu0 %v2769
        %v2771 = vpop.xlane.xlu0 %2770
        %v2772 = vsel %vm2561, %v2503, 0.0
        %2773 = vadd.xlane.f32.xlu0 %v2772
        %v2774 = vpop.xlane.xlu0 %2773
        %v2775 = vsel %vm2561, %v2504, 0.0
        %2776 = vadd.xlane.f32.xlu0 %v2775
        %v2777 = vpop.xlane.xlu0 %2776
        %v2778 = vsel %vm2561, %v2505, 0.0
        %2779 = vadd.xlane.f32.xlu0 %v2778
        %v2780 = vpop.xlane.xlu0 %2779
        %v2781 = vsel %vm2561, %v2506, 0.0
        %2782 = vadd.xlane.f32.xlu0 %v2781
        %v2783 = vpop.xlane.xlu0 %2782
        %v2784 = vsel %vm2561, %v2507, 0.0
        %2785 = vadd.xlane.f32.xlu0 %v2784
        %v2786 = vpop.xlane.xlu0 %2785
        %v2787 = vsel %vm2561, %v2508, 0.0
        %2788 = vadd.xlane.f32.xlu0 %v2787
        %v2789 = vpop.xlane.xlu0 %2788
        %v2790 = vsel %vm2561, %v2509, 0.0
        %2791 = vadd.xlane.f32.xlu0 %v2790
        %v2792 = vpop.xlane.xlu0 %2791
        %v2793 = vsel %vm2561, %v2510, 0.0
        %2794 = vadd.xlane.f32.xlu0 %v2793
        %v2795 = vpop.xlane.xlu0 %2794
        %v2796 = vsel %vm2561, %v2511, 0.0
        %2797 = vadd.xlane.f32.xlu0 %v2796
        %v2798 = vpop.xlane.xlu0 %2797
        %v2799 = vsel %vm2561, %v2512, 0.0
        %2800 = vadd.xlane.f32.xlu0 %v2799
        %v2801 = vpop.xlane.xlu0 %2800
        %v2802 = vsel %vm2561, %v2513, 0.0
        %2803 = vadd.xlane.f32.xlu0 %v2802
        %v2804 = vpop.xlane.xlu0 %2803
        %v2805 = vsel %vm2561, %v2514, 0.0
        %2806 = vadd.xlane.f32.xlu0 %v2805
        %v2807 = vpop.xlane.xlu0 %2806
        %v2808 = vsel %vm2561, %v2515, 0.0
        %2809 = vadd.xlane.f32.xlu0 %v2808
        %v2810 = vpop.xlane.xlu0 %2809
        %v2811 = vsel %vm2561, %v2516, 0.0
        %2812 = vadd.xlane.f32.xlu0 %v2811
        %v2813 = vpop.xlane.xlu0 %2812
        %v2814 = vsel %vm2561, %v2517, 0.0
        %2815 = vadd.xlane.f32.xlu0 %v2814
        %v2816 = vpop.xlane.xlu0 %2815
        %v2817 = vsel %vm2561, %v2518, 0.0
        %2818 = vadd.xlane.f32.xlu0 %v2817
        %v2819 = vpop.xlane.xlu0 %2818
        %v2820 = vsel %vm2561, %v2519, 0.0
        %2821 = vadd.xlane.f32.xlu0 %v2820
        %v2822 = vpop.xlane.xlu0 %2821
        %v2823 = vsel %vm2561, %v2520, 0.0
        %2824 = vadd.xlane.f32.xlu0 %v2823
        %v2825 = vpop.xlane.xlu0 %2824
        %v2826 = vsel %vm2561, %v2521, 0.0
        %2827 = vadd.xlane.f32.xlu0 %v2826
        %v2828 = vpop.xlane.xlu0 %2827
        %v2829 = vsel %vm2561, %v2522, 0.0
        %2830 = vadd.xlane.f32.xlu0 %v2829
        %v2831 = vpop.xlane.xlu0 %2830
        %v2832 = vsel %vm2561, %v2523, 0.0
        %2833 = vadd.xlane.f32.xlu0 %v2832
        %v2834 = vpop.xlane.xlu0 %2833
        %v2835 = vsel %vm2561, %v2524, 0.0
        %2836 = vadd.xlane.f32.xlu0 %v2835
        %v2837 = vpop.xlane.xlu0 %2836
        %v2838 = vsel %vm2561, %v2525, 0.0
        %2839 = vadd.xlane.f32.xlu0 %v2838
        %v2840 = vpop.xlane.xlu0 %2839
        %v2841 = vsel %vm2561, %v2526, 0.0
        %2842 = vadd.xlane.f32.xlu0 %v2841
        %v2843 = vpop.xlane.xlu0 %2842
        %v2844 = vsel %vm2561, %v2527, 0.0
        %2845 = vadd.xlane.f32.xlu0 %v2844
        %v2846 = vpop.xlane.xlu0 %2845
        %v2847 = vsel %vm2561, %v2528, 0.0
        %2848 = vadd.xlane.f32.xlu0 %v2847
        %v2849 = vpop.xlane.xlu0 %2848
        %v2850 = vsel %vm2561, %v2529, 0.0
        %2851 = vadd.xlane.f32.xlu0 %v2850
        %v2852 = vpop.xlane.xlu0 %2851
        %v2853 = vsel %vm2561, %v2530, 0.0
        %2854 = vadd.xlane.f32.xlu0 %v2853
        %v2855 = vpop.xlane.xlu0 %2854
        %v2856 = vsel %vm2561, %v2531, 0.0
        %2857 = vadd.xlane.f32.xlu0 %v2856
        %v2858 = vpop.xlane.xlu0 %2857
        %v2859 = vsel %vm2561, %v2532, 0.0
        %2860 = vadd.xlane.f32.xlu0 %v2859
        %v2861 = vpop.xlane.xlu0 %2860
        %v2862 = vsel %vm2561, %v2533, 0.0
        %2863 = vadd.xlane.f32.xlu0 %v2862
        %v2864 = vpop.xlane.xlu0 %2863
        %v2865 = vsel %vm2561, %v2534, 0.0
        %2866 = vadd.xlane.f32.xlu0 %v2865
        %v2867 = vpop.xlane.xlu0 %2866
        %v2868 = vsel %vm2561, %v2535, 0.0
        %2869 = vadd.xlane.f32.xlu0 %v2868
        %v2870 = vpop.xlane.xlu0 %2869
        %v2871 = vsel %vm2561, %v2536, 0.0
        %2872 = vadd.xlane.f32.xlu0 %v2871
        %v2873 = vpop.xlane.xlu0 %2872
        %v2874 = vsel %vm2561, %v2537, 0.0
        %2875 = vadd.xlane.f32.xlu0 %v2874
        %v2876 = vpop.xlane.xlu0 %2875
        %v2877 = vsel %vm2561, %v2538, 0.0
        %2878 = vadd.xlane.f32.xlu0 %v2877
        %v2879 = vpop.xlane.xlu0 %2878
        %v2880 = vsel %vm2561, %v2539, 0.0
        %2881 = vadd.xlane.f32.xlu0 %v2880
        %v2882 = vpop.xlane.xlu0 %2881
        %v2883 = vsel %vm2561, %v2540, 0.0
        %2884 = vadd.xlane.f32.xlu0 %v2883
        %v2885 = vpop.xlane.xlu0 %2884
        %v2886 = vsel %vm2561, %v2541, 0.0
        %2887 = vadd.xlane.f32.xlu0 %v2886
        %v2888 = vpop.xlane.xlu0 %2887
        %v2889 = vsel %vm2561, %v2542, 0.0
        %2890 = vadd.xlane.f32.xlu0 %v2889
        %v2891 = vpop.xlane.xlu0 %2890
        %v2892 = vsel %vm2561, %v2543, 0.0
        %2893 = vadd.xlane.f32.xlu0 %v2892
        %v2894 = vpop.xlane.xlu0 %2893
        %v2895 = vsel %vm2561, %v2544, 0.0
        %2896 = vadd.xlane.f32.xlu0 %v2895
        %v2897 = vpop.xlane.xlu0 %2896
        %v2898 = vsel %vm2561, %v2545, 0.0
        %2899 = vadd.xlane.f32.xlu0 %v2898
        %v2900 = vpop.xlane.xlu0 %2899
        %v2901 = vsel %vm2561, %v2546, 0.0
        %2902 = vadd.xlane.f32.xlu0 %v2901
        %v2903 = vpop.xlane.xlu0 %2902
        %v2904 = vsel %vm2561, %v2547, 0.0
        %2905 = vadd.xlane.f32.xlu0 %v2904
        %v2906 = vpop.xlane.xlu0 %2905
        %v2907 = vsel %vm2561, %v2548, 0.0
        %2908 = vadd.xlane.f32.xlu0 %v2907
        %v2909 = vpop.xlane.xlu0 %2908
        %v2910 = vsel %vm2561, %v2549, 0.0
        %2911 = vadd.xlane.f32.xlu0 %v2910
        %v2912 = vpop.xlane.xlu0 %2911
        %v2913 = vsel %vm2561, %v2550, 0.0
        %2914 = vadd.xlane.f32.xlu0 %v2913
        %v2915 = vpop.xlane.xlu0 %2914
        %v2916 = vsel %vm2561, %v2551, 0.0
        %2917 = vadd.xlane.f32.xlu0 %v2916
        %v2918 = vpop.xlane.xlu0 %2917
        %v2919 = vsel %vm2561, %v2552, 0.0
        %2920 = vadd.xlane.f32.xlu0 %v2919
        %v2921 = vpop.xlane.xlu0 %2920
        %v2922 = vsel %vm2561, %v2553, 0.0
        %2923 = vadd.xlane.f32.xlu0 %v2922
        %v2924 = vpop.xlane.xlu0 %2923
        %v2925 = vsel %vm2561, %v2554, 0.0
        %2926 = vadd.xlane.f32.xlu0 %v2925
        %v2927 = vpop.xlane.xlu0 %2926
        %v2928 = vsel %vm2561, %v2555, 0.0
        %2929 = vadd.xlane.f32.xlu0 %v2928
        %v2930 = vpop.xlane.xlu0 %2929
        %v2931 = vsel %vm2561, %v2556, 0.0
        %2932 = vadd.xlane.f32.xlu0 %v2931
        %v2933 = vpop.xlane.xlu0 %2932
        %v2934 = vsel %vm2561, %v2557, 0.0
        %2935 = vadd.xlane.f32.xlu0 %v2934
        %v2936 = vpop.xlane.xlu0 %2935
        %v2937 = vsel %vm2561, %v2558, 0.0
        %2938 = vadd.xlane.f32.xlu0 %v2937
        %v2939 = vpop.xlane.xlu0 %2938
        %v2940 = vsel %vm2561, %v2559, 0.0
        %2941 = vadd.xlane.f32.xlu0 %v2940
        %v2942 = vpop.xlane.xlu0 %2941
        %v2943 = vsel %vm2561, %v2560, 0.0
        %2944 = vadd.xlane.f32.xlu0 %v2943
        %v2945 = vpop.xlane.xlu0 %2944
        %v2946 = vmax.f32 %v2564, 1e-24
        %v2947 = vmax.f32 %v2567, 1e-24
        %v2948 = vmax.f32 %v2570, 1e-24
        %v2949 = vmax.f32 %v2573, 1e-24
        %v2950 = vmax.f32 %v2576, 1e-24
        %v2951 = vmax.f32 %v2579, 1e-24
        %v2952 = vmax.f32 %v2582, 1e-24
        %v2953 = vmax.f32 %v2585, 1e-24
        %v2954 = vmax.f32 %v2588, 1e-24
        %v2955 = vmax.f32 %v2591, 1e-24
        %v2956 = vmax.f32 %v2594, 1e-24
        %v2957 = vmax.f32 %v2597, 1e-24
        %v2958 = vmax.f32 %v2600, 1e-24
        %v2959 = vmax.f32 %v2603, 1e-24
        %v2960 = vmax.f32 %v2606, 1e-24
        %v2961 = vmax.f32 %v2609, 1e-24
        %v2962 = vmax.f32 %v2612, 1e-24
        %v2963 = vmax.f32 %v2615, 1e-24
        %v2964 = vmax.f32 %v2618, 1e-24
        %v2965 = vmax.f32 %v2621, 1e-24
        %v2966 = vmax.f32 %v2624, 1e-24
        %v2967 = vmax.f32 %v2627, 1e-24
        %v2968 = vmax.f32 %v2630, 1e-24
        %v2969 = vmax.f32 %v2633, 1e-24
        %v2970 = vmax.f32 %v2636, 1e-24
        %v2971 = vmax.f32 %v2639, 1e-24
        %v2972 = vmax.f32 %v2642, 1e-24
        %v2973 = vmax.f32 %v2645, 1e-24
        %v2974 = vmax.f32 %v2648, 1e-24
        %v2975 = vmax.f32 %v2651, 1e-24
        %v2976 = vmax.f32 %v2654, 1e-24
        %v2977 = vmax.f32 %v2657, 1e-24
        %v2978 = vmax.f32 %v2660, 1e-24
        %v2979 = vmax.f32 %v2663, 1e-24
        %v2980 = vmax.f32 %v2666, 1e-24
        %v2981 = vmax.f32 %v2669, 1e-24
        %v2982 = vmax.f32 %v2672, 1e-24
        %v2983 = vmax.f32 %v2675, 1e-24
        %v2984 = vmax.f32 %v2678, 1e-24
        %v2985 = vmax.f32 %v2681, 1e-24
        %v2986 = vmax.f32 %v2684, 1e-24
        %v2987 = vmax.f32 %v2687, 1e-24
        %v2988 = vmax.f32 %v2690, 1e-24
        %v2989 = vmax.f32 %v2693, 1e-24
        %v2990 = vmax.f32 %v2696, 1e-24
        %v2991 = vmax.f32 %v2699, 1e-24
        %v2992 = vmax.f32 %v2702, 1e-24
        %v2993 = vmax.f32 %v2705, 1e-24
        %v2994 = vmax.f32 %v2708, 1e-24
        %v2995 = vmax.f32 %v2711, 1e-24
        %v2996 = vmax.f32 %v2714, 1e-24
        %v2997 = vmax.f32 %v2717, 1e-24
        %v2998 = vmax.f32 %v2720, 1e-24
        %v2999 = vmax.f32 %v2723, 1e-24
        %v3000 = vmax.f32 %v2726, 1e-24
        %v3001 = vmax.f32 %v2729, 1e-24
        %v3002 = vmax.f32 %v2732, 1e-24
        %v3003 = vmax.f32 %v2735, 1e-24
        %v3004 = vmax.f32 %v2738, 1e-24
        %v3005 = vmax.f32 %v2741, 1e-24
        %v3006 = vmax.f32 %v2744, 1e-24
        %v3007 = vmax.f32 %v2747, 1e-24
        %v3008 = vmax.f32 %v2750, 1e-24
        %v3009 = vmax.f32 %v2753, 1e-24
        %v3010 = vmax.f32 %v2756, 1e-24
        %v3011 = vmax.f32 %v2759, 1e-24
        %v3012 = vmax.f32 %v2762, 1e-24
        %v3013 = vmax.f32 %v2765, 1e-24
        %v3014 = vmax.f32 %v2768, 1e-24
        %v3015 = vmax.f32 %v2771, 1e-24
        %v3016 = vmax.f32 %v2774, 1e-24
        %v3017 = vmax.f32 %v2777, 1e-24
        %v3018 = vmax.f32 %v2780, 1e-24
        %v3019 = vmax.f32 %v2783, 1e-24
        %v3020 = vmax.f32 %v2786, 1e-24
        %v3021 = vmax.f32 %v2789, 1e-24
        %v3022 = vmax.f32 %v2792, 1e-24
        %v3023 = vmax.f32 %v2795, 1e-24
        %v3024 = vmax.f32 %v2798, 1e-24
        %v3025 = vmax.f32 %v2801, 1e-24
        %v3026 = vmax.f32 %v2804, 1e-24
        %v3027 = vmax.f32 %v2807, 1e-24
        %v3028 = vmax.f32 %v2810, 1e-24
        %v3029 = vmax.f32 %v2813, 1e-24
        %v3030 = vmax.f32 %v2816, 1e-24
        %v3031 = vmax.f32 %v2819, 1e-24
        %v3032 = vmax.f32 %v2822, 1e-24
        %v3033 = vmax.f32 %v2825, 1e-24
        %v3034 = vmax.f32 %v2828, 1e-24
        %v3035 = vmax.f32 %v2831, 1e-24
        %v3036 = vmax.f32 %v2834, 1e-24
        %v3037 = vmax.f32 %v2837, 1e-24
        %v3038 = vmax.f32 %v2840, 1e-24
        %v3039 = vmax.f32 %v2843, 1e-24
        %v3040 = vmax.f32 %v2846, 1e-24
        %v3041 = vmax.f32 %v2849, 1e-24
        %v3042 = vmax.f32 %v2852, 1e-24
        %v3043 = vmax.f32 %v2855, 1e-24
        %v3044 = vmax.f32 %v2858, 1e-24
        %v3045 = vmax.f32 %v2861, 1e-24
        %v3046 = vmax.f32 %v2864, 1e-24
        %v3047 = vmax.f32 %v2867, 1e-24
        %v3048 = vmax.f32 %v2870, 1e-24
        %v3049 = vmax.f32 %v2873, 1e-24
        %v3050 = vmax.f32 %v2876, 1e-24
        %v3051 = vmax.f32 %v2879, 1e-24
        %v3052 = vmax.f32 %v2882, 1e-24
        %v3053 = vmax.f32 %v2885, 1e-24
        %v3054 = vmax.f32 %v2888, 1e-24
        %v3055 = vmax.f32 %v2891, 1e-24
        %v3056 = vmax.f32 %v2894, 1e-24
        %v3057 = vmax.f32 %v2897, 1e-24
        %v3058 = vmax.f32 %v2900, 1e-24
        %v3059 = vmax.f32 %v2903, 1e-24
        %v3060 = vmax.f32 %v2906, 1e-24
        %v3061 = vmax.f32 %v2909, 1e-24
        %v3062 = vmax.f32 %v2912, 1e-24
        %v3063 = vmax.f32 %v2915, 1e-24
        %v3064 = vmax.f32 %v2918, 1e-24
        %v3065 = vmax.f32 %v2921, 1e-24
        %v3066 = vmax.f32 %v2924, 1e-24
        %v3067 = vmax.f32 %v2927, 1e-24
        %v3068 = vmax.f32 %v2930, 1e-24
        %v3069 = vmax.f32 %v2933, 1e-24
        %v3070 = vmax.f32 %v2936, 1e-24
        %v3071 = vmax.f32 %v2939, 1e-24
        %v3072 = vmax.f32 %v2942, 1e-24
        %v3073 = vmax.f32 %v2945, 1e-24
        %v3074 = vrsqrt.pop %v2946
        %v3075 = vrsqrt.pop %v2947
        %v3076 = vrsqrt.pop %v2948
        %v3077 = vrsqrt.pop %v2949
        %v3078 = vrsqrt.pop %v2950
        %v3079 = vrsqrt.pop %v2951
        %v3080 = vrsqrt.pop %v2952
        %v3081 = vrsqrt.pop %v2953
        %v3082 = vrsqrt.pop %v2954
        %v3083 = vrsqrt.pop %v2955
        %v3084 = vrsqrt.pop %v2956
        %v3085 = vrsqrt.pop %v2957
        %v3086 = vrsqrt.pop %v2958
        %v3087 = vrsqrt.pop %v2959
        %v3088 = vrsqrt.pop %v2960
        %v3089 = vrsqrt.pop %v2961
        %v3090 = vrsqrt.pop %v2962
        %v3091 = vrsqrt.pop %v2963
        %v3092 = vrsqrt.pop %v2964
        %v3093 = vrsqrt.pop %v2965
        %v3094 = vrsqrt.pop %v2966
        %v3095 = vrsqrt.pop %v2967
        %v3096 = vrsqrt.pop %v2968
        %v3097 = vrsqrt.pop %v2969
        %v3098 = vrsqrt.pop %v2970
        %v3099 = vrsqrt.pop %v2971
        %v3100 = vrsqrt.pop %v2972
        %v3101 = vrsqrt.pop %v2973
        %v3102 = vrsqrt.pop %v2974
        %v3103 = vrsqrt.pop %v2975
        %v3104 = vrsqrt.pop %v2976
        %v3105 = vrsqrt.pop %v2977
        %v3106 = vrsqrt.pop %v2978
        %v3107 = vrsqrt.pop %v2979
        %v3108 = vrsqrt.pop %v2980
        %v3109 = vrsqrt.pop %v2981
        %v3110 = vrsqrt.pop %v2982
        %v3111 = vrsqrt.pop %v2983
        %v3112 = vrsqrt.pop %v2984
        %v3113 = vrsqrt.pop %v2985
        %v3114 = vrsqrt.pop %v2986
        %v3115 = vrsqrt.pop %v2987
        %v3116 = vrsqrt.pop %v2988
        %v3117 = vrsqrt.pop %v2989
        %v3118 = vrsqrt.pop %v2990
        %v3119 = vrsqrt.pop %v2991
        %v3120 = vrsqrt.pop %v2992
        %v3121 = vrsqrt.pop %v2993
        %v3122 = vrsqrt.pop %v2994
        %v3123 = vrsqrt.pop %v2995
        %v3124 = vrsqrt.pop %v2996
        %v3125 = vrsqrt.pop %v2997
        %v3126 = vrsqrt.pop %v2998
        %v3127 = vrsqrt.pop %v2999
        %v3128 = vrsqrt.pop %v3000
        %v3129 = vrsqrt.pop %v3001
        %v3130 = vrsqrt.pop %v3002
        %v3131 = vrsqrt.pop %v3003
        %v3132 = vrsqrt.pop %v3004
        %v3133 = vrsqrt.pop %v3005
        %v3134 = vrsqrt.pop %v3006
        %v3135 = vrsqrt.pop %v3007
        %v3136 = vrsqrt.pop %v3008
        %v3137 = vrsqrt.pop %v3009
        %v3138 = vrsqrt.pop %v3010
        %v3139 = vrsqrt.pop %v3011
        %v3140 = vrsqrt.pop %v3012
        %v3141 = vrsqrt.pop %v3013
        %v3142 = vrsqrt.pop %v3014
        %v3143 = vrsqrt.pop %v3015
        %v3144 = vrsqrt.pop %v3016
        %v3145 = vrsqrt.pop %v3017
        %v3146 = vrsqrt.pop %v3018
        %v3147 = vrsqrt.pop %v3019
        %v3148 = vrsqrt.pop %v3020
        %v3149 = vrsqrt.pop %v3021
        %v3150 = vrsqrt.pop %v3022
        %v3151 = vrsqrt.pop %v3023
        %v3152 = vrsqrt.pop %v3024
        %v3153 = vrsqrt.pop %v3025
        %v3154 = vrsqrt.pop %v3026
        %v3155 = vrsqrt.pop %v3027
        %v3156 = vrsqrt.pop %v3028
        %v3157 = vrsqrt.pop %v3029
        %v3158 = vrsqrt.pop %v3030
        %v3159 = vrsqrt.pop %v3031
        %v3160 = vrsqrt.pop %v3032
        %v3161 = vrsqrt.pop %v3033
        %v3162 = vrsqrt.pop %v3034
        %v3163 = vrsqrt.pop %v3035
        %v3164 = vrsqrt.pop %v3036
        %v3165 = vrsqrt.pop %v3037
        %v3166 = vrsqrt.pop %v3038
        %v3167 = vrsqrt.pop %v3039
        %v3168 = vrsqrt.pop %v3040
        %v3169 = vrsqrt.pop %v3041
        %v3170 = vrsqrt.pop %v3042
        %v3171 = vrsqrt.pop %v3043
        %v3172 = vrsqrt.pop %v3044
        %v3173 = vrsqrt.pop %v3045
        %v3174 = vrsqrt.pop %v3046
        %v3175 = vrsqrt.pop %v3047
        %v3176 = vrsqrt.pop %v3048
        %v3177 = vrsqrt.pop %v3049
        %v3178 = vrsqrt.pop %v3050
        %v3179 = vrsqrt.pop %v3051
        %v3180 = vrsqrt.pop %v3052
        %v3181 = vrsqrt.pop %v3053
        %v3182 = vrsqrt.pop %v3054
        %v3183 = vrsqrt.pop %v3055
        %v3184 = vrsqrt.pop %v3056
        %v3185 = vrsqrt.pop %v3057
        %v3186 = vrsqrt.pop %v3058
        %v3187 = vrsqrt.pop %v3059
        %v3188 = vrsqrt.pop %v3060
        %v3189 = vrsqrt.pop %v3061
        %v3190 = vrsqrt.pop %v3062
        %v3191 = vrsqrt.pop %v3063
        %v3192 = vrsqrt.pop %v3064
        %v3193 = vrsqrt.pop %v3065
        %v3194 = vrsqrt.pop %v3066
        %v3195 = vrsqrt.pop %v3067
        %v3196 = vrsqrt.pop %v3068
        %v3197 = vrsqrt.pop %v3069
        %v3198 = vrsqrt.pop %v3070
        %v3199 = vrsqrt.pop %v3071
        %v3200 = vrsqrt.pop %v3072
        %v3201 = vrsqrt.pop %v3073
        %v3202 = vmul.f32 %v2117, %v3074
        %v3203 = vmul.f32 %v2118, %v3075
        %v3204 = vmul.f32 %v2119, %v3076
        %v3205 = vmul.f32 %v2120, %v3077
        %v3206 = vmul.f32 %v2121, %v3078
        %v3207 = vmul.f32 %v2122, %v3079
        %v3208 = vmul.f32 %v2123, %v3080
        %v3209 = vmul.f32 %v2124, %v3081
        %v3210 = vmul.f32 %v2125, %v3082
        %v3211 = vmul.f32 %v2126, %v3083
        %v3212 = vmul.f32 %v2127, %v3084
        %v3213 = vmul.f32 %v2128, %v3085
        %v3214 = vmul.f32 %v2129, %v3086
        %v3215 = vmul.f32 %v2130, %v3087
        %v3216 = vmul.f32 %v2131, %v3088
        %v3217 = vmul.f32 %v2132, %v3089
        %v3218 = vmul.f32 %v2133, %v3090
        %v3219 = vmul.f32 %v2134, %v3091
        %v3220 = vmul.f32 %v2135, %v3092
        %v3221 = vmul.f32 %v2136, %v3093
        %v3222 = vmul.f32 %v2137, %v3094
        %v3223 = vmul.f32 %v2138, %v3095
        %v3224 = vmul.f32 %v2139, %v3096
        %v3225 = vmul.f32 %v2140, %v3097
        %v3226 = vmul.f32 %v2141, %v3098
        %v3227 = vmul.f32 %v2142, %v3099
        %v3228 = vmul.f32 %v2143, %v3100
        %v3229 = vmul.f32 %v2144, %v3101
        %v3230 = vmul.f32 %v2145, %v3102
        %v3231 = vmul.f32 %v2146, %v3103
        %v3232 = vmul.f32 %v2147, %v3104
        %v3233 = vmul.f32 %v2148, %v3105
        %v3234 = vmul.f32 %v2149, %v3106
        %v3235 = vmul.f32 %v2150, %v3107
        %v3236 = vmul.f32 %v2151, %v3108
        %v3237 = vmul.f32 %v2152, %v3109
        %v3238 = vmul.f32 %v2153, %v3110
        %v3239 = vmul.f32 %v2154, %v3111
        %v3240 = vmul.f32 %v2155, %v3112
        %v3241 = vmul.f32 %v2156, %v3113
        %v3242 = vmul.f32 %v2157, %v3114
        %v3243 = vmul.f32 %v2158, %v3115
        %v3244 = vmul.f32 %v2159, %v3116
        %v3245 = vmul.f32 %v2160, %v3117
        %v3246 = vmul.f32 %v2161, %v3118
        %v3247 = vmul.f32 %v2162, %v3119
        %v3248 = vmul.f32 %v2163, %v3120
        %v3249 = vmul.f32 %v2164, %v3121
        %v3250 = vmul.f32 %v2165, %v3122
        %v3251 = vmul.f32 %v2166, %v3123
        %v3252 = vmul.f32 %v2167, %v3124
        %v3253 = vmul.f32 %v2168, %v3125
        %v3254 = vmul.f32 %v2169, %v3126
        %v3255 = vmul.f32 %v2170, %v3127
        %v3256 = vmul.f32 %v2171, %v3128
        %v3257 = vmul.f32 %v2172, %v3129
        %v3258 = vmul.f32 %v2173, %v3130
        %v3259 = vmul.f32 %v2174, %v3131
        %v3260 = vmul.f32 %v2175, %v3132
        %v3261 = vmul.f32 %v2176, %v3133
        %v3262 = vmul.f32 %v2177, %v3134
        %v3263 = vmul.f32 %v2178, %v3135
        %v3264 = vmul.f32 %v2179, %v3136
        %v3265 = vmul.f32 %v2180, %v3137
        %v3266 = vmul.f32 %v2181, %v3138
        %v3267 = vmul.f32 %v2182, %v3139
        %v3268 = vmul.f32 %v2183, %v3140
        %v3269 = vmul.f32 %v2184, %v3141
        %v3270 = vmul.f32 %v2185, %v3142
        %v3271 = vmul.f32 %v2186, %v3143
        %v3272 = vmul.f32 %v2187, %v3144
        %v3273 = vmul.f32 %v2188, %v3145
        %v3274 = vmul.f32 %v2189, %v3146
        %v3275 = vmul.f32 %v2190, %v3147
        %v3276 = vmul.f32 %v2191, %v3148
        %v3277 = vmul.f32 %v2192, %v3149
        %v3278 = vmul.f32 %v2193, %v3150
        %v3279 = vmul.f32 %v2194, %v3151
        %v3280 = vmul.f32 %v2195, %v3152
        %v3281 = vmul.f32 %v2196, %v3153
        %v3282 = vmul.f32 %v2197, %v3154
        %v3283 = vmul.f32 %v2198, %v3155
        %v3284 = vmul.f32 %v2199, %v3156
        %v3285 = vmul.f32 %v2200, %v3157
        %v3286 = vmul.f32 %v2201, %v3158
        %v3287 = vmul.f32 %v2202, %v3159
        %v3288 = vmul.f32 %v2203, %v3160
        %v3289 = vmul.f32 %v2204, %v3161
        %v3290 = vmul.f32 %v2205, %v3162
        %v3291 = vmul.f32 %v2206, %v3163
        %v3292 = vmul.f32 %v2207, %v3164
        %v3293 = vmul.f32 %v2208, %v3165
        %v3294 = vmul.f32 %v2209, %v3166
        %v3295 = vmul.f32 %v2210, %v3167
        %v3296 = vmul.f32 %v2211, %v3168
        %v3297 = vmul.f32 %v2212, %v3169
        %v3298 = vmul.f32 %v2213, %v3170
        %v3299 = vmul.f32 %v2214, %v3171
        %v3300 = vmul.f32 %v2215, %v3172
        %v3301 = vmul.f32 %v2216, %v3173
        %v3302 = vmul.f32 %v2217, %v3174
        %v3303 = vmul.f32 %v2218, %v3175
        %v3304 = vmul.f32 %v2219, %v3176
        %v3305 = vmul.f32 %v2220, %v3177
        %v3306 = vmul.f32 %v2221, %v3178
        %v3307 = vmul.f32 %v2222, %v3179
        %v3308 = vmul.f32 %v2223, %v3180
        %v3309 = vmul.f32 %v2224, %v3181
        %v3310 = vmul.f32 %v2225, %v3182
        %v3311 = vmul.f32 %v2226, %v3183
        %v3312 = vmul.f32 %v2227, %v3184
        %v3313 = vmul.f32 %v2228, %v3185
        %v3314 = vmul.f32 %v2229, %v3186
        %v3315 = vmul.f32 %v2230, %v3187
        %v3316 = vmul.f32 %v2231, %v3188
        %v3317 = vmul.f32 %v2232, %v3189
        %v3318 = vmul.f32 %v2233, %v3190
        %v3319 = vmul.f32 %v2234, %v3191
        %v3320 = vmul.f32 %v2235, %v3192
        %v3321 = vmul.f32 %v2236, %v3193
        %v3322 = vmul.f32 %v2237, %v3194
        %v3323 = vmul.f32 %v2238, %v3195
        %v3324 = vmul.f32 %v2239, %v3196
        %v3325 = vmul.f32 %v2240, %v3197
        %v3326 = vmul.f32 %v2241, %v3198
        %v3327 = vmul.f32 %v2242, %v3199
        %v3328 = vmul.f32 %v2243, %v3200
        %v3329 = vmul.f32 %v2244, %v3201
        %v3330 = vmul.f32 %v2409, %v2409
        %v3331 = vmul.f32 %v2410, %v2410
        %v3332 = vmul.f32 %v2411, %v2411
        %v3333 = vmul.f32 %v2412, %v2412
        %v3334 = vmul.f32 %v2413, %v2413
        %v3335 = vmul.f32 %v2414, %v2414
        %v3336 = vmul.f32 %v2415, %v2415
        %v3337 = vmul.f32 %v2416, %v2416
        %v3338 = vsel %vm2561, %v3330, 0.0
        %3339 = vadd.xlane.f32.xlu0 %v3338
        %v3340 = vpop.xlane.xlu0 %3339
        %v3341 = vsel %vm2561, %v3331, 0.0
        %3342 = vadd.xlane.f32.xlu0 %v3341
        %v3343 = vpop.xlane.xlu0 %3342
        %v3344 = vsel %vm2561, %v3332, 0.0
        %3345 = vadd.xlane.f32.xlu0 %v3344
        %v3346 = vpop.xlane.xlu0 %3345
        %v3347 = vsel %vm2561, %v3333, 0.0
        %3348 = vadd.xlane.f32.xlu0 %v3347
        %v3349 = vpop.xlane.xlu0 %3348
        %v3350 = vsel %vm2561, %v3334, 0.0
        %3351 = vadd.xlane.f32.xlu0 %v3350
        %v3352 = vpop.xlane.xlu0 %3351
        %v3353 = vsel %vm2561, %v3335, 0.0
        %3354 = vadd.xlane.f32.xlu0 %v3353
        %v3355 = vpop.xlane.xlu0 %3354
        %v3356 = vsel %vm2561, %v3336, 0.0
        %3357 = vadd.xlane.f32.xlu0 %v3356
        %v3358 = vpop.xlane.xlu0 %3357
        %v3359 = vsel %vm2561, %v3337, 0.0
        %3360 = vadd.xlane.f32.xlu0 %v3359
        %v3361 = vpop.xlane.xlu0 %3360
        %v3362 = vmax.f32 %v3340, 1e-24
        %v3363 = vmax.f32 %v3343, 1e-24
        %v3364 = vmax.f32 %v3346, 1e-24
        %v3365 = vmax.f32 %v3349, 1e-24
        %v3366 = vmax.f32 %v3352, 1e-24
        %v3367 = vmax.f32 %v3355, 1e-24
        %v3368 = vmax.f32 %v3358, 1e-24
        %v3369 = vmax.f32 %v3361, 1e-24
        %v3370 = vrsqrt.pop %v3362
        %v3371 = vrsqrt.pop %v3363
        %v3372 = vrsqrt.pop %v3364
        %v3373 = vrsqrt.pop %v3365
        %v3374 = vrsqrt.pop %v3366
        %v3375 = vrsqrt.pop %v3367
        %v3376 = vrsqrt.pop %v3368
        %v3377 = vrsqrt.pop %v3369
        %v3378 = vmul.f32 %v2409, %v3370
        %v3379 = vmul.f32 %v2410, %v3371
        %v3380 = vmul.f32 %v2411, %v3372
        %v3381 = vmul.f32 %v2412, %v3373
        %v3382 = vmul.f32 %v2413, %v3374
        %v3383 = vmul.f32 %v2414, %v3375
        %v3384 = vmul.f32 %v2415, %v3376
        %v3385 = vmul.f32 %v2416, %v3377
        %v3387 = vsel %vm2561, %v3378, 0
        %v3390 = vsel %vm2561, %v3379, 0
        %v3393 = vsel %vm2561, %v3202, 0
        %v3396 = vsel %vm2561, %v3203, 0
        %v3399 = vsel %vm2561, %v3204, 0
        %v3402 = vsel %vm2561, %v3205, 0
        %v3405 = vsel %vm2561, %v3206, 0
        %v3408 = vsel %vm2561, %v3207, 0
        %v3411 = vsel %vm2561, %v3208, 0
        %v3414 = vsel %vm2561, %v3209, 0
        %v3417 = vsel %vm2561, %v3210, 0
        %v3420 = vsel %vm2561, %v3211, 0
        %v3423 = vsel %vm2561, %v3212, 0
        %v3426 = vsel %vm2561, %v3213, 0
        %v3429 = vsel %vm2561, %v3214, 0
        %v3432 = vsel %vm2561, %v3215, 0
        %v3435 = vsel %vm2561, %v3216, 0
        %v3438 = vsel %vm2561, %v3217, 0
        %v3441 = vsel %vm2561, %v3218, 0
        %v3444 = vsel %vm2561, %v3219, 0
        %v3447 = vsel %vm2561, %v3220, 0
        %v3450 = vsel %vm2561, %v3221, 0
        %v3453 = vsel %vm2561, %v3222, 0
        %v3456 = vsel %vm2561, %v3223, 0
        %v3459 = vsel %vm2561, %v3224, 0
        %v3462 = vsel %vm2561, %v3225, 0
        %v3465 = vsel %vm2561, %v3226, 0
        %v3468 = vsel %vm2561, %v3227, 0
        %v3471 = vsel %vm2561, %v3228, 0
        %v3474 = vsel %vm2561, %v3229, 0
        %v3477 = vsel %vm2561, %v3230, 0
        %v3480 = vsel %vm2561, %v3231, 0
        %v3483 = vsel %vm2561, %v3232, 0
        %v3486 = vsel %vm2561, %v3233, 0
        %3488 = vmatprep.subr.mxu0 0.0
        %3489 = vmatpush1.xpose.msra.mxu0 %v3393
        %3490 = vmatprep.subr.mxu0 0.0
        %3491 = vmatpush1.xpose.msra.mxu0 %v3396
        %3492 = vmatprep.subr.mxu0 0.0
        %3493 = vmatpush1.xpose.msra.mxu0 %v3399
        %3494 = vmatprep.subr.mxu0 0.0
        %3495 = vmatpush1.xpose.msra.mxu0 %v3402
        %3496 = vmatprep.subr.mxu0 0.0
        %3497 = vmatpush1.xpose.msra.mxu0 %v3405
        %3498 = vmatprep.subr.mxu0 0.0
        %3499 = vmatpush1.xpose.msra.mxu0 %v3408
        %3500 = vmatprep.subr.mxu0 0.0
        %3501 = vmatpush1.xpose.msra.mxu0 %v3411
        %3502 = vmatprep.subr.mxu0 0.0
        %3503 = vmatpush1.xpose.msra.mxu0 %v3414
        %3504 = vmatprep.subr.mxu0 0.0
        %3505 = vmatpush1.xpose.msra.mxu0 %v3417
        %3506 = vmatprep.subr.mxu0 0.0
        %3507 = vmatpush1.xpose.msra.mxu0 %v3420
        %3508 = vmatprep.subr.mxu0 0.0
        %3509 = vmatpush1.xpose.msra.mxu0 %v3423
        %3510 = vmatprep.subr.mxu0 0.0
        %3511 = vmatpush1.xpose.msra.mxu0 %v3426
        %3512 = vmatprep.subr.mxu0 0.0
        %3513 = vmatpush1.xpose.msra.mxu0 %v3429
        %3514 = vmatprep.subr.mxu0 0.0
        %3515 = vmatpush1.xpose.msra.mxu0 %v3432
        %3516 = vmatprep.subr.mxu0 0.0
        %3517 = vmatpush1.xpose.msra.mxu0 %v3435
        %3518 = vmatprep.subr.mxu0 0.0
        %3519 = vmatpush1.xpose.msra.mxu0 %v3438
        %3520 = vmatprep.subr.mxu0 0.0
        %3521 = vmatpush1.xpose.msra.mxu0 %v3441
        %3522 = vmatprep.subr.mxu0 0.0
        %3523 = vmatpush1.xpose.msra.mxu0 %v3444
        %3524 = vmatprep.subr.mxu0 0.0
        %3525 = vmatpush1.xpose.msra.mxu0 %v3447
        %3526 = vmatprep.subr.mxu0 0.0
        %3527 = vmatpush1.xpose.msra.mxu0 %v3450
        %3528 = vmatprep.subr.mxu0 0.0
        %3529 = vmatpush1.xpose.msra.mxu0 %v3453
        %3530 = vmatprep.subr.mxu0 0.0
        %3531 = vmatpush1.xpose.msra.mxu0 %v3456
        %3532 = vmatprep.subr.mxu0 0.0
        %3533 = vmatpush1.xpose.msra.mxu0 %v3459
        %3534 = vmatprep.subr.mxu0 0.0
        %3535 = vmatpush1.xpose.msra.mxu0 %v3462
        %3536 = vmatprep.subr.mxu0 0.0
        %3537 = vmatpush1.xpose.msra.mxu0 %v3465
        %3538 = vmatprep.subr.mxu0 0.0
        %3539 = vmatpush1.xpose.msra.mxu0 %v3468
        %3540 = vmatprep.subr.mxu0 0.0
        %3541 = vmatpush1.xpose.msra.mxu0 %v3471
        %3542 = vmatprep.subr.mxu0 0.0
        %3543 = vmatpush1.xpose.msra.mxu0 %v3474
        %3544 = vmatprep.subr.mxu0 0.0
        %3545 = vmatpush1.xpose.msra.mxu0 %v3477
        %3546 = vmatprep.subr.mxu0 0.0
        %3547 = vmatpush1.xpose.msra.mxu0 %v3480
        %3548 = vmatprep.subr.mxu0 0.0
        %3549 = vmatpush1.xpose.msra.mxu0 %v3483
        %3550 = vmatprep.subr.mxu0 0.0
        %3551 = vmatpush1.xpose.msra.mxu0 %v3486
        %3552 = vmatprep.mubr.f32.mxu0 0.0
        %3553 = vmatmul.mubr.f32.gmra.mrb[0].mxu0 %v3387
        %v3554 = vpop.f32.mrb[0].mxu0
        %v3555 = vadd.f32 0.0, %v3554
        %v3556 = vpop.f32.mrb[0].mxu0
        %v3557 = vadd.f32 0.0, %v3556
        %3558 = vmatprep.mubr.f32.mxu0 0.0
        %3559 = vmatmul.mubr.f32.gmra.mrb[0].mxu0 %v3390
        %v3560 = vpop.f32.mrb[0].mxu0
        %v3561 = vadd.f32 0.0, %v3560
        %v3562 = vpop.f32.mrb[0].mxu0
        %v3563 = vadd.f32 0.0, %v3562
        %3564 = vdwg.mxu0
        %v3566 = vsel %vm2561, %v3380, 0
        %v3569 = vsel %vm2561, %v3381, 0
        %v3572 = vsel %vm2561, %v3234, 0
        %v3575 = vsel %vm2561, %v3235, 0
        %v3578 = vsel %vm2561, %v3236, 0
        %v3581 = vsel %vm2561, %v3237, 0
        %v3584 = vsel %vm2561, %v3238, 0
        %v3587 = vsel %vm2561, %v3239, 0
        %v3590 = vsel %vm2561, %v3240, 0
        %v3593 = vsel %vm2561, %v3241, 0
        %v3596 = vsel %vm2561, %v3242, 0
        %v3599 = vsel %vm2561, %v3243, 0
        %v3602 = vsel %vm2561, %v3244, 0
        %v3605 = vsel %vm2561, %v3245, 0
        %v3608 = vsel %vm2561, %v3246, 0
        %v3611 = vsel %vm2561, %v3247, 0
        %v3614 = vsel %vm2561, %v3248, 0
        %v3617 = vsel %vm2561, %v3249, 0
        %v3620 = vsel %vm2561, %v3250, 0
        %v3623 = vsel %vm2561, %v3251, 0
        %v3626 = vsel %vm2561, %v3252, 0
        %v3629 = vsel %vm2561, %v3253, 0
        %v3632 = vsel %vm2561, %v3254, 0
        %v3635 = vsel %vm2561, %v3255, 0
        %v3638 = vsel %vm2561, %v3256, 0
        %v3641 = vsel %vm2561, %v3257, 0
        %v3644 = vsel %vm2561, %v3258, 0
        %v3647 = vsel %vm2561, %v3259, 0
        %v3650 = vsel %vm2561, %v3260, 0
        %v3653 = vsel %vm2561, %v3261, 0
        %v3656 = vsel %vm2561, %v3262, 0
        %v3659 = vsel %vm2561, %v3263, 0
        %v3662 = vsel %vm2561, %v3264, 0
        %v3665 = vsel %vm2561, %v3265, 0
        %3667 = vmatprep.subr.mxu0 0.0
        %3668 = vmatpush1.xpose.msra.mxu0 %v3572
        %3669 = vmatprep.subr.mxu0 0.0
        %3670 = vmatpush1.xpose.msra.mxu0 %v3575
        %3671 = vmatprep.subr.mxu0 0.0
        %3672 = vmatpush1.xpose.msra.mxu0 %v3578
        %3673 = vmatprep.subr.mxu0 0.0
        %3674 = vmatpush1.xpose.msra.mxu0 %v3581
        %3675 = vmatprep.subr.mxu0 0.0
        %3676 = vmatpush1.xpose.msra.mxu0 %v3584
        %3677 = vmatprep.subr.mxu0 0.0
        %3678 = vmatpush1.xpose.msra.mxu0 %v3587
        %3679 = vmatprep.subr.mxu0 0.0
        %3680 = vmatpush1.xpose.msra.mxu0 %v3590
        %3681 = vmatprep.subr.mxu0 0.0
        %3682 = vmatpush1.xpose.msra.mxu0 %v3593
        %3683 = vmatprep.subr.mxu0 0.0
        %3684 = vmatpush1.xpose.msra.mxu0 %v3596
        %3685 = vmatprep.subr.mxu0 0.0
        %3686 = vmatpush1.xpose.msra.mxu0 %v3599
        %3687 = vmatprep.subr.mxu0 0.0
        %3688 = vmatpush1.xpose.msra.mxu0 %v3602
        %3689 = vmatprep.subr.mxu0 0.0
        %3690 = vmatpush1.xpose.msra.mxu0 %v3605
        %3691 = vmatprep.subr.mxu0 0.0
        %3692 = vmatpush1.xpose.msra.mxu0 %v3608
        %3693 = vmatprep.subr.mxu0 0.0
        %3694 = vmatpush1.xpose.msra.mxu0 %v3611
        %3695 = vmatprep.subr.mxu0 0.0
        %3696 = vmatpush1.xpose.msra.mxu0 %v3614
        %3697 = vmatprep.subr.mxu0 0.0
        %3698 = vmatpush1.xpose.msra.mxu0 %v3617
        %3699 = vmatprep.subr.mxu0 0.0
        %3700 = vmatpush1.xpose.msra.mxu0 %v3620
        %3701 = vmatprep.subr.mxu0 0.0
        %3702 = vmatpush1.xpose.msra.mxu0 %v3623
        %3703 = vmatprep.subr.mxu0 0.0
        %3704 = vmatpush1.xpose.msra.mxu0 %v3626
        %3705 = vmatprep.subr.mxu0 0.0
        %3706 = vmatpush1.xpose.msra.mxu0 %v3629
        %3707 = vmatprep.subr.mxu0 0.0
        %3708 = vmatpush1.xpose.msra.mxu0 %v3632
        %3709 = vmatprep.subr.mxu0 0.0
        %3710 = vmatpush1.xpose.msra.mxu0 %v3635
        %3711 = vmatprep.subr.mxu0 0.0
        %3712 = vmatpush1.xpose.msra.mxu0 %v3638
        %3713 = vmatprep.subr.mxu0 0.0
        %3714 = vmatpush1.xpose.msra.mxu0 %v3641
        %3715 = vmatprep.subr.mxu0 0.0
        %3716 = vmatpush1.xpose.msra.mxu0 %v3644
        %3717 = vmatprep.subr.mxu0 0.0
        %3718 = vmatpush1.xpose.msra.mxu0 %v3647
        %3719 = vmatprep.subr.mxu0 0.0
        %3720 = vmatpush1.xpose.msra.mxu0 %v3650
        %3721 = vmatprep.subr.mxu0 0.0
        %3722 = vmatpush1.xpose.msra.mxu0 %v3653
        %3723 = vmatprep.subr.mxu0 0.0
        %3724 = vmatpush1.xpose.msra.mxu0 %v3656
        %3725 = vmatprep.subr.mxu0 0.0
        %3726 = vmatpush1.xpose.msra.mxu0 %v3659
        %3727 = vmatprep.subr.mxu0 0.0
        %3728 = vmatpush1.xpose.msra.mxu0 %v3662
        %3729 = vmatprep.subr.mxu0 0.0
        %3730 = vmatpush1.xpose.msra.mxu0 %v3665
        %3731 = vmatprep.mubr.f32.mxu0 0.0
        %3732 = vmatmul.mubr.f32.gmra.mrb[0].mxu0 %v3566
        %v3733 = vpop.f32.mrb[0].mxu0
        %v3734 = vadd.f32 0.0, %v3733
        %v3735 = vpop.f32.mrb[0].mxu0
        %v3736 = vadd.f32 0.0, %v3735
        %3737 = vmatprep.mubr.f32.mxu0 0.0
        %3738 = vmatmul.mubr.f32.gmra.mrb[0].mxu0 %v3569
        %v3739 = vpop.f32.mrb[0].mxu0
        %v3740 = vadd.f32 0.0, %v3739
        %v3741 = vpop.f32.mrb[0].mxu0
        %v3742 = vadd.f32 0.0, %v3741
        %3743 = vdwg.mxu0
        %v3745 = vsel %vm2561, %v3382, 0
        %v3748 = vsel %vm2561, %v3383, 0
        %v3751 = vsel %vm2561, %v3266, 0
        %v3754 = vsel %vm2561, %v3267, 0
        %v3757 = vsel %vm2561, %v3268, 0
        %v3760 = vsel %vm2561, %v3269, 0
        %v3763 = vsel %vm2561, %v3270, 0
        %v3766 = vsel %vm2561, %v3271, 0
        %v3769 = vsel %vm2561, %v3272, 0
        %v3772 = vsel %vm2561, %v3273, 0
        %v3775 = vsel %vm2561, %v3274, 0
        %v3778 = vsel %vm2561, %v3275, 0
        %v3781 = vsel %vm2561, %v3276, 0
        %v3784 = vsel %vm2561, %v3277, 0
        %v3787 = vsel %vm2561, %v3278, 0
        %v3790 = vsel %vm2561, %v3279, 0
        %v3793 = vsel %vm2561, %v3280, 0
        %v3796 = vsel %vm2561, %v3281, 0
        %v3799 = vsel %vm2561, %v3282, 0
        %v3802 = vsel %vm2561, %v3283, 0
        %v3805 = vsel %vm2561, %v3284, 0
        %v3808 = vsel %vm2561, %v3285, 0
        %v3811 = vsel %vm2561, %v3286, 0
        %v3814 = vsel %vm2561, %v3287, 0
        %v3817 = vsel %vm2561, %v3288, 0
        %v3820 = vsel %vm2561, %v3289, 0
        %v3823 = vsel %vm2561, %v3290, 0
        %v3826 = vsel %vm2561, %v3291, 0
        %v3829 = vsel %vm2561, %v3292, 0
        %v3832 = vsel %vm2561, %v3293, 0
        %v3835 = vsel %vm2561, %v3294, 0
        %v3838 = vsel %vm2561, %v3295, 0
        %v3841 = vsel %vm2561, %v3296, 0
        %v3844 = vsel %vm2561, %v3297, 0
        %3846 = vmatprep.subr.mxu0 0.0
        %3847 = vmatpush1.xpose.msra.mxu0 %v3751
        %3848 = vmatprep.subr.mxu0 0.0
        %3849 = vmatpush1.xpose.msra.mxu0 %v3754
        %3850 = vmatprep.subr.mxu0 0.0
        %3851 = vmatpush1.xpose.msra.mxu0 %v3757
        %3852 = vmatprep.subr.mxu0 0.0
        %3853 = vmatpush1.xpose.msra.mxu0 %v3760
        %3854 = vmatprep.subr.mxu0 0.0
        %3855 = vmatpush1.xpose.msra.mxu0 %v3763
        %3856 = vmatprep.subr.mxu0 0.0
        %3857 = vmatpush1.xpose.msra.mxu0 %v3766
        %3858 = vmatprep.subr.mxu0 0.0
        %3859 = vmatpush1.xpose.msra.mxu0 %v3769
        %3860 = vmatprep.subr.mxu0 0.0
        %3861 = vmatpush1.xpose.msra.mxu0 %v3772
        %3862 = vmatprep.subr.mxu0 0.0
        %3863 = vmatpush1.xpose.msra.mxu0 %v3775
        %3864 = vmatprep.subr.mxu0 0.0
        %3865 = vmatpush1.xpose.msra.mxu0 %v3778
        %3866 = vmatprep.subr.mxu0 0.0
        %3867 = vmatpush1.xpose.msra.mxu0 %v3781
        %3868 = vmatprep.subr.mxu0 0.0
        %3869 = vmatpush1.xpose.msra.mxu0 %v3784
        %3870 = vmatprep.subr.mxu0 0.0
        %3871 = vmatpush1.xpose.msra.mxu0 %v3787
        %3872 = vmatprep.subr.mxu0 0.0
        %3873 = vmatpush1.xpose.msra.mxu0 %v3790
        %3874 = vmatprep.subr.mxu0 0.0
        %3875 = vmatpush1.xpose.msra.mxu0 %v3793
        %3876 = vmatprep.subr.mxu0 0.0
        %3877 = vmatpush1.xpose.msra.mxu0 %v3796
        %3878 = vmatprep.subr.mxu0 0.0
        %3879 = vmatpush1.xpose.msra.mxu0 %v3799
        %3880 = vmatprep.subr.mxu0 0.0
        %3881 = vmatpush1.xpose.msra.mxu0 %v3802
        %3882 = vmatprep.subr.mxu0 0.0
        %3883 = vmatpush1.xpose.msra.mxu0 %v3805
        %3884 = vmatprep.subr.mxu0 0.0
        %3885 = vmatpush1.xpose.msra.mxu0 %v3808
        %3886 = vmatprep.subr.mxu0 0.0
        %3887 = vmatpush1.xpose.msra.mxu0 %v3811
        %3888 = vmatprep.subr.mxu0 0.0
        %3889 = vmatpush1.xpose.msra.mxu0 %v3814
        %3890 = vmatprep.subr.mxu0 0.0
        %3891 = vmatpush1.xpose.msra.mxu0 %v3817
        %3892 = vmatprep.subr.mxu0 0.0
        %3893 = vmatpush1.xpose.msra.mxu0 %v3820
        %3894 = vmatprep.subr.mxu0 0.0
        %3895 = vmatpush1.xpose.msra.mxu0 %v3823
        %3896 = vmatprep.subr.mxu0 0.0
        %3897 = vmatpush1.xpose.msra.mxu0 %v3826
        %3898 = vmatprep.subr.mxu0 0.0
        %3899 = vmatpush1.xpose.msra.mxu0 %v3829
        %3900 = vmatprep.subr.mxu0 0.0
        %3901 = vmatpush1.xpose.msra.mxu0 %v3832
        %3902 = vmatprep.subr.mxu0 0.0
        %3903 = vmatpush1.xpose.msra.mxu0 %v3835
        %3904 = vmatprep.subr.mxu0 0.0
        %3905 = vmatpush1.xpose.msra.mxu0 %v3838
        %3906 = vmatprep.subr.mxu0 0.0
        %3907 = vmatpush1.xpose.msra.mxu0 %v3841
        %3908 = vmatprep.subr.mxu0 0.0
        %3909 = vmatpush1.xpose.msra.mxu0 %v3844
        %3910 = vmatprep.mubr.f32.mxu0 0.0
        %3911 = vmatmul.mubr.f32.gmra.mrb[0].mxu0 %v3745
        %v3912 = vpop.f32.mrb[0].mxu0
        %v3913 = vadd.f32 0.0, %v3912
        %v3914 = vpop.f32.mrb[0].mxu0
        %v3915 = vadd.f32 0.0, %v3914
        %3916 = vmatprep.mubr.f32.mxu0 0.0
        %3917 = vmatmul.mubr.f32.gmra.mrb[0].mxu0 %v3748
        %v3918 = vpop.f32.mrb[0].mxu0
        %v3919 = vadd.f32 0.0, %v3918
        %v3920 = vpop.f32.mrb[0].mxu0
        %v3921 = vadd.f32 0.0, %v3920
        %3922 = vdwg.mxu0
        %v3924 = vsel %vm2561, %v3384, 0
        %v3927 = vsel %vm2561, %v3385, 0
        %v3930 = vsel %vm2561, %v3298, 0
        %v3933 = vsel %vm2561, %v3299, 0
        %v3936 = vsel %vm2561, %v3300, 0
        %v3939 = vsel %vm2561, %v3301, 0
        %v3942 = vsel %vm2561, %v3302, 0
        %v3945 = vsel %vm2561, %v3303, 0
        %v3948 = vsel %vm2561, %v3304, 0
        %v3951 = vsel %vm2561, %v3305, 0
        %v3954 = vsel %vm2561, %v3306, 0
        %v3957 = vsel %vm2561, %v3307, 0
        %v3960 = vsel %vm2561, %v3308, 0
        %v3963 = vsel %vm2561, %v3309, 0
        %v3966 = vsel %vm2561, %v3310, 0
        %v3969 = vsel %vm2561, %v3311, 0
        %v3972 = vsel %vm2561, %v3312, 0
        %v3975 = vsel %vm2561, %v3313, 0
        %v3978 = vsel %vm2561, %v3314, 0
        %v3981 = vsel %vm2561, %v3315, 0
        %v3984 = vsel %vm2561, %v3316, 0
        %v3987 = vsel %vm2561, %v3317, 0
        %v3990 = vsel %vm2561, %v3318, 0
        %v3993 = vsel %vm2561, %v3319, 0
        %v3996 = vsel %vm2561, %v3320, 0
        %v3999 = vsel %vm2561, %v3321, 0
        %v4002 = vsel %vm2561, %v3322, 0
        %v4005 = vsel %vm2561, %v3323, 0
        %v4008 = vsel %vm2561, %v3324, 0
        %v4011 = vsel %vm2561, %v3325, 0
        %v4014 = vsel %vm2561, %v3326, 0
        %v4017 = vsel %vm2561, %v3327, 0
        %v4020 = vsel %vm2561, %v3328, 0
        %v4023 = vsel %vm2561, %v3329, 0
        %4025 = vmatprep.subr.mxu0 0.0
        %4026 = vmatpush1.xpose.msra.mxu0 %v3930
        %4027 = vmatprep.subr.mxu0 0.0
        %4028 = vmatpush1.xpose.msra.mxu0 %v3933
        %4029 = vmatprep.subr.mxu0 0.0
        %4030 = vmatpush1.xpose.msra.mxu0 %v3936
        %4031 = vmatprep.subr.mxu0 0.0
        %4032 = vmatpush1.xpose.msra.mxu0 %v3939
        %4033 = vmatprep.subr.mxu0 0.0
        %4034 = vmatpush1.xpose.msra.mxu0 %v3942
        %4035 = vmatprep.subr.mxu0 0.0
        %4036 = vmatpush1.xpose.msra.mxu0 %v3945
        %4037 = vmatprep.subr.mxu0 0.0
        %4038 = vmatpush1.xpose.msra.mxu0 %v3948
        %4039 = vmatprep.subr.mxu0 0.0
        %4040 = vmatpush1.xpose.msra.mxu0 %v3951
        %4041 = vmatprep.subr.mxu0 0.0
        %4042 = vmatpush1.xpose.msra.mxu0 %v3954
        %4043 = vmatprep.subr.mxu0 0.0
        %4044 = vmatpush1.xpose.msra.mxu0 %v3957
        %4045 = vmatprep.subr.mxu0 0.0
        %4046 = vmatpush1.xpose.msra.mxu0 %v3960
        %4047 = vmatprep.subr.mxu0 0.0
        %4048 = vmatpush1.xpose.msra.mxu0 %v3963
        %4049 = vmatprep.subr.mxu0 0.0
        %4050 = vmatpush1.xpose.msra.mxu0 %v3966
        %4051 = vmatprep.subr.mxu0 0.0
        %4052 = vmatpush1.xpose.msra.mxu0 %v3969
        %4053 = vmatprep.subr.mxu0 0.0
        %4054 = vmatpush1.xpose.msra.mxu0 %v3972
        %4055 = vmatprep.subr.mxu0 0.0
        %4056 = vmatpush1.xpose.msra.mxu0 %v3975
        %4057 = vmatprep.subr.mxu0 0.0
        %4058 = vmatpush1.xpose.msra.mxu0 %v3978
        %4059 = vmatprep.subr.mxu0 0.0
        %4060 = vmatpush1.xpose.msra.mxu0 %v3981
        %4061 = vmatprep.subr.mxu0 0.0
        %4062 = vmatpush1.xpose.msra.mxu0 %v3984
        %4063 = vmatprep.subr.mxu0 0.0
        %4064 = vmatpush1.xpose.msra.mxu0 %v3987
        %4065 = vmatprep.subr.mxu0 0.0
        %4066 = vmatpush1.xpose.msra.mxu0 %v3990
        %4067 = vmatprep.subr.mxu0 0.0
        %4068 = vmatpush1.xpose.msra.mxu0 %v3993
        %4069 = vmatprep.subr.mxu0 0.0
        %4070 = vmatpush1.xpose.msra.mxu0 %v3996
        %4071 = vmatprep.subr.mxu0 0.0
        %4072 = vmatpush1.xpose.msra.mxu0 %v3999
        %4073 = vmatprep.subr.mxu0 0.0
        %4074 = vmatpush1.xpose.msra.mxu0 %v4002
        %4075 = vmatprep.subr.mxu0 0.0
        %4076 = vmatpush1.xpose.msra.mxu0 %v4005
        %4077 = vmatprep.subr.mxu0 0.0
        %4078 = vmatpush1.xpose.msra.mxu0 %v4008
        %4079 = vmatprep.subr.mxu0 0.0
        %4080 = vmatpush1.xpose.msra.mxu0 %v4011
        %4081 = vmatprep.subr.mxu0 0.0
        %4082 = vmatpush1.xpose.msra.mxu0 %v4014
        %4083 = vmatprep.subr.mxu0 0.0
        %4084 = vmatpush1.xpose.msra.mxu0 %v4017
        %4085 = vmatprep.subr.mxu0 0.0
        %4086 = vmatpush1.xpose.msra.mxu0 %v4020
        %4087 = vmatprep.subr.mxu0 0.0
        %4088 = vmatpush1.xpose.msra.mxu0 %v4023
        %4089 = vmatprep.mubr.f32.mxu0 0.0
        %4090 = vmatmul.mubr.f32.gmra.mrb[0].mxu0 %v3924
        %v4091 = vpop.f32.mrb[0].mxu0
        %v4092 = vadd.f32 0.0, %v4091
        %v4093 = vpop.f32.mrb[0].mxu0
        %v4094 = vadd.f32 0.0, %v4093
        %4095 = vmatprep.mubr.f32.mxu0 0.0
        %4096 = vmatmul.mubr.f32.gmra.mrb[0].mxu0 %v3927
        %v4097 = vpop.f32.mrb[0].mxu0
        %v4098 = vadd.f32 0.0, %v4097
        %v4099 = vpop.f32.mrb[0].mxu0
        %v4100 = vadd.f32 0.0, %v4099
        %4101 = vdwg.mxu0
        %v4102 = vstv %s373
        %v4103 = vmul.f32 %v4102, %v3555
        %v4104 = vmul.f32 %v4102, %v3557
        %v4105 = vmul.f32 %v4102, %v3561
        %v4106 = vmul.f32 %v4102, %v3563
        %v4107 = vmul.f32 %v4102, %v3734
        %v4108 = vmul.f32 %v4102, %v3736
        %v4109 = vmul.f32 %v4102, %v3740
        %v4110 = vmul.f32 %v4102, %v3742
        %v4111 = vmul.f32 %v4102, %v3913
        %v4112 = vmul.f32 %v4102, %v3915
        %v4113 = vmul.f32 %v4102, %v3919
        %v4114 = vmul.f32 %v4102, %v3921
        %v4115 = vmul.f32 %v4102, %v4092
        %v4116 = vmul.f32 %v4102, %v4094
        %v4117 = vmul.f32 %v4102, %v4098
        %v4118 = vmul.f32 %v4102, %v4100
        %v4119 = vstv %s374
        %v4120 = vadd.f32 %v4119, %v4103
        %v4121 = vadd.f32 %v4119, %v4104
        %v4122 = vadd.f32 %v4119, %v4105
        %v4123 = vadd.f32 %v4119, %v4106
        %v4124 = vadd.f32 %v4119, %v4107
        %v4125 = vadd.f32 %v4119, %v4108
        %v4126 = vadd.f32 %v4119, %v4109
        %v4127 = vadd.f32 %v4119, %v4110
        %v4128 = vadd.f32 %v4119, %v4111
        %v4129 = vadd.f32 %v4119, %v4112
        %v4130 = vadd.f32 %v4119, %v4113
        %v4131 = vadd.f32 %v4119, %v4114
        %v4132 = vadd.f32 %v4119, %v4115
        %v4133 = vadd.f32 %v4119, %v4116
        %v4134 = vadd.f32 %v4119, %v4117
        %v4135 = vadd.f32 %v4119, %v4118
        %v4136 = vxor.u32 %v4120, 2147483648
        %v4137 = vxor.u32 %v4121, 2147483648
        %v4138 = vxor.u32 %v4122, 2147483648
        %v4139 = vxor.u32 %v4123, 2147483648
        %v4140 = vxor.u32 %v4124, 2147483648
        %v4141 = vxor.u32 %v4125, 2147483648
        %v4142 = vxor.u32 %v4126, 2147483648
        %v4143 = vxor.u32 %v4127, 2147483648
        %v4144 = vxor.u32 %v4128, 2147483648
        %v4145 = vxor.u32 %v4129, 2147483648
        %v4146 = vxor.u32 %v4130, 2147483648
        %v4147 = vxor.u32 %v4131, 2147483648
        %v4148 = vxor.u32 %v4132, 2147483648
        %v4149 = vxor.u32 %v4133, 2147483648
        %v4150 = vxor.u32 %v4134, 2147483648
        %v4151 = vxor.u32 %v4135, 2147483648
        %v4152 = vmul.f32 %v4136, 1.442695
        %v4153 = vpow.pop %v4152
        %v4154 = vmul.f32 %v4137, 1.442695
        %v4155 = vpow.pop %v4154
        %v4156 = vmul.f32 %v4138, 1.442695
        %v4157 = vpow.pop %v4156
        %v4158 = vmul.f32 %v4139, 1.442695
        %v4159 = vpow.pop %v4158
        %v4160 = vmul.f32 %v4140, 1.442695
        %v4161 = vpow.pop %v4160
        %v4162 = vmul.f32 %v4141, 1.442695
        %v4163 = vpow.pop %v4162
        %v4164 = vmul.f32 %v4142, 1.442695
        %v4165 = vpow.pop %v4164
        %v4166 = vmul.f32 %v4143, 1.442695
        %v4167 = vpow.pop %v4166
        %v4168 = vmul.f32 %v4144, 1.442695
        %v4169 = vpow.pop %v4168
        %v4170 = vmul.f32 %v4145, 1.442695
        %v4171 = vpow.pop %v4170
        %v4172 = vmul.f32 %v4146, 1.442695
        %v4173 = vpow.pop %v4172
        %v4174 = vmul.f32 %v4147, 1.442695
        %v4175 = vpow.pop %v4174
        %v4176 = vmul.f32 %v4148, 1.442695
        %v4177 = vpow.pop %v4176
        %v4178 = vmul.f32 %v4149, 1.442695
        %v4179 = vpow.pop %v4178
        %v4180 = vmul.f32 %v4150, 1.442695
        %v4181 = vpow.pop %v4180
        %v4182 = vmul.f32 %v4151, 1.442695
        %v4183 = vpow.pop %v4182
        %v4184 = vadd.f32 %v4153, 1.0
        %v4185 = vadd.f32 %v4155, 1.0
        %v4186 = vadd.f32 %v4157, 1.0
        %v4187 = vadd.f32 %v4159, 1.0
        %v4188 = vadd.f32 %v4161, 1.0
        %v4189 = vadd.f32 %v4163, 1.0
        %v4190 = vadd.f32 %v4165, 1.0
        %v4191 = vadd.f32 %v4167, 1.0
        %v4192 = vadd.f32 %v4169, 1.0
        %v4193 = vadd.f32 %v4171, 1.0
        %v4194 = vadd.f32 %v4173, 1.0
        %v4195 = vadd.f32 %v4175, 1.0
        %v4196 = vadd.f32 %v4177, 1.0
        %v4197 = vadd.f32 %v4179, 1.0
        %v4198 = vadd.f32 %v4181, 1.0
        %v4199 = vadd.f32 %v4183, 1.0
        %v4200 = vrcp.pop %v4184
        %v4201 = vmul.f32 1.0, %v4200
        %v4202 = vrcp.pop %v4185
        %v4203 = vmul.f32 1.0, %v4202
        %v4204 = vrcp.pop %v4186
        %v4205 = vmul.f32 1.0, %v4204
        %v4206 = vrcp.pop %v4187
        %v4207 = vmul.f32 1.0, %v4206
        %v4208 = vrcp.pop %v4188
        %v4209 = vmul.f32 1.0, %v4208
        %v4210 = vrcp.pop %v4189
        %v4211 = vmul.f32 1.0, %v4210
        %v4212 = vrcp.pop %v4190
        %v4213 = vmul.f32 1.0, %v4212
        %v4214 = vrcp.pop %v4191
        %v4215 = vmul.f32 1.0, %v4214
        %v4216 = vrcp.pop %v4192
        %v4217 = vmul.f32 1.0, %v4216
        %v4218 = vrcp.pop %v4193
        %v4219 = vmul.f32 1.0, %v4218
        %v4220 = vrcp.pop %v4194
        %v4221 = vmul.f32 1.0, %v4220
        %v4222 = vrcp.pop %v4195
        %v4223 = vmul.f32 1.0, %v4222
        %v4224 = vrcp.pop %v4196
        %v4225 = vmul.f32 1.0, %v4224
        %v4226 = vrcp.pop %v4197
        %v4227 = vmul.f32 1.0, %v4226
        %v4228 = vrcp.pop %v4198
        %v4229 = vmul.f32 1.0, %v4228
        %v4230 = vrcp.pop %v4199
        %v4231 = vmul.f32 1.0, %v4230
        %v4232 = vld [vmem:[%s8] sm:$0xff]
        %v4233 = vld [vmem:[%s8 + $0x8] sm:$0xff]
        %v4234 = vld [vmem:[%s8 + $0x10] sm:$0xff]
        %v4235 = vld [vmem:[%s8 + $0x18] sm:$0xff]
        %v4236 = vmul.f32 %v4201, %v4232
        %v4237 = vmul.f32 %v4203, %v4233
        %v4238 = vmul.f32 %v4205, %v4234
        %v4239 = vmul.f32 %v4207, %v4235
        %v4240 = vmul.f32 %v4209, %v4232
        %v4241 = vmul.f32 %v4211, %v4233
        %v4242 = vmul.f32 %v4213, %v4234
        %v4243 = vmul.f32 %v4215, %v4235
        %v4244 = vmul.f32 %v4217, %v4232
        %v4245 = vmul.f32 %v4219, %v4233
        %v4246 = vmul.f32 %v4221, %v4234
        %v4247 = vmul.f32 %v4223, %v4235
        %v4248 = vmul.f32 %v4225, %v4232
        %v4249 = vmul.f32 %v4227, %v4233
        %v4250 = vmul.f32 %v4229, %v4234
        %v4251 = vmul.f32 %v4231, %v4235
        %v4252 = vlaneseq
        %v4253 = vshrl.u32 %v4252, 7
        %v4254 = vadd.s32 %v4253, 8
        %v4255 = vmax.f32 %v4236, %v4238
        %v4256 = vrot.slane %v4255, 4
        %v4257 = vmax.f32 %v4255, %v4256
        %v4258 = vrot.slane %v4257, 2
        %v4259 = vmax.f32 %v4257, %v4258
        %v4260 = vrot.slane %v4259, 1
        %v4261 = vmax.f32 %v4259, %v4260
        %v4262 = vmax.f32 %v4237, %v4239
        %v4263 = vrot.slane %v4262, 4
        %v4264 = vmax.f32 %v4262, %v4263
        %v4265 = vrot.slane %v4264, 2
        %v4266 = vmax.f32 %v4264, %v4265
        %v4267 = vrot.slane %v4266, 1
        %v4268 = vmax.f32 %v4266, %v4267
        %v4269 = vmax.f32 %v4240, %v4242
        %v4270 = vrot.slane %v4269, 4
        %v4271 = vmax.f32 %v4269, %v4270
        %v4272 = vrot.slane %v4271, 2
        %v4273 = vmax.f32 %v4271, %v4272
        %v4274 = vrot.slane %v4273, 1
        %v4275 = vmax.f32 %v4273, %v4274
        %v4276 = vmax.f32 %v4241, %v4243
        %v4277 = vrot.slane %v4276, 4
        %v4278 = vmax.f32 %v4276, %v4277
        %v4279 = vrot.slane %v4278, 2
        %v4280 = vmax.f32 %v4278, %v4279
        %v4281 = vrot.slane %v4280, 1
        %v4282 = vmax.f32 %v4280, %v4281
        %v4283 = vmax.f32 %v4244, %v4246
        %v4284 = vrot.slane %v4283, 4
        %v4285 = vmax.f32 %v4283, %v4284
        %v4286 = vrot.slane %v4285, 2
        %v4287 = vmax.f32 %v4285, %v4286
        %v4288 = vrot.slane %v4287, 1
        %v4289 = vmax.f32 %v4287, %v4288
        %v4290 = vmax.f32 %v4245, %v4247
        %v4291 = vrot.slane %v4290, 4
        %v4292 = vmax.f32 %v4290, %v4291
        %v4293 = vrot.slane %v4292, 2
        %v4294 = vmax.f32 %v4292, %v4293
        %v4295 = vrot.slane %v4294, 1
        %v4296 = vmax.f32 %v4294, %v4295
        %v4297 = vmax.f32 %v4248, %v4250
        %v4298 = vrot.slane %v4297, 4
        %v4299 = vmax.f32 %v4297, %v4298
        %v4300 = vrot.slane %v4299, 2
        %v4301 = vmax.f32 %v4299, %v4300
        %v4302 = vrot.slane %v4301, 1
        %v4303 = vmax.f32 %v4301, %v4302
        %v4304 = vmax.f32 %v4249, %v4251
        %v4305 = vrot.slane %v4304, 4
        %v4306 = vmax.f32 %v4304, %v4305
        %v4307 = vrot.slane %v4306, 2
        %v4308 = vmax.f32 %v4306, %v4307
        %v4309 = vrot.slane %v4308, 1
        %v4310 = vmax.f32 %v4308, %v4309
        %vm4311 = vcmp.ge.f32.partialorder %v4236, %v4261
        %vm4312 = vcmp.ge.f32.partialorder %v4237, %v4268
        %vm4313 = vcmp.ge.f32.partialorder %v4238, %v4261
        %vm4314 = vcmp.ge.f32.partialorder %v4239, %v4268
        %vm4315 = vcmp.ge.f32.partialorder %v4240, %v4275
        %vm4316 = vcmp.ge.f32.partialorder %v4241, %v4282
        %vm4317 = vcmp.ge.f32.partialorder %v4242, %v4275
        %vm4318 = vcmp.ge.f32.partialorder %v4243, %v4282
        %vm4319 = vcmp.ge.f32.partialorder %v4244, %v4289
        %vm4320 = vcmp.ge.f32.partialorder %v4245, %v4296
        %vm4321 = vcmp.ge.f32.partialorder %v4246, %v4289
        %vm4322 = vcmp.ge.f32.partialorder %v4247, %v4296
        %vm4323 = vcmp.ge.f32.partialorder %v4248, %v4303
        %vm4324 = vcmp.ge.f32.partialorder %v4249, %v4310
        %vm4325 = vcmp.ge.f32.partialorder %v4250, %v4303
        %vm4326 = vcmp.ge.f32.partialorder %v4251, %v4310
        %v4327 = vsel %vm4311, %v4253, 16
        %v4328 = vsel %vm4312, %v4253, 16
        %v4329 = vsel %vm4313, %v4254, 16
        %v4330 = vsel %vm4314, %v4254, 16
        %v4331 = vsel %vm4315, %v4253, 16
        %v4332 = vsel %vm4316, %v4253, 16
        %v4333 = vsel %vm4317, %v4254, 16
        %v4334 = vsel %vm4318, %v4254, 16
        %v4335 = vsel %vm4319, %v4253, 16
        %v4336 = vsel %vm4320, %v4253, 16
        %v4337 = vsel %vm4321, %v4254, 16
        %v4338 = vsel %vm4322, %v4254, 16
        %v4339 = vsel %vm4323, %v4253, 16
        %v4340 = vsel %vm4324, %v4253, 16
        %v4341 = vsel %vm4325, %v4254, 16
        %v4342 = vsel %vm4326, %v4254, 16
        %vm4343 = vcmp.lt.s32.totalorder %v4327, %v4329
        %v4344 = vsel %vm4343, %v4327, %v4329
        %v4345 = vrot.slane %v4344, 4
        %vm4346 = vcmp.lt.s32.totalorder %v4344, %v4345
        %v4347 = vsel %vm4346, %v4344, %v4345
        %v4348 = vrot.slane %v4347, 2
        %vm4349 = vcmp.lt.s32.totalorder %v4347, %v4348
        %v4350 = vsel %vm4349, %v4347, %v4348
        %v4351 = vrot.slane %v4350, 1
        %vm4352 = vcmp.lt.s32.totalorder %v4350, %v4351
        %v4353 = vsel %vm4352, %v4350, %v4351
        %vm4354 = vcmp.lt.s32.totalorder %v4328, %v4330
        %v4355 = vsel %vm4354, %v4328, %v4330
        %v4356 = vrot.slane %v4355, 4
        %vm4357 = vcmp.lt.s32.totalorder %v4355, %v4356
        %v4358 = vsel %vm4357, %v4355, %v4356
        %v4359 = vrot.slane %v4358, 2
        %vm4360 = vcmp.lt.s32.totalorder %v4358, %v4359
        %v4361 = vsel %vm4360, %v4358, %v4359
        %v4362 = vrot.slane %v4361, 1
        %vm4363 = vcmp.lt.s32.totalorder %v4361, %v4362
        %v4364 = vsel %vm4363, %v4361, %v4362
        %vm4365 = vcmp.lt.s32.totalorder %v4331, %v4333
        %v4366 = vsel %vm4365, %v4331, %v4333
        %v4367 = vrot.slane %v4366, 4
        %vm4368 = vcmp.lt.s32.totalorder %v4366, %v4367
        %v4369 = vsel %vm4368, %v4366, %v4367
        %v4370 = vrot.slane %v4369, 2
        %vm4371 = vcmp.lt.s32.totalorder %v4369, %v4370
        %v4372 = vsel %vm4371, %v4369, %v4370
        %v4373 = vrot.slane %v4372, 1
        %vm4374 = vcmp.lt.s32.totalorder %v4372, %v4373
        %v4375 = vsel %vm4374, %v4372, %v4373
        %vm4376 = vcmp.lt.s32.totalorder %v4332, %v4334
        %v4377 = vsel %vm4376, %v4332, %v4334
        %v4378 = vrot.slane %v4377, 4
        %vm4379 = vcmp.lt.s32.totalorder %v4377, %v4378
        %v4380 = vsel %vm4379, %v4377, %v4378
        %v4381 = vrot.slane %v4380, 2
        %vm4382 = vcmp.lt.s32.totalorder %v4380, %v4381
        %v4383 = vsel %vm4382, %v4380, %v4381
        %v4384 = vrot.slane %v4383, 1
        %vm4385 = vcmp.lt.s32.totalorder %v4383, %v4384
        %v4386 = vsel %vm4385, %v4383, %v4384
        %vm4387 = vcmp.lt.s32.totalorder %v4335, %v4337
        %v4388 = vsel %vm4387, %v4335, %v4337
        %v4389 = vrot.slane %v4388, 4
        %vm4390 = vcmp.lt.s32.totalorder %v4388, %v4389
        %v4391 = vsel %vm4390, %v4388, %v4389
        %v4392 = vrot.slane %v4391, 2
        %vm4393 = vcmp.lt.s32.totalorder %v4391, %v4392
        %v4394 = vsel %vm4393, %v4391, %v4392
        %v4395 = vrot.slane %v4394, 1
        %vm4396 = vcmp.lt.s32.totalorder %v4394, %v4395
        %v4397 = vsel %vm4396, %v4394, %v4395
        %vm4398 = vcmp.lt.s32.totalorder %v4336, %v4338
        %v4399 = vsel %vm4398, %v4336, %v4338
        %v4400 = vrot.slane %v4399, 4
        %vm4401 = vcmp.lt.s32.totalorder %v4399, %v4400
        %v4402 = vsel %vm4401, %v4399, %v4400
        %v4403 = vrot.slane %v4402, 2
        %vm4404 = vcmp.lt.s32.totalorder %v4402, %v4403
        %v4405 = vsel %vm4404, %v4402, %v4403
        %v4406 = vrot.slane %v4405, 1
        %vm4407 = vcmp.lt.s32.totalorder %v4405, %v4406
        %v4408 = vsel %vm4407, %v4405, %v4406
        %vm4409 = vcmp.lt.s32.totalorder %v4339, %v4341
        %v4410 = vsel %vm4409, %v4339, %v4341
        %v4411 = vrot.slane %v4410, 4
        %vm4412 = vcmp.lt.s32.totalorder %v4410, %v4411
        %v4413 = vsel %vm4412, %v4410, %v4411
        %v4414 = vrot.slane %v4413, 2
        %vm4415 = vcmp.lt.s32.totalorder %v4413, %v4414
        %v4416 = vsel %vm4415, %v4413, %v4414
        %v4417 = vrot.slane %v4416, 1
        %vm4418 = vcmp.lt.s32.totalorder %v4416, %v4417
        %v4419 = vsel %vm4418, %v4416, %v4417
        %vm4420 = vcmp.lt.s32.totalorder %v4340, %v4342
        %v4421 = vsel %vm4420, %v4340, %v4342
        %v4422 = vrot.slane %v4421, 4
        %vm4423 = vcmp.lt.s32.totalorder %v4421, %v4422
        %v4424 = vsel %vm4423, %v4421, %v4422
        %v4425 = vrot.slane %v4424, 2
        %vm4426 = vcmp.lt.s32.totalorder %v4424, %v4425
        %v4427 = vsel %vm4426, %v4424, %v4425
        %v4428 = vrot.slane %v4427, 1
        %vm4429 = vcmp.lt.s32.totalorder %v4427, %v4428
        %v4430 = vsel %vm4429, %v4427, %v4428
        %vm4431 = vcmp.eq.s32.totalorder %v4253, %v4353
        %vm4432 = vcmp.eq.s32.totalorder %v4253, %v4364
        %vm4433 = vcmp.eq.s32.totalorder %v4254, %v4353
        %vm4434 = vcmp.eq.s32.totalorder %v4254, %v4364
        %vm4435 = vcmp.eq.s32.totalorder %v4253, %v4375
        %vm4436 = vcmp.eq.s32.totalorder %v4253, %v4386
        %vm4437 = vcmp.eq.s32.totalorder %v4254, %v4375
        %vm4438 = vcmp.eq.s32.totalorder %v4254, %v4386
        %vm4439 = vcmp.eq.s32.totalorder %v4253, %v4397
        %vm4440 = vcmp.eq.s32.totalorder %v4253, %v4408
        %vm4441 = vcmp.eq.s32.totalorder %v4254, %v4397
        %vm4442 = vcmp.eq.s32.totalorder %v4254, %v4408
        %vm4443 = vcmp.eq.s32.totalorder %v4253, %v4419
        %vm4444 = vcmp.eq.s32.totalorder %v4253, %v4430
        %vm4445 = vcmp.eq.s32.totalorder %v4254, %v4419
        %vm4446 = vcmp.eq.s32.totalorder %v4254, %v4430
        %v4447 = vsel %vm4431, %v4236, 0.0
        %v4448 = vsel %vm4432, %v4237, 0.0
        %v4449 = vsel %vm4433, %v4238, 0.0
        %v4450 = vsel %vm4434, %v4239, 0.0
        %v4451 = vsel %vm4435, %v4240, 0.0
        %v4452 = vsel %vm4436, %v4241, 0.0
        %v4453 = vsel %vm4437, %v4242, 0.0
        %v4454 = vsel %vm4438, %v4243, 0.0
        %v4455 = vsel %vm4439, %v4244, 0.0
        %v4456 = vsel %vm4440, %v4245, 0.0
        %v4457 = vsel %vm4441, %v4246, 0.0
        %v4458 = vsel %vm4442, %v4247, 0.0
        %v4459 = vsel %vm4443, %v4248, 0.0
        %v4460 = vsel %vm4444, %v4249, 0.0
        %v4461 = vsel %vm4445, %v4250, 0.0
        %v4462 = vsel %vm4446, %v4251, 0.0
        %4463 = vmatprep.subr.mxu0 0.0
        %4464 = vmatpush1.msra.mxu0 %v2273
        %4465 = vmatprep.subr.mxu0 0.0
        %4466 = vmatpush1.msra.mxu0 %v2274
        %4467 = vmatprep.subr.mxu0 0.0
        %4468 = vmatpush1.msra.mxu0 %v2275
        %4469 = vmatprep.subr.mxu0 0.0
        %4470 = vmatpush1.msra.mxu0 %v2276
        %4471 = vmatprep.subr.mxu0 0.0
        %4472 = vmatpush1.msra.mxu0 %v2277
        %4473 = vmatprep.subr.mxu0 0.0
        %4474 = vmatpush1.msra.mxu0 %v2278
        %4475 = vmatprep.subr.mxu0 0.0
        %4476 = vmatpush1.msra.mxu0 %v2279
        %4477 = vmatprep.subr.mxu0 0.0
        %4478 = vmatpush1.msra.mxu0 %v2280
        %4479 = vmatprep.subr.mxu0 0.0
        %4480 = vmatpush1.msra.mxu0 %v2281
        %4481 = vmatprep.subr.mxu0 0.0
        %4482 = vmatpush1.msra.mxu0 %v2282
        %4483 = vmatprep.subr.mxu0 0.0
        %4484 = vmatpush1.msra.mxu0 %v2283
        %4485 = vmatprep.subr.mxu0 0.0
        %4486 = vmatpush1.msra.mxu0 %v2284
        %4487 = vmatprep.subr.mxu0 0.0
        %4488 = vmatpush1.msra.mxu0 %v2285
        %4489 = vmatprep.subr.mxu0 0.0
        %4490 = vmatpush1.msra.mxu0 %v2286
        %4491 = vmatprep.subr.mxu0 0.0
        %4492 = vmatpush1.msra.mxu0 %v2287
        %4493 = vmatprep.subr.mxu0 0.0
        %4494 = vmatpush1.msra.mxu0 %v2288
        %4495 = vmatprep.subr.mxu0 0.0
        %4496 = vmatpush1.msra.mxu0 %v2289
        %4497 = vmatprep.subr.mxu0 0.0
        %4498 = vmatpush1.msra.mxu0 %v2290
        %4499 = vmatprep.subr.mxu0 0.0
        %4500 = vmatpush1.msra.mxu0 %v2291
        %4501 = vmatprep.subr.mxu0 0.0
        %4502 = vmatpush1.msra.mxu0 %v2292
        %4503 = vmatprep.subr.mxu0 0.0
        %4504 = vmatpush1.msra.mxu0 %v2293
        %4505 = vmatprep.subr.mxu0 0.0
        %4506 = vmatpush1.msra.mxu0 %v2294
        %4507 = vmatprep.subr.mxu0 0.0
        %4508 = vmatpush1.msra.mxu0 %v2295
        %4509 = vmatprep.subr.mxu0 0.0
        %4510 = vmatpush1.msra.mxu0 %v2296
        %4511 = vmatprep.subr.mxu0 0.0
        %4512 = vmatpush1.msra.mxu0 %v2297
        %4513 = vmatprep.subr.mxu0 0.0
        %4514 = vmatpush1.msra.mxu0 %v2298
        %4515 = vmatprep.subr.mxu0 0.0
        %4516 = vmatpush1.msra.mxu0 %v2299
        %4517 = vmatprep.subr.mxu0 0.0
        %4518 = vmatpush1.msra.mxu0 %v2300
        %4519 = vmatprep.subr.mxu0 0.0
        %4520 = vmatpush1.msra.mxu0 %v2301
        %4521 = vmatprep.subr.mxu0 0.0
        %4522 = vmatpush1.msra.mxu0 %v2302
        %4523 = vmatprep.subr.mxu0 0.0
        %4524 = vmatpush1.msra.mxu0 %v2303
        %4525 = vmatprep.subr.mxu0 0.0
        %4526 = vmatpush1.msra.mxu0 %v2304
        %4527 = vmatprep.mubr.f32.mxu0 %v4448
        %4528 = vmatmul.mubr.f32.gmra.mrb[0].mxu0 %v4447
        %v4529 = vpop.f32.mrb[0].mxu0
        %v4530 = vadd.f32 %v2425, %v4529
        %v4531 = vpop.f32.mrb[0].mxu0
        %4532 = vmatprep.mubr.f32.mxu0 %v4450
        %4533 = vmatmul.mubr.f32.gmra.mrb[0].mxu0 %v4449
        %v4534 = vpop.f32.mrb[0].mxu0
        %v4535 = vadd.f32 %v2426, %v4534
        %v4536 = vpop.f32.mrb[0].mxu0
        %4537 = vdwg.mxu0
        %4538 = vmatprep.subr.mxu0 0.0
        %4539 = vmatpush1.msra.mxu0 %v2305
        %4540 = vmatprep.subr.mxu0 0.0
        %4541 = vmatpush1.msra.mxu0 %v2306
        %4542 = vmatprep.subr.mxu0 0.0
        %4543 = vmatpush1.msra.mxu0 %v2307
        %4544 = vmatprep.subr.mxu0 0.0
        %4545 = vmatpush1.msra.mxu0 %v2308
        %4546 = vmatprep.subr.mxu0 0.0
        %4547 = vmatpush1.msra.mxu0 %v2309
        %4548 = vmatprep.subr.mxu0 0.0
        %4549 = vmatpush1.msra.mxu0 %v2310
        %4550 = vmatprep.subr.mxu0 0.0
        %4551 = vmatpush1.msra.mxu0 %v2311
        %4552 = vmatprep.subr.mxu0 0.0
        %4553 = vmatpush1.msra.mxu0 %v2312
        %4554 = vmatprep.subr.mxu0 0.0
        %4555 = vmatpush1.msra.mxu0 %v2313
        %4556 = vmatprep.subr.mxu0 0.0
        %4557 = vmatpush1.msra.mxu0 %v2314
        %4558 = vmatprep.subr.mxu0 0.0
        %4559 = vmatpush1.msra.mxu0 %v2315
        %4560 = vmatprep.subr.mxu0 0.0
        %4561 = vmatpush1.msra.mxu0 %v2316
        %4562 = vmatprep.subr.mxu0 0.0
        %4563 = vmatpush1.msra.mxu0 %v2317
        %4564 = vmatprep.subr.mxu0 0.0
        %4565 = vmatpush1.msra.mxu0 %v2318
        %4566 = vmatprep.subr.mxu0 0.0
        %4567 = vmatpush1.msra.mxu0 %v2319
        %4568 = vmatprep.subr.mxu0 0.0
        %4569 = vmatpush1.msra.mxu0 %v2320
        %4570 = vmatprep.subr.mxu0 0.0
        %4571 = vmatpush1.msra.mxu0 %v2321
        %4572 = vmatprep.subr.mxu0 0.0
        %4573 = vmatpush1.msra.mxu0 %v2322
        %4574 = vmatprep.subr.mxu0 0.0
        %4575 = vmatpush1.msra.mxu0 %v2323
        %4576 = vmatprep.subr.mxu0 0.0
        %4577 = vmatpush1.msra.mxu0 %v2324
        %4578 = vmatprep.subr.mxu0 0.0
        %4579 = vmatpush1.msra.mxu0 %v2325
        %4580 = vmatprep.subr.mxu0 0.0
        %4581 = vmatpush1.msra.mxu0 %v2326
        %4582 = vmatprep.subr.mxu0 0.0
        %4583 = vmatpush1.msra.mxu0 %v2327
        %4584 = vmatprep.subr.mxu0 0.0
        %4585 = vmatpush1.msra.mxu0 %v2328
        %4586 = vmatprep.subr.mxu0 0.0
        %4587 = vmatpush1.msra.mxu0 %v2329
        %4588 = vmatprep.subr.mxu0 0.0
        %4589 = vmatpush1.msra.mxu0 %v2330
        %4590 = vmatprep.subr.mxu0 0.0
        %4591 = vmatpush1.msra.mxu0 %v2331
        %4592 = vmatprep.subr.mxu0 0.0
        %4593 = vmatpush1.msra.mxu0 %v2332
        %4594 = vmatprep.subr.mxu0 0.0
        %4595 = vmatpush1.msra.mxu0 %v2333
        %4596 = vmatprep.subr.mxu0 0.0
        %4597 = vmatpush1.msra.mxu0 %v2334
        %4598 = vmatprep.subr.mxu0 0.0
        %4599 = vmatpush1.msra.mxu0 %v2335
        %4600 = vmatprep.subr.mxu0 0.0
        %4601 = vmatpush1.msra.mxu0 %v2336
        %4602 = vmatprep.mubr.f32.mxu0 %v4452
        %4603 = vmatmul.mubr.f32.gmra.mrb[0].mxu0 %v4451
        %v4604 = vpop.f32.mrb[0].mxu0
        %v4605 = vadd.f32 %v2427, %v4604
        %v4606 = vpop.f32.mrb[0].mxu0
        %4607 = vmatprep.mubr.f32.mxu0 %v4454
        %4608 = vmatmul.mubr.f32.gmra.mrb[0].mxu0 %v4453
        %v4609 = vpop.f32.mrb[0].mxu0
        %v4610 = vadd.f32 %v2428, %v4609
        %v4611 = vpop.f32.mrb[0].mxu0
        %4612 = vdwg.mxu0
        %4613 = vmatprep.subr.mxu0 0.0
        %4614 = vmatpush1.msra.mxu0 %v2337
        %4615 = vmatprep.subr.mxu0 0.0
        %4616 = vmatpush1.msra.mxu0 %v2338
        %4617 = vmatprep.subr.mxu0 0.0
        %4618 = vmatpush1.msra.mxu0 %v2339
        %4619 = vmatprep.subr.mxu0 0.0
        %4620 = vmatpush1.msra.mxu0 %v2340
        %4621 = vmatprep.subr.mxu0 0.0
        %4622 = vmatpush1.msra.mxu0 %v2341
        %4623 = vmatprep.subr.mxu0 0.0
        %4624 = vmatpush1.msra.mxu0 %v2342
        %4625 = vmatprep.subr.mxu0 0.0
        %4626 = vmatpush1.msra.mxu0 %v2343
        %4627 = vmatprep.subr.mxu0 0.0
        %4628 = vmatpush1.msra.mxu0 %v2344
        %4629 = vmatprep.subr.mxu0 0.0
        %4630 = vmatpush1.msra.mxu0 %v2345
        %4631 = vmatprep.subr.mxu0 0.0
        %4632 = vmatpush1.msra.mxu0 %v2346
        %4633 = vmatprep.subr.mxu0 0.0
        %4634 = vmatpush1.msra.mxu0 %v2347
        %4635 = vmatprep.subr.mxu0 0.0
        %4636 = vmatpush1.msra.mxu0 %v2348
        %4637 = vmatprep.subr.mxu0 0.0
        %4638 = vmatpush1.msra.mxu0 %v2349
        %4639 = vmatprep.subr.mxu0 0.0
        %4640 = vmatpush1.msra.mxu0 %v2350
        %4641 = vmatprep.subr.mxu0 0.0
        %4642 = vmatpush1.msra.mxu0 %v2351
        %4643 = vmatprep.subr.mxu0 0.0
        %4644 = vmatpush1.msra.mxu0 %v2352
        %4645 = vmatprep.subr.mxu0 0.0
        %4646 = vmatpush1.msra.mxu0 %v2353
        %4647 = vmatprep.subr.mxu0 0.0
        %4648 = vmatpush1.msra.mxu0 %v2354
        %4649 = vmatprep.subr.mxu0 0.0
        %4650 = vmatpush1.msra.mxu0 %v2355
        %4651 = vmatprep.subr.mxu0 0.0
        %4652 = vmatpush1.msra.mxu0 %v2356
        %4653 = vmatprep.subr.mxu0 0.0
        %4654 = vmatpush1.msra.mxu0 %v2357
        %4655 = vmatprep.subr.mxu0 0.0
        %4656 = vmatpush1.msra.mxu0 %v2358
        %4657 = vmatprep.subr.mxu0 0.0
        %4658 = vmatpush1.msra.mxu0 %v2359
        %4659 = vmatprep.subr.mxu0 0.0
        %4660 = vmatpush1.msra.mxu0 %v2360
        %4661 = vmatprep.subr.mxu0 0.0
        %4662 = vmatpush1.msra.mxu0 %v2361
        %4663 = vmatprep.subr.mxu0 0.0
        %4664 = vmatpush1.msra.mxu0 %v2362
        %4665 = vmatprep.subr.mxu0 0.0
        %4666 = vmatpush1.msra.mxu0 %v2363
        %4667 = vmatprep.subr.mxu0 0.0
        %4668 = vmatpush1.msra.mxu0 %v2364
        %4669 = vmatprep.subr.mxu0 0.0
        %4670 = vmatpush1.msra.mxu0 %v2365
        %4671 = vmatprep.subr.mxu0 0.0
        %4672 = vmatpush1.msra.mxu0 %v2366
        %4673 = vmatprep.subr.mxu0 0.0
        %4674 = vmatpush1.msra.mxu0 %v2367
        %4675 = vmatprep.subr.mxu0 0.0
        %4676 = vmatpush1.msra.mxu0 %v2368
        %4677 = vmatprep.mubr.f32.mxu0 %v4456
        %4678 = vmatmul.mubr.f32.gmra.mrb[0].mxu0 %v4455
        %v4679 = vpop.f32.mrb[0].mxu0
        %v4680 = vadd.f32 %v2429, %v4679
        %v4681 = vpop.f32.mrb[0].mxu0
        %4682 = vmatprep.mubr.f32.mxu0 %v4458
        %4683 = vmatmul.mubr.f32.gmra.mrb[0].mxu0 %v4457
        %v4684 = vpop.f32.mrb[0].mxu0
        %v4685 = vadd.f32 %v2430, %v4684
        %v4686 = vpop.f32.mrb[0].mxu0
        %4687 = vdwg.mxu0
        %4688 = vmatprep.subr.mxu0 0.0
        %4689 = vmatpush1.msra.mxu0 %v2369
        %4690 = vmatprep.subr.mxu0 0.0
        %4691 = vmatpush1.msra.mxu0 %v2370
        %4692 = vmatprep.subr.mxu0 0.0
        %4693 = vmatpush1.msra.mxu0 %v2371
        %4694 = vmatprep.subr.mxu0 0.0
        %4695 = vmatpush1.msra.mxu0 %v2372
        %4696 = vmatprep.subr.mxu0 0.0
        %4697 = vmatpush1.msra.mxu0 %v2373
        %4698 = vmatprep.subr.mxu0 0.0
        %4699 = vmatpush1.msra.mxu0 %v2374
        %4700 = vmatprep.subr.mxu0 0.0
        %4701 = vmatpush1.msra.mxu0 %v2375
        %4702 = vmatprep.subr.mxu0 0.0
        %4703 = vmatpush1.msra.mxu0 %v2376
        %4704 = vmatprep.subr.mxu0 0.0
        %4705 = vmatpush1.msra.mxu0 %v2377
        %4706 = vmatprep.subr.mxu0 0.0
        %4707 = vmatpush1.msra.mxu0 %v2378
        %4708 = vmatprep.subr.mxu0 0.0
        %4709 = vmatpush1.msra.mxu0 %v2379
        %4710 = vmatprep.subr.mxu0 0.0
        %4711 = vmatpush1.msra.mxu0 %v2380
        %4712 = vmatprep.subr.mxu0 0.0
        %4713 = vmatpush1.msra.mxu0 %v2381
        %4714 = vmatprep.subr.mxu0 0.0
        %4715 = vmatpush1.msra.mxu0 %v2382
        %4716 = vmatprep.subr.mxu0 0.0
        %4717 = vmatpush1.msra.mxu0 %v2383
        %4718 = vmatprep.subr.mxu0 0.0
        %4719 = vmatpush1.msra.mxu0 %v2384
        %4720 = vmatprep.subr.mxu0 0.0
        %4721 = vmatpush1.msra.mxu0 %v2385
        %4722 = vmatprep.subr.mxu0 0.0
        %4723 = vmatpush1.msra.mxu0 %v2386
        %4724 = vmatprep.subr.mxu0 0.0
        %4725 = vmatpush1.msra.mxu0 %v2387
        %4726 = vmatprep.subr.mxu0 0.0
        %4727 = vmatpush1.msra.mxu0 %v2388
        %4728 = vmatprep.subr.mxu0 0.0
        %4729 = vmatpush1.msra.mxu0 %v2389
        %4730 = vmatprep.subr.mxu0 0.0
        %4731 = vmatpush1.msra.mxu0 %v2390
        %4732 = vmatprep.subr.mxu0 0.0
        %4733 = vmatpush1.msra.mxu0 %v2391
        %4734 = vmatprep.subr.mxu0 0.0
        %4735 = vmatpush1.msra.mxu0 %v2392
        %4736 = vmatprep.subr.mxu0 0.0
        %4737 = vmatpush1.msra.mxu0 %v2393
        %4738 = vmatprep.subr.mxu0 0.0
        %4739 = vmatpush1.msra.mxu0 %v2394
        %4740 = vmatprep.subr.mxu0 0.0
        %4741 = vmatpush1.msra.mxu0 %v2395
        %4742 = vmatprep.subr.mxu0 0.0
        %4743 = vmatpush1.msra.mxu0 %v2396
        %4744 = vmatprep.subr.mxu0 0.0
        %4745 = vmatpush1.msra.mxu0 %v2397
        %4746 = vmatprep.subr.mxu0 0.0
        %4747 = vmatpush1.msra.mxu0 %v2398
        %4748 = vmatprep.subr.mxu0 0.0
        %4749 = vmatpush1.msra.mxu0 %v2399
        %4750 = vmatprep.subr.mxu0 0.0
        %4751 = vmatpush1.msra.mxu0 %v2400
        %4752 = vmatprep.mubr.f32.mxu0 %v4460
        %4753 = vmatmul.mubr.f32.gmra.mrb[0].mxu0 %v4459
        %v4754 = vpop.f32.mrb[0].mxu0
        %v4755 = vadd.f32 %v2431, %v4754
        %v4756 = vpop.f32.mrb[0].mxu0
        %4757 = vmatprep.mubr.f32.mxu0 %v4462
        %4758 = vmatmul.mubr.f32.gmra.mrb[0].mxu0 %v4461
        %v4759 = vpop.f32.mrb[0].mxu0
        %v4760 = vadd.f32 %v2432, %v4759
        %v4761 = vpop.f32.mrb[0].mxu0
        %4762 = vdwg.mxu0
        %v4763 = vadd.f32 %v4447, %v4448
        %4764 = vadd.xlane.f32.xlu0 %v4763
        %v4765 = vpop.xlane.xlu0 %4764
        %v4766 = vadd.f32 %v4449, %v4450
        %4767 = vadd.xlane.f32.xlu0 %v4766
        %v4768 = vpop.xlane.xlu0 %4767
        %v4769 = vadd.f32 %v4451, %v4452
        %4770 = vadd.xlane.f32.xlu0 %v4769
        %v4771 = vpop.xlane.xlu0 %4770
        %v4772 = vadd.f32 %v4453, %v4454
        %4773 = vadd.xlane.f32.xlu0 %v4772
        %v4774 = vpop.xlane.xlu0 %4773
        %v4775 = vadd.f32 %v4455, %v4456
        %4776 = vadd.xlane.f32.xlu0 %v4775
        %v4777 = vpop.xlane.xlu0 %4776
        %v4778 = vadd.f32 %v4457, %v4458
        %4779 = vadd.xlane.f32.xlu0 %v4778
        %v4780 = vpop.xlane.xlu0 %4779
        %v4781 = vadd.f32 %v4459, %v4460
        %4782 = vadd.xlane.f32.xlu0 %v4781
        %v4783 = vpop.xlane.xlu0 %4782
        %v4784 = vadd.f32 %v4461, %v4462
        %4785 = vadd.xlane.f32.xlu0 %v4784
        %v4786 = vpop.xlane.xlu0 %4785
        %v4787 = vadd.f32 %v4765, 1.0
        %v4788 = vadd.f32 %v4768, 1.0
        %v4789 = vadd.f32 %v4771, 1.0
        %v4790 = vadd.f32 %v4774, 1.0
        %v4791 = vadd.f32 %v4777, 1.0
        %v4792 = vadd.f32 %v4780, 1.0
        %v4793 = vadd.f32 %v4783, 1.0
        %v4794 = vadd.f32 %v4786, 1.0
        %v4795 = vrcp.pop %v4787
        %v4796 = vmul.f32 %v4530, %v4795
        %v4797 = vrcp.pop %v4788
        %v4798 = vmul.f32 %v4535, %v4797
        %v4799 = vrcp.pop %v4789
        %v4800 = vmul.f32 %v4605, %v4799
        %v4801 = vrcp.pop %v4790
        %v4802 = vmul.f32 %v4610, %v4801
        %v4803 = vrcp.pop %v4791
        %v4804 = vmul.f32 %v4680, %v4803
        %v4805 = vrcp.pop %v4792
        %v4806 = vmul.f32 %v4685, %v4805
        %v4807 = vrcp.pop %v4793
        %v4808 = vmul.f32 %v4755, %v4807
        %v4809 = vrcp.pop %v4794
        %v4810 = vmul.f32 %v4760, %v4809
        %4811 = vxpose.xlu0.b32.start [1/16] %v4447, 128
        %4812 = vxpose.xlu0.b32.cont [2/16] %v4449, 128
        %4813 = vxpose.xlu0.b32.cont [3/16] 0.0, 128
        %4814 = vxpose.xlu0.b32.cont [4/16] 0.0, 128
        %4815 = vxpose.xlu0.b32.cont [5/16] 0.0, 128
        %4816 = vxpose.xlu0.b32.cont [6/16] 0.0, 128
        %4817 = vxpose.xlu0.b32.cont [7/16] 0.0, 128
        %4818 = vxpose.xlu0.b32.cont [8/16] 0.0, 128
        %4819 = vxpose.xlu0.b32.cont [9/16] 0.0, 128
        %4820 = vxpose.xlu0.b32.cont [10/16] 0.0, 128
        %4821 = vxpose.xlu0.b32.cont [11/16] 0.0, 128
        %4822 = vxpose.xlu0.b32.cont [12/16] 0.0, 128
        %4823 = vxpose.xlu0.b32.cont [13/16] 0.0, 128
        %4824 = vxpose.xlu0.b32.cont [14/16] 0.0, 128
        %4825 = vxpose.xlu0.b32.cont [15/16] 0.0, 128
        %4826 = vxpose.xlu0.b32.end [16/16] 0.0, 128
        %v4827 = vpop.trf.xlu0
        %v4828 = vpop.trf.xlu0
        %v4829 = vpop.trf.xlu0
        %v4830 = vpop.trf.xlu0
        %v4831 = vpop.trf.xlu0
        %v4832 = vpop.trf.xlu0
        %v4833 = vpop.trf.xlu0
        %v4834 = vpop.trf.xlu0
        %v4835 = vpop.trf.xlu0
        %v4836 = vpop.trf.xlu0
        %v4837 = vpop.trf.xlu0
        %v4838 = vpop.trf.xlu0
        %v4839 = vpop.trf.xlu0
        %v4840 = vpop.trf.xlu0
        %v4841 = vpop.trf.xlu0
        %v4842 = vpop.trf.xlu0
        %4843 = vxpose.xlu0.b32.start [1/16] %v4448, 128
        %4844 = vxpose.xlu0.b32.cont [2/16] %v4450, 128
        %4845 = vxpose.xlu0.b32.cont [3/16] 0.0, 128
        %4846 = vxpose.xlu0.b32.cont [4/16] 0.0, 128
        %4847 = vxpose.xlu0.b32.cont [5/16] 0.0, 128
        %4848 = vxpose.xlu0.b32.cont [6/16] 0.0, 128
        %4849 = vxpose.xlu0.b32.cont [7/16] 0.0, 128
        %4850 = vxpose.xlu0.b32.cont [8/16] 0.0, 128
        %4851 = vxpose.xlu0.b32.cont [9/16] 0.0, 128
        %4852 = vxpose.xlu0.b32.cont [10/16] 0.0, 128
        %4853 = vxpose.xlu0.b32.cont [11/16] 0.0, 128
        %4854 = vxpose.xlu0.b32.cont [12/16] 0.0, 128
        %4855 = vxpose.xlu0.b32.cont [13/16] 0.0, 128
        %4856 = vxpose.xlu0.b32.cont [14/16] 0.0, 128
        %4857 = vxpose.xlu0.b32.cont [15/16] 0.0, 128
        %4858 = vxpose.xlu0.b32.end [16/16] 0.0, 128
        %v4859 = vpop.trf.xlu0
        %v4860 = vpop.trf.xlu0
        %v4861 = vpop.trf.xlu0
        %v4862 = vpop.trf.xlu0
        %v4863 = vpop.trf.xlu0
        %v4864 = vpop.trf.xlu0
        %v4865 = vpop.trf.xlu0
        %v4866 = vpop.trf.xlu0
        %v4867 = vpop.trf.xlu0
        %v4868 = vpop.trf.xlu0
        %v4869 = vpop.trf.xlu0
        %v4870 = vpop.trf.xlu0
        %v4871 = vpop.trf.xlu0
        %v4872 = vpop.trf.xlu0
        %v4873 = vpop.trf.xlu0
        %v4874 = vpop.trf.xlu0
        %vm4875 = vcmask 130048
        %v4877 = vsel %vm4875, %v4827, 0
        %v4880 = vsel %vm4875, %v4828, 0
        %v4883 = vsel %vm4875, %v4829, 0
        %v4886 = vsel %vm4875, %v4830, 0
        %v4889 = vsel %vm4875, %v4831, 0
        %v4892 = vsel %vm4875, %v4832, 0
        %v4895 = vsel %vm4875, %v4833, 0
        %v4898 = vsel %vm4875, %v4834, 0
        %v4901 = vsel %vm4875, %v4835, 0
        %v4904 = vsel %vm4875, %v4836, 0
        %v4907 = vsel %vm4875, %v4837, 0
        %v4910 = vsel %vm4875, %v4838, 0
        %v4913 = vsel %vm4875, %v4839, 0
        %v4916 = vsel %vm4875, %v4840, 0
        %v4919 = vsel %vm4875, %v4841, 0
        %v4922 = vsel %vm4875, %v4842, 0
        %v4925 = vsel %vm4875, %v4859, 0
        %v4928 = vsel %vm4875, %v4860, 0
        %v4931 = vsel %vm4875, %v4861, 0
        %v4934 = vsel %vm4875, %v4862, 0
        %v4937 = vsel %vm4875, %v4863, 0
        %v4940 = vsel %vm4875, %v4864, 0
        %v4943 = vsel %vm4875, %v4865, 0
        %v4946 = vsel %vm4875, %v4866, 0
        %v4949 = vsel %vm4875, %v4867, 0
        %v4952 = vsel %vm4875, %v4868, 0
        %v4955 = vsel %vm4875, %v4869, 0
        %v4958 = vsel %vm4875, %v4870, 0
        %v4961 = vsel %vm4875, %v4871, 0
        %v4964 = vsel %vm4875, %v4872, 0
        %v4967 = vsel %vm4875, %v4873, 0
        %v4970 = vsel %vm4875, %v4874, 0
        %4972 = vmatprep.subr.mxu0 0.0
        %4973 = vmatpush1.msra.mxu0 %v4796
        %4974 = vmatprep.subr.mxu0 0.0
        %4975 = vmatpush1.msra.mxu0 %v4798
        %4976 = vmatprep.subr.mxu0 0.0
        %4977 = vmatpush1.msra.mxu0 0.0
        %4978 = vmatprep.subr.mxu0 0.0
        %4979 = vmatpush1.msra.mxu0 0.0
        %4980 = vmatprep.subr.mxu0 0.0
        %4981 = vmatpush1.msra.mxu0 0.0
        %4982 = vmatprep.subr.mxu0 0.0
        %4983 = vmatpush1.msra.mxu0 0.0
        %4984 = vmatprep.subr.mxu0 0.0
        %4985 = vmatpush1.msra.mxu0 0.0
        %4986 = vmatprep.subr.mxu0 0.0
        %4987 = vmatpush1.msra.mxu0 0.0
        %4988 = vmatprep.subr.mxu0 0.0
        %4989 = vmatpush1.msra.mxu0 0.0
        %4990 = vmatprep.subr.mxu0 0.0
        %4991 = vmatpush1.msra.mxu0 0.0
        %4992 = vmatprep.subr.mxu0 0.0
        %4993 = vmatpush1.msra.mxu0 0.0
        %4994 = vmatprep.subr.mxu0 0.0
        %4995 = vmatpush1.msra.mxu0 0.0
        %4996 = vmatprep.subr.mxu0 0.0
        %4997 = vmatpush1.msra.mxu0 0.0
        %4998 = vmatprep.subr.mxu0 0.0
        %4999 = vmatpush1.msra.mxu0 0.0
        %5000 = vmatprep.subr.mxu0 0.0
        %5001 = vmatpush1.msra.mxu0 0.0
        %5002 = vmatprep.subr.mxu0 0.0
        %5003 = vmatpush1.msra.mxu0 0.0
        %5004 = vmatprep.subr.mxu0 0.0
        %5005 = vmatpush1.msra.mxu0 0.0
        %5006 = vmatprep.subr.mxu0 0.0
        %5007 = vmatpush1.msra.mxu0 0.0
        %5008 = vmatprep.subr.mxu0 0.0
        %5009 = vmatpush1.msra.mxu0 0.0
        %5010 = vmatprep.subr.mxu0 0.0
        %5011 = vmatpush1.msra.mxu0 0.0
        %5012 = vmatprep.subr.mxu0 0.0
        %5013 = vmatpush1.msra.mxu0 0.0
        %5014 = vmatprep.subr.mxu0 0.0
        %5015 = vmatpush1.msra.mxu0 0.0
        %5016 = vmatprep.subr.mxu0 0.0
        %5017 = vmatpush1.msra.mxu0 0.0
        %5018 = vmatprep.subr.mxu0 0.0
        %5019 = vmatpush1.msra.mxu0 0.0
        %5020 = vmatprep.subr.mxu0 0.0
        %5021 = vmatpush1.msra.mxu0 0.0
        %5022 = vmatprep.subr.mxu0 0.0
        %5023 = vmatpush1.msra.mxu0 0.0
        %5024 = vmatprep.subr.mxu0 0.0
        %5025 = vmatpush1.msra.mxu0 0.0
        %5026 = vmatprep.subr.mxu0 0.0
        %5027 = vmatpush1.msra.mxu0 0.0
        %5028 = vmatprep.subr.mxu0 0.0
        %5029 = vmatpush1.msra.mxu0 0.0
        %5030 = vmatprep.subr.mxu0 0.0
        %5031 = vmatpush1.msra.mxu0 0.0
        %5032 = vmatprep.subr.mxu0 0.0
        %5033 = vmatpush1.msra.mxu0 0.0
        %5034 = vmatprep.subr.mxu0 0.0
        %5035 = vmatpush1.msra.mxu0 0.0
        %5036 = vmatprep.mubr.f32.mxu0 0.0
        %5037 = vmatmul.mubr.f32.gmra.mrb[0].mxu0 %v4877
        %v5038 = vpop.f32.mrb[0].mxu0
        %v5039 = vadd.f32 0.0, %v5038
        %v5040 = vpop.f32.mrb[0].mxu0
        %5041 = vmatprep.mubr.f32.mxu0 0.0
        %5042 = vmatmul.mubr.f32.gmra.mrb[0].mxu0 %v4880
        %v5043 = vpop.f32.mrb[0].mxu0
        %v5044 = vadd.f32 0.0, %v5043
        %v5045 = vpop.f32.mrb[0].mxu0
        %5046 = vmatprep.mubr.f32.mxu0 0.0
        %5047 = vmatmul.mubr.f32.gmra.mrb[0].mxu0 %v4883
        %v5048 = vpop.f32.mrb[0].mxu0
        %v5049 = vadd.f32 0.0, %v5048
        %v5050 = vpop.f32.mrb[0].mxu0
        %5051 = vmatprep.mubr.f32.mxu0 0.0
        %5052 = vmatmul.mubr.f32.gmra.mrb[0].mxu0 %v4886
        %v5053 = vpop.f32.mrb[0].mxu0
        %v5054 = vadd.f32 0.0, %v5053
        %v5055 = vpop.f32.mrb[0].mxu0
        %5056 = vmatprep.mubr.f32.mxu0 0.0
        %5057 = vmatmul.mubr.f32.gmra.mrb[0].mxu0 %v4889
        %v5058 = vpop.f32.mrb[0].mxu0
        %v5059 = vadd.f32 0.0, %v5058
        %v5060 = vpop.f32.mrb[0].mxu0
        %5061 = vmatprep.mubr.f32.mxu0 0.0
        %5062 = vmatmul.mubr.f32.gmra.mrb[0].mxu0 %v4892
        %v5063 = vpop.f32.mrb[0].mxu0
        %v5064 = vadd.f32 0.0, %v5063
        %v5065 = vpop.f32.mrb[0].mxu0
        %5066 = vmatprep.mubr.f32.mxu0 0.0
        %5067 = vmatmul.mubr.f32.gmra.mrb[0].mxu0 %v4895
        %v5068 = vpop.f32.mrb[0].mxu0
        %v5069 = vadd.f32 0.0, %v5068
        %v5070 = vpop.f32.mrb[0].mxu0
        %5071 = vmatprep.mubr.f32.mxu0 0.0
        %5072 = vmatmul.mubr.f32.gmra.mrb[0].mxu0 %v4898
        %v5073 = vpop.f32.mrb[0].mxu0
        %v5074 = vadd.f32 0.0, %v5073
        %v5075 = vpop.f32.mrb[0].mxu0
        %5076 = vmatprep.mubr.f32.mxu0 0.0
        %5077 = vmatmul.mubr.f32.gmra.mrb[0].mxu0 %v4901
        %v5078 = vpop.f32.mrb[0].mxu0
        %v5079 = vadd.f32 0.0, %v5078
        %v5080 = vpop.f32.mrb[0].mxu0
        %5081 = vmatprep.mubr.f32.mxu0 0.0
        %5082 = vmatmul.mubr.f32.gmra.mrb[0].mxu0 %v4904
        %v5083 = vpop.f32.mrb[0].mxu0
        %v5084 = vadd.f32 0.0, %v5083
        %v5085 = vpop.f32.mrb[0].mxu0
        %5086 = vmatprep.mubr.f32.mxu0 0.0
        %5087 = vmatmul.mubr.f32.gmra.mrb[0].mxu0 %v4907
        %v5088 = vpop.f32.mrb[0].mxu0
        %v5089 = vadd.f32 0.0, %v5088
        %v5090 = vpop.f32.mrb[0].mxu0
        %5091 = vmatprep.mubr.f32.mxu0 0.0
        %5092 = vmatmul.mubr.f32.gmra.mrb[0].mxu0 %v4910
        %v5093 = vpop.f32.mrb[0].mxu0
        %v5094 = vadd.f32 0.0, %v5093
        %v5095 = vpop.f32.mrb[0].mxu0
        %5096 = vmatprep.mubr.f32.mxu0 0.0
        %5097 = vmatmul.mubr.f32.gmra.mrb[0].mxu0 %v4913
        %v5098 = vpop.f32.mrb[0].mxu0
        %v5099 = vadd.f32 0.0, %v5098
        %v5100 = vpop.f32.mrb[0].mxu0
        %5101 = vmatprep.mubr.f32.mxu0 0.0
        %5102 = vmatmul.mubr.f32.gmra.mrb[0].mxu0 %v4916
        %v5103 = vpop.f32.mrb[0].mxu0
        %v5104 = vadd.f32 0.0, %v5103
        %v5105 = vpop.f32.mrb[0].mxu0
        %5106 = vmatprep.mubr.f32.mxu0 0.0
        %5107 = vmatmul.mubr.f32.gmra.mrb[0].mxu0 %v4919
        %v5108 = vpop.f32.mrb[0].mxu0
        %v5109 = vadd.f32 0.0, %v5108
        %v5110 = vpop.f32.mrb[0].mxu0
        %5111 = vmatprep.mubr.f32.mxu0 0.0
        %5112 = vmatmul.mubr.f32.gmra.mrb[0].mxu0 %v4922
        %v5113 = vpop.f32.mrb[0].mxu0
        %v5114 = vadd.f32 0.0, %v5113
        %v5115 = vpop.f32.mrb[0].mxu0
        %5116 = vmatprep.mubr.f32.mxu0 0.0
        %5117 = vmatmul.mubr.f32.gmra.mrb[0].mxu0 %v4925
        %v5118 = vpop.f32.mrb[0].mxu0
        %v5119 = vadd.f32 0.0, %v5118
        %v5120 = vpop.f32.mrb[0].mxu0
        %5121 = vmatprep.mubr.f32.mxu0 0.0
        %5122 = vmatmul.mubr.f32.gmra.mrb[0].mxu0 %v4928
        %v5123 = vpop.f32.mrb[0].mxu0
        %v5124 = vadd.f32 0.0, %v5123
        %v5125 = vpop.f32.mrb[0].mxu0
        %5126 = vmatprep.mubr.f32.mxu0 0.0
        %5127 = vmatmul.mubr.f32.gmra.mrb[0].mxu0 %v4931
        %v5128 = vpop.f32.mrb[0].mxu0
        %v5129 = vadd.f32 0.0, %v5128
        %v5130 = vpop.f32.mrb[0].mxu0
        %5131 = vmatprep.mubr.f32.mxu0 0.0
        %5132 = vmatmul.mubr.f32.gmra.mrb[0].mxu0 %v4934
        %v5133 = vpop.f32.mrb[0].mxu0
        %v5134 = vadd.f32 0.0, %v5133
        %v5135 = vpop.f32.mrb[0].mxu0
        %5136 = vmatprep.mubr.f32.mxu0 0.0
        %5137 = vmatmul.mubr.f32.gmra.mrb[0].mxu0 %v4937
        %v5138 = vpop.f32.mrb[0].mxu0
        %v5139 = vadd.f32 0.0, %v5138
        %v5140 = vpop.f32.mrb[0].mxu0
        %5141 = vmatprep.mubr.f32.mxu0 0.0
        %5142 = vmatmul.mubr.f32.gmra.mrb[0].mxu0 %v4940
        %v5143 = vpop.f32.mrb[0].mxu0
        %v5144 = vadd.f32 0.0, %v5143
        %v5145 = vpop.f32.mrb[0].mxu0
        %5146 = vmatprep.mubr.f32.mxu0 0.0
        %5147 = vmatmul.mubr.f32.gmra.mrb[0].mxu0 %v4943
        %v5148 = vpop.f32.mrb[0].mxu0
        %v5149 = vadd.f32 0.0, %v5148
        %v5150 = vpop.f32.mrb[0].mxu0
        %5151 = vmatprep.mubr.f32.mxu0 0.0
        %5152 = vmatmul.mubr.f32.gmra.mrb[0].mxu0 %v4946
        %v5153 = vpop.f32.mrb[0].mxu0
        %v5154 = vadd.f32 0.0, %v5153
        %v5155 = vpop.f32.mrb[0].mxu0
        %5156 = vmatprep.mubr.f32.mxu0 0.0
        %5157 = vmatmul.mubr.f32.gmra.mrb[0].mxu0 %v4949
        %v5158 = vpop.f32.mrb[0].mxu0
        %v5159 = vadd.f32 0.0, %v5158
        %v5160 = vpop.f32.mrb[0].mxu0
        %5161 = vmatprep.mubr.f32.mxu0 0.0
        %5162 = vmatmul.mubr.f32.gmra.mrb[0].mxu0 %v4952
        %v5163 = vpop.f32.mrb[0].mxu0
        %v5164 = vadd.f32 0.0, %v5163
        %v5165 = vpop.f32.mrb[0].mxu0
        %5166 = vmatprep.mubr.f32.mxu0 0.0
        %5167 = vmatmul.mubr.f32.gmra.mrb[0].mxu0 %v4955
        %v5168 = vpop.f32.mrb[0].mxu0
        %v5169 = vadd.f32 0.0, %v5168
        %v5170 = vpop.f32.mrb[0].mxu0
        %5171 = vmatprep.mubr.f32.mxu0 0.0
        %5172 = vmatmul.mubr.f32.gmra.mrb[0].mxu0 %v4958
        %v5173 = vpop.f32.mrb[0].mxu0
        %v5174 = vadd.f32 0.0, %v5173
        %v5175 = vpop.f32.mrb[0].mxu0
        %5176 = vmatprep.mubr.f32.mxu0 0.0
        %5177 = vmatmul.mubr.f32.gmra.mrb[0].mxu0 %v4961
        %v5178 = vpop.f32.mrb[0].mxu0
        %v5179 = vadd.f32 0.0, %v5178
        %v5180 = vpop.f32.mrb[0].mxu0
        %5181 = vmatprep.mubr.f32.mxu0 0.0
        %5182 = vmatmul.mubr.f32.gmra.mrb[0].mxu0 %v4964
        %v5183 = vpop.f32.mrb[0].mxu0
        %v5184 = vadd.f32 0.0, %v5183
        %v5185 = vpop.f32.mrb[0].mxu0
        %5186 = vmatprep.mubr.f32.mxu0 0.0
        %5187 = vmatmul.mubr.f32.gmra.mrb[0].mxu0 %v4967
        %v5188 = vpop.f32.mrb[0].mxu0
        %v5189 = vadd.f32 0.0, %v5188
        %v5190 = vpop.f32.mrb[0].mxu0
        %5191 = vmatprep.mubr.f32.mxu0 0.0
        %5192 = vmatmul.mubr.f32.gmra.mrb[0].mxu0 %v4970
        %v5193 = vpop.f32.mrb[0].mxu0
        %v5194 = vadd.f32 0.0, %v5193
        %v5195 = vpop.f32.mrb[0].mxu0
        %5196 = vdwg.mxu0
        %5197 = vxpose.xlu0.b32.start [1/16] %v4451, 128
        %5198 = vxpose.xlu0.b32.cont [2/16] %v4453, 128
        %5199 = vxpose.xlu0.b32.cont [3/16] 0.0, 128
        %5200 = vxpose.xlu0.b32.cont [4/16] 0.0, 128
        %5201 = vxpose.xlu0.b32.cont [5/16] 0.0, 128
        %5202 = vxpose.xlu0.b32.cont [6/16] 0.0, 128
        %5203 = vxpose.xlu0.b32.cont [7/16] 0.0, 128
        %5204 = vxpose.xlu0.b32.cont [8/16] 0.0, 128
        %5205 = vxpose.xlu0.b32.cont [9/16] 0.0, 128
        %5206 = vxpose.xlu0.b32.cont [10/16] 0.0, 128
        %5207 = vxpose.xlu0.b32.cont [11/16] 0.0, 128
        %5208 = vxpose.xlu0.b32.cont [12/16] 0.0, 128
        %5209 = vxpose.xlu0.b32.cont [13/16] 0.0, 128
        %5210 = vxpose.xlu0.b32.cont [14/16] 0.0, 128
        %5211 = vxpose.xlu0.b32.cont [15/16] 0.0, 128
        %5212 = vxpose.xlu0.b32.end [16/16] 0.0, 128
        %v5213 = vpop.trf.xlu0
        %v5214 = vpop.trf.xlu0
        %v5215 = vpop.trf.xlu0
        %v5216 = vpop.trf.xlu0
        %v5217 = vpop.trf.xlu0
        %v5218 = vpop.trf.xlu0
        %v5219 = vpop.trf.xlu0
        %v5220 = vpop.trf.xlu0
        %v5221 = vpop.trf.xlu0
        %v5222 = vpop.trf.xlu0
        %v5223 = vpop.trf.xlu0
        %v5224 = vpop.trf.xlu0
        %v5225 = vpop.trf.xlu0
        %v5226 = vpop.trf.xlu0
        %v5227 = vpop.trf.xlu0
        %v5228 = vpop.trf.xlu0
        %5229 = vxpose.xlu0.b32.start [1/16] %v4452, 128
        %5230 = vxpose.xlu0.b32.cont [2/16] %v4454, 128
        %5231 = vxpose.xlu0.b32.cont [3/16] 0.0, 128
        %5232 = vxpose.xlu0.b32.cont [4/16] 0.0, 128
        %5233 = vxpose.xlu0.b32.cont [5/16] 0.0, 128
        %5234 = vxpose.xlu0.b32.cont [6/16] 0.0, 128
        %5235 = vxpose.xlu0.b32.cont [7/16] 0.0, 128
        %5236 = vxpose.xlu0.b32.cont [8/16] 0.0, 128
        %5237 = vxpose.xlu0.b32.cont [9/16] 0.0, 128
        %5238 = vxpose.xlu0.b32.cont [10/16] 0.0, 128
        %5239 = vxpose.xlu0.b32.cont [11/16] 0.0, 128
        %5240 = vxpose.xlu0.b32.cont [12/16] 0.0, 128
        %5241 = vxpose.xlu0.b32.cont [13/16] 0.0, 128
        %5242 = vxpose.xlu0.b32.cont [14/16] 0.0, 128
        %5243 = vxpose.xlu0.b32.cont [15/16] 0.0, 128
        %5244 = vxpose.xlu0.b32.end [16/16] 0.0, 128
        %v5245 = vpop.trf.xlu0
        %v5246 = vpop.trf.xlu0
        %v5247 = vpop.trf.xlu0
        %v5248 = vpop.trf.xlu0
        %v5249 = vpop.trf.xlu0
        %v5250 = vpop.trf.xlu0
        %v5251 = vpop.trf.xlu0
        %v5252 = vpop.trf.xlu0
        %v5253 = vpop.trf.xlu0
        %v5254 = vpop.trf.xlu0
        %v5255 = vpop.trf.xlu0
        %v5256 = vpop.trf.xlu0
        %v5257 = vpop.trf.xlu0
        %v5258 = vpop.trf.xlu0
        %v5259 = vpop.trf.xlu0
        %v5260 = vpop.trf.xlu0
        %v5262 = vsel %vm4875, %v5213, 0
        %v5265 = vsel %vm4875, %v5214, 0
        %v5268 = vsel %vm4875, %v5215, 0
        %v5271 = vsel %vm4875, %v5216, 0
        %v5274 = vsel %vm4875, %v5217, 0
        %v5277 = vsel %vm4875, %v5218, 0
        %v5280 = vsel %vm4875, %v5219, 0
        %v5283 = vsel %vm4875, %v5220, 0
        %v5286 = vsel %vm4875, %v5221, 0
        %v5289 = vsel %vm4875, %v5222, 0
        %v5292 = vsel %vm4875, %v5223, 0
        %v5295 = vsel %vm4875, %v5224, 0
        %v5298 = vsel %vm4875, %v5225, 0
        %v5301 = vsel %vm4875, %v5226, 0
        %v5304 = vsel %vm4875, %v5227, 0
        %v5307 = vsel %vm4875, %v5228, 0
        %v5310 = vsel %vm4875, %v5245, 0
        %v5313 = vsel %vm4875, %v5246, 0
        %v5316 = vsel %vm4875, %v5247, 0
        %v5319 = vsel %vm4875, %v5248, 0
        %v5322 = vsel %vm4875, %v5249, 0
        %v5325 = vsel %vm4875, %v5250, 0
        %v5328 = vsel %vm4875, %v5251, 0
        %v5331 = vsel %vm4875, %v5252, 0
        %v5334 = vsel %vm4875, %v5253, 0
        %v5337 = vsel %vm4875, %v5254, 0
        %v5340 = vsel %vm4875, %v5255, 0
        %v5343 = vsel %vm4875, %v5256, 0
        %v5346 = vsel %vm4875, %v5257, 0
        %v5349 = vsel %vm4875, %v5258, 0
        %v5352 = vsel %vm4875, %v5259, 0
        %v5355 = vsel %vm4875, %v5260, 0
        %5357 = vmatprep.subr.mxu0 0.0
        %5358 = vmatpush1.msra.mxu0 %v4800
        %5359 = vmatprep.subr.mxu0 0.0
        %5360 = vmatpush1.msra.mxu0 %v4802
        %5361 = vmatprep.subr.mxu0 0.0
        %5362 = vmatpush1.msra.mxu0 0.0
        %5363 = vmatprep.subr.mxu0 0.0
        %5364 = vmatpush1.msra.mxu0 0.0
        %5365 = vmatprep.subr.mxu0 0.0
        %5366 = vmatpush1.msra.mxu0 0.0
        %5367 = vmatprep.subr.mxu0 0.0
        %5368 = vmatpush1.msra.mxu0 0.0
        %5369 = vmatprep.subr.mxu0 0.0
        %5370 = vmatpush1.msra.mxu0 0.0
        %5371 = vmatprep.subr.mxu0 0.0
        %5372 = vmatpush1.msra.mxu0 0.0
        %5373 = vmatprep.subr.mxu0 0.0
        %5374 = vmatpush1.msra.mxu0 0.0
        %5375 = vmatprep.subr.mxu0 0.0
        %5376 = vmatpush1.msra.mxu0 0.0
        %5377 = vmatprep.subr.mxu0 0.0
        %5378 = vmatpush1.msra.mxu0 0.0
        %5379 = vmatprep.subr.mxu0 0.0
        %5380 = vmatpush1.msra.mxu0 0.0
        %5381 = vmatprep.subr.mxu0 0.0
        %5382 = vmatpush1.msra.mxu0 0.0
        %5383 = vmatprep.subr.mxu0 0.0
        %5384 = vmatpush1.msra.mxu0 0.0
        %5385 = vmatprep.subr.mxu0 0.0
        %5386 = vmatpush1.msra.mxu0 0.0
        %5387 = vmatprep.subr.mxu0 0.0
        %5388 = vmatpush1.msra.mxu0 0.0
        %5389 = vmatprep.subr.mxu0 0.0
        %5390 = vmatpush1.msra.mxu0 0.0
        %5391 = vmatprep.subr.mxu0 0.0
        %5392 = vmatpush1.msra.mxu0 0.0
        %5393 = vmatprep.subr.mxu0 0.0
        %5394 = vmatpush1.msra.mxu0 0.0
        %5395 = vmatprep.subr.mxu0 0.0
        %5396 = vmatpush1.msra.mxu0 0.0
        %5397 = vmatprep.subr.mxu0 0.0
        %5398 = vmatpush1.msra.mxu0 0.0
        %5399 = vmatprep.subr.mxu0 0.0
        %5400 = vmatpush1.msra.mxu0 0.0
        %5401 = vmatprep.subr.mxu0 0.0
        %5402 = vmatpush1.msra.mxu0 0.0
        %5403 = vmatprep.subr.mxu0 0.0
        %5404 = vmatpush1.msra.mxu0 0.0
        %5405 = vmatprep.subr.mxu0 0.0
        %5406 = vmatpush1.msra.mxu0 0.0
        %5407 = vmatprep.subr.mxu0 0.0
        %5408 = vmatpush1.msra.mxu0 0.0
        %5409 = vmatprep.subr.mxu0 0.0
        %5410 = vmatpush1.msra.mxu0 0.0
        %5411 = vmatprep.subr.mxu0 0.0
        %5412 = vmatpush1.msra.mxu0 0.0
        %5413 = vmatprep.subr.mxu0 0.0
        %5414 = vmatpush1.msra.mxu0 0.0
        %5415 = vmatprep.subr.mxu0 0.0
        %5416 = vmatpush1.msra.mxu0 0.0
        %5417 = vmatprep.subr.mxu0 0.0
        %5418 = vmatpush1.msra.mxu0 0.0
        %5419 = vmatprep.subr.mxu0 0.0
        %5420 = vmatpush1.msra.mxu0 0.0
        %5421 = vmatprep.mubr.f32.mxu0 0.0
        %5422 = vmatmul.mubr.f32.gmra.mrb[0].mxu0 %v5262
        %v5423 = vpop.f32.mrb[0].mxu0
        %v5424 = vadd.f32 0.0, %v5423
        %v5425 = vpop.f32.mrb[0].mxu0
        %5426 = vmatprep.mubr.f32.mxu0 0.0
        %5427 = vmatmul.mubr.f32.gmra.mrb[0].mxu0 %v5265
        %v5428 = vpop.f32.mrb[0].mxu0
        %v5429 = vadd.f32 0.0, %v5428
        %v5430 = vpop.f32.mrb[0].mxu0
        %5431 = vmatprep.mubr.f32.mxu0 0.0
        %5432 = vmatmul.mubr.f32.gmra.mrb[0].mxu0 %v5268
        %v5433 = vpop.f32.mrb[0].mxu0
        %v5434 = vadd.f32 0.0, %v5433
        %v5435 = vpop.f32.mrb[0].mxu0
        %5436 = vmatprep.mubr.f32.mxu0 0.0
        %5437 = vmatmul.mubr.f32.gmra.mrb[0].mxu0 %v5271
        %v5438 = vpop.f32.mrb[0].mxu0
        %v5439 = vadd.f32 0.0, %v5438
        %v5440 = vpop.f32.mrb[0].mxu0
        %5441 = vmatprep.mubr.f32.mxu0 0.0
        %5442 = vmatmul.mubr.f32.gmra.mrb[0].mxu0 %v5274
        %v5443 = vpop.f32.mrb[0].mxu0
        %v5444 = vadd.f32 0.0, %v5443
        %v5445 = vpop.f32.mrb[0].mxu0
        %5446 = vmatprep.mubr.f32.mxu0 0.0
        %5447 = vmatmul.mubr.f32.gmra.mrb[0].mxu0 %v5277
        %v5448 = vpop.f32.mrb[0].mxu0
        %v5449 = vadd.f32 0.0, %v5448
        %v5450 = vpop.f32.mrb[0].mxu0
        %5451 = vmatprep.mubr.f32.mxu0 0.0
        %5452 = vmatmul.mubr.f32.gmra.mrb[0].mxu0 %v5280
        %v5453 = vpop.f32.mrb[0].mxu0
        %v5454 = vadd.f32 0.0, %v5453
        %v5455 = vpop.f32.mrb[0].mxu0
        %5456 = vmatprep.mubr.f32.mxu0 0.0
        %5457 = vmatmul.mubr.f32.gmra.mrb[0].mxu0 %v5283
        %v5458 = vpop.f32.mrb[0].mxu0
        %v5459 = vadd.f32 0.0, %v5458
        %v5460 = vpop.f32.mrb[0].mxu0
        %5461 = vmatprep.mubr.f32.mxu0 0.0
        %5462 = vmatmul.mubr.f32.gmra.mrb[0].mxu0 %v5286
        %v5463 = vpop.f32.mrb[0].mxu0
        %v5464 = vadd.f32 0.0, %v5463
        %v5465 = vpop.f32.mrb[0].mxu0
        %5466 = vmatprep.mubr.f32.mxu0 0.0
        %5467 = vmatmul.mubr.f32.gmra.mrb[0].mxu0 %v5289
        %v5468 = vpop.f32.mrb[0].mxu0
        %v5469 = vadd.f32 0.0, %v5468
        %v5470 = vpop.f32.mrb[0].mxu0
        %5471 = vmatprep.mubr.f32.mxu0 0.0
        %5472 = vmatmul.mubr.f32.gmra.mrb[0].mxu0 %v5292
        %v5473 = vpop.f32.mrb[0].mxu0
        %v5474 = vadd.f32 0.0, %v5473
        %v5475 = vpop.f32.mrb[0].mxu0
        %5476 = vmatprep.mubr.f32.mxu0 0.0
        %5477 = vmatmul.mubr.f32.gmra.mrb[0].mxu0 %v5295
        %v5478 = vpop.f32.mrb[0].mxu0
        %v5479 = vadd.f32 0.0, %v5478
        %v5480 = vpop.f32.mrb[0].mxu0
        %5481 = vmatprep.mubr.f32.mxu0 0.0
        %5482 = vmatmul.mubr.f32.gmra.mrb[0].mxu0 %v5298
        %v5483 = vpop.f32.mrb[0].mxu0
        %v5484 = vadd.f32 0.0, %v5483
        %v5485 = vpop.f32.mrb[0].mxu0
        %5486 = vmatprep.mubr.f32.mxu0 0.0
        %5487 = vmatmul.mubr.f32.gmra.mrb[0].mxu0 %v5301
        %v5488 = vpop.f32.mrb[0].mxu0
        %v5489 = vadd.f32 0.0, %v5488
        %v5490 = vpop.f32.mrb[0].mxu0
        %5491 = vmatprep.mubr.f32.mxu0 0.0
        %5492 = vmatmul.mubr.f32.gmra.mrb[0].mxu0 %v5304
        %v5493 = vpop.f32.mrb[0].mxu0
        %v5494 = vadd.f32 0.0, %v5493
        %v5495 = vpop.f32.mrb[0].mxu0
        %5496 = vmatprep.mubr.f32.mxu0 0.0
        %5497 = vmatmul.mubr.f32.gmra.mrb[0].mxu0 %v5307
        %v5498 = vpop.f32.mrb[0].mxu0
        %v5499 = vadd.f32 0.0, %v5498
        %v5500 = vpop.f32.mrb[0].mxu0
        %5501 = vmatprep.mubr.f32.mxu0 0.0
        %5502 = vmatmul.mubr.f32.gmra.mrb[0].mxu0 %v5310
        %v5503 = vpop.f32.mrb[0].mxu0
        %v5504 = vadd.f32 0.0, %v5503
        %v5505 = vpop.f32.mrb[0].mxu0
        %5506 = vmatprep.mubr.f32.mxu0 0.0
        %5507 = vmatmul.mubr.f32.gmra.mrb[0].mxu0 %v5313
        %v5508 = vpop.f32.mrb[0].mxu0
        %v5509 = vadd.f32 0.0, %v5508
        %v5510 = vpop.f32.mrb[0].mxu0
        %5511 = vmatprep.mubr.f32.mxu0 0.0
        %5512 = vmatmul.mubr.f32.gmra.mrb[0].mxu0 %v5316
        %v5513 = vpop.f32.mrb[0].mxu0
        %v5514 = vadd.f32 0.0, %v5513
        %v5515 = vpop.f32.mrb[0].mxu0
        %5516 = vmatprep.mubr.f32.mxu0 0.0
        %5517 = vmatmul.mubr.f32.gmra.mrb[0].mxu0 %v5319
        %v5518 = vpop.f32.mrb[0].mxu0
        %v5519 = vadd.f32 0.0, %v5518
        %v5520 = vpop.f32.mrb[0].mxu0
        %5521 = vmatprep.mubr.f32.mxu0 0.0
        %5522 = vmatmul.mubr.f32.gmra.mrb[0].mxu0 %v5322
        %v5523 = vpop.f32.mrb[0].mxu0
        %v5524 = vadd.f32 0.0, %v5523
        %v5525 = vpop.f32.mrb[0].mxu0
        %5526 = vmatprep.mubr.f32.mxu0 0.0
        %5527 = vmatmul.mubr.f32.gmra.mrb[0].mxu0 %v5325
        %v5528 = vpop.f32.mrb[0].mxu0
        %v5529 = vadd.f32 0.0, %v5528
        %v5530 = vpop.f32.mrb[0].mxu0
        %5531 = vmatprep.mubr.f32.mxu0 0.0
        %5532 = vmatmul.mubr.f32.gmra.mrb[0].mxu0 %v5328
        %v5533 = vpop.f32.mrb[0].mxu0
        %v5534 = vadd.f32 0.0, %v5533
        %v5535 = vpop.f32.mrb[0].mxu0
        %5536 = vmatprep.mubr.f32.mxu0 0.0
        %5537 = vmatmul.mubr.f32.gmra.mrb[0].mxu0 %v5331
        %v5538 = vpop.f32.mrb[0].mxu0
        %v5539 = vadd.f32 0.0, %v5538
        %v5540 = vpop.f32.mrb[0].mxu0
        %5541 = vmatprep.mubr.f32.mxu0 0.0
        %5542 = vmatmul.mubr.f32.gmra.mrb[0].mxu0 %v5334
        %v5543 = vpop.f32.mrb[0].mxu0
        %v5544 = vadd.f32 0.0, %v5543
        %v5545 = vpop.f32.mrb[0].mxu0
        %5546 = vmatprep.mubr.f32.mxu0 0.0
        %5547 = vmatmul.mubr.f32.gmra.mrb[0].mxu0 %v5337
        %v5548 = vpop.f32.mrb[0].mxu0
        %v5549 = vadd.f32 0.0, %v5548
        %v5550 = vpop.f32.mrb[0].mxu0
        %5551 = vmatprep.mubr.f32.mxu0 0.0
        %5552 = vmatmul.mubr.f32.gmra.mrb[0].mxu0 %v5340
        %v5553 = vpop.f32.mrb[0].mxu0
        %v5554 = vadd.f32 0.0, %v5553
        %v5555 = vpop.f32.mrb[0].mxu0
        %5556 = vmatprep.mubr.f32.mxu0 0.0
        %5557 = vmatmul.mubr.f32.gmra.mrb[0].mxu0 %v5343
        %v5558 = vpop.f32.mrb[0].mxu0
        %v5559 = vadd.f32 0.0, %v5558
        %v5560 = vpop.f32.mrb[0].mxu0
        %5561 = vmatprep.mubr.f32.mxu0 0.0
        %5562 = vmatmul.mubr.f32.gmra.mrb[0].mxu0 %v5346
        %v5563 = vpop.f32.mrb[0].mxu0
        %v5564 = vadd.f32 0.0, %v5563
        %v5565 = vpop.f32.mrb[0].mxu0
        %5566 = vmatprep.mubr.f32.mxu0 0.0
        %5567 = vmatmul.mubr.f32.gmra.mrb[0].mxu0 %v5349
        %v5568 = vpop.f32.mrb[0].mxu0
        %v5569 = vadd.f32 0.0, %v5568
        %v5570 = vpop.f32.mrb[0].mxu0
        %5571 = vmatprep.mubr.f32.mxu0 0.0
        %5572 = vmatmul.mubr.f32.gmra.mrb[0].mxu0 %v5352
        %v5573 = vpop.f32.mrb[0].mxu0
        %v5574 = vadd.f32 0.0, %v5573
        %v5575 = vpop.f32.mrb[0].mxu0
        %5576 = vmatprep.mubr.f32.mxu0 0.0
        %5577 = vmatmul.mubr.f32.gmra.mrb[0].mxu0 %v5355
        %v5578 = vpop.f32.mrb[0].mxu0
        %v5579 = vadd.f32 0.0, %v5578
        %v5580 = vpop.f32.mrb[0].mxu0
        %5581 = vdwg.mxu0
        %5582 = vxpose.xlu0.b32.start [1/16] %v4455, 128
        %5583 = vxpose.xlu0.b32.cont [2/16] %v4457, 128
        %5584 = vxpose.xlu0.b32.cont [3/16] 0.0, 128
        %5585 = vxpose.xlu0.b32.cont [4/16] 0.0, 128
        %5586 = vxpose.xlu0.b32.cont [5/16] 0.0, 128
        %5587 = vxpose.xlu0.b32.cont [6/16] 0.0, 128
        %5588 = vxpose.xlu0.b32.cont [7/16] 0.0, 128
        %5589 = vxpose.xlu0.b32.cont [8/16] 0.0, 128
        %5590 = vxpose.xlu0.b32.cont [9/16] 0.0, 128
        %5591 = vxpose.xlu0.b32.cont [10/16] 0.0, 128
        %5592 = vxpose.xlu0.b32.cont [11/16] 0.0, 128
        %5593 = vxpose.xlu0.b32.cont [12/16] 0.0, 128
        %5594 = vxpose.xlu0.b32.cont [13/16] 0.0, 128
        %5595 = vxpose.xlu0.b32.cont [14/16] 0.0, 128
        %5596 = vxpose.xlu0.b32.cont [15/16] 0.0, 128
        %5597 = vxpose.xlu0.b32.end [16/16] 0.0, 128
        %v5598 = vpop.trf.xlu0
        %v5599 = vpop.trf.xlu0
        %v5600 = vpop.trf.xlu0
        %v5601 = vpop.trf.xlu0
        %v5602 = vpop.trf.xlu0
        %v5603 = vpop.trf.xlu0
        %v5604 = vpop.trf.xlu0
        %v5605 = vpop.trf.xlu0
        %v5606 = vpop.trf.xlu0
        %v5607 = vpop.trf.xlu0
        %v5608 = vpop.trf.xlu0
        %v5609 = vpop.trf.xlu0
        %v5610 = vpop.trf.xlu0
        %v5611 = vpop.trf.xlu0
        %v5612 = vpop.trf.xlu0
        %v5613 = vpop.trf.xlu0
        %5614 = vxpose.xlu0.b32.start [1/16] %v4456, 128
        %5615 = vxpose.xlu0.b32.cont [2/16] %v4458, 128
        %5616 = vxpose.xlu0.b32.cont [3/16] 0.0, 128
        %5617 = vxpose.xlu0.b32.cont [4/16] 0.0, 128
        %5618 = vxpose.xlu0.b32.cont [5/16] 0.0, 128
        %5619 = vxpose.xlu0.b32.cont [6/16] 0.0, 128
        %5620 = vxpose.xlu0.b32.cont [7/16] 0.0, 128
        %5621 = vxpose.xlu0.b32.cont [8/16] 0.0, 128
        %5622 = vxpose.xlu0.b32.cont [9/16] 0.0, 128
        %5623 = vxpose.xlu0.b32.cont [10/16] 0.0, 128
        %5624 = vxpose.xlu0.b32.cont [11/16] 0.0, 128
        %5625 = vxpose.xlu0.b32.cont [12/16] 0.0, 128
        %5626 = vxpose.xlu0.b32.cont [13/16] 0.0, 128
        %5627 = vxpose.xlu0.b32.cont [14/16] 0.0, 128
        %5628 = vxpose.xlu0.b32.cont [15/16] 0.0, 128
        %5629 = vxpose.xlu0.b32.end [16/16] 0.0, 128
        %v5630 = vpop.trf.xlu0
        %v5631 = vpop.trf.xlu0
        %v5632 = vpop.trf.xlu0
        %v5633 = vpop.trf.xlu0
        %v5634 = vpop.trf.xlu0
        %v5635 = vpop.trf.xlu0
        %v5636 = vpop.trf.xlu0
        %v5637 = vpop.trf.xlu0
        %v5638 = vpop.trf.xlu0
        %v5639 = vpop.trf.xlu0
        %v5640 = vpop.trf.xlu0
        %v5641 = vpop.trf.xlu0
        %v5642 = vpop.trf.xlu0
        %v5643 = vpop.trf.xlu0
        %v5644 = vpop.trf.xlu0
        %v5645 = vpop.trf.xlu0
        %v5647 = vsel %vm4875, %v5598, 0
        %v5650 = vsel %vm4875, %v5599, 0
        %v5653 = vsel %vm4875, %v5600, 0
        %v5656 = vsel %vm4875, %v5601, 0
        %v5659 = vsel %vm4875, %v5602, 0
        %v5662 = vsel %vm4875, %v5603, 0
        %v5665 = vsel %vm4875, %v5604, 0
        %v5668 = vsel %vm4875, %v5605, 0
        %v5671 = vsel %vm4875, %v5606, 0
        %v5674 = vsel %vm4875, %v5607, 0
        %v5677 = vsel %vm4875, %v5608, 0
        %v5680 = vsel %vm4875, %v5609, 0
        %v5683 = vsel %vm4875, %v5610, 0
        %v5686 = vsel %vm4875, %v5611, 0
        %v5689 = vsel %vm4875, %v5612, 0
        %v5692 = vsel %vm4875, %v5613, 0
        %v5695 = vsel %vm4875, %v5630, 0
        %v5698 = vsel %vm4875, %v5631, 0
        %v5701 = vsel %vm4875, %v5632, 0
        %v5704 = vsel %vm4875, %v5633, 0
        %v5707 = vsel %vm4875, %v5634, 0
        %v5710 = vsel %vm4875, %v5635, 0
        %v5713 = vsel %vm4875, %v5636, 0
        %v5716 = vsel %vm4875, %v5637, 0
        %v5719 = vsel %vm4875, %v5638, 0
        %v5722 = vsel %vm4875, %v5639, 0
        %v5725 = vsel %vm4875, %v5640, 0
        %v5728 = vsel %vm4875, %v5641, 0
        %v5731 = vsel %vm4875, %v5642, 0
        %v5734 = vsel %vm4875, %v5643, 0
        %v5737 = vsel %vm4875, %v5644, 0
        %v5740 = vsel %vm4875, %v5645, 0
        %5742 = vmatprep.subr.mxu0 0.0
        %5743 = vmatpush1.msra.mxu0 %v4804
        %5744 = vmatprep.subr.mxu0 0.0
        %5745 = vmatpush1.msra.mxu0 %v4806
        %5746 = vmatprep.subr.mxu0 0.0
        %5747 = vmatpush1.msra.mxu0 0.0
        %5748 = vmatprep.subr.mxu0 0.0
        %5749 = vmatpush1.msra.mxu0 0.0
        %5750 = vmatprep.subr.mxu0 0.0
        %5751 = vmatpush1.msra.mxu0 0.0
        %5752 = vmatprep.subr.mxu0 0.0
        %5753 = vmatpush1.msra.mxu0 0.0
        %5754 = vmatprep.subr.mxu0 0.0
        %5755 = vmatpush1.msra.mxu0 0.0
        %5756 = vmatprep.subr.mxu0 0.0
        %5757 = vmatpush1.msra.mxu0 0.0
        %5758 = vmatprep.subr.mxu0 0.0
        %5759 = vmatpush1.msra.mxu0 0.0
        %5760 = vmatprep.subr.mxu0 0.0
        %5761 = vmatpush1.msra.mxu0 0.0
        %5762 = vmatprep.subr.mxu0 0.0
        %5763 = vmatpush1.msra.mxu0 0.0
        %5764 = vmatprep.subr.mxu0 0.0
        %5765 = vmatpush1.msra.mxu0 0.0
        %5766 = vmatprep.subr.mxu0 0.0
        %5767 = vmatpush1.msra.mxu0 0.0
        %5768 = vmatprep.subr.mxu0 0.0
        %5769 = vmatpush1.msra.mxu0 0.0
        %5770 = vmatprep.subr.mxu0 0.0
        %5771 = vmatpush1.msra.mxu0 0.0
        %5772 = vmatprep.subr.mxu0 0.0
        %5773 = vmatpush1.msra.mxu0 0.0
        %5774 = vmatprep.subr.mxu0 0.0
        %5775 = vmatpush1.msra.mxu0 0.0
        %5776 = vmatprep.subr.mxu0 0.0
        %5777 = vmatpush1.msra.mxu0 0.0
        %5778 = vmatprep.subr.mxu0 0.0
        %5779 = vmatpush1.msra.mxu0 0.0
        %5780 = vmatprep.subr.mxu0 0.0
        %5781 = vmatpush1.msra.mxu0 0.0
        %5782 = vmatprep.subr.mxu0 0.0
        %5783 = vmatpush1.msra.mxu0 0.0
        %5784 = vmatprep.subr.mxu0 0.0
        %5785 = vmatpush1.msra.mxu0 0.0
        %5786 = vmatprep.subr.mxu0 0.0
        %5787 = vmatpush1.msra.mxu0 0.0
        %5788 = vmatprep.subr.mxu0 0.0
        %5789 = vmatpush1.msra.mxu0 0.0
        %5790 = vmatprep.subr.mxu0 0.0
        %5791 = vmatpush1.msra.mxu0 0.0
        %5792 = vmatprep.subr.mxu0 0.0
        %5793 = vmatpush1.msra.mxu0 0.0
        %5794 = vmatprep.subr.mxu0 0.0
        %5795 = vmatpush1.msra.mxu0 0.0
        %5796 = vmatprep.subr.mxu0 0.0
        %5797 = vmatpush1.msra.mxu0 0.0
        %5798 = vmatprep.subr.mxu0 0.0
        %5799 = vmatpush1.msra.mxu0 0.0
        %5800 = vmatprep.subr.mxu0 0.0
        %5801 = vmatpush1.msra.mxu0 0.0
        %5802 = vmatprep.subr.mxu0 0.0
        %5803 = vmatpush1.msra.mxu0 0.0
        %5804 = vmatprep.subr.mxu0 0.0
        %5805 = vmatpush1.msra.mxu0 0.0
        %5806 = vmatprep.mubr.f32.mxu0 0.0
        %5807 = vmatmul.mubr.f32.gmra.mrb[0].mxu0 %v5647
        %v5808 = vpop.f32.mrb[0].mxu0
        %v5809 = vadd.f32 0.0, %v5808
        %v5810 = vpop.f32.mrb[0].mxu0
        %5811 = vmatprep.mubr.f32.mxu0 0.0
        %5812 = vmatmul.mubr.f32.gmra.mrb[0].mxu0 %v5650
        %v5813 = vpop.f32.mrb[0].mxu0
        %v5814 = vadd.f32 0.0, %v5813
        %v5815 = vpop.f32.mrb[0].mxu0
        %5816 = vmatprep.mubr.f32.mxu0 0.0
        %5817 = vmatmul.mubr.f32.gmra.mrb[0].mxu0 %v5653
        %v5818 = vpop.f32.mrb[0].mxu0
        %v5819 = vadd.f32 0.0, %v5818
        %v5820 = vpop.f32.mrb[0].mxu0
        %5821 = vmatprep.mubr.f32.mxu0 0.0
        %5822 = vmatmul.mubr.f32.gmra.mrb[0].mxu0 %v5656
        %v5823 = vpop.f32.mrb[0].mxu0
        %v5824 = vadd.f32 0.0, %v5823
        %v5825 = vpop.f32.mrb[0].mxu0
        %5826 = vmatprep.mubr.f32.mxu0 0.0
        %5827 = vmatmul.mubr.f32.gmra.mrb[0].mxu0 %v5659
        %v5828 = vpop.f32.mrb[0].mxu0
        %v5829 = vadd.f32 0.0, %v5828
        %v5830 = vpop.f32.mrb[0].mxu0
        %5831 = vmatprep.mubr.f32.mxu0 0.0
        %5832 = vmatmul.mubr.f32.gmra.mrb[0].mxu0 %v5662
        %v5833 = vpop.f32.mrb[0].mxu0
        %v5834 = vadd.f32 0.0, %v5833
        %v5835 = vpop.f32.mrb[0].mxu0
        %5836 = vmatprep.mubr.f32.mxu0 0.0
        %5837 = vmatmul.mubr.f32.gmra.mrb[0].mxu0 %v5665
        %v5838 = vpop.f32.mrb[0].mxu0
        %v5839 = vadd.f32 0.0, %v5838
        %v5840 = vpop.f32.mrb[0].mxu0
        %5841 = vmatprep.mubr.f32.mxu0 0.0
        %5842 = vmatmul.mubr.f32.gmra.mrb[0].mxu0 %v5668
        %v5843 = vpop.f32.mrb[0].mxu0
        %v5844 = vadd.f32 0.0, %v5843
        %v5845 = vpop.f32.mrb[0].mxu0
        %5846 = vmatprep.mubr.f32.mxu0 0.0
        %5847 = vmatmul.mubr.f32.gmra.mrb[0].mxu0 %v5671
        %v5848 = vpop.f32.mrb[0].mxu0
        %v5849 = vadd.f32 0.0, %v5848
        %v5850 = vpop.f32.mrb[0].mxu0
        %5851 = vmatprep.mubr.f32.mxu0 0.0
        %5852 = vmatmul.mubr.f32.gmra.mrb[0].mxu0 %v5674
        %v5853 = vpop.f32.mrb[0].mxu0
        %v5854 = vadd.f32 0.0, %v5853
        %v5855 = vpop.f32.mrb[0].mxu0
        %5856 = vmatprep.mubr.f32.mxu0 0.0
        %5857 = vmatmul.mubr.f32.gmra.mrb[0].mxu0 %v5677
        %v5858 = vpop.f32.mrb[0].mxu0
        %v5859 = vadd.f32 0.0, %v5858
        %v5860 = vpop.f32.mrb[0].mxu0
        %5861 = vmatprep.mubr.f32.mxu0 0.0
        %5862 = vmatmul.mubr.f32.gmra.mrb[0].mxu0 %v5680
        %v5863 = vpop.f32.mrb[0].mxu0
        %v5864 = vadd.f32 0.0, %v5863
        %v5865 = vpop.f32.mrb[0].mxu0
        %5866 = vmatprep.mubr.f32.mxu0 0.0
        %5867 = vmatmul.mubr.f32.gmra.mrb[0].mxu0 %v5683
        %v5868 = vpop.f32.mrb[0].mxu0
        %v5869 = vadd.f32 0.0, %v5868
        %v5870 = vpop.f32.mrb[0].mxu0
        %5871 = vmatprep.mubr.f32.mxu0 0.0
        %5872 = vmatmul.mubr.f32.gmra.mrb[0].mxu0 %v5686
        %v5873 = vpop.f32.mrb[0].mxu0
        %v5874 = vadd.f32 0.0, %v5873
        %v5875 = vpop.f32.mrb[0].mxu0
        %5876 = vmatprep.mubr.f32.mxu0 0.0
        %5877 = vmatmul.mubr.f32.gmra.mrb[0].mxu0 %v5689
        %v5878 = vpop.f32.mrb[0].mxu0
        %v5879 = vadd.f32 0.0, %v5878
        %v5880 = vpop.f32.mrb[0].mxu0
        %5881 = vmatprep.mubr.f32.mxu0 0.0
        %5882 = vmatmul.mubr.f32.gmra.mrb[0].mxu0 %v5692
        %v5883 = vpop.f32.mrb[0].mxu0
        %v5884 = vadd.f32 0.0, %v5883
        %v5885 = vpop.f32.mrb[0].mxu0
        %5886 = vmatprep.mubr.f32.mxu0 0.0
        %5887 = vmatmul.mubr.f32.gmra.mrb[0].mxu0 %v5695
        %v5888 = vpop.f32.mrb[0].mxu0
        %v5889 = vadd.f32 0.0, %v5888
        %v5890 = vpop.f32.mrb[0].mxu0
        %5891 = vmatprep.mubr.f32.mxu0 0.0
        %5892 = vmatmul.mubr.f32.gmra.mrb[0].mxu0 %v5698
        %v5893 = vpop.f32.mrb[0].mxu0
        %v5894 = vadd.f32 0.0, %v5893
        %v5895 = vpop.f32.mrb[0].mxu0
        %5896 = vmatprep.mubr.f32.mxu0 0.0
        %5897 = vmatmul.mubr.f32.gmra.mrb[0].mxu0 %v5701
        %v5898 = vpop.f32.mrb[0].mxu0
        %v5899 = vadd.f32 0.0, %v5898
        %v5900 = vpop.f32.mrb[0].mxu0
        %5901 = vmatprep.mubr.f32.mxu0 0.0
        %5902 = vmatmul.mubr.f32.gmra.mrb[0].mxu0 %v5704
        %v5903 = vpop.f32.mrb[0].mxu0
        %v5904 = vadd.f32 0.0, %v5903
        %v5905 = vpop.f32.mrb[0].mxu0
        %5906 = vmatprep.mubr.f32.mxu0 0.0
        %5907 = vmatmul.mubr.f32.gmra.mrb[0].mxu0 %v5707
        %v5908 = vpop.f32.mrb[0].mxu0
        %v5909 = vadd.f32 0.0, %v5908
        %v5910 = vpop.f32.mrb[0].mxu0
        %5911 = vmatprep.mubr.f32.mxu0 0.0
        %5912 = vmatmul.mubr.f32.gmra.mrb[0].mxu0 %v5710
        %v5913 = vpop.f32.mrb[0].mxu0
        %v5914 = vadd.f32 0.0, %v5913
        %v5915 = vpop.f32.mrb[0].mxu0
        %5916 = vmatprep.mubr.f32.mxu0 0.0
        %5917 = vmatmul.mubr.f32.gmra.mrb[0].mxu0 %v5713
        %v5918 = vpop.f32.mrb[0].mxu0
        %v5919 = vadd.f32 0.0, %v5918
        %v5920 = vpop.f32.mrb[0].mxu0
        %5921 = vmatprep.mubr.f32.mxu0 0.0
        %5922 = vmatmul.mubr.f32.gmra.mrb[0].mxu0 %v5716
        %v5923 = vpop.f32.mrb[0].mxu0
        %v5924 = vadd.f32 0.0, %v5923
        %v5925 = vpop.f32.mrb[0].mxu0
        %5926 = vmatprep.mubr.f32.mxu0 0.0
        %5927 = vmatmul.mubr.f32.gmra.mrb[0].mxu0 %v5719
        %v5928 = vpop.f32.mrb[0].mxu0
        %v5929 = vadd.f32 0.0, %v5928
        %v5930 = vpop.f32.mrb[0].mxu0
        %5931 = vmatprep.mubr.f32.mxu0 0.0
        %5932 = vmatmul.mubr.f32.gmra.mrb[0].mxu0 %v5722
        %v5933 = vpop.f32.mrb[0].mxu0
        %v5934 = vadd.f32 0.0, %v5933
        %v5935 = vpop.f32.mrb[0].mxu0
        %5936 = vmatprep.mubr.f32.mxu0 0.0
        %5937 = vmatmul.mubr.f32.gmra.mrb[0].mxu0 %v5725
        %v5938 = vpop.f32.mrb[0].mxu0
        %v5939 = vadd.f32 0.0, %v5938
        %v5940 = vpop.f32.mrb[0].mxu0
        %5941 = vmatprep.mubr.f32.mxu0 0.0
        %5942 = vmatmul.mubr.f32.gmra.mrb[0].mxu0 %v5728
        %v5943 = vpop.f32.mrb[0].mxu0
        %v5944 = vadd.f32 0.0, %v5943
        %v5945 = vpop.f32.mrb[0].mxu0
        %5946 = vmatprep.mubr.f32.mxu0 0.0
        %5947 = vmatmul.mubr.f32.gmra.mrb[0].mxu0 %v5731
        %v5948 = vpop.f32.mrb[0].mxu0
        %v5949 = vadd.f32 0.0, %v5948
        %v5950 = vpop.f32.mrb[0].mxu0
        %5951 = vmatprep.mubr.f32.mxu0 0.0
        %5952 = vmatmul.mubr.f32.gmra.mrb[0].mxu0 %v5734
        %v5953 = vpop.f32.mrb[0].mxu0
        %v5954 = vadd.f32 0.0, %v5953
        %v5955 = vpop.f32.mrb[0].mxu0
        %5956 = vmatprep.mubr.f32.mxu0 0.0
        %5957 = vmatmul.mubr.f32.gmra.mrb[0].mxu0 %v5737
        %v5958 = vpop.f32.mrb[0].mxu0
        %v5959 = vadd.f32 0.0, %v5958
        %v5960 = vpop.f32.mrb[0].mxu0
        %5961 = vmatprep.mubr.f32.mxu0 0.0
        %5962 = vmatmul.mubr.f32.gmra.mrb[0].mxu0 %v5740
        %v5963 = vpop.f32.mrb[0].mxu0
        %v5964 = vadd.f32 0.0, %v5963
        %v5965 = vpop.f32.mrb[0].mxu0
        %5966 = vdwg.mxu0
        %5967 = vxpose.xlu0.b32.start [1/16] %v4459, 128
        %5968 = vxpose.xlu0.b32.cont [2/16] %v4461, 128
        %5969 = vxpose.xlu0.b32.cont [3/16] 0.0, 128
        %5970 = vxpose.xlu0.b32.cont [4/16] 0.0, 128
        %5971 = vxpose.xlu0.b32.cont [5/16] 0.0, 128
        %5972 = vxpose.xlu0.b32.cont [6/16] 0.0, 128
        %5973 = vxpose.xlu0.b32.cont [7/16] 0.0, 128
        %5974 = vxpose.xlu0.b32.cont [8/16] 0.0, 128
        %5975 = vxpose.xlu0.b32.cont [9/16] 0.0, 128
        %5976 = vxpose.xlu0.b32.cont [10/16] 0.0, 128
        %5977 = vxpose.xlu0.b32.cont [11/16] 0.0, 128
        %5978 = vxpose.xlu0.b32.cont [12/16] 0.0, 128
        %5979 = vxpose.xlu0.b32.cont [13/16] 0.0, 128
        %5980 = vxpose.xlu0.b32.cont [14/16] 0.0, 128
        %5981 = vxpose.xlu0.b32.cont [15/16] 0.0, 128
        %5982 = vxpose.xlu0.b32.end [16/16] 0.0, 128
        %v5983 = vpop.trf.xlu0
        %v5984 = vpop.trf.xlu0
        %v5985 = vpop.trf.xlu0
        %v5986 = vpop.trf.xlu0
        %v5987 = vpop.trf.xlu0
        %v5988 = vpop.trf.xlu0
        %v5989 = vpop.trf.xlu0
        %v5990 = vpop.trf.xlu0
        %v5991 = vpop.trf.xlu0
        %v5992 = vpop.trf.xlu0
        %v5993 = vpop.trf.xlu0
        %v5994 = vpop.trf.xlu0
        %v5995 = vpop.trf.xlu0
        %v5996 = vpop.trf.xlu0
        %v5997 = vpop.trf.xlu0
        %v5998 = vpop.trf.xlu0
        %5999 = vxpose.xlu0.b32.start [1/16] %v4460, 128
        %6000 = vxpose.xlu0.b32.cont [2/16] %v4462, 128
        %6001 = vxpose.xlu0.b32.cont [3/16] 0.0, 128
        %6002 = vxpose.xlu0.b32.cont [4/16] 0.0, 128
        %6003 = vxpose.xlu0.b32.cont [5/16] 0.0, 128
        %6004 = vxpose.xlu0.b32.cont [6/16] 0.0, 128
        %6005 = vxpose.xlu0.b32.cont [7/16] 0.0, 128
        %6006 = vxpose.xlu0.b32.cont [8/16] 0.0, 128
        %6007 = vxpose.xlu0.b32.cont [9/16] 0.0, 128
        %6008 = vxpose.xlu0.b32.cont [10/16] 0.0, 128
        %6009 = vxpose.xlu0.b32.cont [11/16] 0.0, 128
        %6010 = vxpose.xlu0.b32.cont [12/16] 0.0, 128
        %6011 = vxpose.xlu0.b32.cont [13/16] 0.0, 128
        %6012 = vxpose.xlu0.b32.cont [14/16] 0.0, 128
        %6013 = vxpose.xlu0.b32.cont [15/16] 0.0, 128
        %6014 = vxpose.xlu0.b32.end [16/16] 0.0, 128
        %v6015 = vpop.trf.xlu0
        %v6016 = vpop.trf.xlu0
        %v6017 = vpop.trf.xlu0
        %v6018 = vpop.trf.xlu0
        %v6019 = vpop.trf.xlu0
        %v6020 = vpop.trf.xlu0
        %v6021 = vpop.trf.xlu0
        %v6022 = vpop.trf.xlu0
        %v6023 = vpop.trf.xlu0
        %v6024 = vpop.trf.xlu0
        %v6025 = vpop.trf.xlu0
        %v6026 = vpop.trf.xlu0
        %v6027 = vpop.trf.xlu0
        %v6028 = vpop.trf.xlu0
        %v6029 = vpop.trf.xlu0
        %v6030 = vpop.trf.xlu0
        %v6032 = vsel %vm4875, %v5983, 0
        %v6035 = vsel %vm4875, %v5984, 0
        %v6038 = vsel %vm4875, %v5985, 0
        %v6041 = vsel %vm4875, %v5986, 0
        %v6044 = vsel %vm4875, %v5987, 0
        %v6047 = vsel %vm4875, %v5988, 0
        %v6050 = vsel %vm4875, %v5989, 0
        %v6053 = vsel %vm4875, %v5990, 0
        %v6056 = vsel %vm4875, %v5991, 0
        %v6059 = vsel %vm4875, %v5992, 0
        %v6062 = vsel %vm4875, %v5993, 0
        %v6065 = vsel %vm4875, %v5994, 0
        %v6068 = vsel %vm4875, %v5995, 0
        %v6071 = vsel %vm4875, %v5996, 0
        %v6074 = vsel %vm4875, %v5997, 0
        %v6077 = vsel %vm4875, %v5998, 0
        %v6080 = vsel %vm4875, %v6015, 0
        %v6083 = vsel %vm4875, %v6016, 0
        %v6086 = vsel %vm4875, %v6017, 0
        %v6089 = vsel %vm4875, %v6018, 0
        %v6092 = vsel %vm4875, %v6019, 0
        %v6095 = vsel %vm4875, %v6020, 0
        %v6098 = vsel %vm4875, %v6021, 0
        %v6101 = vsel %vm4875, %v6022, 0
        %v6104 = vsel %vm4875, %v6023, 0
        %v6107 = vsel %vm4875, %v6024, 0
        %v6110 = vsel %vm4875, %v6025, 0
        %v6113 = vsel %vm4875, %v6026, 0
        %v6116 = vsel %vm4875, %v6027, 0
        %v6119 = vsel %vm4875, %v6028, 0
        %v6122 = vsel %vm4875, %v6029, 0
        %v6125 = vsel %vm4875, %v6030, 0
        %6127 = vmatprep.subr.mxu0 0.0
        %6128 = vmatpush1.msra.mxu0 %v4808
        %6129 = vmatprep.subr.mxu0 0.0
        %6130 = vmatpush1.msra.mxu0 %v4810
        %6131 = vmatprep.subr.mxu0 0.0
        %6132 = vmatpush1.msra.mxu0 0.0
        %6133 = vmatprep.subr.mxu0 0.0
        %6134 = vmatpush1.msra.mxu0 0.0
        %6135 = vmatprep.subr.mxu0 0.0
        %6136 = vmatpush1.msra.mxu0 0.0
        %6137 = vmatprep.subr.mxu0 0.0
        %6138 = vmatpush1.msra.mxu0 0.0
        %6139 = vmatprep.subr.mxu0 0.0
        %6140 = vmatpush1.msra.mxu0 0.0
        %6141 = vmatprep.subr.mxu0 0.0
        %6142 = vmatpush1.msra.mxu0 0.0
        %6143 = vmatprep.subr.mxu0 0.0
        %6144 = vmatpush1.msra.mxu0 0.0
        %6145 = vmatprep.subr.mxu0 0.0
        %6146 = vmatpush1.msra.mxu0 0.0
        %6147 = vmatprep.subr.mxu0 0.0
        %6148 = vmatpush1.msra.mxu0 0.0
        %6149 = vmatprep.subr.mxu0 0.0
        %6150 = vmatpush1.msra.mxu0 0.0
        %6151 = vmatprep.subr.mxu0 0.0
        %6152 = vmatpush1.msra.mxu0 0.0
        %6153 = vmatprep.subr.mxu0 0.0
        %6154 = vmatpush1.msra.mxu0 0.0
        %6155 = vmatprep.subr.mxu0 0.0
        %6156 = vmatpush1.msra.mxu0 0.0
        %6157 = vmatprep.subr.mxu0 0.0
        %6158 = vmatpush1.msra.mxu0 0.0
        %6159 = vmatprep.subr.mxu0 0.0
        %6160 = vmatpush1.msra.mxu0 0.0
        %6161 = vmatprep.subr.mxu0 0.0
        %6162 = vmatpush1.msra.mxu0 0.0
        %6163 = vmatprep.subr.mxu0 0.0
        %6164 = vmatpush1.msra.mxu0 0.0
        %6165 = vmatprep.subr.mxu0 0.0
        %6166 = vmatpush1.msra.mxu0 0.0
        %6167 = vmatprep.subr.mxu0 0.0
        %6168 = vmatpush1.msra.mxu0 0.0
        %6169 = vmatprep.subr.mxu0 0.0
        %6170 = vmatpush1.msra.mxu0 0.0
        %6171 = vmatprep.subr.mxu0 0.0
        %6172 = vmatpush1.msra.mxu0 0.0
        %6173 = vmatprep.subr.mxu0 0.0
        %6174 = vmatpush1.msra.mxu0 0.0
        %6175 = vmatprep.subr.mxu0 0.0
        %6176 = vmatpush1.msra.mxu0 0.0
        %6177 = vmatprep.subr.mxu0 0.0
        %6178 = vmatpush1.msra.mxu0 0.0
        %6179 = vmatprep.subr.mxu0 0.0
        %6180 = vmatpush1.msra.mxu0 0.0
        %6181 = vmatprep.subr.mxu0 0.0
        %6182 = vmatpush1.msra.mxu0 0.0
        %6183 = vmatprep.subr.mxu0 0.0
        %6184 = vmatpush1.msra.mxu0 0.0
        %6185 = vmatprep.subr.mxu0 0.0
        %6186 = vmatpush1.msra.mxu0 0.0
        %6187 = vmatprep.subr.mxu0 0.0
        %6188 = vmatpush1.msra.mxu0 0.0
        %6189 = vmatprep.subr.mxu0 0.0
        %6190 = vmatpush1.msra.mxu0 0.0
        %6191 = vmatprep.mubr.f32.mxu0 0.0
        %6192 = vmatmul.mubr.f32.gmra.mrb[0].mxu0 %v6032
        %v6193 = vpop.f32.mrb[0].mxu0
        %v6194 = vadd.f32 0.0, %v6193
        %v6195 = vpop.f32.mrb[0].mxu0
        %6196 = vmatprep.mubr.f32.mxu0 0.0
        %6197 = vmatmul.mubr.f32.gmra.mrb[0].mxu0 %v6035
        %v6198 = vpop.f32.mrb[0].mxu0
        %v6199 = vadd.f32 0.0, %v6198
        %v6200 = vpop.f32.mrb[0].mxu0
        %6201 = vmatprep.mubr.f32.mxu0 0.0
        %6202 = vmatmul.mubr.f32.gmra.mrb[0].mxu0 %v6038
        %v6203 = vpop.f32.mrb[0].mxu0
        %v6204 = vadd.f32 0.0, %v6203
        %v6205 = vpop.f32.mrb[0].mxu0
        %6206 = vmatprep.mubr.f32.mxu0 0.0
        %6207 = vmatmul.mubr.f32.gmra.mrb[0].mxu0 %v6041
        %v6208 = vpop.f32.mrb[0].mxu0
        %v6209 = vadd.f32 0.0, %v6208
        %v6210 = vpop.f32.mrb[0].mxu0
        %6211 = vmatprep.mubr.f32.mxu0 0.0
        %6212 = vmatmul.mubr.f32.gmra.mrb[0].mxu0 %v6044
        %v6213 = vpop.f32.mrb[0].mxu0
        %v6214 = vadd.f32 0.0, %v6213
        %v6215 = vpop.f32.mrb[0].mxu0
        %6216 = vmatprep.mubr.f32.mxu0 0.0
        %6217 = vmatmul.mubr.f32.gmra.mrb[0].mxu0 %v6047
        %v6218 = vpop.f32.mrb[0].mxu0
        %v6219 = vadd.f32 0.0, %v6218
        %v6220 = vpop.f32.mrb[0].mxu0
        %6221 = vmatprep.mubr.f32.mxu0 0.0
        %6222 = vmatmul.mubr.f32.gmra.mrb[0].mxu0 %v6050
        %v6223 = vpop.f32.mrb[0].mxu0
        %v6224 = vadd.f32 0.0, %v6223
        %v6225 = vpop.f32.mrb[0].mxu0
        %6226 = vmatprep.mubr.f32.mxu0 0.0
        %6227 = vmatmul.mubr.f32.gmra.mrb[0].mxu0 %v6053
        %v6228 = vpop.f32.mrb[0].mxu0
        %v6229 = vadd.f32 0.0, %v6228
        %v6230 = vpop.f32.mrb[0].mxu0
        %6231 = vmatprep.mubr.f32.mxu0 0.0
        %6232 = vmatmul.mubr.f32.gmra.mrb[0].mxu0 %v6056
        %v6233 = vpop.f32.mrb[0].mxu0
        %v6234 = vadd.f32 0.0, %v6233
        %v6235 = vpop.f32.mrb[0].mxu0
        %6236 = vmatprep.mubr.f32.mxu0 0.0
        %6237 = vmatmul.mubr.f32.gmra.mrb[0].mxu0 %v6059
        %v6238 = vpop.f32.mrb[0].mxu0
        %v6239 = vadd.f32 0.0, %v6238
        %v6240 = vpop.f32.mrb[0].mxu0
        %6241 = vmatprep.mubr.f32.mxu0 0.0
        %6242 = vmatmul.mubr.f32.gmra.mrb[0].mxu0 %v6062
        %v6243 = vpop.f32.mrb[0].mxu0
        %v6244 = vadd.f32 0.0, %v6243
        %v6245 = vpop.f32.mrb[0].mxu0
        %6246 = vmatprep.mubr.f32.mxu0 0.0
        %6247 = vmatmul.mubr.f32.gmra.mrb[0].mxu0 %v6065
        %v6248 = vpop.f32.mrb[0].mxu0
        %v6249 = vadd.f32 0.0, %v6248
        %v6250 = vpop.f32.mrb[0].mxu0
        %6251 = vmatprep.mubr.f32.mxu0 0.0
        %6252 = vmatmul.mubr.f32.gmra.mrb[0].mxu0 %v6068
        %v6253 = vpop.f32.mrb[0].mxu0
        %v6254 = vadd.f32 0.0, %v6253
        %v6255 = vpop.f32.mrb[0].mxu0
        %6256 = vmatprep.mubr.f32.mxu0 0.0
        %6257 = vmatmul.mubr.f32.gmra.mrb[0].mxu0 %v6071
        %v6258 = vpop.f32.mrb[0].mxu0
        %v6259 = vadd.f32 0.0, %v6258
        %v6260 = vpop.f32.mrb[0].mxu0
        %6261 = vmatprep.mubr.f32.mxu0 0.0
        %6262 = vmatmul.mubr.f32.gmra.mrb[0].mxu0 %v6074
        %v6263 = vpop.f32.mrb[0].mxu0
        %v6264 = vadd.f32 0.0, %v6263
        %v6265 = vpop.f32.mrb[0].mxu0
        %6266 = vmatprep.mubr.f32.mxu0 0.0
        %6267 = vmatmul.mubr.f32.gmra.mrb[0].mxu0 %v6077
        %v6268 = vpop.f32.mrb[0].mxu0
        %v6269 = vadd.f32 0.0, %v6268
        %v6270 = vpop.f32.mrb[0].mxu0
        %6271 = vmatprep.mubr.f32.mxu0 0.0
        %6272 = vmatmul.mubr.f32.gmra.mrb[0].mxu0 %v6080
        %v6273 = vpop.f32.mrb[0].mxu0
        %v6274 = vadd.f32 0.0, %v6273
        %v6275 = vpop.f32.mrb[0].mxu0
        %6276 = vmatprep.mubr.f32.mxu0 0.0
        %6277 = vmatmul.mubr.f32.gmra.mrb[0].mxu0 %v6083
        %v6278 = vpop.f32.mrb[0].mxu0
        %v6279 = vadd.f32 0.0, %v6278
        %v6280 = vpop.f32.mrb[0].mxu0
        %6281 = vmatprep.mubr.f32.mxu0 0.0
        %6282 = vmatmul.mubr.f32.gmra.mrb[0].mxu0 %v6086
        %v6283 = vpop.f32.mrb[0].mxu0
        %v6284 = vadd.f32 0.0, %v6283
        %v6285 = vpop.f32.mrb[0].mxu0
        %6286 = vmatprep.mubr.f32.mxu0 0.0
        %6287 = vmatmul.mubr.f32.gmra.mrb[0].mxu0 %v6089
        %v6288 = vpop.f32.mrb[0].mxu0
        %v6289 = vadd.f32 0.0, %v6288
        %v6290 = vpop.f32.mrb[0].mxu0
        %6291 = vmatprep.mubr.f32.mxu0 0.0
        %6292 = vmatmul.mubr.f32.gmra.mrb[0].mxu0 %v6092
        %v6293 = vpop.f32.mrb[0].mxu0
        %v6294 = vadd.f32 0.0, %v6293
        %v6295 = vpop.f32.mrb[0].mxu0
        %6296 = vmatprep.mubr.f32.mxu0 0.0
        %6297 = vmatmul.mubr.f32.gmra.mrb[0].mxu0 %v6095
        %v6298 = vpop.f32.mrb[0].mxu0
        %v6299 = vadd.f32 0.0, %v6298
        %v6300 = vpop.f32.mrb[0].mxu0
        %6301 = vmatprep.mubr.f32.mxu0 0.0
        %6302 = vmatmul.mubr.f32.gmra.mrb[0].mxu0 %v6098
        %v6303 = vpop.f32.mrb[0].mxu0
        %v6304 = vadd.f32 0.0, %v6303
        %v6305 = vpop.f32.mrb[0].mxu0
        %6306 = vmatprep.mubr.f32.mxu0 0.0
        %6307 = vmatmul.mubr.f32.gmra.mrb[0].mxu0 %v6101
        %v6308 = vpop.f32.mrb[0].mxu0
        %v6309 = vadd.f32 0.0, %v6308
        %v6310 = vpop.f32.mrb[0].mxu0
        %6311 = vmatprep.mubr.f32.mxu0 0.0
        %6312 = vmatmul.mubr.f32.gmra.mrb[0].mxu0 %v6104
        %v6313 = vpop.f32.mrb[0].mxu0
        %v6314 = vadd.f32 0.0, %v6313
        %v6315 = vpop.f32.mrb[0].mxu0
        %6316 = vmatprep.mubr.f32.mxu0 0.0
        %6317 = vmatmul.mubr.f32.gmra.mrb[0].mxu0 %v6107
        %v6318 = vpop.f32.mrb[0].mxu0
        %v6319 = vadd.f32 0.0, %v6318
        %v6320 = vpop.f32.mrb[0].mxu0
        %6321 = vmatprep.mubr.f32.mxu0 0.0
        %6322 = vmatmul.mubr.f32.gmra.mrb[0].mxu0 %v6110
        %v6323 = vpop.f32.mrb[0].mxu0
        %v6324 = vadd.f32 0.0, %v6323
        %v6325 = vpop.f32.mrb[0].mxu0
        %6326 = vmatprep.mubr.f32.mxu0 0.0
        %6327 = vmatmul.mubr.f32.gmra.mrb[0].mxu0 %v6113
        %v6328 = vpop.f32.mrb[0].mxu0
        %v6329 = vadd.f32 0.0, %v6328
        %v6330 = vpop.f32.mrb[0].mxu0
        %6331 = vmatprep.mubr.f32.mxu0 0.0
        %6332 = vmatmul.mubr.f32.gmra.mrb[0].mxu0 %v6116
        %v6333 = vpop.f32.mrb[0].mxu0
        %v6334 = vadd.f32 0.0, %v6333
        %v6335 = vpop.f32.mrb[0].mxu0
        %6336 = vmatprep.mubr.f32.mxu0 0.0
        %6337 = vmatmul.mubr.f32.gmra.mrb[0].mxu0 %v6119
        %v6338 = vpop.f32.mrb[0].mxu0
        %v6339 = vadd.f32 0.0, %v6338
        %v6340 = vpop.f32.mrb[0].mxu0
        %6341 = vmatprep.mubr.f32.mxu0 0.0
        %6342 = vmatmul.mubr.f32.gmra.mrb[0].mxu0 %v6122
        %v6343 = vpop.f32.mrb[0].mxu0
        %v6344 = vadd.f32 0.0, %v6343
        %v6345 = vpop.f32.mrb[0].mxu0
        %6346 = vmatprep.mubr.f32.mxu0 0.0
        %6347 = vmatmul.mubr.f32.gmra.mrb[0].mxu0 %v6125
        %v6348 = vpop.f32.mrb[0].mxu0
        %v6349 = vadd.f32 0.0, %v6348
        %v6350 = vpop.f32.mrb[0].mxu0
        %6351 = vdwg.mxu0
        %v6352 = vpack.c.bf16 %v5044, %v5039
        %v6353 = vpack.c.bf16 %v5054, %v5049
        %v6354 = vpack.c.bf16 %v5064, %v5059
        %v6355 = vpack.c.bf16 %v5074, %v5069
        %v6356 = vpack.c.bf16 %v5084, %v5079
        %v6357 = vpack.c.bf16 %v5094, %v5089
        %v6358 = vpack.c.bf16 %v5104, %v5099
        %v6359 = vpack.c.bf16 %v5114, %v5109
        %v6360 = vpack.c.bf16 %v5124, %v5119
        %v6361 = vpack.c.bf16 %v5134, %v5129
        %v6362 = vpack.c.bf16 %v5144, %v5139
        %v6363 = vpack.c.bf16 %v5154, %v5149
        %v6364 = vpack.c.bf16 %v5164, %v5159
        %v6365 = vpack.c.bf16 %v5174, %v5169
        %v6366 = vpack.c.bf16 %v5184, %v5179
        %v6367 = vpack.c.bf16 %v5194, %v5189
        %v6368 = vpack.c.bf16 %v5429, %v5424
        %v6369 = vpack.c.bf16 %v5439, %v5434
        %v6370 = vpack.c.bf16 %v5449, %v5444
        %v6371 = vpack.c.bf16 %v5459, %v5454
        %v6372 = vpack.c.bf16 %v5469, %v5464
        %v6373 = vpack.c.bf16 %v5479, %v5474
        %v6374 = vpack.c.bf16 %v5489, %v5484
        %v6375 = vpack.c.bf16 %v5499, %v5494
        %v6376 = vpack.c.bf16 %v5509, %v5504
        %v6377 = vpack.c.bf16 %v5519, %v5514
        %v6378 = vpack.c.bf16 %v5529, %v5524
        %v6379 = vpack.c.bf16 %v5539, %v5534
        %v6380 = vpack.c.bf16 %v5549, %v5544
        %v6381 = vpack.c.bf16 %v5559, %v5554
        %v6382 = vpack.c.bf16 %v5569, %v5564
        %v6383 = vpack.c.bf16 %v5579, %v5574
        %v6384 = vpack.c.bf16 %v5814, %v5809
        %v6385 = vpack.c.bf16 %v5824, %v5819
        %v6386 = vpack.c.bf16 %v5834, %v5829
        %v6387 = vpack.c.bf16 %v5844, %v5839
        %v6388 = vpack.c.bf16 %v5854, %v5849
        %v6389 = vpack.c.bf16 %v5864, %v5859
        %v6390 = vpack.c.bf16 %v5874, %v5869
        %v6391 = vpack.c.bf16 %v5884, %v5879
        %v6392 = vpack.c.bf16 %v5894, %v5889
        %v6393 = vpack.c.bf16 %v5904, %v5899
        %v6394 = vpack.c.bf16 %v5914, %v5909
        %v6395 = vpack.c.bf16 %v5924, %v5919
        %v6396 = vpack.c.bf16 %v5934, %v5929
        %v6397 = vpack.c.bf16 %v5944, %v5939
        %v6398 = vpack.c.bf16 %v5954, %v5949
        %v6399 = vpack.c.bf16 %v5964, %v5959
        %v6400 = vpack.c.bf16 %v6199, %v6194
        %v6401 = vpack.c.bf16 %v6209, %v6204
        %v6402 = vpack.c.bf16 %v6219, %v6214
        %v6403 = vpack.c.bf16 %v6229, %v6224
        %v6404 = vpack.c.bf16 %v6239, %v6234
        %v6405 = vpack.c.bf16 %v6249, %v6244
        %v6406 = vpack.c.bf16 %v6259, %v6254
        %v6407 = vpack.c.bf16 %v6269, %v6264
        %v6408 = vpack.c.bf16 %v6279, %v6274
        %v6409 = vpack.c.bf16 %v6289, %v6284
        %v6410 = vpack.c.bf16 %v6299, %v6294
        %v6411 = vpack.c.bf16 %v6309, %v6304
        %v6412 = vpack.c.bf16 %v6319, %v6314
        %v6413 = vpack.c.bf16 %v6329, %v6324
        %v6414 = vpack.c.bf16 %v6339, %v6334
        %v6415 = vpack.c.bf16 %v6349, %v6344
        %v6416 = vld [vmem:[%s5] sm:$0xf]
        %v6417 = vld [vmem:[%s5 + $0x4] sm:$0xf]
        %v6418 = vld [vmem:[%s5 + $0x8] sm:$0xf]
        %v6419 = vld [vmem:[%s5 + $0xc] sm:$0xf]
        %v6420 = vld [vmem:[%s5 + $0x10] sm:$0xf]
        %v6421 = vld [vmem:[%s5 + $0x14] sm:$0xf]
        %v6422 = vld [vmem:[%s5 + $0x18] sm:$0xf]
        %v6423 = vld [vmem:[%s5 + $0x1c] sm:$0xf]
        %v6424 = vld [vmem:[%s5 + $0x20] sm:$0xf]
        %v6425 = vld [vmem:[%s5 + $0x24] sm:$0xf]
        %v6426 = vld [vmem:[%s5 + $0x28] sm:$0xf]
        %v6427 = vld [vmem:[%s5 + $0x2c] sm:$0xf]
        %v6431 = vunpack.c.l.b16 %v6416
        %v6432 = vunpack.c.l.b16 %v6417
        %v6433 = vunpack.c.l.b16 %v6418
        %v6434 = vpack.c.b16 %v6432, %v6431
        %v6435 = vpack.c.b16 %v6433, %v6433
        %v6438 = vsel %vm2561, %v6352, 0
        %v6441 = vsel %vm2561, %v6353, 0
        %v6444 = vsel %vm2561, %v6354, 0
        %v6447 = vsel %vm2561, %v6355, 0
        %v6450 = vsel %vm2561, %v6356, 0
        %v6453 = vsel %vm2561, %v6357, 0
        %v6456 = vsel %vm2561, %v6358, 0
        %v6459 = vsel %vm2561, %v6359, 0
        %v6462 = vsel %vm2561, %v6360, 0
        %v6465 = vsel %vm2561, %v6361, 0
        %v6468 = vsel %vm2561, %v6362, 0
        %v6471 = vsel %vm2561, %v6363, 0
        %v6474 = vsel %vm2561, %v6364, 0
        %v6477 = vsel %vm2561, %v6365, 0
        %v6480 = vsel %vm2561, %v6366, 0
        %v6483 = vsel %vm2561, %v6367, 0
        %vm6485 = vcmask 1043456
        %v6487 = vsel %vm6485, %v6435, 0
        %6489 = vmatprep.subr.bf16.mxu0 0
        %6490 = vmatpush1.bf16.msra.mxu0 %v6434
        %6491 = vmatprep.subr.bf16.mxu0 0
        %6492 = vmatpush1.bf16.msra.mxu0 %v6487
        %6493 = vmatprep.subr.bf16.mxu0 0
        %6494 = vmatpush1.bf16.msra.mxu0 0
        %6495 = vmatprep.subr.bf16.mxu0 0
        %6496 = vmatpush1.bf16.msra.mxu0 0
        %6497 = vmatprep.subr.bf16.mxu0 0
        %6498 = vmatpush1.bf16.msra.mxu0 0
        %6499 = vmatprep.subr.bf16.mxu0 0
        %6500 = vmatpush1.bf16.msra.mxu0 0
        %6501 = vmatprep.subr.bf16.mxu0 0
        %6502 = vmatpush1.bf16.msra.mxu0 0
        %6503 = vmatprep.subr.bf16.mxu0 0
        %6504 = vmatpush1.bf16.msra.mxu0 0
        %6505 = vmatprep.subr.bf16.mxu0 0
        %6506 = vmatpush1.bf16.msra.mxu0 0
        %6507 = vmatprep.subr.bf16.mxu0 0
        %6508 = vmatpush1.bf16.msra.mxu0 0
        %6509 = vmatprep.subr.bf16.mxu0 0
        %6510 = vmatpush1.bf16.msra.mxu0 0
        %6511 = vmatprep.subr.bf16.mxu0 0
        %6512 = vmatpush1.bf16.msra.mxu0 0
        %6513 = vmatprep.subr.bf16.mxu0 0
        %6514 = vmatpush1.bf16.msra.mxu0 0
        %6515 = vmatprep.subr.bf16.mxu0 0
        %6516 = vmatpush1.bf16.msra.mxu0 0
        %6517 = vmatprep.subr.bf16.mxu0 0
        %6518 = vmatpush1.bf16.msra.mxu0 0
        %6519 = vmatprep.subr.bf16.mxu0 0
        %6520 = vmatpush1.bf16.msra.mxu0 0
        %6521 = vmatprep.mubr.bf16.mxu0 0
        %6522 = vmatmul.mubr.bf16.gmra.mrb[0].mxu0 %v6438
        %v6523 = vpop.f32.mrb[0].mxu0
        %v6524 = vadd.f32 0.0, %v6523
        %v6525 = vpop.f32.mrb[0].mxu0
        %v6526 = vpop.f32.mrb[0].mxu0
        %v6527 = vadd.f32 0.0, %v6526
        %v6528 = vpop.f32.mrb[0].mxu0
        %6529 = vmatprep.mubr.bf16.mxu0 0
        %6530 = vmatmul.mubr.bf16.gmra.mrb[0].mxu0 %v6441
        %v6531 = vpop.f32.mrb[0].mxu0
        %v6532 = vadd.f32 0.0, %v6531
        %v6533 = vpop.f32.mrb[0].mxu0
        %v6534 = vpop.f32.mrb[0].mxu0
        %v6535 = vadd.f32 0.0, %v6534
        %v6536 = vpop.f32.mrb[0].mxu0
        %6537 = vmatprep.mubr.bf16.mxu0 0
        %6538 = vmatmul.mubr.bf16.gmra.mrb[0].mxu0 %v6444
        %v6539 = vpop.f32.mrb[0].mxu0
        %v6540 = vadd.f32 0.0, %v6539
        %v6541 = vpop.f32.mrb[0].mxu0
        %v6542 = vpop.f32.mrb[0].mxu0
        %v6543 = vadd.f32 0.0, %v6542
        %v6544 = vpop.f32.mrb[0].mxu0
        %6545 = vmatprep.mubr.bf16.mxu0 0
        %6546 = vmatmul.mubr.bf16.gmra.mrb[0].mxu0 %v6447
        %v6547 = vpop.f32.mrb[0].mxu0
        %v6548 = vadd.f32 0.0, %v6547
        %v6549 = vpop.f32.mrb[0].mxu0
        %v6550 = vpop.f32.mrb[0].mxu0
        %v6551 = vadd.f32 0.0, %v6550
        %v6552 = vpop.f32.mrb[0].mxu0
        %6553 = vmatprep.mubr.bf16.mxu0 0
        %6554 = vmatmul.mubr.bf16.gmra.mrb[0].mxu0 %v6450
        %v6555 = vpop.f32.mrb[0].mxu0
        %v6556 = vadd.f32 0.0, %v6555
        %v6557 = vpop.f32.mrb[0].mxu0
        %v6558 = vpop.f32.mrb[0].mxu0
        %v6559 = vadd.f32 0.0, %v6558
        %v6560 = vpop.f32.mrb[0].mxu0
        %6561 = vmatprep.mubr.bf16.mxu0 0
        %6562 = vmatmul.mubr.bf16.gmra.mrb[0].mxu0 %v6453
        %v6563 = vpop.f32.mrb[0].mxu0
        %v6564 = vadd.f32 0.0, %v6563
        %v6565 = vpop.f32.mrb[0].mxu0
        %v6566 = vpop.f32.mrb[0].mxu0
        %v6567 = vadd.f32 0.0, %v6566
        %v6568 = vpop.f32.mrb[0].mxu0
        %6569 = vmatprep.mubr.bf16.mxu0 0
        %6570 = vmatmul.mubr.bf16.gmra.mrb[0].mxu0 %v6456
        %v6571 = vpop.f32.mrb[0].mxu0
        %v6572 = vadd.f32 0.0, %v6571
        %v6573 = vpop.f32.mrb[0].mxu0
        %v6574 = vpop.f32.mrb[0].mxu0
        %v6575 = vadd.f32 0.0, %v6574
        %v6576 = vpop.f32.mrb[0].mxu0
        %6577 = vmatprep.mubr.bf16.mxu0 0
        %6578 = vmatmul.mubr.bf16.gmra.mrb[0].mxu0 %v6459
        %v6579 = vpop.f32.mrb[0].mxu0
        %v6580 = vadd.f32 0.0, %v6579
        %v6581 = vpop.f32.mrb[0].mxu0
        %v6582 = vpop.f32.mrb[0].mxu0
        %v6583 = vadd.f32 0.0, %v6582
        %v6584 = vpop.f32.mrb[0].mxu0
        %6585 = vmatprep.mubr.bf16.mxu0 0
        %6586 = vmatmul.mubr.bf16.gmra.mrb[0].mxu0 %v6462
        %v6587 = vpop.f32.mrb[0].mxu0
        %v6588 = vadd.f32 0.0, %v6587
        %v6589 = vpop.f32.mrb[0].mxu0
        %v6590 = vpop.f32.mrb[0].mxu0
        %v6591 = vadd.f32 0.0, %v6590
        %v6592 = vpop.f32.mrb[0].mxu0
        %6593 = vmatprep.mubr.bf16.mxu0 0
        %6594 = vmatmul.mubr.bf16.gmra.mrb[0].mxu0 %v6465
        %v6595 = vpop.f32.mrb[0].mxu0
        %v6596 = vadd.f32 0.0, %v6595
        %v6597 = vpop.f32.mrb[0].mxu0
        %v6598 = vpop.f32.mrb[0].mxu0
        %v6599 = vadd.f32 0.0, %v6598
        %v6600 = vpop.f32.mrb[0].mxu0
        %6601 = vmatprep.mubr.bf16.mxu0 0
        %6602 = vmatmul.mubr.bf16.gmra.mrb[0].mxu0 %v6468
        %v6603 = vpop.f32.mrb[0].mxu0
        %v6604 = vadd.f32 0.0, %v6603
        %v6605 = vpop.f32.mrb[0].mxu0
        %v6606 = vpop.f32.mrb[0].mxu0
        %v6607 = vadd.f32 0.0, %v6606
        %v6608 = vpop.f32.mrb[0].mxu0
        %6609 = vmatprep.mubr.bf16.mxu0 0
        %6610 = vmatmul.mubr.bf16.gmra.mrb[0].mxu0 %v6471
        %v6611 = vpop.f32.mrb[0].mxu0
        %v6612 = vadd.f32 0.0, %v6611
        %v6613 = vpop.f32.mrb[0].mxu0
        %v6614 = vpop.f32.mrb[0].mxu0
        %v6615 = vadd.f32 0.0, %v6614
        %v6616 = vpop.f32.mrb[0].mxu0
        %6617 = vmatprep.mubr.bf16.mxu0 0
        %6618 = vmatmul.mubr.bf16.gmra.mrb[0].mxu0 %v6474
        %v6619 = vpop.f32.mrb[0].mxu0
        %v6620 = vadd.f32 0.0, %v6619
        %v6621 = vpop.f32.mrb[0].mxu0
        %v6622 = vpop.f32.mrb[0].mxu0
        %v6623 = vadd.f32 0.0, %v6622
        %v6624 = vpop.f32.mrb[0].mxu0
        %6625 = vmatprep.mubr.bf16.mxu0 0
        %6626 = vmatmul.mubr.bf16.gmra.mrb[0].mxu0 %v6477
        %v6627 = vpop.f32.mrb[0].mxu0
        %v6628 = vadd.f32 0.0, %v6627
        %v6629 = vpop.f32.mrb[0].mxu0
        %v6630 = vpop.f32.mrb[0].mxu0
        %v6631 = vadd.f32 0.0, %v6630
        %v6632 = vpop.f32.mrb[0].mxu0
        %6633 = vmatprep.mubr.bf16.mxu0 0
        %6634 = vmatmul.mubr.bf16.gmra.mrb[0].mxu0 %v6480
        %v6635 = vpop.f32.mrb[0].mxu0
        %v6636 = vadd.f32 0.0, %v6635
        %v6637 = vpop.f32.mrb[0].mxu0
        %v6638 = vpop.f32.mrb[0].mxu0
        %v6639 = vadd.f32 0.0, %v6638
        %v6640 = vpop.f32.mrb[0].mxu0
        %6641 = vmatprep.mubr.bf16.mxu0 0
        %6642 = vmatmul.mubr.bf16.gmra.mrb[0].mxu0 %v6483
        %v6643 = vpop.f32.mrb[0].mxu0
        %v6644 = vadd.f32 0.0, %v6643
        %v6645 = vpop.f32.mrb[0].mxu0
        %v6646 = vpop.f32.mrb[0].mxu0
        %v6647 = vadd.f32 0.0, %v6646
        %v6648 = vpop.f32.mrb[0].mxu0
        %6649 = vdwg.mxu0
        %v6653 = vunpack.c.l.b16 %v6419
        %v6654 = vunpack.c.l.b16 %v6420
        %v6655 = vunpack.c.l.b16 %v6421
        %v6656 = vpack.c.b16 %v6654, %v6653
        %v6657 = vpack.c.b16 %v6655, %v6655
        %v6660 = vsel %vm2561, %v6368, 0
        %v6663 = vsel %vm2561, %v6369, 0
        %v6666 = vsel %vm2561, %v6370, 0
        %v6669 = vsel %vm2561, %v6371, 0
        %v6672 = vsel %vm2561, %v6372, 0
        %v6675 = vsel %vm2561, %v6373, 0
        %v6678 = vsel %vm2561, %v6374, 0
        %v6681 = vsel %vm2561, %v6375, 0
        %v6684 = vsel %vm2561, %v6376, 0
        %v6687 = vsel %vm2561, %v6377, 0
        %v6690 = vsel %vm2561, %v6378, 0
        %v6693 = vsel %vm2561, %v6379, 0
        %v6696 = vsel %vm2561, %v6380, 0
        %v6699 = vsel %vm2561, %v6381, 0
        %v6702 = vsel %vm2561, %v6382, 0
        %v6705 = vsel %vm2561, %v6383, 0
        %v6708 = vsel %vm6485, %v6657, 0
        %6710 = vmatprep.subr.bf16.mxu0 0
        %6711 = vmatpush1.bf16.msra.mxu0 %v6656
        %6712 = vmatprep.subr.bf16.mxu0 0
        %6713 = vmatpush1.bf16.msra.mxu0 %v6708
        %6714 = vmatprep.subr.bf16.mxu0 0
        %6715 = vmatpush1.bf16.msra.mxu0 0
        %6716 = vmatprep.subr.bf16.mxu0 0
        %6717 = vmatpush1.bf16.msra.mxu0 0
        %6718 = vmatprep.subr.bf16.mxu0 0
        %6719 = vmatpush1.bf16.msra.mxu0 0
        %6720 = vmatprep.subr.bf16.mxu0 0
        %6721 = vmatpush1.bf16.msra.mxu0 0
        %6722 = vmatprep.subr.bf16.mxu0 0
        %6723 = vmatpush1.bf16.msra.mxu0 0
        %6724 = vmatprep.subr.bf16.mxu0 0
        %6725 = vmatpush1.bf16.msra.mxu0 0
        %6726 = vmatprep.subr.bf16.mxu0 0
        %6727 = vmatpush1.bf16.msra.mxu0 0
        %6728 = vmatprep.subr.bf16.mxu0 0
        %6729 = vmatpush1.bf16.msra.mxu0 0
        %6730 = vmatprep.subr.bf16.mxu0 0
        %6731 = vmatpush1.bf16.msra.mxu0 0
        %6732 = vmatprep.subr.bf16.mxu0 0
        %6733 = vmatpush1.bf16.msra.mxu0 0
        %6734 = vmatprep.subr.bf16.mxu0 0
        %6735 = vmatpush1.bf16.msra.mxu0 0
        %6736 = vmatprep.subr.bf16.mxu0 0
        %6737 = vmatpush1.bf16.msra.mxu0 0
        %6738 = vmatprep.subr.bf16.mxu0 0
        %6739 = vmatpush1.bf16.msra.mxu0 0
        %6740 = vmatprep.subr.bf16.mxu0 0
        %6741 = vmatpush1.bf16.msra.mxu0 0
        %6742 = vmatprep.mubr.bf16.mxu0 0
        %6743 = vmatmul.mubr.bf16.gmra.mrb[0].mxu0 %v6660
        %v6744 = vpop.f32.mrb[0].mxu0
        %v6745 = vadd.f32 0.0, %v6744
        %v6746 = vpop.f32.mrb[0].mxu0
        %v6747 = vpop.f32.mrb[0].mxu0
        %v6748 = vadd.f32 0.0, %v6747
        %v6749 = vpop.f32.mrb[0].mxu0
        %6750 = vmatprep.mubr.bf16.mxu0 0
        %6751 = vmatmul.mubr.bf16.gmra.mrb[0].mxu0 %v6663
        %v6752 = vpop.f32.mrb[0].mxu0
        %v6753 = vadd.f32 0.0, %v6752
        %v6754 = vpop.f32.mrb[0].mxu0
        %v6755 = vpop.f32.mrb[0].mxu0
        %v6756 = vadd.f32 0.0, %v6755
        %v6757 = vpop.f32.mrb[0].mxu0
        %6758 = vmatprep.mubr.bf16.mxu0 0
        %6759 = vmatmul.mubr.bf16.gmra.mrb[0].mxu0 %v6666
        %v6760 = vpop.f32.mrb[0].mxu0
        %v6761 = vadd.f32 0.0, %v6760
        %v6762 = vpop.f32.mrb[0].mxu0
        %v6763 = vpop.f32.mrb[0].mxu0
        %v6764 = vadd.f32 0.0, %v6763
        %v6765 = vpop.f32.mrb[0].mxu0
        %6766 = vmatprep.mubr.bf16.mxu0 0
        %6767 = vmatmul.mubr.bf16.gmra.mrb[0].mxu0 %v6669
        %v6768 = vpop.f32.mrb[0].mxu0
        %v6769 = vadd.f32 0.0, %v6768
        %v6770 = vpop.f32.mrb[0].mxu0
        %v6771 = vpop.f32.mrb[0].mxu0
        %v6772 = vadd.f32 0.0, %v6771
        %v6773 = vpop.f32.mrb[0].mxu0
        %6774 = vmatprep.mubr.bf16.mxu0 0
        %6775 = vmatmul.mubr.bf16.gmra.mrb[0].mxu0 %v6672
        %v6776 = vpop.f32.mrb[0].mxu0
        %v6777 = vadd.f32 0.0, %v6776
        %v6778 = vpop.f32.mrb[0].mxu0
        %v6779 = vpop.f32.mrb[0].mxu0
        %v6780 = vadd.f32 0.0, %v6779
        %v6781 = vpop.f32.mrb[0].mxu0
        %6782 = vmatprep.mubr.bf16.mxu0 0
        %6783 = vmatmul.mubr.bf16.gmra.mrb[0].mxu0 %v6675
        %v6784 = vpop.f32.mrb[0].mxu0
        %v6785 = vadd.f32 0.0, %v6784
        %v6786 = vpop.f32.mrb[0].mxu0
        %v6787 = vpop.f32.mrb[0].mxu0
        %v6788 = vadd.f32 0.0, %v6787
        %v6789 = vpop.f32.mrb[0].mxu0
        %6790 = vmatprep.mubr.bf16.mxu0 0
        %6791 = vmatmul.mubr.bf16.gmra.mrb[0].mxu0 %v6678
        %v6792 = vpop.f32.mrb[0].mxu0
        %v6793 = vadd.f32 0.0, %v6792
        %v6794 = vpop.f32.mrb[0].mxu0
        %v6795 = vpop.f32.mrb[0].mxu0
        %v6796 = vadd.f32 0.0, %v6795
        %v6797 = vpop.f32.mrb[0].mxu0
        %6798 = vmatprep.mubr.bf16.mxu0 0
        %6799 = vmatmul.mubr.bf16.gmra.mrb[0].mxu0 %v6681
        %v6800 = vpop.f32.mrb[0].mxu0
        %v6801 = vadd.f32 0.0, %v6800
        %v6802 = vpop.f32.mrb[0].mxu0
        %v6803 = vpop.f32.mrb[0].mxu0
        %v6804 = vadd.f32 0.0, %v6803
        %v6805 = vpop.f32.mrb[0].mxu0
        %6806 = vmatprep.mubr.bf16.mxu0 0
        %6807 = vmatmul.mubr.bf16.gmra.mrb[0].mxu0 %v6684
        %v6808 = vpop.f32.mrb[0].mxu0
        %v6809 = vadd.f32 0.0, %v6808
        %v6810 = vpop.f32.mrb[0].mxu0
        %v6811 = vpop.f32.mrb[0].mxu0
        %v6812 = vadd.f32 0.0, %v6811
        %v6813 = vpop.f32.mrb[0].mxu0
        %6814 = vmatprep.mubr.bf16.mxu0 0
        %6815 = vmatmul.mubr.bf16.gmra.mrb[0].mxu0 %v6687
        %v6816 = vpop.f32.mrb[0].mxu0
        %v6817 = vadd.f32 0.0, %v6816
        %v6818 = vpop.f32.mrb[0].mxu0
        %v6819 = vpop.f32.mrb[0].mxu0
        %v6820 = vadd.f32 0.0, %v6819
        %v6821 = vpop.f32.mrb[0].mxu0
        %6822 = vmatprep.mubr.bf16.mxu0 0
        %6823 = vmatmul.mubr.bf16.gmra.mrb[0].mxu0 %v6690
        %v6824 = vpop.f32.mrb[0].mxu0
        %v6825 = vadd.f32 0.0, %v6824
        %v6826 = vpop.f32.mrb[0].mxu0
        %v6827 = vpop.f32.mrb[0].mxu0
        %v6828 = vadd.f32 0.0, %v6827
        %v6829 = vpop.f32.mrb[0].mxu0
        %6830 = vmatprep.mubr.bf16.mxu0 0
        %6831 = vmatmul.mubr.bf16.gmra.mrb[0].mxu0 %v6693
        %v6832 = vpop.f32.mrb[0].mxu0
        %v6833 = vadd.f32 0.0, %v6832
        %v6834 = vpop.f32.mrb[0].mxu0
        %v6835 = vpop.f32.mrb[0].mxu0
        %v6836 = vadd.f32 0.0, %v6835
        %v6837 = vpop.f32.mrb[0].mxu0
        %6838 = vmatprep.mubr.bf16.mxu0 0
        %6839 = vmatmul.mubr.bf16.gmra.mrb[0].mxu0 %v6696
        %v6840 = vpop.f32.mrb[0].mxu0
        %v6841 = vadd.f32 0.0, %v6840
        %v6842 = vpop.f32.mrb[0].mxu0
        %v6843 = vpop.f32.mrb[0].mxu0
        %v6844 = vadd.f32 0.0, %v6843
        %v6845 = vpop.f32.mrb[0].mxu0
        %6846 = vmatprep.mubr.bf16.mxu0 0
        %6847 = vmatmul.mubr.bf16.gmra.mrb[0].mxu0 %v6699
        %v6848 = vpop.f32.mrb[0].mxu0
        %v6849 = vadd.f32 0.0, %v6848
        %v6850 = vpop.f32.mrb[0].mxu0
        %v6851 = vpop.f32.mrb[0].mxu0
        %v6852 = vadd.f32 0.0, %v6851
        %v6853 = vpop.f32.mrb[0].mxu0
        %6854 = vmatprep.mubr.bf16.mxu0 0
        %6855 = vmatmul.mubr.bf16.gmra.mrb[0].mxu0 %v6702
        %v6856 = vpop.f32.mrb[0].mxu0
        %v6857 = vadd.f32 0.0, %v6856
        %v6858 = vpop.f32.mrb[0].mxu0
        %v6859 = vpop.f32.mrb[0].mxu0
        %v6860 = vadd.f32 0.0, %v6859
        %v6861 = vpop.f32.mrb[0].mxu0
        %6862 = vmatprep.mubr.bf16.mxu0 0
        %6863 = vmatmul.mubr.bf16.gmra.mrb[0].mxu0 %v6705
        %v6864 = vpop.f32.mrb[0].mxu0
        %v6865 = vadd.f32 0.0, %v6864
        %v6866 = vpop.f32.mrb[0].mxu0
        %v6867 = vpop.f32.mrb[0].mxu0
        %v6868 = vadd.f32 0.0, %v6867
        %v6869 = vpop.f32.mrb[0].mxu0
        %6870 = vdwg.mxu0
        %v6874 = vunpack.c.l.b16 %v6422
        %v6875 = vunpack.c.l.b16 %v6423
        %v6876 = vunpack.c.l.b16 %v6424
        %v6877 = vpack.c.b16 %v6875, %v6874
        %v6878 = vpack.c.b16 %v6876, %v6876
        %v6881 = vsel %vm2561, %v6384, 0
        %v6884 = vsel %vm2561, %v6385, 0
        %v6887 = vsel %vm2561, %v6386, 0
        %v6890 = vsel %vm2561, %v6387, 0
        %v6893 = vsel %vm2561, %v6388, 0
        %v6896 = vsel %vm2561, %v6389, 0
        %v6899 = vsel %vm2561, %v6390, 0
        %v6902 = vsel %vm2561, %v6391, 0
        %v6905 = vsel %vm2561, %v6392, 0
        %v6908 = vsel %vm2561, %v6393, 0
        %v6911 = vsel %vm2561, %v6394, 0
        %v6914 = vsel %vm2561, %v6395, 0
        %v6917 = vsel %vm2561, %v6396, 0
        %v6920 = vsel %vm2561, %v6397, 0
        %v6923 = vsel %vm2561, %v6398, 0
        %v6926 = vsel %vm2561, %v6399, 0
        %v6929 = vsel %vm6485, %v6878, 0
        %6931 = vmatprep.subr.bf16.mxu0 0
        %6932 = vmatpush1.bf16.msra.mxu0 %v6877
        %6933 = vmatprep.subr.bf16.mxu0 0
        %6934 = vmatpush1.bf16.msra.mxu0 %v6929
        %6935 = vmatprep.subr.bf16.mxu0 0
        %6936 = vmatpush1.bf16.msra.mxu0 0
        %6937 = vmatprep.subr.bf16.mxu0 0
        %6938 = vmatpush1.bf16.msra.mxu0 0
        %6939 = vmatprep.subr.bf16.mxu0 0
        %6940 = vmatpush1.bf16.msra.mxu0 0
        %6941 = vmatprep.subr.bf16.mxu0 0
        %6942 = vmatpush1.bf16.msra.mxu0 0
        %6943 = vmatprep.subr.bf16.mxu0 0
        %6944 = vmatpush1.bf16.msra.mxu0 0
        %6945 = vmatprep.subr.bf16.mxu0 0
        %6946 = vmatpush1.bf16.msra.mxu0 0
        %6947 = vmatprep.subr.bf16.mxu0 0
        %6948 = vmatpush1.bf16.msra.mxu0 0
        %6949 = vmatprep.subr.bf16.mxu0 0
        %6950 = vmatpush1.bf16.msra.mxu0 0
        %6951 = vmatprep.subr.bf16.mxu0 0
        %6952 = vmatpush1.bf16.msra.mxu0 0
        %6953 = vmatprep.subr.bf16.mxu0 0
        %6954 = vmatpush1.bf16.msra.mxu0 0
        %6955 = vmatprep.subr.bf16.mxu0 0
        %6956 = vmatpush1.bf16.msra.mxu0 0
        %6957 = vmatprep.subr.bf16.mxu0 0
        %6958 = vmatpush1.bf16.msra.mxu0 0
        %6959 = vmatprep.subr.bf16.mxu0 0
        %6960 = vmatpush1.bf16.msra.mxu0 0
        %6961 = vmatprep.subr.bf16.mxu0 0
        %6962 = vmatpush1.bf16.msra.mxu0 0
        %6963 = vmatprep.mubr.bf16.mxu0 0
        %6964 = vmatmul.mubr.bf16.gmra.mrb[0].mxu0 %v6881
        %v6965 = vpop.f32.mrb[0].mxu0
        %v6966 = vadd.f32 0.0, %v6965
        %v6967 = vpop.f32.mrb[0].mxu0
        %v6968 = vpop.f32.mrb[0].mxu0
        %v6969 = vadd.f32 0.0, %v6968
        %v6970 = vpop.f32.mrb[0].mxu0
        %6971 = vmatprep.mubr.bf16.mxu0 0
        %6972 = vmatmul.mubr.bf16.gmra.mrb[0].mxu0 %v6884
        %v6973 = vpop.f32.mrb[0].mxu0
        %v6974 = vadd.f32 0.0, %v6973
        %v6975 = vpop.f32.mrb[0].mxu0
        %v6976 = vpop.f32.mrb[0].mxu0
        %v6977 = vadd.f32 0.0, %v6976
        %v6978 = vpop.f32.mrb[0].mxu0
        %6979 = vmatprep.mubr.bf16.mxu0 0
        %6980 = vmatmul.mubr.bf16.gmra.mrb[0].mxu0 %v6887
        %v6981 = vpop.f32.mrb[0].mxu0
        %v6982 = vadd.f32 0.0, %v6981
        %v6983 = vpop.f32.mrb[0].mxu0
        %v6984 = vpop.f32.mrb[0].mxu0
        %v6985 = vadd.f32 0.0, %v6984
        %v6986 = vpop.f32.mrb[0].mxu0
        %6987 = vmatprep.mubr.bf16.mxu0 0
        %6988 = vmatmul.mubr.bf16.gmra.mrb[0].mxu0 %v6890
        %v6989 = vpop.f32.mrb[0].mxu0
        %v6990 = vadd.f32 0.0, %v6989
        %v6991 = vpop.f32.mrb[0].mxu0
        %v6992 = vpop.f32.mrb[0].mxu0
        %v6993 = vadd.f32 0.0, %v6992
        %v6994 = vpop.f32.mrb[0].mxu0
        %6995 = vmatprep.mubr.bf16.mxu0 0
        %6996 = vmatmul.mubr.bf16.gmra.mrb[0].mxu0 %v6893
        %v6997 = vpop.f32.mrb[0].mxu0
        %v6998 = vadd.f32 0.0, %v6997
        %v6999 = vpop.f32.mrb[0].mxu0
        %v7000 = vpop.f32.mrb[0].mxu0
        %v7001 = vadd.f32 0.0, %v7000
        %v7002 = vpop.f32.mrb[0].mxu0
        %7003 = vmatprep.mubr.bf16.mxu0 0
        %7004 = vmatmul.mubr.bf16.gmra.mrb[0].mxu0 %v6896
        %v7005 = vpop.f32.mrb[0].mxu0
        %v7006 = vadd.f32 0.0, %v7005
        %v7007 = vpop.f32.mrb[0].mxu0
        %v7008 = vpop.f32.mrb[0].mxu0
        %v7009 = vadd.f32 0.0, %v7008
        %v7010 = vpop.f32.mrb[0].mxu0
        %7011 = vmatprep.mubr.bf16.mxu0 0
        %7012 = vmatmul.mubr.bf16.gmra.mrb[0].mxu0 %v6899
        %v7013 = vpop.f32.mrb[0].mxu0
        %v7014 = vadd.f32 0.0, %v7013
        %v7015 = vpop.f32.mrb[0].mxu0
        %v7016 = vpop.f32.mrb[0].mxu0
        %v7017 = vadd.f32 0.0, %v7016
        %v7018 = vpop.f32.mrb[0].mxu0
        %7019 = vmatprep.mubr.bf16.mxu0 0
        %7020 = vmatmul.mubr.bf16.gmra.mrb[0].mxu0 %v6902
        %v7021 = vpop.f32.mrb[0].mxu0
        %v7022 = vadd.f32 0.0, %v7021
        %v7023 = vpop.f32.mrb[0].mxu0
        %v7024 = vpop.f32.mrb[0].mxu0
        %v7025 = vadd.f32 0.0, %v7024
        %v7026 = vpop.f32.mrb[0].mxu0
        %7027 = vmatprep.mubr.bf16.mxu0 0
        %7028 = vmatmul.mubr.bf16.gmra.mrb[0].mxu0 %v6905
        %v7029 = vpop.f32.mrb[0].mxu0
        %v7030 = vadd.f32 0.0, %v7029
        %v7031 = vpop.f32.mrb[0].mxu0
        %v7032 = vpop.f32.mrb[0].mxu0
        %v7033 = vadd.f32 0.0, %v7032
        %v7034 = vpop.f32.mrb[0].mxu0
        %7035 = vmatprep.mubr.bf16.mxu0 0
        %7036 = vmatmul.mubr.bf16.gmra.mrb[0].mxu0 %v6908
        %v7037 = vpop.f32.mrb[0].mxu0
        %v7038 = vadd.f32 0.0, %v7037
        %v7039 = vpop.f32.mrb[0].mxu0
        %v7040 = vpop.f32.mrb[0].mxu0
        %v7041 = vadd.f32 0.0, %v7040
        %v7042 = vpop.f32.mrb[0].mxu0
        %7043 = vmatprep.mubr.bf16.mxu0 0
        %7044 = vmatmul.mubr.bf16.gmra.mrb[0].mxu0 %v6911
        %v7045 = vpop.f32.mrb[0].mxu0
        %v7046 = vadd.f32 0.0, %v7045
        %v7047 = vpop.f32.mrb[0].mxu0
        %v7048 = vpop.f32.mrb[0].mxu0
        %v7049 = vadd.f32 0.0, %v7048
        %v7050 = vpop.f32.mrb[0].mxu0
        %7051 = vmatprep.mubr.bf16.mxu0 0
        %7052 = vmatmul.mubr.bf16.gmra.mrb[0].mxu0 %v6914
        %v7053 = vpop.f32.mrb[0].mxu0
        %v7054 = vadd.f32 0.0, %v7053
        %v7055 = vpop.f32.mrb[0].mxu0
        %v7056 = vpop.f32.mrb[0].mxu0
        %v7057 = vadd.f32 0.0, %v7056
        %v7058 = vpop.f32.mrb[0].mxu0
        %7059 = vmatprep.mubr.bf16.mxu0 0
        %7060 = vmatmul.mubr.bf16.gmra.mrb[0].mxu0 %v6917
        %v7061 = vpop.f32.mrb[0].mxu0
        %v7062 = vadd.f32 0.0, %v7061
        %v7063 = vpop.f32.mrb[0].mxu0
        %v7064 = vpop.f32.mrb[0].mxu0
        %v7065 = vadd.f32 0.0, %v7064
        %v7066 = vpop.f32.mrb[0].mxu0
        %7067 = vmatprep.mubr.bf16.mxu0 0
        %7068 = vmatmul.mubr.bf16.gmra.mrb[0].mxu0 %v6920
        %v7069 = vpop.f32.mrb[0].mxu0
        %v7070 = vadd.f32 0.0, %v7069
        %v7071 = vpop.f32.mrb[0].mxu0
        %v7072 = vpop.f32.mrb[0].mxu0
        %v7073 = vadd.f32 0.0, %v7072
        %v7074 = vpop.f32.mrb[0].mxu0
        %7075 = vmatprep.mubr.bf16.mxu0 0
        %7076 = vmatmul.mubr.bf16.gmra.mrb[0].mxu0 %v6923
        %v7077 = vpop.f32.mrb[0].mxu0
        %v7078 = vadd.f32 0.0, %v7077
        %v7079 = vpop.f32.mrb[0].mxu0
        %v7080 = vpop.f32.mrb[0].mxu0
        %v7081 = vadd.f32 0.0, %v7080
        %v7082 = vpop.f32.mrb[0].mxu0
        %7083 = vmatprep.mubr.bf16.mxu0 0
        %7084 = vmatmul.mubr.bf16.gmra.mrb[0].mxu0 %v6926
        %v7085 = vpop.f32.mrb[0].mxu0
        %v7086 = vadd.f32 0.0, %v7085
        %v7087 = vpop.f32.mrb[0].mxu0
        %v7088 = vpop.f32.mrb[0].mxu0
        %v7089 = vadd.f32 0.0, %v7088
        %v7090 = vpop.f32.mrb[0].mxu0
        %7091 = vdwg.mxu0
        %v7095 = vunpack.c.l.b16 %v6425
        %v7096 = vunpack.c.l.b16 %v6426
        %v7097 = vunpack.c.l.b16 %v6427
        %v7098 = vpack.c.b16 %v7096, %v7095
        %v7099 = vpack.c.b16 %v7097, %v7097
        %v7102 = vsel %vm2561, %v6400, 0
        %v7105 = vsel %vm2561, %v6401, 0
        %v7108 = vsel %vm2561, %v6402, 0
        %v7111 = vsel %vm2561, %v6403, 0
        %v7114 = vsel %vm2561, %v6404, 0
        %v7117 = vsel %vm2561, %v6405, 0
        %v7120 = vsel %vm2561, %v6406, 0
        %v7123 = vsel %vm2561, %v6407, 0
        %v7126 = vsel %vm2561, %v6408, 0
        %v7129 = vsel %vm2561, %v6409, 0
        %v7132 = vsel %vm2561, %v6410, 0
        %v7135 = vsel %vm2561, %v6411, 0
        %v7138 = vsel %vm2561, %v6412, 0
        %v7141 = vsel %vm2561, %v6413, 0
        %v7144 = vsel %vm2561, %v6414, 0
        %v7147 = vsel %vm2561, %v6415, 0
        %v7150 = vsel %vm6485, %v7099, 0
        %7152 = vmatprep.subr.bf16.mxu0 0
        %7153 = vmatpush1.bf16.msra.mxu0 %v7098
        %7154 = vmatprep.subr.bf16.mxu0 0
        %7155 = vmatpush1.bf16.msra.mxu0 %v7150
        %7156 = vmatprep.subr.bf16.mxu0 0
        %7157 = vmatpush1.bf16.msra.mxu0 0
        %7158 = vmatprep.subr.bf16.mxu0 0
        %7159 = vmatpush1.bf16.msra.mxu0 0
        %7160 = vmatprep.subr.bf16.mxu0 0
        %7161 = vmatpush1.bf16.msra.mxu0 0
        %7162 = vmatprep.subr.bf16.mxu0 0
        %7163 = vmatpush1.bf16.msra.mxu0 0
        %7164 = vmatprep.subr.bf16.mxu0 0
        %7165 = vmatpush1.bf16.msra.mxu0 0
        %7166 = vmatprep.subr.bf16.mxu0 0
        %7167 = vmatpush1.bf16.msra.mxu0 0
        %7168 = vmatprep.subr.bf16.mxu0 0
        %7169 = vmatpush1.bf16.msra.mxu0 0
        %7170 = vmatprep.subr.bf16.mxu0 0
        %7171 = vmatpush1.bf16.msra.mxu0 0
        %7172 = vmatprep.subr.bf16.mxu0 0
        %7173 = vmatpush1.bf16.msra.mxu0 0
        %7174 = vmatprep.subr.bf16.mxu0 0
        %7175 = vmatpush1.bf16.msra.mxu0 0
        %7176 = vmatprep.subr.bf16.mxu0 0
        %7177 = vmatpush1.bf16.msra.mxu0 0
        %7178 = vmatprep.subr.bf16.mxu0 0
        %7179 = vmatpush1.bf16.msra.mxu0 0
        %7180 = vmatprep.subr.bf16.mxu0 0
        %7181 = vmatpush1.bf16.msra.mxu0 0
        %7182 = vmatprep.subr.bf16.mxu0 0
        %7183 = vmatpush1.bf16.msra.mxu0 0
        %7184 = vmatprep.mubr.bf16.mxu0 0
        %7185 = vmatmul.mubr.bf16.gmra.mrb[0].mxu0 %v7102
        %v7186 = vpop.f32.mrb[0].mxu0
        %v7187 = vadd.f32 0.0, %v7186
        %v7188 = vpop.f32.mrb[0].mxu0
        %v7189 = vpop.f32.mrb[0].mxu0
        %v7190 = vadd.f32 0.0, %v7189
        %v7191 = vpop.f32.mrb[0].mxu0
        %7192 = vmatprep.mubr.bf16.mxu0 0
        %7193 = vmatmul.mubr.bf16.gmra.mrb[0].mxu0 %v7105
        %v7194 = vpop.f32.mrb[0].mxu0
        %v7195 = vadd.f32 0.0, %v7194
        %v7196 = vpop.f32.mrb[0].mxu0
        %v7197 = vpop.f32.mrb[0].mxu0
        %v7198 = vadd.f32 0.0, %v7197
        %v7199 = vpop.f32.mrb[0].mxu0
        %7200 = vmatprep.mubr.bf16.mxu0 0
        %7201 = vmatmul.mubr.bf16.gmra.mrb[0].mxu0 %v7108
        %v7202 = vpop.f32.mrb[0].mxu0
        %v7203 = vadd.f32 0.0, %v7202
        %v7204 = vpop.f32.mrb[0].mxu0
        %v7205 = vpop.f32.mrb[0].mxu0
        %v7206 = vadd.f32 0.0, %v7205
        %v7207 = vpop.f32.mrb[0].mxu0
        %7208 = vmatprep.mubr.bf16.mxu0 0
        %7209 = vmatmul.mubr.bf16.gmra.mrb[0].mxu0 %v7111
        %v7210 = vpop.f32.mrb[0].mxu0
        %v7211 = vadd.f32 0.0, %v7210
        %v7212 = vpop.f32.mrb[0].mxu0
        %v7213 = vpop.f32.mrb[0].mxu0
        %v7214 = vadd.f32 0.0, %v7213
        %v7215 = vpop.f32.mrb[0].mxu0
        %7216 = vmatprep.mubr.bf16.mxu0 0
        %7217 = vmatmul.mubr.bf16.gmra.mrb[0].mxu0 %v7114
        %v7218 = vpop.f32.mrb[0].mxu0
        %v7219 = vadd.f32 0.0, %v7218
        %v7220 = vpop.f32.mrb[0].mxu0
        %v7221 = vpop.f32.mrb[0].mxu0
        %v7222 = vadd.f32 0.0, %v7221
        %v7223 = vpop.f32.mrb[0].mxu0
        %7224 = vmatprep.mubr.bf16.mxu0 0
        %7225 = vmatmul.mubr.bf16.gmra.mrb[0].mxu0 %v7117
        %v7226 = vpop.f32.mrb[0].mxu0
        %v7227 = vadd.f32 0.0, %v7226
        %v7228 = vpop.f32.mrb[0].mxu0
        %v7229 = vpop.f32.mrb[0].mxu0
        %v7230 = vadd.f32 0.0, %v7229
        %v7231 = vpop.f32.mrb[0].mxu0
        %7232 = vmatprep.mubr.bf16.mxu0 0
        %7233 = vmatmul.mubr.bf16.gmra.mrb[0].mxu0 %v7120
        %v7234 = vpop.f32.mrb[0].mxu0
        %v7235 = vadd.f32 0.0, %v7234
        %v7236 = vpop.f32.mrb[0].mxu0
        %v7237 = vpop.f32.mrb[0].mxu0
        %v7238 = vadd.f32 0.0, %v7237
        %v7239 = vpop.f32.mrb[0].mxu0
        %7240 = vmatprep.mubr.bf16.mxu0 0
        %7241 = vmatmul.mubr.bf16.gmra.mrb[0].mxu0 %v7123
        %v7242 = vpop.f32.mrb[0].mxu0
        %v7243 = vadd.f32 0.0, %v7242
        %v7244 = vpop.f32.mrb[0].mxu0
        %v7245 = vpop.f32.mrb[0].mxu0
        %v7246 = vadd.f32 0.0, %v7245
        %v7247 = vpop.f32.mrb[0].mxu0
        %7248 = vmatprep.mubr.bf16.mxu0 0
        %7249 = vmatmul.mubr.bf16.gmra.mrb[0].mxu0 %v7126
        %v7250 = vpop.f32.mrb[0].mxu0
        %v7251 = vadd.f32 0.0, %v7250
        %v7252 = vpop.f32.mrb[0].mxu0
        %v7253 = vpop.f32.mrb[0].mxu0
        %v7254 = vadd.f32 0.0, %v7253
        %v7255 = vpop.f32.mrb[0].mxu0
        %7256 = vmatprep.mubr.bf16.mxu0 0
        %7257 = vmatmul.mubr.bf16.gmra.mrb[0].mxu0 %v7129
        %v7258 = vpop.f32.mrb[0].mxu0
        %v7259 = vadd.f32 0.0, %v7258
        %v7260 = vpop.f32.mrb[0].mxu0
        %v7261 = vpop.f32.mrb[0].mxu0
        %v7262 = vadd.f32 0.0, %v7261
        %v7263 = vpop.f32.mrb[0].mxu0
        %7264 = vmatprep.mubr.bf16.mxu0 0
        %7265 = vmatmul.mubr.bf16.gmra.mrb[0].mxu0 %v7132
        %v7266 = vpop.f32.mrb[0].mxu0
        %v7267 = vadd.f32 0.0, %v7266
        %v7268 = vpop.f32.mrb[0].mxu0
        %v7269 = vpop.f32.mrb[0].mxu0
        %v7270 = vadd.f32 0.0, %v7269
        %v7271 = vpop.f32.mrb[0].mxu0
        %7272 = vmatprep.mubr.bf16.mxu0 0
        %7273 = vmatmul.mubr.bf16.gmra.mrb[0].mxu0 %v7135
        %v7274 = vpop.f32.mrb[0].mxu0
        %v7275 = vadd.f32 0.0, %v7274
        %v7276 = vpop.f32.mrb[0].mxu0
        %v7277 = vpop.f32.mrb[0].mxu0
        %v7278 = vadd.f32 0.0, %v7277
        %v7279 = vpop.f32.mrb[0].mxu0
        %7280 = vmatprep.mubr.bf16.mxu0 0
        %7281 = vmatmul.mubr.bf16.gmra.mrb[0].mxu0 %v7138
        %v7282 = vpop.f32.mrb[0].mxu0
        %v7283 = vadd.f32 0.0, %v7282
        %v7284 = vpop.f32.mrb[0].mxu0
        %v7285 = vpop.f32.mrb[0].mxu0
        %v7286 = vadd.f32 0.0, %v7285
        %v7287 = vpop.f32.mrb[0].mxu0
        %7288 = vmatprep.mubr.bf16.mxu0 0
        %7289 = vmatmul.mubr.bf16.gmra.mrb[0].mxu0 %v7141
        %v7290 = vpop.f32.mrb[0].mxu0
        %v7291 = vadd.f32 0.0, %v7290
        %v7292 = vpop.f32.mrb[0].mxu0
        %v7293 = vpop.f32.mrb[0].mxu0
        %v7294 = vadd.f32 0.0, %v7293
        %v7295 = vpop.f32.mrb[0].mxu0
        %7296 = vmatprep.mubr.bf16.mxu0 0
        %7297 = vmatmul.mubr.bf16.gmra.mrb[0].mxu0 %v7144
        %v7298 = vpop.f32.mrb[0].mxu0
        %v7299 = vadd.f32 0.0, %v7298
        %v7300 = vpop.f32.mrb[0].mxu0
        %v7301 = vpop.f32.mrb[0].mxu0
        %v7302 = vadd.f32 0.0, %v7301
        %v7303 = vpop.f32.mrb[0].mxu0
        %7304 = vmatprep.mubr.bf16.mxu0 0
        %7305 = vmatmul.mubr.bf16.gmra.mrb[0].mxu0 %v7147
        %v7306 = vpop.f32.mrb[0].mxu0
        %v7307 = vadd.f32 0.0, %v7306
        %v7308 = vpop.f32.mrb[0].mxu0
        %v7309 = vpop.f32.mrb[0].mxu0
        %v7310 = vadd.f32 0.0, %v7309
        %v7311 = vpop.f32.mrb[0].mxu0
        %7312 = vdwg.mxu0
        %v7313 = vsel %vm585, %v6524, 0.0
        %v7314 = vsel %vm585, %v6745, 0.0
        %v7315 = vadd.f32 %v7313, %v7314
        %v7316 = vsel %vm585, %v6966, 0.0
        %v7317 = vadd.f32 %v7315, %v7316
        %v7318 = vsel %vm585, %v7187, 0.0
        %v7319 = vadd.f32 %v7317, %v7318
        %v7320 = vsel %vm585, %v6527, 0.0
        %v7321 = vsel %vm585, %v6748, 0.0
        %v7322 = vadd.f32 %v7320, %v7321
        %v7323 = vsel %vm585, %v6969, 0.0
        %v7324 = vadd.f32 %v7322, %v7323
        %v7325 = vsel %vm585, %v7190, 0.0
        %v7326 = vadd.f32 %v7324, %v7325
        %v7327 = vsel %vm585, %v6532, 0.0
        %v7328 = vsel %vm585, %v6753, 0.0
        %v7329 = vadd.f32 %v7327, %v7328
        %v7330 = vsel %vm585, %v6974, 0.0
        %v7331 = vadd.f32 %v7329, %v7330
        %v7332 = vsel %vm585, %v7195, 0.0
        %v7333 = vadd.f32 %v7331, %v7332
        %v7334 = vsel %vm585, %v6535, 0.0
        %v7335 = vsel %vm585, %v6756, 0.0
        %v7336 = vadd.f32 %v7334, %v7335
        %v7337 = vsel %vm585, %v6977, 0.0
        %v7338 = vadd.f32 %v7336, %v7337
        %v7339 = vsel %vm585, %v7198, 0.0
        %v7340 = vadd.f32 %v7338, %v7339
        %v7341 = vsel %vm585, %v6540, 0.0
        %v7342 = vsel %vm585, %v6761, 0.0
        %v7343 = vadd.f32 %v7341, %v7342
        %v7344 = vsel %vm585, %v6982, 0.0
        %v7345 = vadd.f32 %v7343, %v7344
        %v7346 = vsel %vm585, %v7203, 0.0
        %v7347 = vadd.f32 %v7345, %v7346
        %v7348 = vsel %vm585, %v6543, 0.0
        %v7349 = vsel %vm585, %v6764, 0.0
        %v7350 = vadd.f32 %v7348, %v7349
        %v7351 = vsel %vm585, %v6985, 0.0
        %v7352 = vadd.f32 %v7350, %v7351
        %v7353 = vsel %vm585, %v7206, 0.0
        %v7354 = vadd.f32 %v7352, %v7353
        %v7355 = vsel %vm585, %v6548, 0.0
        %v7356 = vsel %vm585, %v6769, 0.0
        %v7357 = vadd.f32 %v7355, %v7356
        %v7358 = vsel %vm585, %v6990, 0.0
        %v7359 = vadd.f32 %v7357, %v7358
        %v7360 = vsel %vm585, %v7211, 0.0
        %v7361 = vadd.f32 %v7359, %v7360
        %v7362 = vsel %vm585, %v6551, 0.0
        %v7363 = vsel %vm585, %v6772, 0.0
        %v7364 = vadd.f32 %v7362, %v7363
        %v7365 = vsel %vm585, %v6993, 0.0
        %v7366 = vadd.f32 %v7364, %v7365
        %v7367 = vsel %vm585, %v7214, 0.0
        %v7368 = vadd.f32 %v7366, %v7367
        %v7369 = vsel %vm585, %v6556, 0.0
        %v7370 = vsel %vm585, %v6777, 0.0
        %v7371 = vadd.f32 %v7369, %v7370
        %v7372 = vsel %vm585, %v6998, 0.0
        %v7373 = vadd.f32 %v7371, %v7372
        %v7374 = vsel %vm585, %v7219, 0.0
        %v7375 = vadd.f32 %v7373, %v7374
        %v7376 = vsel %vm585, %v6559, 0.0
        %v7377 = vsel %vm585, %v6780, 0.0
        %v7378 = vadd.f32 %v7376, %v7377
        %v7379 = vsel %vm585, %v7001, 0.0
        %v7380 = vadd.f32 %v7378, %v7379
        %v7381 = vsel %vm585, %v7222, 0.0
        %v7382 = vadd.f32 %v7380, %v7381
        %v7383 = vsel %vm585, %v6564, 0.0
        %v7384 = vsel %vm585, %v6785, 0.0
        %v7385 = vadd.f32 %v7383, %v7384
        %v7386 = vsel %vm585, %v7006, 0.0
        %v7387 = vadd.f32 %v7385, %v7386
        %v7388 = vsel %vm585, %v7227, 0.0
        %v7389 = vadd.f32 %v7387, %v7388
        %v7390 = vsel %vm585, %v6567, 0.0
        %v7391 = vsel %vm585, %v6788, 0.0
        %v7392 = vadd.f32 %v7390, %v7391
        %v7393 = vsel %vm585, %v7009, 0.0
        %v7394 = vadd.f32 %v7392, %v7393
        %v7395 = vsel %vm585, %v7230, 0.0
        %v7396 = vadd.f32 %v7394, %v7395
        %v7397 = vsel %vm585, %v6572, 0.0
        %v7398 = vsel %vm585, %v6793, 0.0
        %v7399 = vadd.f32 %v7397, %v7398
        %v7400 = vsel %vm585, %v7014, 0.0
        %v7401 = vadd.f32 %v7399, %v7400
        %v7402 = vsel %vm585, %v7235, 0.0
        %v7403 = vadd.f32 %v7401, %v7402
        %v7404 = vsel %vm585, %v6575, 0.0
        %v7405 = vsel %vm585, %v6796, 0.0
        %v7406 = vadd.f32 %v7404, %v7405
        %v7407 = vsel %vm585, %v7017, 0.0
        %v7408 = vadd.f32 %v7406, %v7407
        %v7409 = vsel %vm585, %v7238, 0.0
        %v7410 = vadd.f32 %v7408, %v7409
        %v7411 = vsel %vm585, %v6580, 0.0
        %v7412 = vsel %vm585, %v6801, 0.0
        %v7413 = vadd.f32 %v7411, %v7412
        %v7414 = vsel %vm585, %v7022, 0.0
        %v7415 = vadd.f32 %v7413, %v7414
        %v7416 = vsel %vm585, %v7243, 0.0
        %v7417 = vadd.f32 %v7415, %v7416
        %v7418 = vsel %vm585, %v6583, 0.0
        %v7419 = vsel %vm585, %v6804, 0.0
        %v7420 = vadd.f32 %v7418, %v7419
        %v7421 = vsel %vm585, %v7025, 0.0
        %v7422 = vadd.f32 %v7420, %v7421
        %v7423 = vsel %vm585, %v7246, 0.0
        %v7424 = vadd.f32 %v7422, %v7423
        %v7425 = vsel %vm585, %v6588, 0.0
        %v7426 = vsel %vm585, %v6809, 0.0
        %v7427 = vadd.f32 %v7425, %v7426
        %v7428 = vsel %vm585, %v7030, 0.0
        %v7429 = vadd.f32 %v7427, %v7428
        %v7430 = vsel %vm585, %v7251, 0.0
        %v7431 = vadd.f32 %v7429, %v7430
        %v7432 = vsel %vm585, %v6591, 0.0
        %v7433 = vsel %vm585, %v6812, 0.0
        %v7434 = vadd.f32 %v7432, %v7433
        %v7435 = vsel %vm585, %v7033, 0.0
        %v7436 = vadd.f32 %v7434, %v7435
        %v7437 = vsel %vm585, %v7254, 0.0
        %v7438 = vadd.f32 %v7436, %v7437
        %v7439 = vsel %vm585, %v6596, 0.0
        %v7440 = vsel %vm585, %v6817, 0.0
        %v7441 = vadd.f32 %v7439, %v7440
        %v7442 = vsel %vm585, %v7038, 0.0
        %v7443 = vadd.f32 %v7441, %v7442
        %v7444 = vsel %vm585, %v7259, 0.0
        %v7445 = vadd.f32 %v7443, %v7444
        %v7446 = vsel %vm585, %v6599, 0.0
        %v7447 = vsel %vm585, %v6820, 0.0
        %v7448 = vadd.f32 %v7446, %v7447
        %v7449 = vsel %vm585, %v7041, 0.0
        %v7450 = vadd.f32 %v7448, %v7449
        %v7451 = vsel %vm585, %v7262, 0.0
        %v7452 = vadd.f32 %v7450, %v7451
        %v7453 = vsel %vm585, %v6604, 0.0
        %v7454 = vsel %vm585, %v6825, 0.0
        %v7455 = vadd.f32 %v7453, %v7454
        %v7456 = vsel %vm585, %v7046, 0.0
        %v7457 = vadd.f32 %v7455, %v7456
        %v7458 = vsel %vm585, %v7267, 0.0
        %v7459 = vadd.f32 %v7457, %v7458
        %v7460 = vsel %vm585, %v6607, 0.0
        %v7461 = vsel %vm585, %v6828, 0.0
        %v7462 = vadd.f32 %v7460, %v7461
        %v7463 = vsel %vm585, %v7049, 0.0
        %v7464 = vadd.f32 %v7462, %v7463
        %v7465 = vsel %vm585, %v7270, 0.0
        %v7466 = vadd.f32 %v7464, %v7465
        %v7467 = vsel %vm585, %v6612, 0.0
        %v7468 = vsel %vm585, %v6833, 0.0
        %v7469 = vadd.f32 %v7467, %v7468
        %v7470 = vsel %vm585, %v7054, 0.0
        %v7471 = vadd.f32 %v7469, %v7470
        %v7472 = vsel %vm585, %v7275, 0.0
        %v7473 = vadd.f32 %v7471, %v7472
        %v7474 = vsel %vm585, %v6615, 0.0
        %v7475 = vsel %vm585, %v6836, 0.0
        %v7476 = vadd.f32 %v7474, %v7475
        %v7477 = vsel %vm585, %v7057, 0.0
        %v7478 = vadd.f32 %v7476, %v7477
        %v7479 = vsel %vm585, %v7278, 0.0
        %v7480 = vadd.f32 %v7478, %v7479
        %v7481 = vsel %vm585, %v6620, 0.0
        %v7482 = vsel %vm585, %v6841, 0.0
        %v7483 = vadd.f32 %v7481, %v7482
        %v7484 = vsel %vm585, %v7062, 0.0
        %v7485 = vadd.f32 %v7483, %v7484
        %v7486 = vsel %vm585, %v7283, 0.0
        %v7487 = vadd.f32 %v7485, %v7486
        %v7488 = vsel %vm585, %v6623, 0.0
        %v7489 = vsel %vm585, %v6844, 0.0
        %v7490 = vadd.f32 %v7488, %v7489
        %v7491 = vsel %vm585, %v7065, 0.0
        %v7492 = vadd.f32 %v7490, %v7491
        %v7493 = vsel %vm585, %v7286, 0.0
        %v7494 = vadd.f32 %v7492, %v7493
        %v7495 = vsel %vm585, %v6628, 0.0
        %v7496 = vsel %vm585, %v6849, 0.0
        %v7497 = vadd.f32 %v7495, %v7496
        %v7498 = vsel %vm585, %v7070, 0.0
        %v7499 = vadd.f32 %v7497, %v7498
        %v7500 = vsel %vm585, %v7291, 0.0
        %v7501 = vadd.f32 %v7499, %v7500
        %v7502 = vsel %vm585, %v6631, 0.0
        %v7503 = vsel %vm585, %v6852, 0.0
        %v7504 = vadd.f32 %v7502, %v7503
        %v7505 = vsel %vm585, %v7073, 0.0
        %v7506 = vadd.f32 %v7504, %v7505
        %v7507 = vsel %vm585, %v7294, 0.0
        %v7508 = vadd.f32 %v7506, %v7507
        %v7509 = vsel %vm585, %v6636, 0.0
        %v7510 = vsel %vm585, %v6857, 0.0
        %v7511 = vadd.f32 %v7509, %v7510
        %v7512 = vsel %vm585, %v7078, 0.0
        %v7513 = vadd.f32 %v7511, %v7512
        %v7514 = vsel %vm585, %v7299, 0.0
        %v7515 = vadd.f32 %v7513, %v7514
        %v7516 = vsel %vm585, %v6639, 0.0
        %v7517 = vsel %vm585, %v6860, 0.0
        %v7518 = vadd.f32 %v7516, %v7517
        %v7519 = vsel %vm585, %v7081, 0.0
        %v7520 = vadd.f32 %v7518, %v7519
        %v7521 = vsel %vm585, %v7302, 0.0
        %v7522 = vadd.f32 %v7520, %v7521
        %v7523 = vsel %vm585, %v6644, 0.0
        %v7524 = vsel %vm585, %v6865, 0.0
        %v7525 = vadd.f32 %v7523, %v7524
        %v7526 = vsel %vm585, %v7086, 0.0
        %v7527 = vadd.f32 %v7525, %v7526
        %v7528 = vsel %vm585, %v7307, 0.0
        %v7529 = vadd.f32 %v7527, %v7528
        %v7530 = vsel %vm585, %v6647, 0.0
        %v7531 = vsel %vm585, %v6868, 0.0
        %v7532 = vadd.f32 %v7530, %v7531
        %v7533 = vsel %vm585, %v7089, 0.0
        %v7534 = vadd.f32 %v7532, %v7533
        %v7535 = vsel %vm585, %v7310, 0.0
        %v7536 = vadd.f32 %v7534, %v7535
        %v7537 = vld [vmem:[%s6] sm:$0x1]
        %v7539 = vlaneseq
        %v7540 = vshrl.u32 %v7539, 7
        %v7541 = vsub.s32 0, %v7540
        %v7542 = vrot.slane %v7537, %v7541
        %v7544 = vadd.f32 %v7319, %v7542
        %v7545 = vadd.f32 %v7326, %v7542
        %v7546 = vadd.f32 %v7333, %v7542
        %v7547 = vadd.f32 %v7340, %v7542
        %v7548 = vadd.f32 %v7347, %v7542
        %v7549 = vadd.f32 %v7354, %v7542
        %v7550 = vadd.f32 %v7361, %v7542
        %v7551 = vadd.f32 %v7368, %v7542
        %v7552 = vadd.f32 %v7375, %v7542
        %v7553 = vadd.f32 %v7382, %v7542
        %v7554 = vadd.f32 %v7389, %v7542
        %v7555 = vadd.f32 %v7396, %v7542
        %v7556 = vadd.f32 %v7403, %v7542
        %v7557 = vadd.f32 %v7410, %v7542
        %v7558 = vadd.f32 %v7417, %v7542
        %v7559 = vadd.f32 %v7424, %v7542
        %v7560 = vadd.f32 %v7431, %v7542
        %v7561 = vadd.f32 %v7438, %v7542
        %v7562 = vadd.f32 %v7445, %v7542
        %v7563 = vadd.f32 %v7452, %v7542
        %v7564 = vadd.f32 %v7459, %v7542
        %v7565 = vadd.f32 %v7466, %v7542
        %v7566 = vadd.f32 %v7473, %v7542
        %v7567 = vadd.f32 %v7480, %v7542
        %v7568 = vadd.f32 %v7487, %v7542
        %v7569 = vadd.f32 %v7494, %v7542
        %v7570 = vadd.f32 %v7501, %v7542
        %v7571 = vadd.f32 %v7508, %v7542
        %v7572 = vadd.f32 %v7515, %v7542
        %v7573 = vadd.f32 %v7522, %v7542
        %v7574 = vadd.f32 %v7529, %v7542
        %v7575 = vadd.f32 %v7536, %v7542
        %7576 = vst.msk [vmem:[%s366] sm:$0xff] %vm585, %v7544
        %7577 = vst.msk [vmem:[%s366 + $0x8] sm:$0xff] %vm585, %v7545
        %7578 = vst.msk [vmem:[%s366 + $0x10] sm:$0xff] %vm585, %v7546
        %7579 = vst.msk [vmem:[%s366 + $0x18] sm:$0xff] %vm585, %v7547
        %7580 = vst.msk [vmem:[%s366 + $0x20] sm:$0xff] %vm585, %v7548
        %7581 = vst.msk [vmem:[%s366 + $0x28] sm:$0xff] %vm585, %v7549
        %7582 = vst.msk [vmem:[%s366 + $0x30] sm:$0xff] %vm585, %v7550
        %7583 = vst.msk [vmem:[%s366 + $0x38] sm:$0xff] %vm585, %v7551
        %7584 = vst.msk [vmem:[%s366 + $0x40] sm:$0xff] %vm585, %v7552
        %7585 = vst.msk [vmem:[%s366 + $0x48] sm:$0xff] %vm585, %v7553
        %7586 = vst.msk [vmem:[%s366 + $0x50] sm:$0xff] %vm585, %v7554
        %7587 = vst.msk [vmem:[%s366 + $0x58] sm:$0xff] %vm585, %v7555
        %7588 = vst.msk [vmem:[%s366 + $0x60] sm:$0xff] %vm585, %v7556
        %7589 = vst.msk [vmem:[%s366 + $0x68] sm:$0xff] %vm585, %v7557
        %7590 = vst.msk [vmem:[%s366 + $0x70] sm:$0xff] %vm585, %v7558
        %7591 = vst.msk [vmem:[%s366 + $0x78] sm:$0xff] %vm585, %v7559
        %7592 = vst.msk [vmem:[%s366 + $0x80] sm:$0xff] %vm585, %v7560
        %7593 = vst.msk [vmem:[%s366 + $0x88] sm:$0xff] %vm585, %v7561
        %7594 = vst.msk [vmem:[%s366 + $0x90] sm:$0xff] %vm585, %v7562
        %7595 = vst.msk [vmem:[%s366 + $0x98] sm:$0xff] %vm585, %v7563
        %7596 = vst.msk [vmem:[%s366 + $0xa0] sm:$0xff] %vm585, %v7564
        %7597 = vst.msk [vmem:[%s366 + $0xa8] sm:$0xff] %vm585, %v7565
        %7598 = vst.msk [vmem:[%s366 + $0xb0] sm:$0xff] %vm585, %v7566
        %7599 = vst.msk [vmem:[%s366 + $0xb8] sm:$0xff] %vm585, %v7567
        %7600 = vst.msk [vmem:[%s366 + $0xc0] sm:$0xff] %vm585, %v7568
        %7601 = vst.msk [vmem:[%s366 + $0xc8] sm:$0xff] %vm585, %v7569
        %7602 = vst.msk [vmem:[%s366 + $0xd0] sm:$0xff] %vm585, %v7570
        %7603 = vst.msk [vmem:[%s366 + $0xd8] sm:$0xff] %vm585, %v7571
        %7604 = vst.msk [vmem:[%s366 + $0xe0] sm:$0xff] %vm585, %v7572
        %7605 = vst.msk [vmem:[%s366 + $0xe8] sm:$0xff] %vm585, %v7573
        %7606 = vst.msk [vmem:[%s366 + $0xf0] sm:$0xff] %vm585, %v7574
        %7607 = vst.msk [vmem:[%s366 + $0xf8] sm:$0xff] %vm585, %v7575
        %s7608 = sand.u32 %s248, 1
        %s7609 = scalar_lea.sflag [#allocation3], %s7608
        %s7610 = sand.u32 %s248, 1
        %s7611 = smul.addr %s7610, 256
        %s7612 = scalar_lea.vmem [#allocation5], %s7611
        // Predicated region
        $region65: #{cluster_forward.1} parent=59 // pred_check
          %p7613 = pneg %p258
        $region66: #{cluster_forward.1} parent=59 // pred_check_branch
          %7615 = sbr.rel (%p7613) target = $region68
        $region67: #{cluster_forward.1} parent=59 // pred_region
          %s7617 = ssub.s32 4096, 4096
          %7618 = vsyncadd %s7609, %s7617
          %s7619 = smul.addr %s25, 32
          %s7620 = smul.addr %s7619, 128
          %s7621 = scalar_lea.hbm %s10, %s7620
          %s7622 = sshll.u32 %s7612, 4
          %s7623 = int_to_ptr.vmem [resolvable:$true] %s7622
          %7628 = dma.vmem_to_hbm [thread:$0]  %s7623, 4096, %s7621, %s7609, 128, 128, 8
        $region68: #{cluster_forward.1} parent=59 // pred_fallthru
          _
      $region60: #{cluster_forward.1} parent=5 // pred_fallthru
        _
      %p7629 = scmp.le.s32.totalorder 2, %s20
      // Predicated region
      $region69: #{cluster_forward.1} parent=5 // pred_check
        %p7630 = pneg %p7629
      $region70: #{cluster_forward.1} parent=5 // pred_check_branch
        %7632 = sbr.rel (%p7630) target = $region72
      $region71: #{cluster_forward.1} parent=5 // pred_region
        %s7633 = ssub.s32 %s20, 2
        // Predicated region
        $region73: #{cluster_forward.1} parent=71 // pred_check
          %p7634 = pneg %p264
        $region74: #{cluster_forward.1} parent=71 // pred_check_branch
          %7636 = sbr.rel (%p7634) target = $region76
        $region75: #{cluster_forward.1} parent=71 // pred_region
          %s7637 = sand.u32 %s249, 1
          %s7638 = scalar_lea.sflag [#allocation3], %s7637
          %s7639 = sand.u32 %s249, 1
          %s7640 = smul.addr %s7639, 256
          %s7641 = scalar_lea.vmem [#allocation5], %s7640
          %7642 = dma.done %s7638, 4096
        $region76: #{cluster_forward.1} parent=71 // pred_fallthru
          _
      $region72: #{cluster_forward.1} parent=5 // pred_fallthru
        _
    $region6: #{cluster_forward.1} parent=1 // loop_footer
      %s24 = sadd.s32 1, %s20
    $region7: #{cluster_forward.1} parent=1 // loop_footer_branch
      %19 = sbr.rel target = $region3
    $region8: #{cluster_forward.1} parent=1 // loop_exit
      _
    %7643 = vsyncpa [#allocation3], 1
    %s7644 = scalar_lea.sflag [#allocation3], 1
    %7645 = vsyncpa %s7644, 1
    %7646 = vsyncpa [#allocation4], 1
    %s7647 = scalar_lea.sflag [#allocation4], 1
    %7648 = vsyncpa %s7647, 1

</llo_original>
